<compile_context>
chip_gen: v7x
topology: tpu7x:2x2x1
jax: 0.10.0
libtpu: 0.0.40
codegen_flags: <defaults>
</compile_context>

<pallas_src>
import functools

import jax
import jax.numpy as jnp
from jax import lax
from jax.experimental import pallas as pl
from jax.experimental.pallas import tpu as pltpu

# ---- small synthetic config (consistent with the module's __init__) ----
INPUT_RES = 16
PATCH = 4
WIDTH = 32
LAYERS = 2
HEADS = 4
OUTPUT_DIM = 16
BATCH = 2
HEAD_DIM = WIDTH // HEADS                      # 8
NUM_PATCHES = (INPUT_RES // PATCH) ** 2        # 16
SEQ = NUM_PATCHES + 1                          # 17 (16 patches + CLS)
EPS = 1e-5


# ============================ fused Pallas kernel ============================

def _layernorm(v, g, b):
    """Row-wise LayerNorm over the last dim in fp32 (matches torch LayerNorm subclass)."""
    mean = jnp.mean(v, axis=-1, keepdims=True)
    c = v - mean
    var = jnp.mean(c * c, axis=-1, keepdims=True)
    return c * lax.rsqrt(var + EPS) * g + b


def _vit_kernel(patches_ref, convw_ref, cls_ref, pos_ref,
                lnpre_g_ref, lnpre_b_ref,
                ln1_g_ref, ln1_b_ref, wqkv_ref, bqkv_ref, wo_ref, bo_ref,
                ln2_g_ref, ln2_b_ref, wfc_ref, bfc_ref, wcp_ref, bcp_ref,
                lnpost_g_ref, lnpost_b_ref, proj_ref,
                out_ref,
                *, batch, seq, width, heads, layers):
    f32 = jnp.float32
    head_dim = width // heads
    n = batch * seq

    # --- patch embedding: conv(stride=kernel, no bias) as a matmul.
    #     CLS slots were zero-padded patch rows, so they come out exactly zero. ---
    x = jnp.dot(patches_ref[...].astype(f32), convw_ref[...].astype(f32),
                preferred_element_type=f32)                              # (B*S, D)

    # --- insert class embedding at s == 0 of each batch, add positional embedding ---
    row = lax.broadcasted_iota(jnp.int32, (n, width), 0)
    is_cls = row == 0
    for b in range(1, batch):
        is_cls = jnp.logical_or(is_cls, row == b * seq)
    x = jnp.where(is_cls, cls_ref[...].astype(f32), x)
    pos = pos_ref[...].astype(f32)                                       # (S, D)
    x = x + jnp.concatenate([pos] * batch, axis=0)                       # (B*S, D)

    # --- ln_pre ---
    x = _layernorm(x, lnpre_g_ref[...].astype(f32), lnpre_b_ref[...].astype(f32))

    scale = 1.0 / float(head_dim) ** 0.5

    for l in range(layers):
        # ---------------- multi-head self-attention ----------------
        xn = _layernorm(x, ln1_g_ref[l].astype(f32), ln1_b_ref[l].astype(f32))
        qkv = jnp.dot(xn, wqkv_ref[l].astype(f32),
                      preferred_element_type=f32) + bqkv_ref[l].astype(f32)   # (B*S, 3D)
        wo = wo_ref[l].astype(f32)                                            # (D, D)

        per_batch = []
        for b in range(batch):
            qkv_b = lax.slice(qkv, (b * seq, 0), ((b + 1) * seq, 3 * width))  # (S, 3D)
            acc = None
            for h in range(heads):
                c0 = h * head_dim
                qh = lax.slice(qkv_b, (0, c0), (seq, c0 + head_dim)) * scale
                kh = lax.slice(qkv_b, (0, width + c0), (seq, width + c0 + head_dim))
                vh = lax.slice(qkv_b, (0, 2 * width + c0), (seq, 2 * width + c0 + head_dim))
                s = lax.dot_general(qh, kh, (((1,), (1,)), ((), ())),
                                    preferred_element_type=f32)               # (S, S)
                s = s - jnp.max(s, axis=-1, keepdims=True)
                p = jnp.exp(s)
                p = p * pl.reciprocal(jnp.sum(p, axis=-1, keepdims=True), approx=True)
                oh = jnp.dot(p, vh, preferred_element_type=f32)               # (S, Dh)
                # fold out_proj per head: concat_h(oh) @ Wo == sum_h oh @ Wo[rows_h]
                contrib = jnp.dot(oh, lax.slice(wo, (c0, 0), (c0 + head_dim, width)),
                                  preferred_element_type=f32)                 # (S, D)
                acc = contrib if acc is None else acc + contrib
            per_batch.append(acc)
        ao = jnp.concatenate(per_batch, axis=0) + bo_ref[l].astype(f32)       # (B*S, D)
        x = x + ao                                                            # residual

        # ---------------- MLP (c_fc -> QuickGELU -> c_proj) ----------------
        xn2 = _layernorm(x, ln2_g_ref[l].astype(f32), ln2_b_ref[l].astype(f32))
        hdn = jnp.dot(xn2, wfc_ref[l].astype(f32),
                      preferred_element_type=f32) + bfc_ref[l].astype(f32)    # (B*S, 4D)
        hdn = hdn * jax.nn.sigmoid(1.702 * hdn)                               # QuickGELU
        x = x + jnp.dot(hdn, wcp_ref[l].astype(f32),
                        preferred_element_type=f32) + bcp_ref[l].astype(f32)  # residual

    # --- ln_post on the CLS rows, final projection (no bias) ---
    xcls = jnp.concatenate(
        [lax.slice(x, (b * seq, 0), (b * seq + 1, width)) for b in range(batch)], axis=0)
    xcls = _layernorm(xcls, lnpost_g_ref[...].astype(f32), lnpost_b_ref[...].astype(f32))
    out = jnp.dot(xcls, proj_ref[...].astype(f32), preferred_element_type=f32)
    out_ref[...] = out.astype(out_ref.dtype)


# ============================ wrapper (plain-JAX layout glue only) ============================

def vision_transformer_forward(x, params):
    """x: (B, 3, H, W) NCHW -> (B, OUTPUT_DIM). One fused pallas_call."""
    B, C, H, W = x.shape
    p = PATCH
    gh, gw = H // p, W // p
    seq = gh * gw + 1

    # patchify in (channel, ph, pw) flatten order (matches conv weight flatten), and
    # reserve a zero row per batch at s == 0 for the CLS slot.
    patches = x.reshape(B, C, gh, p, gw, p).transpose(0, 2, 4, 1, 3, 5)
    patches = patches.reshape(B, gh * gw, C * p * p)
    patches = jnp.pad(patches, ((0, 0), (1, 0), (0, 0)))
    patches = patches.reshape(B * seq, C * p * p)

    kernel = functools.partial(_vit_kernel, batch=B, seq=seq, width=WIDTH,
                               heads=HEADS, layers=LAYERS)
    args = (patches, params["conv_w"], params["class_embedding"],
            params["positional_embedding"], params["ln_pre_g"], params["ln_pre_b"],
            params["ln1_g"], params["ln1_b"], params["wqkv"], params["bqkv"],
            params["wo"], params["bo"], params["ln2_g"], params["ln2_b"],
            params["wfc"], params["bfc"], params["wcp"], params["bcp"],
            params["ln_post_g"], params["ln_post_b"], params["proj"])

    return pl.pallas_call(
        kernel,
        out_shape=jax.ShapeDtypeStruct((B, OUTPUT_DIM), x.dtype),
        in_specs=[pl.BlockSpec(memory_space=pltpu.MemorySpace.VMEM) for _ in args],
        out_specs=pl.BlockSpec(memory_space=pltpu.MemorySpace.VMEM),
    )(*args)


# ============================ deterministic parameter init ============================

def _key_stream(key):
    while True:
        key, sub = jax.random.split(key)
        yield sub


def init_params(key):
    """Weights stored pre-transposed to (in, out) and stacked per layer (one-time cost)."""
    ks = _key_stream(key)
    scale = WIDTH ** (-0.5)
    nrm = lambda shp, s: (s * jax.random.normal(next(ks), shp)).astype(jnp.float32)

    params = {
        # torch conv1 weight is (WIDTH, 3, P, P); store flattened+transposed once.
        "conv_w": nrm((WIDTH, 3, PATCH, PATCH), 0.02).reshape(WIDTH, -1).T,   # (3*P*P, D)
        "class_embedding": nrm((1, WIDTH), scale),
        "positional_embedding": nrm((SEQ, WIDTH), scale),
        "ln_pre_g": jnp.ones((1, WIDTH), jnp.float32),
        "ln_pre_b": jnp.zeros((1, WIDTH), jnp.float32),
        "ln_post_g": jnp.ones((1, WIDTH), jnp.float32),
        "ln_post_b": jnp.zeros((1, WIDTH), jnp.float32),
        "proj": nrm((WIDTH, OUTPUT_DIM), scale),
    }

    ln1_g, ln1_b, wqkv, bqkv, wo, bo = [], [], [], [], [], []
    ln2_g, ln2_b, wfc, bfc, wcp, bcp = [], [], [], [], [], []
    for _ in range(LAYERS):
        ln1_g.append(jnp.ones((1, WIDTH), jnp.float32))
        ln1_b.append(jnp.zeros((1, WIDTH), jnp.float32))
        wqkv.append(nrm((3 * WIDTH, WIDTH), 0.02).T)        # torch (3D, D) -> (D, 3D)
        bqkv.append(nrm((1, 3 * WIDTH), 0.02))
        wo.append(nrm((WIDTH, WIDTH), 0.02).T)              # torch (D, D)  -> (D, D)
        bo.append(jnp.zeros((1, WIDTH), jnp.float32))       # out_proj bias is zero-init
        ln2_g.append(jnp.ones((1, WIDTH), jnp.float32))
        ln2_b.append(jnp.zeros((1, WIDTH), jnp.float32))
        wfc.append(nrm((4 * WIDTH, WIDTH), 0.02).T)         # (D, 4D)
        bfc.append(nrm((1, 4 * WIDTH), 0.02))
        wcp.append(nrm((WIDTH, 4 * WIDTH), 0.02).T)         # (4D, D)
        bcp.append(nrm((1, WIDTH), 0.02))

    stack = lambda xs: jnp.stack(xs, axis=0).astype(jnp.float32)
    params.update(
        ln1_g=stack(ln1_g), ln1_b=stack(ln1_b), wqkv=stack(wqkv), bqkv=stack(bqkv),
        wo=stack(wo), bo=stack(bo), ln2_g=stack(ln2_g), ln2_b=stack(ln2_b),
        wfc=stack(wfc), bfc=stack(bfc), wcp=stack(wcp), bcp=stack(bcp),
    )
    return params


# ============================ main ============================

if __name__ == "__main__":
    root_key = jax.random.PRNGKey(0)
    pkey, xkey = jax.random.split(root_key)
    params = init_params(pkey)
    x = jax.random.normal(xkey, (BATCH, 3, INPUT_RES, INPUT_RES), dtype=jnp.float32)

    fwd = jax.jit(vision_transformer_forward)
    out = jax.block_until_ready(fwd(x, params))

    assert out.shape == (BATCH, OUTPUT_DIM), out.shape
    assert bool(jnp.all(jnp.isfinite(out)))
    print("KERNEL_OK")
</pallas_src>

<mosaic_0001>
module attributes {stable_mosaic.version = 11 : i64} {
  func.func @_vit_kernel(%arg0: memref<34x48xf32, #tpu.memory_space<vmem>>, %arg1: memref<48x32xf32, #tpu.memory_space<vmem>>, %arg2: memref<1x32xf32, #tpu.memory_space<vmem>>, %arg3: memref<17x32xf32, #tpu.memory_space<vmem>>, %arg4: memref<1x32xf32, #tpu.memory_space<vmem>>, %arg5: memref<1x32xf32, #tpu.memory_space<vmem>>, %arg6: memref<2x1x32xf32, #tpu.memory_space<vmem>>, %arg7: memref<2x1x32xf32, #tpu.memory_space<vmem>>, %arg8: memref<2x32x96xf32, #tpu.memory_space<vmem>>, %arg9: memref<2x1x96xf32, #tpu.memory_space<vmem>>, %arg10: memref<2x32x32xf32, #tpu.memory_space<vmem>>, %arg11: memref<2x1x32xf32, #tpu.memory_space<vmem>>, %arg12: memref<2x1x32xf32, #tpu.memory_space<vmem>>, %arg13: memref<2x1x32xf32, #tpu.memory_space<vmem>>, %arg14: memref<2x32x128xf32, #tpu.memory_space<vmem>>, %arg15: memref<2x1x128xf32, #tpu.memory_space<vmem>>, %arg16: memref<2x128x32xf32, #tpu.memory_space<vmem>>, %arg17: memref<2x1x32xf32, #tpu.memory_space<vmem>>, %arg18: memref<1x32xf32, #tpu.memory_space<vmem>>, %arg19: memref<1x32xf32, #tpu.memory_space<vmem>>, %arg20: memref<32x16xf32, #tpu.memory_space<vmem>>, %arg21: memref<2x16xf32, #tpu.memory_space<vmem>>) attributes {dimension_semantics = [], scalar_prefetch = 0 : i64, scratch_operands = 0 : i64, tpu.core_type = #tpu.core_type<tc>} {
    %c0 = arith.constant 0 : index
    %c0_0 = arith.constant 0 : index
    %0 = vector.load %arg0[%c0, %c0_0] : memref<34x48xf32, #tpu.memory_space<vmem>>, vector<34x48xf32>
    %c0_1 = arith.constant 0 : index
    %c0_2 = arith.constant 0 : index
    %1 = vector.load %arg1[%c0_1, %c0_2] : memref<48x32xf32, #tpu.memory_space<vmem>>, vector<48x32xf32>
    %cst = arith.constant dense<0.000000e+00> : vector<34x32xf32>
    %2 = tpu.matmul %0, %1, %cst {dimension_numbers = #tpu.dot_dimension_numbers<[1], [0], [0], [1], [0, 0, 1, 1], [], []>} : vector<34x48xf32>, vector<48x32xf32>, vector<34x32xf32> -> vector<34x32xf32>
    %3 = tpu.iota {dimensions = array<i32: 0>} : vector<34x32xi32>
    %c0_i32 = arith.constant 0 : i32
    %4 = vector.broadcast %c0_i32 : i32 to vector<34x32xi32>
    %5 = arith.cmpi eq, %3, %4 : vector<34x32xi32>
    %c17_i32 = arith.constant 17 : i32
    %6 = vector.broadcast %c17_i32 : i32 to vector<34x32xi32>
    %7 = arith.cmpi eq, %3, %6 : vector<34x32xi32>
    %8 = arith.ori %5, %7 : vector<34x32xi1>
    %c0_3 = arith.constant 0 : index
    %c0_4 = arith.constant 0 : index
    %9 = vector.load %arg2[%c0_3, %c0_4] : memref<1x32xf32, #tpu.memory_space<vmem>>, vector<1x32xf32>
    %10 = vector.shape_cast %9 : vector<1x32xf32> to vector<1x32xf32>
    %11 = vector.broadcast %10 : vector<1x32xf32> to vector<34x32xf32>
    %12 = arith.select %8, %11, %2 : vector<34x32xi1>, vector<34x32xf32>
    %c0_5 = arith.constant 0 : index
    %c0_6 = arith.constant 0 : index
    %13 = vector.load %arg3[%c0_5, %c0_6] : memref<17x32xf32, #tpu.memory_space<vmem>>, vector<17x32xf32>
    %14 = tpu.concatenate %13, %13 in 0 : vector<17x32xf32>, vector<17x32xf32> -> vector<34x32xf32>
    %15 = arith.addf %12, %14 : vector<34x32xf32>
    %c0_7 = arith.constant 0 : index
    %c0_8 = arith.constant 0 : index
    %16 = vector.load %arg4[%c0_7, %c0_8] : memref<1x32xf32, #tpu.memory_space<vmem>>, vector<1x32xf32>
    %c0_9 = arith.constant 0 : index
    %c0_10 = arith.constant 0 : index
    %17 = vector.load %arg5[%c0_9, %c0_10] : memref<1x32xf32, #tpu.memory_space<vmem>>, vector<1x32xf32>
    %cst_11 = arith.constant dense<0.000000e+00> : vector<34xf32>
    %18 = vector.multi_reduction <add>, %15, %cst_11 [1] : vector<34x32xf32> to vector<34xf32>
    %19 = vector.shape_cast %18 : vector<34xf32> to vector<34x1xf32>
    %cst_12 = arith.constant 3.200000e+01 : f32
    %20 = vector.broadcast %cst_12 : f32 to vector<34x1xf32>
    %21 = arith.divf %19, %20 : vector<34x1xf32>
    %22 = vector.broadcast %21 : vector<34x1xf32> to vector<34x32xf32>
    %23 = arith.subf %15, %22 : vector<34x32xf32>
    %24 = arith.mulf %23, %23 : vector<34x32xf32>
    %cst_13 = arith.constant dense<0.000000e+00> : vector<34xf32>
    %25 = vector.multi_reduction <add>, %24, %cst_13 [1] : vector<34x32xf32> to vector<34xf32>
    %26 = vector.shape_cast %25 : vector<34xf32> to vector<34x1xf32>
    %cst_14 = arith.constant 3.200000e+01 : f32
    %27 = vector.broadcast %cst_14 : f32 to vector<34x1xf32>
    %28 = arith.divf %26, %27 : vector<34x1xf32>
    %cst_15 = arith.constant 9.99999974E-6 : f32
    %29 = vector.broadcast %cst_15 : f32 to vector<34x1xf32>
    %30 = arith.addf %28, %29 : vector<34x1xf32>
    %31 = math.rsqrt %30 : vector<34x1xf32>
    %32 = vector.broadcast %31 : vector<34x1xf32> to vector<34x32xf32>
    %33 = arith.mulf %23, %32 : vector<34x32xf32>
    %34 = vector.broadcast %16 : vector<1x32xf32> to vector<34x32xf32>
    %35 = arith.mulf %33, %34 : vector<34x32xf32>
    %36 = vector.broadcast %17 : vector<1x32xf32> to vector<34x32xf32>
    %37 = arith.addf %35, %36 : vector<34x32xf32>
    %c0_16 = arith.constant 0 : index
    %c0_17 = arith.constant 0 : index
    %c0_18 = arith.constant 0 : index
    %38 = vector.load %arg6[%c0_16, %c0_17, %c0_18] : memref<2x1x32xf32, #tpu.memory_space<vmem>>, vector<1x1x32xf32>
    %39 = vector.shape_cast %38 : vector<1x1x32xf32> to vector<1x32xf32>
    %c0_19 = arith.constant 0 : index
    %c0_20 = arith.constant 0 : index
    %c0_21 = arith.constant 0 : index
    %40 = vector.load %arg7[%c0_19, %c0_20, %c0_21] : memref<2x1x32xf32, #tpu.memory_space<vmem>>, vector<1x1x32xf32>
    %41 = vector.shape_cast %40 : vector<1x1x32xf32> to vector<1x32xf32>
    %cst_22 = arith.constant dense<0.000000e+00> : vector<34xf32>
    %42 = vector.multi_reduction <add>, %37, %cst_22 [1] : vector<34x32xf32> to vector<34xf32>
    %43 = vector.shape_cast %42 : vector<34xf32> to vector<34x1xf32>
    %cst_23 = arith.constant 3.200000e+01 : f32
    %44 = vector.broadcast %cst_23 : f32 to vector<34x1xf32>
    %45 = arith.divf %43, %44 : vector<34x1xf32>
    %46 = vector.broadcast %45 : vector<34x1xf32> to vector<34x32xf32>
    %47 = arith.subf %37, %46 : vector<34x32xf32>
    %48 = arith.mulf %47, %47 : vector<34x32xf32>
    %cst_24 = arith.constant dense<0.000000e+00> : vector<34xf32>
    %49 = vector.multi_reduction <add>, %48, %cst_24 [1] : vector<34x32xf32> to vector<34xf32>
    %50 = vector.shape_cast %49 : vector<34xf32> to vector<34x1xf32>
    %cst_25 = arith.constant 3.200000e+01 : f32
    %51 = vector.broadcast %cst_25 : f32 to vector<34x1xf32>
    %52 = arith.divf %50, %51 : vector<34x1xf32>
    %cst_26 = arith.constant 9.99999974E-6 : f32
    %53 = vector.broadcast %cst_26 : f32 to vector<34x1xf32>
    %54 = arith.addf %52, %53 : vector<34x1xf32>
    %55 = math.rsqrt %54 : vector<34x1xf32>
    %56 = vector.broadcast %55 : vector<34x1xf32> to vector<34x32xf32>
    %57 = arith.mulf %47, %56 : vector<34x32xf32>
    %58 = vector.broadcast %39 : vector<1x32xf32> to vector<34x32xf32>
    %59 = arith.mulf %57, %58 : vector<34x32xf32>
    %60 = vector.broadcast %41 : vector<1x32xf32> to vector<34x32xf32>
    %61 = arith.addf %59, %60 : vector<34x32xf32>
    %c0_27 = arith.constant 0 : index
    %c0_28 = arith.constant 0 : index
    %c0_29 = arith.constant 0 : index
    %62 = vector.load %arg8[%c0_27, %c0_28, %c0_29] : memref<2x32x96xf32, #tpu.memory_space<vmem>>, vector<1x32x96xf32>
    %63 = vector.shape_cast %62 : vector<1x32x96xf32> to vector<32x96xf32>
    %cst_30 = arith.constant dense<0.000000e+00> : vector<34x96xf32>
    %64 = tpu.matmul %61, %63, %cst_30 {dimension_numbers = #tpu.dot_dimension_numbers<[1], [0], [0], [1], [0, 0, 1, 1], [], []>} : vector<34x32xf32>, vector<32x96xf32>, vector<34x96xf32> -> vector<34x96xf32>
    %c0_31 = arith.constant 0 : index
    %c0_32 = arith.constant 0 : index
    %c0_33 = arith.constant 0 : index
    %65 = vector.load %arg9[%c0_31, %c0_32, %c0_33] : memref<2x1x96xf32, #tpu.memory_space<vmem>>, vector<1x1x96xf32>
    %66 = vector.shape_cast %65 : vector<1x1x96xf32> to vector<1x96xf32>
    %67 = vector.broadcast %66 : vector<1x96xf32> to vector<34x96xf32>
    %68 = arith.addf %64, %67 : vector<34x96xf32>
    %c0_34 = arith.constant 0 : index
    %c0_35 = arith.constant 0 : index
    %c0_36 = arith.constant 0 : index
    %69 = vector.load %arg10[%c0_34, %c0_35, %c0_36] : memref<2x32x32xf32, #tpu.memory_space<vmem>>, vector<1x32x32xf32>
    %70 = vector.shape_cast %69 : vector<1x32x32xf32> to vector<32x32xf32>
    %71 = vector.extract_strided_slice %68 {offsets = [0, 0], sizes = [17, 96], strides = [1, 1]} : vector<34x96xf32> to vector<17x96xf32>
    %72 = vector.extract_strided_slice %71 {offsets = [0, 0], sizes = [17, 8], strides = [1, 1]} : vector<17x96xf32> to vector<17x8xf32>
    %cst_37 = arith.constant 0.353553385 : f32
    %73 = vector.broadcast %cst_37 : f32 to vector<17x8xf32>
    %74 = arith.mulf %72, %73 : vector<17x8xf32>
    %75 = vector.extract_strided_slice %71 {offsets = [0, 32], sizes = [17, 8], strides = [1, 1]} : vector<17x96xf32> to vector<17x8xf32>
    %76 = vector.extract_strided_slice %71 {offsets = [0, 64], sizes = [17, 8], strides = [1, 1]} : vector<17x96xf32> to vector<17x8xf32>
    %cst_38 = arith.constant dense<0.000000e+00> : vector<17x17xf32>
    %77 = tpu.matmul %74, %75, %cst_38 {dimension_numbers = #tpu.dot_dimension_numbers<[1], [1], [0], [0], [0, 0, 1, 0], [], []>} : vector<17x8xf32>, vector<17x8xf32>, vector<17x17xf32> -> vector<17x17xf32>
    %cst_39 = arith.constant dense<0xFF800000> : vector<17xf32>
    %78 = vector.multi_reduction <maximumf>, %77, %cst_39 [1] : vector<17x17xf32> to vector<17xf32>
    %79 = vector.shape_cast %78 : vector<17xf32> to vector<17x1xf32>
    %80 = vector.broadcast %79 : vector<17x1xf32> to vector<17x17xf32>
    %81 = arith.subf %77, %80 : vector<17x17xf32>
    %82 = math.exp %81 : vector<17x17xf32>
    %cst_40 = arith.constant dense<0.000000e+00> : vector<17xf32>
    %83 = vector.multi_reduction <add>, %82, %cst_40 [1] : vector<17x17xf32> to vector<17xf32>
    %84 = vector.shape_cast %83 : vector<17xf32> to vector<17x1xf32>
    %85 = tpu.reciprocal %84 {approx = true} : vector<17x1xf32> -> vector<17x1xf32>
    %86 = vector.broadcast %85 : vector<17x1xf32> to vector<17x17xf32>
    %87 = arith.mulf %82, %86 : vector<17x17xf32>
    %cst_41 = arith.constant dense<0.000000e+00> : vector<17x8xf32>
    %88 = tpu.matmul %87, %76, %cst_41 {dimension_numbers = #tpu.dot_dimension_numbers<[1], [0], [0], [1], [0, 0, 1, 1], [], []>} : vector<17x17xf32>, vector<17x8xf32>, vector<17x8xf32> -> vector<17x8xf32>
    %89 = vector.extract_strided_slice %70 {offsets = [0, 0], sizes = [8, 32], strides = [1, 1]} : vector<32x32xf32> to vector<8x32xf32>
    %cst_42 = arith.constant dense<0.000000e+00> : vector<17x32xf32>
    %90 = tpu.matmul %88, %89, %cst_42 {dimension_numbers = #tpu.dot_dimension_numbers<[1], [0], [0], [1], [0, 0, 1, 1], [], []>} : vector<17x8xf32>, vector<8x32xf32>, vector<17x32xf32> -> vector<17x32xf32>
    %91 = vector.extract_strided_slice %71 {offsets = [0, 8], sizes = [17, 8], strides = [1, 1]} : vector<17x96xf32> to vector<17x8xf32>
    %cst_43 = arith.constant 0.353553385 : f32
    %92 = vector.broadcast %cst_43 : f32 to vector<17x8xf32>
    %93 = arith.mulf %91, %92 : vector<17x8xf32>
    %94 = vector.extract_strided_slice %71 {offsets = [0, 40], sizes = [17, 8], strides = [1, 1]} : vector<17x96xf32> to vector<17x8xf32>
    %95 = vector.extract_strided_slice %71 {offsets = [0, 72], sizes = [17, 8], strides = [1, 1]} : vector<17x96xf32> to vector<17x8xf32>
    %cst_44 = arith.constant dense<0.000000e+00> : vector<17x17xf32>
    %96 = tpu.matmul %93, %94, %cst_44 {dimension_numbers = #tpu.dot_dimension_numbers<[1], [1], [0], [0], [0, 0, 1, 0], [], []>} : vector<17x8xf32>, vector<17x8xf32>, vector<17x17xf32> -> vector<17x17xf32>
    %cst_45 = arith.constant dense<0xFF800000> : vector<17xf32>
    %97 = vector.multi_reduction <maximumf>, %96, %cst_45 [1] : vector<17x17xf32> to vector<17xf32>
    %98 = vector.shape_cast %97 : vector<17xf32> to vector<17x1xf32>
    %99 = vector.broadcast %98 : vector<17x1xf32> to vector<17x17xf32>
    %100 = arith.subf %96, %99 : vector<17x17xf32>
    %101 = math.exp %100 : vector<17x17xf32>
    %cst_46 = arith.constant dense<0.000000e+00> : vector<17xf32>
    %102 = vector.multi_reduction <add>, %101, %cst_46 [1] : vector<17x17xf32> to vector<17xf32>
    %103 = vector.shape_cast %102 : vector<17xf32> to vector<17x1xf32>
    %104 = tpu.reciprocal %103 {approx = true} : vector<17x1xf32> -> vector<17x1xf32>
    %105 = vector.broadcast %104 : vector<17x1xf32> to vector<17x17xf32>
    %106 = arith.mulf %101, %105 : vector<17x17xf32>
    %cst_47 = arith.constant dense<0.000000e+00> : vector<17x8xf32>
    %107 = tpu.matmul %106, %95, %cst_47 {dimension_numbers = #tpu.dot_dimension_numbers<[1], [0], [0], [1], [0, 0, 1, 1], [], []>} : vector<17x17xf32>, vector<17x8xf32>, vector<17x8xf32> -> vector<17x8xf32>
    %108 = vector.extract_strided_slice %70 {offsets = [8, 0], sizes = [8, 32], strides = [1, 1]} : vector<32x32xf32> to vector<8x32xf32>
    %cst_48 = arith.constant dense<0.000000e+00> : vector<17x32xf32>
    %109 = tpu.matmul %107, %108, %cst_48 {dimension_numbers = #tpu.dot_dimension_numbers<[1], [0], [0], [1], [0, 0, 1, 1], [], []>} : vector<17x8xf32>, vector<8x32xf32>, vector<17x32xf32> -> vector<17x32xf32>
    %110 = arith.addf %90, %109 : vector<17x32xf32>
    %111 = vector.extract_strided_slice %71 {offsets = [0, 16], sizes = [17, 8], strides = [1, 1]} : vector<17x96xf32> to vector<17x8xf32>
    %cst_49 = arith.constant 0.353553385 : f32
    %112 = vector.broadcast %cst_49 : f32 to vector<17x8xf32>
    %113 = arith.mulf %111, %112 : vector<17x8xf32>
    %114 = vector.extract_strided_slice %71 {offsets = [0, 48], sizes = [17, 8], strides = [1, 1]} : vector<17x96xf32> to vector<17x8xf32>
    %115 = vector.extract_strided_slice %71 {offsets = [0, 80], sizes = [17, 8], strides = [1, 1]} : vector<17x96xf32> to vector<17x8xf32>
    %cst_50 = arith.constant dense<0.000000e+00> : vector<17x17xf32>
    %116 = tpu.matmul %113, %114, %cst_50 {dimension_numbers = #tpu.dot_dimension_numbers<[1], [1], [0], [0], [0, 0, 1, 0], [], []>} : vector<17x8xf32>, vector<17x8xf32>, vector<17x17xf32> -> vector<17x17xf32>
    %cst_51 = arith.constant dense<0xFF800000> : vector<17xf32>
    %117 = vector.multi_reduction <maximumf>, %116, %cst_51 [1] : vector<17x17xf32> to vector<17xf32>
    %118 = vector.shape_cast %117 : vector<17xf32> to vector<17x1xf32>
    %119 = vector.broadcast %118 : vector<17x1xf32> to vector<17x17xf32>
    %120 = arith.subf %116, %119 : vector<17x17xf32>
    %121 = math.exp %120 : vector<17x17xf32>
    %cst_52 = arith.constant dense<0.000000e+00> : vector<17xf32>
    %122 = vector.multi_reduction <add>, %121, %cst_52 [1] : vector<17x17xf32> to vector<17xf32>
    %123 = vector.shape_cast %122 : vector<17xf32> to vector<17x1xf32>
    %124 = tpu.reciprocal %123 {approx = true} : vector<17x1xf32> -> vector<17x1xf32>
    %125 = vector.broadcast %124 : vector<17x1xf32> to vector<17x17xf32>
    %126 = arith.mulf %121, %125 : vector<17x17xf32>
    %cst_53 = arith.constant dense<0.000000e+00> : vector<17x8xf32>
    %127 = tpu.matmul %126, %115, %cst_53 {dimension_numbers = #tpu.dot_dimension_numbers<[1], [0], [0], [1], [0, 0, 1, 1], [], []>} : vector<17x17xf32>, vector<17x8xf32>, vector<17x8xf32> -> vector<17x8xf32>
    %128 = vector.extract_strided_slice %70 {offsets = [16, 0], sizes = [8, 32], strides = [1, 1]} : vector<32x32xf32> to vector<8x32xf32>
    %cst_54 = arith.constant dense<0.000000e+00> : vector<17x32xf32>
    %129 = tpu.matmul %127, %128, %cst_54 {dimension_numbers = #tpu.dot_dimension_numbers<[1], [0], [0], [1], [0, 0, 1, 1], [], []>} : vector<17x8xf32>, vector<8x32xf32>, vector<17x32xf32> -> vector<17x32xf32>
    %130 = arith.addf %110, %129 : vector<17x32xf32>
    %131 = vector.extract_strided_slice %71 {offsets = [0, 24], sizes = [17, 8], strides = [1, 1]} : vector<17x96xf32> to vector<17x8xf32>
    %cst_55 = arith.constant 0.353553385 : f32
    %132 = vector.broadcast %cst_55 : f32 to vector<17x8xf32>
    %133 = arith.mulf %131, %132 : vector<17x8xf32>
    %134 = vector.extract_strided_slice %71 {offsets = [0, 56], sizes = [17, 8], strides = [1, 1]} : vector<17x96xf32> to vector<17x8xf32>
    %135 = vector.extract_strided_slice %71 {offsets = [0, 88], sizes = [17, 8], strides = [1, 1]} : vector<17x96xf32> to vector<17x8xf32>
    %cst_56 = arith.constant dense<0.000000e+00> : vector<17x17xf32>
    %136 = tpu.matmul %133, %134, %cst_56 {dimension_numbers = #tpu.dot_dimension_numbers<[1], [1], [0], [0], [0, 0, 1, 0], [], []>} : vector<17x8xf32>, vector<17x8xf32>, vector<17x17xf32> -> vector<17x17xf32>
    %cst_57 = arith.constant dense<0xFF800000> : vector<17xf32>
    %137 = vector.multi_reduction <maximumf>, %136, %cst_57 [1] : vector<17x17xf32> to vector<17xf32>
    %138 = vector.shape_cast %137 : vector<17xf32> to vector<17x1xf32>
    %139 = vector.broadcast %138 : vector<17x1xf32> to vector<17x17xf32>
    %140 = arith.subf %136, %139 : vector<17x17xf32>
    %141 = math.exp %140 : vector<17x17xf32>
    %cst_58 = arith.constant dense<0.000000e+00> : vector<17xf32>
    %142 = vector.multi_reduction <add>, %141, %cst_58 [1] : vector<17x17xf32> to vector<17xf32>
    %143 = vector.shape_cast %142 : vector<17xf32> to vector<17x1xf32>
    %144 = tpu.reciprocal %143 {approx = true} : vector<17x1xf32> -> vector<17x1xf32>
    %145 = vector.broadcast %144 : vector<17x1xf32> to vector<17x17xf32>
    %146 = arith.mulf %141, %145 : vector<17x17xf32>
    %cst_59 = arith.constant dense<0.000000e+00> : vector<17x8xf32>
    %147 = tpu.matmul %146, %135, %cst_59 {dimension_numbers = #tpu.dot_dimension_numbers<[1], [0], [0], [1], [0, 0, 1, 1], [], []>} : vector<17x17xf32>, vector<17x8xf32>, vector<17x8xf32> -> vector<17x8xf32>
    %148 = vector.extract_strided_slice %70 {offsets = [24, 0], sizes = [8, 32], strides = [1, 1]} : vector<32x32xf32> to vector<8x32xf32>
    %cst_60 = arith.constant dense<0.000000e+00> : vector<17x32xf32>
    %149 = tpu.matmul %147, %148, %cst_60 {dimension_numbers = #tpu.dot_dimension_numbers<[1], [0], [0], [1], [0, 0, 1, 1], [], []>} : vector<17x8xf32>, vector<8x32xf32>, vector<17x32xf32> -> vector<17x32xf32>
    %150 = arith.addf %130, %149 : vector<17x32xf32>
    %151 = vector.extract_strided_slice %68 {offsets = [17, 0], sizes = [17, 96], strides = [1, 1]} : vector<34x96xf32> to vector<17x96xf32>
    %152 = vector.extract_strided_slice %151 {offsets = [0, 0], sizes = [17, 8], strides = [1, 1]} : vector<17x96xf32> to vector<17x8xf32>
    %cst_61 = arith.constant 0.353553385 : f32
    %153 = vector.broadcast %cst_61 : f32 to vector<17x8xf32>
    %154 = arith.mulf %152, %153 : vector<17x8xf32>
    %155 = vector.extract_strided_slice %151 {offsets = [0, 32], sizes = [17, 8], strides = [1, 1]} : vector<17x96xf32> to vector<17x8xf32>
    %156 = vector.extract_strided_slice %151 {offsets = [0, 64], sizes = [17, 8], strides = [1, 1]} : vector<17x96xf32> to vector<17x8xf32>
    %cst_62 = arith.constant dense<0.000000e+00> : vector<17x17xf32>
    %157 = tpu.matmul %154, %155, %cst_62 {dimension_numbers = #tpu.dot_dimension_numbers<[1], [1], [0], [0], [0, 0, 1, 0], [], []>} : vector<17x8xf32>, vector<17x8xf32>, vector<17x17xf32> -> vector<17x17xf32>
    %cst_63 = arith.constant dense<0xFF800000> : vector<17xf32>
    %158 = vector.multi_reduction <maximumf>, %157, %cst_63 [1] : vector<17x17xf32> to vector<17xf32>
    %159 = vector.shape_cast %158 : vector<17xf32> to vector<17x1xf32>
    %160 = vector.broadcast %159 : vector<17x1xf32> to vector<17x17xf32>
    %161 = arith.subf %157, %160 : vector<17x17xf32>
    %162 = math.exp %161 : vector<17x17xf32>
    %cst_64 = arith.constant dense<0.000000e+00> : vector<17xf32>
    %163 = vector.multi_reduction <add>, %162, %cst_64 [1] : vector<17x17xf32> to vector<17xf32>
    %164 = vector.shape_cast %163 : vector<17xf32> to vector<17x1xf32>
    %165 = tpu.reciprocal %164 {approx = true} : vector<17x1xf32> -> vector<17x1xf32>
    %166 = vector.broadcast %165 : vector<17x1xf32> to vector<17x17xf32>
    %167 = arith.mulf %162, %166 : vector<17x17xf32>
    %cst_65 = arith.constant dense<0.000000e+00> : vector<17x8xf32>
    %168 = tpu.matmul %167, %156, %cst_65 {dimension_numbers = #tpu.dot_dimension_numbers<[1], [0], [0], [1], [0, 0, 1, 1], [], []>} : vector<17x17xf32>, vector<17x8xf32>, vector<17x8xf32> -> vector<17x8xf32>
    %169 = vector.extract_strided_slice %70 {offsets = [0, 0], sizes = [8, 32], strides = [1, 1]} : vector<32x32xf32> to vector<8x32xf32>
    %cst_66 = arith.constant dense<0.000000e+00> : vector<17x32xf32>
    %170 = tpu.matmul %168, %169, %cst_66 {dimension_numbers = #tpu.dot_dimension_numbers<[1], [0], [0], [1], [0, 0, 1, 1], [], []>} : vector<17x8xf32>, vector<8x32xf32>, vector<17x32xf32> -> vector<17x32xf32>
    %171 = vector.extract_strided_slice %151 {offsets = [0, 8], sizes = [17, 8], strides = [1, 1]} : vector<17x96xf32> to vector<17x8xf32>
    %cst_67 = arith.constant 0.353553385 : f32
    %172 = vector.broadcast %cst_67 : f32 to vector<17x8xf32>
    %173 = arith.mulf %171, %172 : vector<17x8xf32>
    %174 = vector.extract_strided_slice %151 {offsets = [0, 40], sizes = [17, 8], strides = [1, 1]} : vector<17x96xf32> to vector<17x8xf32>
    %175 = vector.extract_strided_slice %151 {offsets = [0, 72], sizes = [17, 8], strides = [1, 1]} : vector<17x96xf32> to vector<17x8xf32>
    %cst_68 = arith.constant dense<0.000000e+00> : vector<17x17xf32>
    %176 = tpu.matmul %173, %174, %cst_68 {dimension_numbers = #tpu.dot_dimension_numbers<[1], [1], [0], [0], [0, 0, 1, 0], [], []>} : vector<17x8xf32>, vector<17x8xf32>, vector<17x17xf32> -> vector<17x17xf32>
    %cst_69 = arith.constant dense<0xFF800000> : vector<17xf32>
    %177 = vector.multi_reduction <maximumf>, %176, %cst_69 [1] : vector<17x17xf32> to vector<17xf32>
    %178 = vector.shape_cast %177 : vector<17xf32> to vector<17x1xf32>
    %179 = vector.broadcast %178 : vector<17x1xf32> to vector<17x17xf32>
    %180 = arith.subf %176, %179 : vector<17x17xf32>
    %181 = math.exp %180 : vector<17x17xf32>
    %cst_70 = arith.constant dense<0.000000e+00> : vector<17xf32>
    %182 = vector.multi_reduction <add>, %181, %cst_70 [1] : vector<17x17xf32> to vector<17xf32>
    %183 = vector.shape_cast %182 : vector<17xf32> to vector<17x1xf32>
    %184 = tpu.reciprocal %183 {approx = true} : vector<17x1xf32> -> vector<17x1xf32>
    %185 = vector.broadcast %184 : vector<17x1xf32> to vector<17x17xf32>
    %186 = arith.mulf %181, %185 : vector<17x17xf32>
    %cst_71 = arith.constant dense<0.000000e+00> : vector<17x8xf32>
    %187 = tpu.matmul %186, %175, %cst_71 {dimension_numbers = #tpu.dot_dimension_numbers<[1], [0], [0], [1], [0, 0, 1, 1], [], []>} : vector<17x17xf32>, vector<17x8xf32>, vector<17x8xf32> -> vector<17x8xf32>
    %188 = vector.extract_strided_slice %70 {offsets = [8, 0], sizes = [8, 32], strides = [1, 1]} : vector<32x32xf32> to vector<8x32xf32>
    %cst_72 = arith.constant dense<0.000000e+00> : vector<17x32xf32>
    %189 = tpu.matmul %187, %188, %cst_72 {dimension_numbers = #tpu.dot_dimension_numbers<[1], [0], [0], [1], [0, 0, 1, 1], [], []>} : vector<17x8xf32>, vector<8x32xf32>, vector<17x32xf32> -> vector<17x32xf32>
    %190 = arith.addf %170, %189 : vector<17x32xf32>
    %191 = vector.extract_strided_slice %151 {offsets = [0, 16], sizes = [17, 8], strides = [1, 1]} : vector<17x96xf32> to vector<17x8xf32>
    %cst_73 = arith.constant 0.353553385 : f32
    %192 = vector.broadcast %cst_73 : f32 to vector<17x8xf32>
    %193 = arith.mulf %191, %192 : vector<17x8xf32>
    %194 = vector.extract_strided_slice %151 {offsets = [0, 48], sizes = [17, 8], strides = [1, 1]} : vector<17x96xf32> to vector<17x8xf32>
    %195 = vector.extract_strided_slice %151 {offsets = [0, 80], sizes = [17, 8], strides = [1, 1]} : vector<17x96xf32> to vector<17x8xf32>
    %cst_74 = arith.constant dense<0.000000e+00> : vector<17x17xf32>
    %196 = tpu.matmul %193, %194, %cst_74 {dimension_numbers = #tpu.dot_dimension_numbers<[1], [1], [0], [0], [0, 0, 1, 0], [], []>} : vector<17x8xf32>, vector<17x8xf32>, vector<17x17xf32> -> vector<17x17xf32>
    %cst_75 = arith.constant dense<0xFF800000> : vector<17xf32>
    %197 = vector.multi_reduction <maximumf>, %196, %cst_75 [1] : vector<17x17xf32> to vector<17xf32>
    %198 = vector.shape_cast %197 : vector<17xf32> to vector<17x1xf32>
    %199 = vector.broadcast %198 : vector<17x1xf32> to vector<17x17xf32>
    %200 = arith.subf %196, %199 : vector<17x17xf32>
    %201 = math.exp %200 : vector<17x17xf32>
    %cst_76 = arith.constant dense<0.000000e+00> : vector<17xf32>
    %202 = vector.multi_reduction <add>, %201, %cst_76 [1] : vector<17x17xf32> to vector<17xf32>
    %203 = vector.shape_cast %202 : vector<17xf32> to vector<17x1xf32>
    %204 = tpu.reciprocal %203 {approx = true} : vector<17x1xf32> -> vector<17x1xf32>
    %205 = vector.broadcast %204 : vector<17x1xf32> to vector<17x17xf32>
    %206 = arith.mulf %201, %205 : vector<17x17xf32>
    %cst_77 = arith.constant dense<0.000000e+00> : vector<17x8xf32>
    %207 = tpu.matmul %206, %195, %cst_77 {dimension_numbers = #tpu.dot_dimension_numbers<[1], [0], [0], [1], [0, 0, 1, 1], [], []>} : vector<17x17xf32>, vector<17x8xf32>, vector<17x8xf32> -> vector<17x8xf32>
    %208 = vector.extract_strided_slice %70 {offsets = [16, 0], sizes = [8, 32], strides = [1, 1]} : vector<32x32xf32> to vector<8x32xf32>
    %cst_78 = arith.constant dense<0.000000e+00> : vector<17x32xf32>
    %209 = tpu.matmul %207, %208, %cst_78 {dimension_numbers = #tpu.dot_dimension_numbers<[1], [0], [0], [1], [0, 0, 1, 1], [], []>} : vector<17x8xf32>, vector<8x32xf32>, vector<17x32xf32> -> vector<17x32xf32>
    %210 = arith.addf %190, %209 : vector<17x32xf32>
    %211 = vector.extract_strided_slice %151 {offsets = [0, 24], sizes = [17, 8], strides = [1, 1]} : vector<17x96xf32> to vector<17x8xf32>
    %cst_79 = arith.constant 0.353553385 : f32
    %212 = vector.broadcast %cst_79 : f32 to vector<17x8xf32>
    %213 = arith.mulf %211, %212 : vector<17x8xf32>
    %214 = vector.extract_strided_slice %151 {offsets = [0, 56], sizes = [17, 8], strides = [1, 1]} : vector<17x96xf32> to vector<17x8xf32>
    %215 = vector.extract_strided_slice %151 {offsets = [0, 88], sizes = [17, 8], strides = [1, 1]} : vector<17x96xf32> to vector<17x8xf32>
    %cst_80 = arith.constant dense<0.000000e+00> : vector<17x17xf32>
    %216 = tpu.matmul %213, %214, %cst_80 {dimension_numbers = #tpu.dot_dimension_numbers<[1], [1], [0], [0], [0, 0, 1, 0], [], []>} : vector<17x8xf32>, vector<17x8xf32>, vector<17x17xf32> -> vector<17x17xf32>
    %cst_81 = arith.constant dense<0xFF800000> : vector<17xf32>
    %217 = vector.multi_reduction <maximumf>, %216, %cst_81 [1] : vector<17x17xf32> to vector<17xf32>
    %218 = vector.shape_cast %217 : vector<17xf32> to vector<17x1xf32>
    %219 = vector.broadcast %218 : vector<17x1xf32> to vector<17x17xf32>
    %220 = arith.subf %216, %219 : vector<17x17xf32>
    %221 = math.exp %220 : vector<17x17xf32>
    %cst_82 = arith.constant dense<0.000000e+00> : vector<17xf32>
    %222 = vector.multi_reduction <add>, %221, %cst_82 [1] : vector<17x17xf32> to vector<17xf32>
    %223 = vector.shape_cast %222 : vector<17xf32> to vector<17x1xf32>
    %224 = tpu.reciprocal %223 {approx = true} : vector<17x1xf32> -> vector<17x1xf32>
    %225 = vector.broadcast %224 : vector<17x1xf32> to vector<17x17xf32>
    %226 = arith.mulf %221, %225 : vector<17x17xf32>
    %cst_83 = arith.constant dense<0.000000e+00> : vector<17x8xf32>
    %227 = tpu.matmul %226, %215, %cst_83 {dimension_numbers = #tpu.dot_dimension_numbers<[1], [0], [0], [1], [0, 0, 1, 1], [], []>} : vector<17x17xf32>, vector<17x8xf32>, vector<17x8xf32> -> vector<17x8xf32>
    %228 = vector.extract_strided_slice %70 {offsets = [24, 0], sizes = [8, 32], strides = [1, 1]} : vector<32x32xf32> to vector<8x32xf32>
    %cst_84 = arith.constant dense<0.000000e+00> : vector<17x32xf32>
    %229 = tpu.matmul %227, %228, %cst_84 {dimension_numbers = #tpu.dot_dimension_numbers<[1], [0], [0], [1], [0, 0, 1, 1], [], []>} : vector<17x8xf32>, vector<8x32xf32>, vector<17x32xf32> -> vector<17x32xf32>
    %230 = arith.addf %210, %229 : vector<17x32xf32>
    %231 = tpu.concatenate %150, %230 in 0 : vector<17x32xf32>, vector<17x32xf32> -> vector<34x32xf32>
    %c0_85 = arith.constant 0 : index
    %c0_86 = arith.constant 0 : index
    %c0_87 = arith.constant 0 : index
    %232 = vector.load %arg11[%c0_85, %c0_86, %c0_87] : memref<2x1x32xf32, #tpu.memory_space<vmem>>, vector<1x1x32xf32>
    %233 = vector.shape_cast %232 : vector<1x1x32xf32> to vector<1x32xf32>
    %234 = vector.broadcast %233 : vector<1x32xf32> to vector<34x32xf32>
    %235 = arith.addf %231, %234 : vector<34x32xf32>
    %236 = arith.addf %37, %235 : vector<34x32xf32>
    %c0_88 = arith.constant 0 : index
    %c0_89 = arith.constant 0 : index
    %c0_90 = arith.constant 0 : index
    %237 = vector.load %arg12[%c0_88, %c0_89, %c0_90] : memref<2x1x32xf32, #tpu.memory_space<vmem>>, vector<1x1x32xf32>
    %238 = vector.shape_cast %237 : vector<1x1x32xf32> to vector<1x32xf32>
    %c0_91 = arith.constant 0 : index
    %c0_92 = arith.constant 0 : index
    %c0_93 = arith.constant 0 : index
    %239 = vector.load %arg13[%c0_91, %c0_92, %c0_93] : memref<2x1x32xf32, #tpu.memory_space<vmem>>, vector<1x1x32xf32>
    %240 = vector.shape_cast %239 : vector<1x1x32xf32> to vector<1x32xf32>
    %cst_94 = arith.constant dense<0.000000e+00> : vector<34xf32>
    %241 = vector.multi_reduction <add>, %236, %cst_94 [1] : vector<34x32xf32> to vector<34xf32>
    %242 = vector.shape_cast %241 : vector<34xf32> to vector<34x1xf32>
    %cst_95 = arith.constant 3.200000e+01 : f32
    %243 = vector.broadcast %cst_95 : f32 to vector<34x1xf32>
    %244 = arith.divf %242, %243 : vector<34x1xf32>
    %245 = vector.broadcast %244 : vector<34x1xf32> to vector<34x32xf32>
    %246 = arith.subf %236, %245 : vector<34x32xf32>
    %247 = arith.mulf %246, %246 : vector<34x32xf32>
    %cst_96 = arith.constant dense<0.000000e+00> : vector<34xf32>
    %248 = vector.multi_reduction <add>, %247, %cst_96 [1] : vector<34x32xf32> to vector<34xf32>
    %249 = vector.shape_cast %248 : vector<34xf32> to vector<34x1xf32>
    %cst_97 = arith.constant 3.200000e+01 : f32
    %250 = vector.broadcast %cst_97 : f32 to vector<34x1xf32>
    %251 = arith.divf %249, %250 : vector<34x1xf32>
    %cst_98 = arith.constant 9.99999974E-6 : f32
    %252 = vector.broadcast %cst_98 : f32 to vector<34x1xf32>
    %253 = arith.addf %251, %252 : vector<34x1xf32>
    %254 = math.rsqrt %253 : vector<34x1xf32>
    %255 = vector.broadcast %254 : vector<34x1xf32> to vector<34x32xf32>
    %256 = arith.mulf %246, %255 : vector<34x32xf32>
    %257 = vector.broadcast %238 : vector<1x32xf32> to vector<34x32xf32>
    %258 = arith.mulf %256, %257 : vector<34x32xf32>
    %259 = vector.broadcast %240 : vector<1x32xf32> to vector<34x32xf32>
    %260 = arith.addf %258, %259 : vector<34x32xf32>
    %c0_99 = arith.constant 0 : index
    %c0_100 = arith.constant 0 : index
    %c0_101 = arith.constant 0 : index
    %261 = vector.load %arg14[%c0_99, %c0_100, %c0_101] : memref<2x32x128xf32, #tpu.memory_space<vmem>>, vector<1x32x128xf32>
    %262 = vector.shape_cast %261 : vector<1x32x128xf32> to vector<32x128xf32>
    %cst_102 = arith.constant dense<0.000000e+00> : vector<34x128xf32>
    %263 = tpu.matmul %260, %262, %cst_102 {dimension_numbers = #tpu.dot_dimension_numbers<[1], [0], [0], [1], [0, 0, 1, 1], [], []>} : vector<34x32xf32>, vector<32x128xf32>, vector<34x128xf32> -> vector<34x128xf32>
    %c0_103 = arith.constant 0 : index
    %c0_104 = arith.constant 0 : index
    %c0_105 = arith.constant 0 : index
    %264 = vector.load %arg15[%c0_103, %c0_104, %c0_105] : memref<2x1x128xf32, #tpu.memory_space<vmem>>, vector<1x1x128xf32>
    %265 = vector.shape_cast %264 : vector<1x1x128xf32> to vector<1x128xf32>
    %266 = vector.broadcast %265 : vector<1x128xf32> to vector<34x128xf32>
    %267 = arith.addf %263, %266 : vector<34x128xf32>
    %cst_106 = arith.constant 1.702000e+00 : f32
    %268 = vector.broadcast %cst_106 : f32 to vector<34x128xf32>
    %269 = arith.mulf %268, %267 : vector<34x128xf32>
    %270 = arith.negf %269 : vector<34x128xf32>
    %271 = math.exp %270 : vector<34x128xf32>
    %cst_107 = arith.constant 1.000000e+00 : f32
    %272 = vector.broadcast %cst_107 : f32 to vector<34x128xf32>
    %273 = arith.addf %272, %271 : vector<34x128xf32>
    %274 = arith.divf %272, %273 : vector<34x128xf32>
    %275 = arith.mulf %267, %274 : vector<34x128xf32>
    %c0_108 = arith.constant 0 : index
    %c0_109 = arith.constant 0 : index
    %c0_110 = arith.constant 0 : index
    %276 = vector.load %arg16[%c0_108, %c0_109, %c0_110] : memref<2x128x32xf32, #tpu.memory_space<vmem>>, vector<1x128x32xf32>
    %277 = vector.shape_cast %276 : vector<1x128x32xf32> to vector<128x32xf32>
    %cst_111 = arith.constant dense<0.000000e+00> : vector<34x32xf32>
    %278 = tpu.matmul %275, %277, %cst_111 {dimension_numbers = #tpu.dot_dimension_numbers<[1], [0], [0], [1], [0, 0, 1, 1], [], []>} : vector<34x128xf32>, vector<128x32xf32>, vector<34x32xf32> -> vector<34x32xf32>
    %279 = arith.addf %236, %278 : vector<34x32xf32>
    %c0_112 = arith.constant 0 : index
    %c0_113 = arith.constant 0 : index
    %c0_114 = arith.constant 0 : index
    %280 = vector.load %arg17[%c0_112, %c0_113, %c0_114] : memref<2x1x32xf32, #tpu.memory_space<vmem>>, vector<1x1x32xf32>
    %281 = vector.shape_cast %280 : vector<1x1x32xf32> to vector<1x32xf32>
    %282 = vector.broadcast %281 : vector<1x32xf32> to vector<34x32xf32>
    %283 = arith.addf %279, %282 : vector<34x32xf32>
    %c1 = arith.constant 1 : index
    %c0_115 = arith.constant 0 : index
    %c0_116 = arith.constant 0 : index
    %284 = vector.load %arg6[%c1, %c0_115, %c0_116] : memref<2x1x32xf32, #tpu.memory_space<vmem>>, vector<1x1x32xf32>
    %285 = vector.shape_cast %284 : vector<1x1x32xf32> to vector<1x32xf32>
    %c1_117 = arith.constant 1 : index
    %c0_118 = arith.constant 0 : index
    %c0_119 = arith.constant 0 : index
    %286 = vector.load %arg7[%c1_117, %c0_118, %c0_119] : memref<2x1x32xf32, #tpu.memory_space<vmem>>, vector<1x1x32xf32>
    %287 = vector.shape_cast %286 : vector<1x1x32xf32> to vector<1x32xf32>
    %cst_120 = arith.constant dense<0.000000e+00> : vector<34xf32>
    %288 = vector.multi_reduction <add>, %283, %cst_120 [1] : vector<34x32xf32> to vector<34xf32>
    %289 = vector.shape_cast %288 : vector<34xf32> to vector<34x1xf32>
    %cst_121 = arith.constant 3.200000e+01 : f32
    %290 = vector.broadcast %cst_121 : f32 to vector<34x1xf32>
    %291 = arith.divf %289, %290 : vector<34x1xf32>
    %292 = vector.broadcast %291 : vector<34x1xf32> to vector<34x32xf32>
    %293 = arith.subf %283, %292 : vector<34x32xf32>
    %294 = arith.mulf %293, %293 : vector<34x32xf32>
    %cst_122 = arith.constant dense<0.000000e+00> : vector<34xf32>
    %295 = vector.multi_reduction <add>, %294, %cst_122 [1] : vector<34x32xf32> to vector<34xf32>
    %296 = vector.shape_cast %295 : vector<34xf32> to vector<34x1xf32>
    %cst_123 = arith.constant 3.200000e+01 : f32
    %297 = vector.broadcast %cst_123 : f32 to vector<34x1xf32>
    %298 = arith.divf %296, %297 : vector<34x1xf32>
    %cst_124 = arith.constant 9.99999974E-6 : f32
    %299 = vector.broadcast %cst_124 : f32 to vector<34x1xf32>
    %300 = arith.addf %298, %299 : vector<34x1xf32>
    %301 = math.rsqrt %300 : vector<34x1xf32>
    %302 = vector.broadcast %301 : vector<34x1xf32> to vector<34x32xf32>
    %303 = arith.mulf %293, %302 : vector<34x32xf32>
    %304 = vector.broadcast %285 : vector<1x32xf32> to vector<34x32xf32>
    %305 = arith.mulf %303, %304 : vector<34x32xf32>
    %306 = vector.broadcast %287 : vector<1x32xf32> to vector<34x32xf32>
    %307 = arith.addf %305, %306 : vector<34x32xf32>
    %c1_125 = arith.constant 1 : index
    %c0_126 = arith.constant 0 : index
    %c0_127 = arith.constant 0 : index
    %308 = vector.load %arg8[%c1_125, %c0_126, %c0_127] : memref<2x32x96xf32, #tpu.memory_space<vmem>>, vector<1x32x96xf32>
    %309 = vector.shape_cast %308 : vector<1x32x96xf32> to vector<32x96xf32>
    %cst_128 = arith.constant dense<0.000000e+00> : vector<34x96xf32>
    %310 = tpu.matmul %307, %309, %cst_128 {dimension_numbers = #tpu.dot_dimension_numbers<[1], [0], [0], [1], [0, 0, 1, 1], [], []>} : vector<34x32xf32>, vector<32x96xf32>, vector<34x96xf32> -> vector<34x96xf32>
    %c1_129 = arith.constant 1 : index
    %c0_130 = arith.constant 0 : index
    %c0_131 = arith.constant 0 : index
    %311 = vector.load %arg9[%c1_129, %c0_130, %c0_131] : memref<2x1x96xf32, #tpu.memory_space<vmem>>, vector<1x1x96xf32>
    %312 = vector.shape_cast %311 : vector<1x1x96xf32> to vector<1x96xf32>
    %313 = vector.broadcast %312 : vector<1x96xf32> to vector<34x96xf32>
    %314 = arith.addf %310, %313 : vector<34x96xf32>
    %c1_132 = arith.constant 1 : index
    %c0_133 = arith.constant 0 : index
    %c0_134 = arith.constant 0 : index
    %315 = vector.load %arg10[%c1_132, %c0_133, %c0_134] : memref<2x32x32xf32, #tpu.memory_space<vmem>>, vector<1x32x32xf32>
    %316 = vector.shape_cast %315 : vector<1x32x32xf32> to vector<32x32xf32>
    %317 = vector.extract_strided_slice %314 {offsets = [0, 0], sizes = [17, 96], strides = [1, 1]} : vector<34x96xf32> to vector<17x96xf32>
    %318 = vector.extract_strided_slice %317 {offsets = [0, 0], sizes = [17, 8], strides = [1, 1]} : vector<17x96xf32> to vector<17x8xf32>
    %cst_135 = arith.constant 0.353553385 : f32
    %319 = vector.broadcast %cst_135 : f32 to vector<17x8xf32>
    %320 = arith.mulf %318, %319 : vector<17x8xf32>
    %321 = vector.extract_strided_slice %317 {offsets = [0, 32], sizes = [17, 8], strides = [1, 1]} : vector<17x96xf32> to vector<17x8xf32>
    %322 = vector.extract_strided_slice %317 {offsets = [0, 64], sizes = [17, 8], strides = [1, 1]} : vector<17x96xf32> to vector<17x8xf32>
    %cst_136 = arith.constant dense<0.000000e+00> : vector<17x17xf32>
    %323 = tpu.matmul %320, %321, %cst_136 {dimension_numbers = #tpu.dot_dimension_numbers<[1], [1], [0], [0], [0, 0, 1, 0], [], []>} : vector<17x8xf32>, vector<17x8xf32>, vector<17x17xf32> -> vector<17x17xf32>
    %cst_137 = arith.constant dense<0xFF800000> : vector<17xf32>
    %324 = vector.multi_reduction <maximumf>, %323, %cst_137 [1] : vector<17x17xf32> to vector<17xf32>
    %325 = vector.shape_cast %324 : vector<17xf32> to vector<17x1xf32>
    %326 = vector.broadcast %325 : vector<17x1xf32> to vector<17x17xf32>
    %327 = arith.subf %323, %326 : vector<17x17xf32>
    %328 = math.exp %327 : vector<17x17xf32>
    %cst_138 = arith.constant dense<0.000000e+00> : vector<17xf32>
    %329 = vector.multi_reduction <add>, %328, %cst_138 [1] : vector<17x17xf32> to vector<17xf32>
    %330 = vector.shape_cast %329 : vector<17xf32> to vector<17x1xf32>
    %331 = tpu.reciprocal %330 {approx = true} : vector<17x1xf32> -> vector<17x1xf32>
    %332 = vector.broadcast %331 : vector<17x1xf32> to vector<17x17xf32>
    %333 = arith.mulf %328, %332 : vector<17x17xf32>
    %cst_139 = arith.constant dense<0.000000e+00> : vector<17x8xf32>
    %334 = tpu.matmul %333, %322, %cst_139 {dimension_numbers = #tpu.dot_dimension_numbers<[1], [0], [0], [1], [0, 0, 1, 1], [], []>} : vector<17x17xf32>, vector<17x8xf32>, vector<17x8xf32> -> vector<17x8xf32>
    %335 = vector.extract_strided_slice %316 {offsets = [0, 0], sizes = [8, 32], strides = [1, 1]} : vector<32x32xf32> to vector<8x32xf32>
    %cst_140 = arith.constant dense<0.000000e+00> : vector<17x32xf32>
    %336 = tpu.matmul %334, %335, %cst_140 {dimension_numbers = #tpu.dot_dimension_numbers<[1], [0], [0], [1], [0, 0, 1, 1], [], []>} : vector<17x8xf32>, vector<8x32xf32>, vector<17x32xf32> -> vector<17x32xf32>
    %337 = vector.extract_strided_slice %317 {offsets = [0, 8], sizes = [17, 8], strides = [1, 1]} : vector<17x96xf32> to vector<17x8xf32>
    %cst_141 = arith.constant 0.353553385 : f32
    %338 = vector.broadcast %cst_141 : f32 to vector<17x8xf32>
    %339 = arith.mulf %337, %338 : vector<17x8xf32>
    %340 = vector.extract_strided_slice %317 {offsets = [0, 40], sizes = [17, 8], strides = [1, 1]} : vector<17x96xf32> to vector<17x8xf32>
    %341 = vector.extract_strided_slice %317 {offsets = [0, 72], sizes = [17, 8], strides = [1, 1]} : vector<17x96xf32> to vector<17x8xf32>
    %cst_142 = arith.constant dense<0.000000e+00> : vector<17x17xf32>
    %342 = tpu.matmul %339, %340, %cst_142 {dimension_numbers = #tpu.dot_dimension_numbers<[1], [1], [0], [0], [0, 0, 1, 0], [], []>} : vector<17x8xf32>, vector<17x8xf32>, vector<17x17xf32> -> vector<17x17xf32>
    %cst_143 = arith.constant dense<0xFF800000> : vector<17xf32>
    %343 = vector.multi_reduction <maximumf>, %342, %cst_143 [1] : vector<17x17xf32> to vector<17xf32>
    %344 = vector.shape_cast %343 : vector<17xf32> to vector<17x1xf32>
    %345 = vector.broadcast %344 : vector<17x1xf32> to vector<17x17xf32>
    %346 = arith.subf %342, %345 : vector<17x17xf32>
    %347 = math.exp %346 : vector<17x17xf32>
    %cst_144 = arith.constant dense<0.000000e+00> : vector<17xf32>
    %348 = vector.multi_reduction <add>, %347, %cst_144 [1] : vector<17x17xf32> to vector<17xf32>
    %349 = vector.shape_cast %348 : vector<17xf32> to vector<17x1xf32>
    %350 = tpu.reciprocal %349 {approx = true} : vector<17x1xf32> -> vector<17x1xf32>
    %351 = vector.broadcast %350 : vector<17x1xf32> to vector<17x17xf32>
    %352 = arith.mulf %347, %351 : vector<17x17xf32>
    %cst_145 = arith.constant dense<0.000000e+00> : vector<17x8xf32>
    %353 = tpu.matmul %352, %341, %cst_145 {dimension_numbers = #tpu.dot_dimension_numbers<[1], [0], [0], [1], [0, 0, 1, 1], [], []>} : vector<17x17xf32>, vector<17x8xf32>, vector<17x8xf32> -> vector<17x8xf32>
    %354 = vector.extract_strided_slice %316 {offsets = [8, 0], sizes = [8, 32], strides = [1, 1]} : vector<32x32xf32> to vector<8x32xf32>
    %cst_146 = arith.constant dense<0.000000e+00> : vector<17x32xf32>
    %355 = tpu.matmul %353, %354, %cst_146 {dimension_numbers = #tpu.dot_dimension_numbers<[1], [0], [0], [1], [0, 0, 1, 1], [], []>} : vector<17x8xf32>, vector<8x32xf32>, vector<17x32xf32> -> vector<17x32xf32>
    %356 = arith.addf %336, %355 : vector<17x32xf32>
    %357 = vector.extract_strided_slice %317 {offsets = [0, 16], sizes = [17, 8], strides = [1, 1]} : vector<17x96xf32> to vector<17x8xf32>
    %cst_147 = arith.constant 0.353553385 : f32
    %358 = vector.broadcast %cst_147 : f32 to vector<17x8xf32>
    %359 = arith.mulf %357, %358 : vector<17x8xf32>
    %360 = vector.extract_strided_slice %317 {offsets = [0, 48], sizes = [17, 8], strides = [1, 1]} : vector<17x96xf32> to vector<17x8xf32>
    %361 = vector.extract_strided_slice %317 {offsets = [0, 80], sizes = [17, 8], strides = [1, 1]} : vector<17x96xf32> to vector<17x8xf32>
    %cst_148 = arith.constant dense<0.000000e+00> : vector<17x17xf32>
    %362 = tpu.matmul %359, %360, %cst_148 {dimension_numbers = #tpu.dot_dimension_numbers<[1], [1], [0], [0], [0, 0, 1, 0], [], []>} : vector<17x8xf32>, vector<17x8xf32>, vector<17x17xf32> -> vector<17x17xf32>
    %cst_149 = arith.constant dense<0xFF800000> : vector<17xf32>
    %363 = vector.multi_reduction <maximumf>, %362, %cst_149 [1] : vector<17x17xf32> to vector<17xf32>
    %364 = vector.shape_cast %363 : vector<17xf32> to vector<17x1xf32>
    %365 = vector.broadcast %364 : vector<17x1xf32> to vector<17x17xf32>
    %366 = arith.subf %362, %365 : vector<17x17xf32>
    %367 = math.exp %366 : vector<17x17xf32>
    %cst_150 = arith.constant dense<0.000000e+00> : vector<17xf32>
    %368 = vector.multi_reduction <add>, %367, %cst_150 [1] : vector<17x17xf32> to vector<17xf32>
    %369 = vector.shape_cast %368 : vector<17xf32> to vector<17x1xf32>
    %370 = tpu.reciprocal %369 {approx = true} : vector<17x1xf32> -> vector<17x1xf32>
    %371 = vector.broadcast %370 : vector<17x1xf32> to vector<17x17xf32>
    %372 = arith.mulf %367, %371 : vector<17x17xf32>
    %cst_151 = arith.constant dense<0.000000e+00> : vector<17x8xf32>
    %373 = tpu.matmul %372, %361, %cst_151 {dimension_numbers = #tpu.dot_dimension_numbers<[1], [0], [0], [1], [0, 0, 1, 1], [], []>} : vector<17x17xf32>, vector<17x8xf32>, vector<17x8xf32> -> vector<17x8xf32>
    %374 = vector.extract_strided_slice %316 {offsets = [16, 0], sizes = [8, 32], strides = [1, 1]} : vector<32x32xf32> to vector<8x32xf32>
    %cst_152 = arith.constant dense<0.000000e+00> : vector<17x32xf32>
    %375 = tpu.matmul %373, %374, %cst_152 {dimension_numbers = #tpu.dot_dimension_numbers<[1], [0], [0], [1], [0, 0, 1, 1], [], []>} : vector<17x8xf32>, vector<8x32xf32>, vector<17x32xf32> -> vector<17x32xf32>
    %376 = arith.addf %356, %375 : vector<17x32xf32>
    %377 = vector.extract_strided_slice %317 {offsets = [0, 24], sizes = [17, 8], strides = [1, 1]} : vector<17x96xf32> to vector<17x8xf32>
    %cst_153 = arith.constant 0.353553385 : f32
    %378 = vector.broadcast %cst_153 : f32 to vector<17x8xf32>
    %379 = arith.mulf %377, %378 : vector<17x8xf32>
    %380 = vector.extract_strided_slice %317 {offsets = [0, 56], sizes = [17, 8], strides = [1, 1]} : vector<17x96xf32> to vector<17x8xf32>
    %381 = vector.extract_strided_slice %317 {offsets = [0, 88], sizes = [17, 8], strides = [1, 1]} : vector<17x96xf32> to vector<17x8xf32>
    %cst_154 = arith.constant dense<0.000000e+00> : vector<17x17xf32>
    %382 = tpu.matmul %379, %380, %cst_154 {dimension_numbers = #tpu.dot_dimension_numbers<[1], [1], [0], [0], [0, 0, 1, 0], [], []>} : vector<17x8xf32>, vector<17x8xf32>, vector<17x17xf32> -> vector<17x17xf32>
    %cst_155 = arith.constant dense<0xFF800000> : vector<17xf32>
    %383 = vector.multi_reduction <maximumf>, %382, %cst_155 [1] : vector<17x17xf32> to vector<17xf32>
    %384 = vector.shape_cast %383 : vector<17xf32> to vector<17x1xf32>
    %385 = vector.broadcast %384 : vector<17x1xf32> to vector<17x17xf32>
    %386 = arith.subf %382, %385 : vector<17x17xf32>
    %387 = math.exp %386 : vector<17x17xf32>
    %cst_156 = arith.constant dense<0.000000e+00> : vector<17xf32>
    %388 = vector.multi_reduction <add>, %387, %cst_156 [1] : vector<17x17xf32> to vector<17xf32>
    %389 = vector.shape_cast %388 : vector<17xf32> to vector<17x1xf32>
    %390 = tpu.reciprocal %389 {approx = true} : vector<17x1xf32> -> vector<17x1xf32>
    %391 = vector.broadcast %390 : vector<17x1xf32> to vector<17x17xf32>
    %392 = arith.mulf %387, %391 : vector<17x17xf32>
    %cst_157 = arith.constant dense<0.000000e+00> : vector<17x8xf32>
    %393 = tpu.matmul %392, %381, %cst_157 {dimension_numbers = #tpu.dot_dimension_numbers<[1], [0], [0], [1], [0, 0, 1, 1], [], []>} : vector<17x17xf32>, vector<17x8xf32>, vector<17x8xf32> -> vector<17x8xf32>
    %394 = vector.extract_strided_slice %316 {offsets = [24, 0], sizes = [8, 32], strides = [1, 1]} : vector<32x32xf32> to vector<8x32xf32>
    %cst_158 = arith.constant dense<0.000000e+00> : vector<17x32xf32>
    %395 = tpu.matmul %393, %394, %cst_158 {dimension_numbers = #tpu.dot_dimension_numbers<[1], [0], [0], [1], [0, 0, 1, 1], [], []>} : vector<17x8xf32>, vector<8x32xf32>, vector<17x32xf32> -> vector<17x32xf32>
    %396 = arith.addf %376, %395 : vector<17x32xf32>
    %397 = vector.extract_strided_slice %314 {offsets = [17, 0], sizes = [17, 96], strides = [1, 1]} : vector<34x96xf32> to vector<17x96xf32>
    %398 = vector.extract_strided_slice %397 {offsets = [0, 0], sizes = [17, 8], strides = [1, 1]} : vector<17x96xf32> to vector<17x8xf32>
    %cst_159 = arith.constant 0.353553385 : f32
    %399 = vector.broadcast %cst_159 : f32 to vector<17x8xf32>
    %400 = arith.mulf %398, %399 : vector<17x8xf32>
    %401 = vector.extract_strided_slice %397 {offsets = [0, 32], sizes = [17, 8], strides = [1, 1]} : vector<17x96xf32> to vector<17x8xf32>
    %402 = vector.extract_strided_slice %397 {offsets = [0, 64], sizes = [17, 8], strides = [1, 1]} : vector<17x96xf32> to vector<17x8xf32>
    %cst_160 = arith.constant dense<0.000000e+00> : vector<17x17xf32>
    %403 = tpu.matmul %400, %401, %cst_160 {dimension_numbers = #tpu.dot_dimension_numbers<[1], [1], [0], [0], [0, 0, 1, 0], [], []>} : vector<17x8xf32>, vector<17x8xf32>, vector<17x17xf32> -> vector<17x17xf32>
    %cst_161 = arith.constant dense<0xFF800000> : vector<17xf32>
    %404 = vector.multi_reduction <maximumf>, %403, %cst_161 [1] : vector<17x17xf32> to vector<17xf32>
    %405 = vector.shape_cast %404 : vector<17xf32> to vector<17x1xf32>
    %406 = vector.broadcast %405 : vector<17x1xf32> to vector<17x17xf32>
    %407 = arith.subf %403, %406 : vector<17x17xf32>
    %408 = math.exp %407 : vector<17x17xf32>
    %cst_162 = arith.constant dense<0.000000e+00> : vector<17xf32>
    %409 = vector.multi_reduction <add>, %408, %cst_162 [1] : vector<17x17xf32> to vector<17xf32>
    %410 = vector.shape_cast %409 : vector<17xf32> to vector<17x1xf32>
    %411 = tpu.reciprocal %410 {approx = true} : vector<17x1xf32> -> vector<17x1xf32>
    %412 = vector.broadcast %411 : vector<17x1xf32> to vector<17x17xf32>
    %413 = arith.mulf %408, %412 : vector<17x17xf32>
    %cst_163 = arith.constant dense<0.000000e+00> : vector<17x8xf32>
    %414 = tpu.matmul %413, %402, %cst_163 {dimension_numbers = #tpu.dot_dimension_numbers<[1], [0], [0], [1], [0, 0, 1, 1], [], []>} : vector<17x17xf32>, vector<17x8xf32>, vector<17x8xf32> -> vector<17x8xf32>
    %415 = vector.extract_strided_slice %316 {offsets = [0, 0], sizes = [8, 32], strides = [1, 1]} : vector<32x32xf32> to vector<8x32xf32>
    %cst_164 = arith.constant dense<0.000000e+00> : vector<17x32xf32>
    %416 = tpu.matmul %414, %415, %cst_164 {dimension_numbers = #tpu.dot_dimension_numbers<[1], [0], [0], [1], [0, 0, 1, 1], [], []>} : vector<17x8xf32>, vector<8x32xf32>, vector<17x32xf32> -> vector<17x32xf32>
    %417 = vector.extract_strided_slice %397 {offsets = [0, 8], sizes = [17, 8], strides = [1, 1]} : vector<17x96xf32> to vector<17x8xf32>
    %cst_165 = arith.constant 0.353553385 : f32
    %418 = vector.broadcast %cst_165 : f32 to vector<17x8xf32>
    %419 = arith.mulf %417, %418 : vector<17x8xf32>
    %420 = vector.extract_strided_slice %397 {offsets = [0, 40], sizes = [17, 8], strides = [1, 1]} : vector<17x96xf32> to vector<17x8xf32>
    %421 = vector.extract_strided_slice %397 {offsets = [0, 72], sizes = [17, 8], strides = [1, 1]} : vector<17x96xf32> to vector<17x8xf32>
    %cst_166 = arith.constant dense<0.000000e+00> : vector<17x17xf32>
    %422 = tpu.matmul %419, %420, %cst_166 {dimension_numbers = #tpu.dot_dimension_numbers<[1], [1], [0], [0], [0, 0, 1, 0], [], []>} : vector<17x8xf32>, vector<17x8xf32>, vector<17x17xf32> -> vector<17x17xf32>
    %cst_167 = arith.constant dense<0xFF800000> : vector<17xf32>
    %423 = vector.multi_reduction <maximumf>, %422, %cst_167 [1] : vector<17x17xf32> to vector<17xf32>
    %424 = vector.shape_cast %423 : vector<17xf32> to vector<17x1xf32>
    %425 = vector.broadcast %424 : vector<17x1xf32> to vector<17x17xf32>
    %426 = arith.subf %422, %425 : vector<17x17xf32>
    %427 = math.exp %426 : vector<17x17xf32>
    %cst_168 = arith.constant dense<0.000000e+00> : vector<17xf32>
    %428 = vector.multi_reduction <add>, %427, %cst_168 [1] : vector<17x17xf32> to vector<17xf32>
    %429 = vector.shape_cast %428 : vector<17xf32> to vector<17x1xf32>
    %430 = tpu.reciprocal %429 {approx = true} : vector<17x1xf32> -> vector<17x1xf32>
    %431 = vector.broadcast %430 : vector<17x1xf32> to vector<17x17xf32>
    %432 = arith.mulf %427, %431 : vector<17x17xf32>
    %cst_169 = arith.constant dense<0.000000e+00> : vector<17x8xf32>
    %433 = tpu.matmul %432, %421, %cst_169 {dimension_numbers = #tpu.dot_dimension_numbers<[1], [0], [0], [1], [0, 0, 1, 1], [], []>} : vector<17x17xf32>, vector<17x8xf32>, vector<17x8xf32> -> vector<17x8xf32>
    %434 = vector.extract_strided_slice %316 {offsets = [8, 0], sizes = [8, 32], strides = [1, 1]} : vector<32x32xf32> to vector<8x32xf32>
    %cst_170 = arith.constant dense<0.000000e+00> : vector<17x32xf32>
    %435 = tpu.matmul %433, %434, %cst_170 {dimension_numbers = #tpu.dot_dimension_numbers<[1], [0], [0], [1], [0, 0, 1, 1], [], []>} : vector<17x8xf32>, vector<8x32xf32>, vector<17x32xf32> -> vector<17x32xf32>
    %436 = arith.addf %416, %435 : vector<17x32xf32>
    %437 = vector.extract_strided_slice %397 {offsets = [0, 16], sizes = [17, 8], strides = [1, 1]} : vector<17x96xf32> to vector<17x8xf32>
    %cst_171 = arith.constant 0.353553385 : f32
    %438 = vector.broadcast %cst_171 : f32 to vector<17x8xf32>
    %439 = arith.mulf %437, %438 : vector<17x8xf32>
    %440 = vector.extract_strided_slice %397 {offsets = [0, 48], sizes = [17, 8], strides = [1, 1]} : vector<17x96xf32> to vector<17x8xf32>
    %441 = vector.extract_strided_slice %397 {offsets = [0, 80], sizes = [17, 8], strides = [1, 1]} : vector<17x96xf32> to vector<17x8xf32>
    %cst_172 = arith.constant dense<0.000000e+00> : vector<17x17xf32>
    %442 = tpu.matmul %439, %440, %cst_172 {dimension_numbers = #tpu.dot_dimension_numbers<[1], [1], [0], [0], [0, 0, 1, 0], [], []>} : vector<17x8xf32>, vector<17x8xf32>, vector<17x17xf32> -> vector<17x17xf32>
    %cst_173 = arith.constant dense<0xFF800000> : vector<17xf32>
    %443 = vector.multi_reduction <maximumf>, %442, %cst_173 [1] : vector<17x17xf32> to vector<17xf32>
    %444 = vector.shape_cast %443 : vector<17xf32> to vector<17x1xf32>
    %445 = vector.broadcast %444 : vector<17x1xf32> to vector<17x17xf32>
    %446 = arith.subf %442, %445 : vector<17x17xf32>
    %447 = math.exp %446 : vector<17x17xf32>
    %cst_174 = arith.constant dense<0.000000e+00> : vector<17xf32>
    %448 = vector.multi_reduction <add>, %447, %cst_174 [1] : vector<17x17xf32> to vector<17xf32>
    %449 = vector.shape_cast %448 : vector<17xf32> to vector<17x1xf32>
    %450 = tpu.reciprocal %449 {approx = true} : vector<17x1xf32> -> vector<17x1xf32>
    %451 = vector.broadcast %450 : vector<17x1xf32> to vector<17x17xf32>
    %452 = arith.mulf %447, %451 : vector<17x17xf32>
    %cst_175 = arith.constant dense<0.000000e+00> : vector<17x8xf32>
    %453 = tpu.matmul %452, %441, %cst_175 {dimension_numbers = #tpu.dot_dimension_numbers<[1], [0], [0], [1], [0, 0, 1, 1], [], []>} : vector<17x17xf32>, vector<17x8xf32>, vector<17x8xf32> -> vector<17x8xf32>
    %454 = vector.extract_strided_slice %316 {offsets = [16, 0], sizes = [8, 32], strides = [1, 1]} : vector<32x32xf32> to vector<8x32xf32>
    %cst_176 = arith.constant dense<0.000000e+00> : vector<17x32xf32>
    %455 = tpu.matmul %453, %454, %cst_176 {dimension_numbers = #tpu.dot_dimension_numbers<[1], [0], [0], [1], [0, 0, 1, 1], [], []>} : vector<17x8xf32>, vector<8x32xf32>, vector<17x32xf32> -> vector<17x32xf32>
    %456 = arith.addf %436, %455 : vector<17x32xf32>
    %457 = vector.extract_strided_slice %397 {offsets = [0, 24], sizes = [17, 8], strides = [1, 1]} : vector<17x96xf32> to vector<17x8xf32>
    %cst_177 = arith.constant 0.353553385 : f32
    %458 = vector.broadcast %cst_177 : f32 to vector<17x8xf32>
    %459 = arith.mulf %457, %458 : vector<17x8xf32>
    %460 = vector.extract_strided_slice %397 {offsets = [0, 56], sizes = [17, 8], strides = [1, 1]} : vector<17x96xf32> to vector<17x8xf32>
    %461 = vector.extract_strided_slice %397 {offsets = [0, 88], sizes = [17, 8], strides = [1, 1]} : vector<17x96xf32> to vector<17x8xf32>
    %cst_178 = arith.constant dense<0.000000e+00> : vector<17x17xf32>
    %462 = tpu.matmul %459, %460, %cst_178 {dimension_numbers = #tpu.dot_dimension_numbers<[1], [1], [0], [0], [0, 0, 1, 0], [], []>} : vector<17x8xf32>, vector<17x8xf32>, vector<17x17xf32> -> vector<17x17xf32>
    %cst_179 = arith.constant dense<0xFF800000> : vector<17xf32>
    %463 = vector.multi_reduction <maximumf>, %462, %cst_179 [1] : vector<17x17xf32> to vector<17xf32>
    %464 = vector.shape_cast %463 : vector<17xf32> to vector<17x1xf32>
    %465 = vector.broadcast %464 : vector<17x1xf32> to vector<17x17xf32>
    %466 = arith.subf %462, %465 : vector<17x17xf32>
    %467 = math.exp %466 : vector<17x17xf32>
    %cst_180 = arith.constant dense<0.000000e+00> : vector<17xf32>
    %468 = vector.multi_reduction <add>, %467, %cst_180 [1] : vector<17x17xf32> to vector<17xf32>
    %469 = vector.shape_cast %468 : vector<17xf32> to vector<17x1xf32>
    %470 = tpu.reciprocal %469 {approx = true} : vector<17x1xf32> -> vector<17x1xf32>
    %471 = vector.broadcast %470 : vector<17x1xf32> to vector<17x17xf32>
    %472 = arith.mulf %467, %471 : vector<17x17xf32>
    %cst_181 = arith.constant dense<0.000000e+00> : vector<17x8xf32>
    %473 = tpu.matmul %472, %461, %cst_181 {dimension_numbers = #tpu.dot_dimension_numbers<[1], [0], [0], [1], [0, 0, 1, 1], [], []>} : vector<17x17xf32>, vector<17x8xf32>, vector<17x8xf32> -> vector<17x8xf32>
    %474 = vector.extract_strided_slice %316 {offsets = [24, 0], sizes = [8, 32], strides = [1, 1]} : vector<32x32xf32> to vector<8x32xf32>
    %cst_182 = arith.constant dense<0.000000e+00> : vector<17x32xf32>
    %475 = tpu.matmul %473, %474, %cst_182 {dimension_numbers = #tpu.dot_dimension_numbers<[1], [0], [0], [1], [0, 0, 1, 1], [], []>} : vector<17x8xf32>, vector<8x32xf32>, vector<17x32xf32> -> vector<17x32xf32>
    %476 = arith.addf %456, %475 : vector<17x32xf32>
    %477 = tpu.concatenate %396, %476 in 0 : vector<17x32xf32>, vector<17x32xf32> -> vector<34x32xf32>
    %c1_183 = arith.constant 1 : index
    %c0_184 = arith.constant 0 : index
    %c0_185 = arith.constant 0 : index
    %478 = vector.load %arg11[%c1_183, %c0_184, %c0_185] : memref<2x1x32xf32, #tpu.memory_space<vmem>>, vector<1x1x32xf32>
    %479 = vector.shape_cast %478 : vector<1x1x32xf32> to vector<1x32xf32>
    %480 = vector.broadcast %479 : vector<1x32xf32> to vector<34x32xf32>
    %481 = arith.addf %477, %480 : vector<34x32xf32>
    %482 = arith.addf %283, %481 : vector<34x32xf32>
    %c1_186 = arith.constant 1 : index
    %c0_187 = arith.constant 0 : index
    %c0_188 = arith.constant 0 : index
    %483 = vector.load %arg12[%c1_186, %c0_187, %c0_188] : memref<2x1x32xf32, #tpu.memory_space<vmem>>, vector<1x1x32xf32>
    %484 = vector.shape_cast %483 : vector<1x1x32xf32> to vector<1x32xf32>
    %c1_189 = arith.constant 1 : index
    %c0_190 = arith.constant 0 : index
    %c0_191 = arith.constant 0 : index
    %485 = vector.load %arg13[%c1_189, %c0_190, %c0_191] : memref<2x1x32xf32, #tpu.memory_space<vmem>>, vector<1x1x32xf32>
    %486 = vector.shape_cast %485 : vector<1x1x32xf32> to vector<1x32xf32>
    %cst_192 = arith.constant dense<0.000000e+00> : vector<34xf32>
    %487 = vector.multi_reduction <add>, %482, %cst_192 [1] : vector<34x32xf32> to vector<34xf32>
    %488 = vector.shape_cast %487 : vector<34xf32> to vector<34x1xf32>
    %cst_193 = arith.constant 3.200000e+01 : f32
    %489 = vector.broadcast %cst_193 : f32 to vector<34x1xf32>
    %490 = arith.divf %488, %489 : vector<34x1xf32>
    %491 = vector.broadcast %490 : vector<34x1xf32> to vector<34x32xf32>
    %492 = arith.subf %482, %491 : vector<34x32xf32>
    %493 = arith.mulf %492, %492 : vector<34x32xf32>
    %cst_194 = arith.constant dense<0.000000e+00> : vector<34xf32>
    %494 = vector.multi_reduction <add>, %493, %cst_194 [1] : vector<34x32xf32> to vector<34xf32>
    %495 = vector.shape_cast %494 : vector<34xf32> to vector<34x1xf32>
    %cst_195 = arith.constant 3.200000e+01 : f32
    %496 = vector.broadcast %cst_195 : f32 to vector<34x1xf32>
    %497 = arith.divf %495, %496 : vector<34x1xf32>
    %cst_196 = arith.constant 9.99999974E-6 : f32
    %498 = vector.broadcast %cst_196 : f32 to vector<34x1xf32>
    %499 = arith.addf %497, %498 : vector<34x1xf32>
    %500 = math.rsqrt %499 : vector<34x1xf32>
    %501 = vector.broadcast %500 : vector<34x1xf32> to vector<34x32xf32>
    %502 = arith.mulf %492, %501 : vector<34x32xf32>
    %503 = vector.broadcast %484 : vector<1x32xf32> to vector<34x32xf32>
    %504 = arith.mulf %502, %503 : vector<34x32xf32>
    %505 = vector.broadcast %486 : vector<1x32xf32> to vector<34x32xf32>
    %506 = arith.addf %504, %505 : vector<34x32xf32>
    %c1_197 = arith.constant 1 : index
    %c0_198 = arith.constant 0 : index
    %c0_199 = arith.constant 0 : index
    %507 = vector.load %arg14[%c1_197, %c0_198, %c0_199] : memref<2x32x128xf32, #tpu.memory_space<vmem>>, vector<1x32x128xf32>
    %508 = vector.shape_cast %507 : vector<1x32x128xf32> to vector<32x128xf32>
    %cst_200 = arith.constant dense<0.000000e+00> : vector<34x128xf32>
    %509 = tpu.matmul %506, %508, %cst_200 {dimension_numbers = #tpu.dot_dimension_numbers<[1], [0], [0], [1], [0, 0, 1, 1], [], []>} : vector<34x32xf32>, vector<32x128xf32>, vector<34x128xf32> -> vector<34x128xf32>
    %c1_201 = arith.constant 1 : index
    %c0_202 = arith.constant 0 : index
    %c0_203 = arith.constant 0 : index
    %510 = vector.load %arg15[%c1_201, %c0_202, %c0_203] : memref<2x1x128xf32, #tpu.memory_space<vmem>>, vector<1x1x128xf32>
    %511 = vector.shape_cast %510 : vector<1x1x128xf32> to vector<1x128xf32>
    %512 = vector.broadcast %511 : vector<1x128xf32> to vector<34x128xf32>
    %513 = arith.addf %509, %512 : vector<34x128xf32>
    %cst_204 = arith.constant 1.702000e+00 : f32
    %514 = vector.broadcast %cst_204 : f32 to vector<34x128xf32>
    %515 = arith.mulf %514, %513 : vector<34x128xf32>
    %516 = arith.negf %515 : vector<34x128xf32>
    %517 = math.exp %516 : vector<34x128xf32>
    %cst_205 = arith.constant 1.000000e+00 : f32
    %518 = vector.broadcast %cst_205 : f32 to vector<34x128xf32>
    %519 = arith.addf %518, %517 : vector<34x128xf32>
    %520 = arith.divf %518, %519 : vector<34x128xf32>
    %521 = arith.mulf %513, %520 : vector<34x128xf32>
    %c1_206 = arith.constant 1 : index
    %c0_207 = arith.constant 0 : index
    %c0_208 = arith.constant 0 : index
    %522 = vector.load %arg16[%c1_206, %c0_207, %c0_208] : memref<2x128x32xf32, #tpu.memory_space<vmem>>, vector<1x128x32xf32>
    %523 = vector.shape_cast %522 : vector<1x128x32xf32> to vector<128x32xf32>
    %cst_209 = arith.constant dense<0.000000e+00> : vector<34x32xf32>
    %524 = tpu.matmul %521, %523, %cst_209 {dimension_numbers = #tpu.dot_dimension_numbers<[1], [0], [0], [1], [0, 0, 1, 1], [], []>} : vector<34x128xf32>, vector<128x32xf32>, vector<34x32xf32> -> vector<34x32xf32>
    %525 = arith.addf %482, %524 : vector<34x32xf32>
    %c1_210 = arith.constant 1 : index
    %c0_211 = arith.constant 0 : index
    %c0_212 = arith.constant 0 : index
    %526 = vector.load %arg17[%c1_210, %c0_211, %c0_212] : memref<2x1x32xf32, #tpu.memory_space<vmem>>, vector<1x1x32xf32>
    %527 = vector.shape_cast %526 : vector<1x1x32xf32> to vector<1x32xf32>
    %528 = vector.broadcast %527 : vector<1x32xf32> to vector<34x32xf32>
    %529 = arith.addf %525, %528 : vector<34x32xf32>
    %530 = vector.extract_strided_slice %529 {offsets = [0, 0], sizes = [1, 32], strides = [1, 1]} : vector<34x32xf32> to vector<1x32xf32>
    %531 = vector.extract_strided_slice %529 {offsets = [17, 0], sizes = [1, 32], strides = [1, 1]} : vector<34x32xf32> to vector<1x32xf32>
    %532 = tpu.concatenate %530, %531 in 0 : vector<1x32xf32>, vector<1x32xf32> -> vector<2x32xf32>
    %c0_213 = arith.constant 0 : index
    %c0_214 = arith.constant 0 : index
    %533 = vector.load %arg18[%c0_213, %c0_214] : memref<1x32xf32, #tpu.memory_space<vmem>>, vector<1x32xf32>
    %c0_215 = arith.constant 0 : index
    %c0_216 = arith.constant 0 : index
    %534 = vector.load %arg19[%c0_215, %c0_216] : memref<1x32xf32, #tpu.memory_space<vmem>>, vector<1x32xf32>
    %cst_217 = arith.constant dense<0.000000e+00> : vector<2xf32>
    %535 = vector.multi_reduction <add>, %532, %cst_217 [1] : vector<2x32xf32> to vector<2xf32>
    %536 = vector.shape_cast %535 : vector<2xf32> to vector<2x1xf32>
    %cst_218 = arith.constant 3.200000e+01 : f32
    %537 = vector.broadcast %cst_218 : f32 to vector<2x1xf32>
    %538 = arith.divf %536, %537 : vector<2x1xf32>
    %539 = vector.broadcast %538 : vector<2x1xf32> to vector<2x32xf32>
    %540 = arith.subf %532, %539 : vector<2x32xf32>
    %541 = arith.mulf %540, %540 : vector<2x32xf32>
    %cst_219 = arith.constant dense<0.000000e+00> : vector<2xf32>
    %542 = vector.multi_reduction <add>, %541, %cst_219 [1] : vector<2x32xf32> to vector<2xf32>
    %543 = vector.shape_cast %542 : vector<2xf32> to vector<2x1xf32>
    %cst_220 = arith.constant 3.200000e+01 : f32
    %544 = vector.broadcast %cst_220 : f32 to vector<2x1xf32>
    %545 = arith.divf %543, %544 : vector<2x1xf32>
    %cst_221 = arith.constant 9.99999974E-6 : f32
    %546 = vector.broadcast %cst_221 : f32 to vector<2x1xf32>
    %547 = arith.addf %545, %546 : vector<2x1xf32>
    %548 = math.rsqrt %547 : vector<2x1xf32>
    %549 = vector.broadcast %548 : vector<2x1xf32> to vector<2x32xf32>
    %550 = arith.mulf %540, %549 : vector<2x32xf32>
    %551 = vector.broadcast %533 : vector<1x32xf32> to vector<2x32xf32>
    %552 = arith.mulf %550, %551 : vector<2x32xf32>
    %553 = vector.broadcast %534 : vector<1x32xf32> to vector<2x32xf32>
    %554 = arith.addf %552, %553 : vector<2x32xf32>
    %c0_222 = arith.constant 0 : index
    %c0_223 = arith.constant 0 : index
    %555 = vector.load %arg20[%c0_222, %c0_223] : memref<32x16xf32, #tpu.memory_space<vmem>>, vector<32x16xf32>
    %cst_224 = arith.constant dense<0.000000e+00> : vector<2x16xf32>
    %556 = tpu.matmul %554, %555, %cst_224 {dimension_numbers = #tpu.dot_dimension_numbers<[1], [0], [0], [1], [0, 0, 1, 1], [], []>} : vector<2x32xf32>, vector<32x16xf32>, vector<2x16xf32> -> vector<2x16xf32>
    %c0_225 = arith.constant 0 : index
    %c0_226 = arith.constant 0 : index
    %557 = vector.load %arg21[%c0_225, %c0_226] : memref<2x16xf32, #tpu.memory_space<vmem>>, vector<2x16xf32>
    tpu.vector_store %arg21[%c0_225, %c0_226], %556 {strides = array<i32>} : memref<2x16xf32, #tpu.memory_space<vmem>>, vector<2x16xf32>,
    return
  }
}

</mosaic_0001>

<llo_original>
// kernel: vision_transformer_forward.1
$region0: #{vision_transformer_forward.1}
  #allocation0 [shape = 'u32[]', space=smem, size = 0x4, offset = 0x4, fixed_abs, tag = 'smem constant byte address 0x4 - core index']
  #allocation1 [shape = 'u32[144,128]{1,0:T(1,128)}', space=vmem, size = 0x12000, scoped, tag = 'internal scratch']
  %s0 = inlined_call_operand.vmem [shape: f32[34,48], index: 0, kind: input, shape index: {}]
  %s1 = inlined_call_operand.vmem [shape: f32[48,32], index: 1, kind: input, shape index: {}]
  %s2 = inlined_call_operand.vmem [shape: f32[1,32], index: 2, kind: input, shape index: {}]
  %s3 = inlined_call_operand.vmem [shape: f32[17,32], index: 3, kind: input, shape index: {}]
  %s4 = inlined_call_operand.vmem [shape: f32[1,32], index: 4, kind: input, shape index: {}]
  %s5 = inlined_call_operand.vmem [shape: f32[1,32], index: 5, kind: input, shape index: {}]
  %s6 = inlined_call_operand.vmem [shape: f32[2,1,32], index: 6, kind: input, shape index: {}]
  %s7 = inlined_call_operand.vmem [shape: f32[2,1,32], index: 7, kind: input, shape index: {}]
  %s8 = inlined_call_operand.vmem [shape: f32[2,32,96], index: 8, kind: input, shape index: {}]
  %s9 = inlined_call_operand.vmem [shape: f32[2,1,96], index: 9, kind: input, shape index: {}]
  %s10 = inlined_call_operand.vmem [shape: f32[2,32,32], index: 10, kind: input, shape index: {}]
  %s11 = inlined_call_operand.vmem [shape: f32[2,1,32], index: 11, kind: input, shape index: {}]
  %s12 = inlined_call_operand.vmem [shape: f32[2,1,32], index: 12, kind: input, shape index: {}]
  %s13 = inlined_call_operand.vmem [shape: f32[2,1,32], index: 13, kind: input, shape index: {}]
  %s14 = inlined_call_operand.vmem [shape: f32[2,32,128], index: 14, kind: input, shape index: {}]
  %s15 = inlined_call_operand.vmem [shape: f32[2,1,128], index: 15, kind: input, shape index: {}]
  %s16 = inlined_call_operand.vmem [shape: f32[2,128,32], index: 16, kind: input, shape index: {}]
  %s17 = inlined_call_operand.vmem [shape: f32[2,1,32], index: 17, kind: input, shape index: {}]
  %s18 = inlined_call_operand.vmem [shape: f32[1,32], index: 18, kind: input, shape index: {}]
  %s19 = inlined_call_operand.vmem [shape: f32[1,32], index: 19, kind: input, shape index: {}]
  %s20 = inlined_call_operand.vmem [shape: f32[32,16], index: 20, kind: input, shape index: {}]
  %s21 = inlined_call_operand.hbm [shape: f32[2,16], index: 21, kind: output, shape index: {}]
  %s22 = sld [smem:[#allocation0]]
  $region94: #{vision_transformer_forward.1} parent=0
    _
  %s24 = ssub.s32 1, %s22
  %s25 = scalar_select 0, %s24, %s22
  $region1: #{vision_transformer_forward.1} parent=0
    #allocation2 [shape = 'u8[1024]{0}', space=vmem, size = 0x400, scoped, tag = 'output window, operand 0, single buffered']
    #allocation3 [shape = 's32[1]{0}', space=sflag, size = 0x4, scoped, tag = 'scoped memory for vision_transformer_forward.1']
    %26 = vsyncpa [#allocation3], 0
    // Predicated region
    $region2: #{vision_transformer_forward.1} parent=1 // pred_check
      _
    $region3: #{vision_transformer_forward.1} parent=1 // pred_check_branch
      %28 = sbr.rel (0) target = $region5
    $region4: #{vision_transformer_forward.1} parent=1 // pred_region
      _
    $region5: #{vision_transformer_forward.1} parent=1 // pred_fallthru
      _
    // Predicated region
    $region6: #{vision_transformer_forward.1} parent=1 // pred_check
      _
    $region7: #{vision_transformer_forward.1} parent=1 // pred_check_branch
      %30 = sbr.rel (0) target = $region9
    $region8: #{vision_transformer_forward.1} parent=1 // pred_region
      _
    $region9: #{vision_transformer_forward.1} parent=1 // pred_fallthru
      _
    // Predicated region
    $region10: #{vision_transformer_forward.1} parent=1 // pred_check
      _
    $region11: #{vision_transformer_forward.1} parent=1 // pred_check_branch
      %32 = sbr.rel (0) target = $region13
    $region12: #{vision_transformer_forward.1} parent=1 // pred_region
      _
    $region13: #{vision_transformer_forward.1} parent=1 // pred_fallthru
      _
    // Predicated region
    $region14: #{vision_transformer_forward.1} parent=1 // pred_check
      _
    $region15: #{vision_transformer_forward.1} parent=1 // pred_check_branch
      %34 = sbr.rel (0) target = $region17
    $region16: #{vision_transformer_forward.1} parent=1 // pred_region
      _
    $region17: #{vision_transformer_forward.1} parent=1 // pred_fallthru
      _
    // Predicated region
    $region18: #{vision_transformer_forward.1} parent=1 // pred_check
      _
    $region19: #{vision_transformer_forward.1} parent=1 // pred_check_branch
      %36 = sbr.rel (0) target = $region21
    $region20: #{vision_transformer_forward.1} parent=1 // pred_region
      _
    $region21: #{vision_transformer_forward.1} parent=1 // pred_fallthru
      _
    // Predicated region
    $region22: #{vision_transformer_forward.1} parent=1 // pred_check
      _
    $region23: #{vision_transformer_forward.1} parent=1 // pred_check_branch
      %38 = sbr.rel (0) target = $region25
    $region24: #{vision_transformer_forward.1} parent=1 // pred_region
      _
    $region25: #{vision_transformer_forward.1} parent=1 // pred_fallthru
      _
    // Predicated region
    $region26: #{vision_transformer_forward.1} parent=1 // pred_check
      _
    $region27: #{vision_transformer_forward.1} parent=1 // pred_check_branch
      %40 = sbr.rel (0) target = $region29
    $region28: #{vision_transformer_forward.1} parent=1 // pred_region
      _
    $region29: #{vision_transformer_forward.1} parent=1 // pred_fallthru
      _
    // Predicated region
    $region30: #{vision_transformer_forward.1} parent=1 // pred_check
      _
    $region31: #{vision_transformer_forward.1} parent=1 // pred_check_branch
      %42 = sbr.rel (0) target = $region33
    $region32: #{vision_transformer_forward.1} parent=1 // pred_region
      _
    $region33: #{vision_transformer_forward.1} parent=1 // pred_fallthru
      _
    // Predicated region
    $region34: #{vision_transformer_forward.1} parent=1 // pred_check
      _
    $region35: #{vision_transformer_forward.1} parent=1 // pred_check_branch
      %44 = sbr.rel (0) target = $region37
    $region36: #{vision_transformer_forward.1} parent=1 // pred_region
      _
    $region37: #{vision_transformer_forward.1} parent=1 // pred_fallthru
      _
    // Predicated region
    $region38: #{vision_transformer_forward.1} parent=1 // pred_check
      _
    $region39: #{vision_transformer_forward.1} parent=1 // pred_check_branch
      %46 = sbr.rel (0) target = $region41
    $region40: #{vision_transformer_forward.1} parent=1 // pred_region
      _
    $region41: #{vision_transformer_forward.1} parent=1 // pred_fallthru
      _
    // Predicated region
    $region42: #{vision_transformer_forward.1} parent=1 // pred_check
      _
    $region43: #{vision_transformer_forward.1} parent=1 // pred_check_branch
      %48 = sbr.rel (0) target = $region45
    $region44: #{vision_transformer_forward.1} parent=1 // pred_region
      _
    $region45: #{vision_transformer_forward.1} parent=1 // pred_fallthru
      _
    // Predicated region
    $region46: #{vision_transformer_forward.1} parent=1 // pred_check
      _
    $region47: #{vision_transformer_forward.1} parent=1 // pred_check_branch
      %50 = sbr.rel (0) target = $region49
    $region48: #{vision_transformer_forward.1} parent=1 // pred_region
      _
    $region49: #{vision_transformer_forward.1} parent=1 // pred_fallthru
      _
    // Predicated region
    $region50: #{vision_transformer_forward.1} parent=1 // pred_check
      _
    $region51: #{vision_transformer_forward.1} parent=1 // pred_check_branch
      %52 = sbr.rel (0) target = $region53
    $region52: #{vision_transformer_forward.1} parent=1 // pred_region
      _
    $region53: #{vision_transformer_forward.1} parent=1 // pred_fallthru
      _
    // Predicated region
    $region54: #{vision_transformer_forward.1} parent=1 // pred_check
      _
    $region55: #{vision_transformer_forward.1} parent=1 // pred_check_branch
      %54 = sbr.rel (0) target = $region57
    $region56: #{vision_transformer_forward.1} parent=1 // pred_region
      _
    $region57: #{vision_transformer_forward.1} parent=1 // pred_fallthru
      _
    // Predicated region
    $region58: #{vision_transformer_forward.1} parent=1 // pred_check
      _
    $region59: #{vision_transformer_forward.1} parent=1 // pred_check_branch
      %56 = sbr.rel (0) target = $region61
    $region60: #{vision_transformer_forward.1} parent=1 // pred_region
      _
    $region61: #{vision_transformer_forward.1} parent=1 // pred_fallthru
      _
    // Predicated region
    $region62: #{vision_transformer_forward.1} parent=1 // pred_check
      _
    $region63: #{vision_transformer_forward.1} parent=1 // pred_check_branch
      %58 = sbr.rel (0) target = $region65
    $region64: #{vision_transformer_forward.1} parent=1 // pred_region
      _
    $region65: #{vision_transformer_forward.1} parent=1 // pred_fallthru
      _
    // Predicated region
    $region66: #{vision_transformer_forward.1} parent=1 // pred_check
      _
    $region67: #{vision_transformer_forward.1} parent=1 // pred_check_branch
      %60 = sbr.rel (0) target = $region69
    $region68: #{vision_transformer_forward.1} parent=1 // pred_region
      _
    $region69: #{vision_transformer_forward.1} parent=1 // pred_fallthru
      _
    // Predicated region
    $region70: #{vision_transformer_forward.1} parent=1 // pred_check
      _
    $region71: #{vision_transformer_forward.1} parent=1 // pred_check_branch
      %62 = sbr.rel (0) target = $region73
    $region72: #{vision_transformer_forward.1} parent=1 // pred_region
      _
    $region73: #{vision_transformer_forward.1} parent=1 // pred_fallthru
      _
    // Predicated region
    $region74: #{vision_transformer_forward.1} parent=1 // pred_check
      _
    $region75: #{vision_transformer_forward.1} parent=1 // pred_check_branch
      %64 = sbr.rel (0) target = $region77
    $region76: #{vision_transformer_forward.1} parent=1 // pred_region
      _
    $region77: #{vision_transformer_forward.1} parent=1 // pred_fallthru
      _
    // Predicated region
    $region78: #{vision_transformer_forward.1} parent=1 // pred_check
      _
    $region79: #{vision_transformer_forward.1} parent=1 // pred_check_branch
      %66 = sbr.rel (0) target = $region81
    $region80: #{vision_transformer_forward.1} parent=1 // pred_region
      _
    $region81: #{vision_transformer_forward.1} parent=1 // pred_fallthru
      _
    // Predicated region
    $region82: #{vision_transformer_forward.1} parent=1 // pred_check
      _
    $region83: #{vision_transformer_forward.1} parent=1 // pred_check_branch
      %68 = sbr.rel (0) target = $region85
    $region84: #{vision_transformer_forward.1} parent=1 // pred_region
      _
    $region85: #{vision_transformer_forward.1} parent=1 // pred_fallthru
      _
    %v69 = vld [vmem:[%s0] sm:$0xff]
    %v70 = vld [vmem:[%s0 + $0x8] sm:$0xff]
    %v71 = vld [vmem:[%s0 + $0x10] sm:$0xff]
    %v72 = vld [vmem:[%s0 + $0x18] sm:$0xff]
    %v73 = vld [vmem:[%s0 + $0x20] sm:$0x3]
    %v74 = vld [vmem:[%s1] sm:$0xff]
    %v75 = vld [vmem:[%s1 + $0x8] sm:$0xff]
    %v76 = vld [vmem:[%s1 + $0x10] sm:$0xff]
    %v77 = vld [vmem:[%s1 + $0x18] sm:$0xff]
    %v78 = vld [vmem:[%s1 + $0x20] sm:$0xff]
    %v79 = vld [vmem:[%s1 + $0x28] sm:$0xff]
    %vm80 = vcmask 392192
    %v82 = vsel %vm80, %v69, 0
    %v85 = vsel %vm80, %v70, 0
    %v88 = vsel %vm80, %v71, 0
    %v91 = vsel %vm80, %v72, 0
    %v94 = vsel %vm80, %v73, 0
    %96 = vmatprep.subr.mxu0 0.0
    %97 = vmatpush1.msra.mxu0 %v74
    %98 = vmatprep.subr.mxu0 0.0
    %99 = vmatpush1.msra.mxu0 %v75
    %100 = vmatprep.subr.mxu0 0.0
    %101 = vmatpush1.msra.mxu0 %v76
    %102 = vmatprep.subr.mxu0 0.0
    %103 = vmatpush1.msra.mxu0 %v77
    %104 = vmatprep.subr.mxu0 0.0
    %105 = vmatpush1.msra.mxu0 %v78
    %106 = vmatprep.subr.mxu0 0.0
    %107 = vmatpush1.msra.mxu0 %v79
    %108 = vmatprep.subr.mxu0 0.0
    %109 = vmatpush1.msra.mxu0 0.0
    %110 = vmatprep.subr.mxu0 0.0
    %111 = vmatpush1.msra.mxu0 0.0
    %112 = vmatprep.subr.mxu0 0.0
    %113 = vmatpush1.msra.mxu0 0.0
    %114 = vmatprep.subr.mxu0 0.0
    %115 = vmatpush1.msra.mxu0 0.0
    %116 = vmatprep.subr.mxu0 0.0
    %117 = vmatpush1.msra.mxu0 0.0
    %118 = vmatprep.subr.mxu0 0.0
    %119 = vmatpush1.msra.mxu0 0.0
    %120 = vmatprep.subr.mxu0 0.0
    %121 = vmatpush1.msra.mxu0 0.0
    %122 = vmatprep.subr.mxu0 0.0
    %123 = vmatpush1.msra.mxu0 0.0
    %124 = vmatprep.subr.mxu0 0.0
    %125 = vmatpush1.msra.mxu0 0.0
    %126 = vmatprep.subr.mxu0 0.0
    %127 = vmatpush1.msra.mxu0 0.0
    %128 = vmatprep.subr.mxu0 0.0
    %129 = vmatpush1.msra.mxu0 0.0
    %130 = vmatprep.subr.mxu0 0.0
    %131 = vmatpush1.msra.mxu0 0.0
    %132 = vmatprep.subr.mxu0 0.0
    %133 = vmatpush1.msra.mxu0 0.0
    %134 = vmatprep.subr.mxu0 0.0
    %135 = vmatpush1.msra.mxu0 0.0
    %136 = vmatprep.subr.mxu0 0.0
    %137 = vmatpush1.msra.mxu0 0.0
    %138 = vmatprep.subr.mxu0 0.0
    %139 = vmatpush1.msra.mxu0 0.0
    %140 = vmatprep.subr.mxu0 0.0
    %141 = vmatpush1.msra.mxu0 0.0
    %142 = vmatprep.subr.mxu0 0.0
    %143 = vmatpush1.msra.mxu0 0.0
    %144 = vmatprep.subr.mxu0 0.0
    %145 = vmatpush1.msra.mxu0 0.0
    %146 = vmatprep.subr.mxu0 0.0
    %147 = vmatpush1.msra.mxu0 0.0
    %148 = vmatprep.subr.mxu0 0.0
    %149 = vmatpush1.msra.mxu0 0.0
    %150 = vmatprep.subr.mxu0 0.0
    %151 = vmatpush1.msra.mxu0 0.0
    %152 = vmatprep.subr.mxu0 0.0
    %153 = vmatpush1.msra.mxu0 0.0
    %154 = vmatprep.subr.mxu0 0.0
    %155 = vmatpush1.msra.mxu0 0.0
    %156 = vmatprep.subr.mxu0 0.0
    %157 = vmatpush1.msra.mxu0 0.0
    %158 = vmatprep.subr.mxu0 0.0
    %159 = vmatpush1.msra.mxu0 0.0
    %160 = vmatprep.mubr.f32.mxu0 0.0
    %161 = vmatmul.mubr.f32.gmra.mrb[0].mxu0 %v82
    %v162 = vpop.f32.mrb[0].mxu0
    %v163 = vadd.f32 0.0, %v162
    %v164 = vpop.f32.mrb[0].mxu0
    %165 = vmatprep.mubr.f32.mxu0 0.0
    %166 = vmatmul.mubr.f32.gmra.mrb[0].mxu0 %v85
    %v167 = vpop.f32.mrb[0].mxu0
    %v168 = vadd.f32 0.0, %v167
    %v169 = vpop.f32.mrb[0].mxu0
    %170 = vmatprep.mubr.f32.mxu0 0.0
    %171 = vmatmul.mubr.f32.gmra.mrb[0].mxu0 %v88
    %v172 = vpop.f32.mrb[0].mxu0
    %v173 = vadd.f32 0.0, %v172
    %v174 = vpop.f32.mrb[0].mxu0
    %175 = vmatprep.mubr.f32.mxu0 0.0
    %176 = vmatmul.mubr.f32.gmra.mrb[0].mxu0 %v91
    %v177 = vpop.f32.mrb[0].mxu0
    %v178 = vadd.f32 0.0, %v177
    %v179 = vpop.f32.mrb[0].mxu0
    %180 = vmatprep.mubr.f32.mxu0 0.0
    %181 = vmatmul.mubr.f32.gmra.mrb[0].mxu0 %v94
    %v182 = vpop.f32.mrb[0].mxu0
    %v183 = vadd.f32 0.0, %v182
    %v184 = vpop.f32.mrb[0].mxu0
    %185 = vdwg.mxu0
    %v186 = vlaneseq
    %v187 = vshrl.u32 %v186, 7
    %v188 = vadd.s32 %v187, 8
    %v189 = vadd.s32 %v187, 16
    %v190 = vadd.s32 %v187, 24
    %v191 = vadd.s32 %v187, 32
    %vm192 = vcmp.eq.s32.totalorder %v187, 0
    %vm193 = vcmp.eq.s32.totalorder %v188, 0
    %vm194 = vcmp.eq.s32.totalorder %v189, 0
    %vm195 = vcmp.eq.s32.totalorder %v190, 0
    %vm196 = vcmp.eq.s32.totalorder %v191, 0
    %vm197 = vcmp.eq.s32.totalorder %v187, 17
    %vm198 = vcmp.eq.s32.totalorder %v188, 17
    %vm199 = vcmp.eq.s32.totalorder %v189, 17
    %vm200 = vcmp.eq.s32.totalorder %v190, 17
    %vm201 = vcmp.eq.s32.totalorder %v191, 17
    %vm202 = vmor %vm192, %vm197
    %vm203 = vmor %vm193, %vm198
    %vm204 = vmor %vm194, %vm199
    %vm205 = vmor %vm195, %vm200
    %vm206 = vmor %vm196, %vm201
    %v207 = vld [vmem:[%s2] sm:$0x1]
    %v209 = vlaneseq
    %v210 = vshrl.u32 %v209, 7
    %v211 = vsub.s32 0, %v210
    %v212 = vrot.slane %v207, %v211
    %v214 = vsel %vm202, %v212, %v163
    %v215 = vsel %vm203, %v212, %v168
    %v216 = vsel %vm204, %v212, %v173
    %v217 = vsel %vm205, %v212, %v178
    %v218 = vsel %vm206, %v212, %v183
    %v219 = vld [vmem:[%s3] sm:$0xff]
    %v220 = vld [vmem:[%s3 + $0x8] sm:$0xff]
    %v221 = vld [vmem:[%s3 + $0x10] sm:$0x1]
    %vm225 = vcmask 1040384
    %v226 = vrot.slane %v219, 7
    %v227 = vrot.slane %v220, 7
    %v228 = vsel %vm225, %v226, %v227
    %v229 = vrot.slane %v221, 7
    %v230 = vsel %vm225, %v227, %v229
    %v234 = vsel %vm225, %v221, %v226
    %v235 = vadd.f32 %v214, %v219
    %v236 = vadd.f32 %v215, %v220
    %v237 = vadd.f32 %v216, %v234
    %v238 = vadd.f32 %v217, %v228
    %v239 = vadd.f32 %v218, %v230
    %v240 = vld [vmem:[%s4] sm:$0x1]
    %v241 = vld [vmem:[%s5] sm:$0x1]
    %vm242 = vcmask 261120
    %v243 = vsel %vm242, %v235, 0.0
    %244 = vadd.xlane.f32.xlu0 %v243
    %v245 = vpop.xlane.xlu0 %244
    %v246 = vsel %vm242, %v236, 0.0
    %247 = vadd.xlane.f32.xlu0 %v246
    %v248 = vpop.xlane.xlu0 %247
    %v249 = vsel %vm242, %v237, 0.0
    %250 = vadd.xlane.f32.xlu0 %v249
    %v251 = vpop.xlane.xlu0 %250
    %v252 = vsel %vm242, %v238, 0.0
    %253 = vadd.xlane.f32.xlu0 %v252
    %v254 = vpop.xlane.xlu0 %253
    %vm255 = vcmask 254976
    %v256 = vsel %vm255, %v239, 0.0
    %257 = vadd.xlane.f32.xlu0 %v256
    %v258 = vpop.xlane.xlu0 %257
    %v259 = vrcp.pop 32.0
    %v260 = vmul.f32 %v245, %v259
    %v261 = vmul.f32 %v248, %v259
    %v262 = vmul.f32 %v251, %v259
    %v263 = vmul.f32 %v254, %v259
    %v264 = vmul.f32 %v258, %v259
    %v265 = vsub.f32 %v235, %v260
    %v266 = vsub.f32 %v236, %v261
    %v267 = vsub.f32 %v237, %v262
    %v268 = vsub.f32 %v238, %v263
    %v269 = vsub.f32 %v239, %v264
    %v270 = vmul.f32 %v265, %v265
    %v271 = vmul.f32 %v266, %v266
    %v272 = vmul.f32 %v267, %v267
    %v273 = vmul.f32 %v268, %v268
    %v274 = vmul.f32 %v269, %v269
    %v275 = vsel %vm242, %v270, 0.0
    %276 = vadd.xlane.f32.xlu0 %v275
    %v277 = vpop.xlane.xlu0 %276
    %v278 = vsel %vm242, %v271, 0.0
    %279 = vadd.xlane.f32.xlu0 %v278
    %v280 = vpop.xlane.xlu0 %279
    %v281 = vsel %vm242, %v272, 0.0
    %282 = vadd.xlane.f32.xlu0 %v281
    %v283 = vpop.xlane.xlu0 %282
    %v284 = vsel %vm242, %v273, 0.0
    %285 = vadd.xlane.f32.xlu0 %v284
    %v286 = vpop.xlane.xlu0 %285
    %v287 = vsel %vm255, %v274, 0.0
    %288 = vadd.xlane.f32.xlu0 %v287
    %v289 = vpop.xlane.xlu0 %288
    %v290 = vmul.f32 %v277, %v259
    %v291 = vmul.f32 %v280, %v259
    %v292 = vmul.f32 %v283, %v259
    %v293 = vmul.f32 %v286, %v259
    %v294 = vmul.f32 %v289, %v259
    %v295 = vadd.f32 %v290, 1e-05
    %v296 = vadd.f32 %v291, 1e-05
    %v297 = vadd.f32 %v292, 1e-05
    %v298 = vadd.f32 %v293, 1e-05
    %v299 = vadd.f32 %v294, 1e-05
    %v300 = vrsqrt.pop %v295
    %v301 = vrsqrt.pop %v296
    %v302 = vrsqrt.pop %v297
    %v303 = vrsqrt.pop %v298
    %v304 = vrsqrt.pop %v299
    %v305 = vmul.f32 %v265, %v300
    %v306 = vmul.f32 %v266, %v301
    %v307 = vmul.f32 %v267, %v302
    %v308 = vmul.f32 %v268, %v303
    %v309 = vmul.f32 %v269, %v304
    %v311 = vlaneseq
    %v312 = vshrl.u32 %v311, 7
    %v313 = vsub.s32 0, %v312
    %v314 = vrot.slane %v240, %v313
    %v316 = vmul.f32 %v305, %v314
    %v317 = vmul.f32 %v306, %v314
    %v318 = vmul.f32 %v307, %v314
    %v319 = vmul.f32 %v308, %v314
    %v320 = vmul.f32 %v309, %v314
    %v322 = vlaneseq
    %v323 = vshrl.u32 %v322, 7
    %v324 = vsub.s32 0, %v323
    %v325 = vrot.slane %v241, %v324
    %v327 = vadd.f32 %v316, %v325
    %v328 = vadd.f32 %v317, %v325
    %v329 = vadd.f32 %v318, %v325
    %v330 = vadd.f32 %v319, %v325
    %v331 = vadd.f32 %v320, %v325
    %v332 = vld [vmem:[%s6] sm:$0x1]
    %v333 = vld [vmem:[%s7] sm:$0x1]
    %v334 = vsel %vm242, %v327, 0.0
    %335 = vadd.xlane.f32.xlu0 %v334
    %v336 = vpop.xlane.xlu0 %335
    %v337 = vsel %vm242, %v328, 0.0
    %338 = vadd.xlane.f32.xlu0 %v337
    %v339 = vpop.xlane.xlu0 %338
    %v340 = vsel %vm242, %v329, 0.0
    %341 = vadd.xlane.f32.xlu0 %v340
    %v342 = vpop.xlane.xlu0 %341
    %v343 = vsel %vm242, %v330, 0.0
    %344 = vadd.xlane.f32.xlu0 %v343
    %v345 = vpop.xlane.xlu0 %344
    %v346 = vsel %vm255, %v331, 0.0
    %347 = vadd.xlane.f32.xlu0 %v346
    %v348 = vpop.xlane.xlu0 %347
    %v349 = vmul.f32 %v336, %v259
    %v350 = vmul.f32 %v339, %v259
    %v351 = vmul.f32 %v342, %v259
    %v352 = vmul.f32 %v345, %v259
    %v353 = vmul.f32 %v348, %v259
    %v354 = vsub.f32 %v327, %v349
    %v355 = vsub.f32 %v328, %v350
    %v356 = vsub.f32 %v329, %v351
    %v357 = vsub.f32 %v330, %v352
    %v358 = vsub.f32 %v331, %v353
    %v359 = vmul.f32 %v354, %v354
    %v360 = vmul.f32 %v355, %v355
    %v361 = vmul.f32 %v356, %v356
    %v362 = vmul.f32 %v357, %v357
    %v363 = vmul.f32 %v358, %v358
    %v364 = vsel %vm242, %v359, 0.0
    %365 = vadd.xlane.f32.xlu0 %v364
    %v366 = vpop.xlane.xlu0 %365
    %v367 = vsel %vm242, %v360, 0.0
    %368 = vadd.xlane.f32.xlu0 %v367
    %v369 = vpop.xlane.xlu0 %368
    %v370 = vsel %vm242, %v361, 0.0
    %371 = vadd.xlane.f32.xlu0 %v370
    %v372 = vpop.xlane.xlu0 %371
    %v373 = vsel %vm242, %v362, 0.0
    %374 = vadd.xlane.f32.xlu0 %v373
    %v375 = vpop.xlane.xlu0 %374
    %v376 = vsel %vm255, %v363, 0.0
    %377 = vadd.xlane.f32.xlu0 %v376
    %v378 = vpop.xlane.xlu0 %377
    %v379 = vmul.f32 %v366, %v259
    %v380 = vmul.f32 %v369, %v259
    %v381 = vmul.f32 %v372, %v259
    %v382 = vmul.f32 %v375, %v259
    %v383 = vmul.f32 %v378, %v259
    %v384 = vadd.f32 %v379, 1e-05
    %v385 = vadd.f32 %v380, 1e-05
    %v386 = vadd.f32 %v381, 1e-05
    %v387 = vadd.f32 %v382, 1e-05
    %v388 = vadd.f32 %v383, 1e-05
    %v389 = vrsqrt.pop %v384
    %v390 = vrsqrt.pop %v385
    %v391 = vrsqrt.pop %v386
    %v392 = vrsqrt.pop %v387
    %v393 = vrsqrt.pop %v388
    %v394 = vmul.f32 %v354, %v389
    %v395 = vmul.f32 %v355, %v390
    %v396 = vmul.f32 %v356, %v391
    %v397 = vmul.f32 %v357, %v392
    %v398 = vmul.f32 %v358, %v393
    %v400 = vlaneseq
    %v401 = vshrl.u32 %v400, 7
    %v402 = vsub.s32 0, %v401
    %v403 = vrot.slane %v332, %v402
    %v405 = vmul.f32 %v394, %v403
    %v406 = vmul.f32 %v395, %v403
    %v407 = vmul.f32 %v396, %v403
    %v408 = vmul.f32 %v397, %v403
    %v409 = vmul.f32 %v398, %v403
    %v411 = vlaneseq
    %v412 = vshrl.u32 %v411, 7
    %v413 = vsub.s32 0, %v412
    %v414 = vrot.slane %v333, %v413
    %v416 = vadd.f32 %v405, %v414
    %v417 = vadd.f32 %v406, %v414
    %v418 = vadd.f32 %v407, %v414
    %v419 = vadd.f32 %v408, %v414
    %v420 = vadd.f32 %v409, %v414
    %v421 = vld [vmem:[%s8] sm:$0xff]
    %v422 = vld [vmem:[%s8 + $0x8] sm:$0xff]
    %v423 = vld [vmem:[%s8 + $0x10] sm:$0xff]
    %v424 = vld [vmem:[%s8 + $0x18] sm:$0xff]
    %v425 = vld [vmem:[%s9] sm:$0x1]
    %v427 = vlaneseq
    %v428 = vshrl.u32 %v427, 7
    %v429 = vsub.s32 0, %v428
    %v430 = vrot.slane %v425, %v429
    %v433 = vsel %vm242, %v416, 0
    %v436 = vsel %vm242, %v417, 0
    %v439 = vsel %vm242, %v418, 0
    %v442 = vsel %vm242, %v419, 0
    %v445 = vsel %vm242, %v420, 0
    %447 = vmatprep.subr.mxu0 0.0
    %448 = vmatpush1.msra.mxu0 %v421
    %449 = vmatprep.subr.mxu0 0.0
    %450 = vmatpush1.msra.mxu0 %v422
    %451 = vmatprep.subr.mxu0 0.0
    %452 = vmatpush1.msra.mxu0 %v423
    %453 = vmatprep.subr.mxu0 0.0
    %454 = vmatpush1.msra.mxu0 %v424
    %455 = vmatprep.subr.mxu0 0.0
    %456 = vmatpush1.msra.mxu0 0.0
    %457 = vmatprep.subr.mxu0 0.0
    %458 = vmatpush1.msra.mxu0 0.0
    %459 = vmatprep.subr.mxu0 0.0
    %460 = vmatpush1.msra.mxu0 0.0
    %461 = vmatprep.subr.mxu0 0.0
    %462 = vmatpush1.msra.mxu0 0.0
    %463 = vmatprep.subr.mxu0 0.0
    %464 = vmatpush1.msra.mxu0 0.0
    %465 = vmatprep.subr.mxu0 0.0
    %466 = vmatpush1.msra.mxu0 0.0
    %467 = vmatprep.subr.mxu0 0.0
    %468 = vmatpush1.msra.mxu0 0.0
    %469 = vmatprep.subr.mxu0 0.0
    %470 = vmatpush1.msra.mxu0 0.0
    %471 = vmatprep.subr.mxu0 0.0
    %472 = vmatpush1.msra.mxu0 0.0
    %473 = vmatprep.subr.mxu0 0.0
    %474 = vmatpush1.msra.mxu0 0.0
    %475 = vmatprep.subr.mxu0 0.0
    %476 = vmatpush1.msra.mxu0 0.0
    %477 = vmatprep.subr.mxu0 0.0
    %478 = vmatpush1.msra.mxu0 0.0
    %479 = vmatprep.subr.mxu0 0.0
    %480 = vmatpush1.msra.mxu0 0.0
    %481 = vmatprep.subr.mxu0 0.0
    %482 = vmatpush1.msra.mxu0 0.0
    %483 = vmatprep.subr.mxu0 0.0
    %484 = vmatpush1.msra.mxu0 0.0
    %485 = vmatprep.subr.mxu0 0.0
    %486 = vmatpush1.msra.mxu0 0.0
    %487 = vmatprep.subr.mxu0 0.0
    %488 = vmatpush1.msra.mxu0 0.0
    %489 = vmatprep.subr.mxu0 0.0
    %490 = vmatpush1.msra.mxu0 0.0
    %491 = vmatprep.subr.mxu0 0.0
    %492 = vmatpush1.msra.mxu0 0.0
    %493 = vmatprep.subr.mxu0 0.0
    %494 = vmatpush1.msra.mxu0 0.0
    %495 = vmatprep.subr.mxu0 0.0
    %496 = vmatpush1.msra.mxu0 0.0
    %497 = vmatprep.subr.mxu0 0.0
    %498 = vmatpush1.msra.mxu0 0.0
    %499 = vmatprep.subr.mxu0 0.0
    %500 = vmatpush1.msra.mxu0 0.0
    %501 = vmatprep.subr.mxu0 0.0
    %502 = vmatpush1.msra.mxu0 0.0
    %503 = vmatprep.subr.mxu0 0.0
    %504 = vmatpush1.msra.mxu0 0.0
    %505 = vmatprep.subr.mxu0 0.0
    %506 = vmatpush1.msra.mxu0 0.0
    %507 = vmatprep.subr.mxu0 0.0
    %508 = vmatpush1.msra.mxu0 0.0
    %509 = vmatprep.subr.mxu0 0.0
    %510 = vmatpush1.msra.mxu0 0.0
    %511 = vmatprep.mubr.f32.mxu0 0.0
    %512 = vmatmul.mubr.f32.gmra.mrb[0].mxu0 %v433
    %v513 = vpop.f32.mrb[0].mxu0
    %v514 = vadd.f32 %v430, %v513
    %v515 = vpop.f32.mrb[0].mxu0
    %516 = vmatprep.mubr.f32.mxu0 0.0
    %517 = vmatmul.mubr.f32.gmra.mrb[0].mxu0 %v436
    %v518 = vpop.f32.mrb[0].mxu0
    %v519 = vadd.f32 %v430, %v518
    %v520 = vpop.f32.mrb[0].mxu0
    %521 = vmatprep.mubr.f32.mxu0 0.0
    %522 = vmatmul.mubr.f32.gmra.mrb[0].mxu0 %v439
    %v523 = vpop.f32.mrb[0].mxu0
    %v524 = vadd.f32 %v430, %v523
    %v525 = vpop.f32.mrb[0].mxu0
    %526 = vmatprep.mubr.f32.mxu0 0.0
    %527 = vmatmul.mubr.f32.gmra.mrb[0].mxu0 %v442
    %v528 = vpop.f32.mrb[0].mxu0
    %v529 = vadd.f32 %v430, %v528
    %v530 = vpop.f32.mrb[0].mxu0
    %531 = vmatprep.mubr.f32.mxu0 0.0
    %532 = vmatmul.mubr.f32.gmra.mrb[0].mxu0 %v445
    %v533 = vpop.f32.mrb[0].mxu0
    %v534 = vadd.f32 %v430, %v533
    %v535 = vpop.f32.mrb[0].mxu0
    %536 = vdwg.mxu0
    %v537 = vld [vmem:[%s10] sm:$0xff]
    %v538 = vld [vmem:[%s10 + $0x8] sm:$0xff]
    %v539 = vld [vmem:[%s10 + $0x10] sm:$0xff]
    %v540 = vld [vmem:[%s10 + $0x18] sm:$0xff]
    %v541 = vmul.f32 %v514, 0.35355338
    %v542 = vmul.f32 %v519, 0.35355338
    %v543 = vmul.f32 %v524, 0.35355338
    %547 = vrot.lane.b32.xlu0 %v514, 96
    %v548 = vpop.permute.xlu0 %547
    %549 = vrot.lane.b32.xlu0 %v519, 96
    %v550 = vpop.permute.xlu0 %549
    %551 = vrot.lane.b32.xlu0 %v524, 96
    %v552 = vpop.permute.xlu0 %551
    %vm553 = vcmask 64512
    %v555 = vsel %vm553, %v541, 0
    %v558 = vsel %vm553, %v542, 0
    %v561 = vsel %vm553, %v543, 0
    %v563 = vsel %vm553, %v548, 0
    %v565 = vsel %vm553, %v550, 0
    %v567 = vsel %vm553, %v552, 0
    %569 = vmatprep.subr.mxu0 0.0
    %570 = vmatpush1.xpose.msra.mxu0 %v563
    %571 = vmatprep.subr.mxu0 0.0
    %572 = vmatpush1.xpose.msra.mxu0 %v565
    %573 = vmatprep.subr.mxu0 0.0
    %574 = vmatpush1.xpose.msra.mxu0 %v567
    %575 = vmatprep.subr.mxu0 0.0
    %576 = vmatpush1.xpose.msra.mxu0 0.0
    %577 = vmatprep.subr.mxu0 0.0
    %578 = vmatpush1.xpose.msra.mxu0 0.0
    %579 = vmatprep.subr.mxu0 0.0
    %580 = vmatpush1.xpose.msra.mxu0 0.0
    %581 = vmatprep.subr.mxu0 0.0
    %582 = vmatpush1.xpose.msra.mxu0 0.0
    %583 = vmatprep.subr.mxu0 0.0
    %584 = vmatpush1.xpose.msra.mxu0 0.0
    %585 = vmatprep.subr.mxu0 0.0
    %586 = vmatpush1.xpose.msra.mxu0 0.0
    %587 = vmatprep.subr.mxu0 0.0
    %588 = vmatpush1.xpose.msra.mxu0 0.0
    %589 = vmatprep.subr.mxu0 0.0
    %590 = vmatpush1.xpose.msra.mxu0 0.0
    %591 = vmatprep.subr.mxu0 0.0
    %592 = vmatpush1.xpose.msra.mxu0 0.0
    %593 = vmatprep.subr.mxu0 0.0
    %594 = vmatpush1.xpose.msra.mxu0 0.0
    %595 = vmatprep.subr.mxu0 0.0
    %596 = vmatpush1.xpose.msra.mxu0 0.0
    %597 = vmatprep.subr.mxu0 0.0
    %598 = vmatpush1.xpose.msra.mxu0 0.0
    %599 = vmatprep.subr.mxu0 0.0
    %600 = vmatpush1.xpose.msra.mxu0 0.0
    %601 = vmatprep.subr.mxu0 0.0
    %602 = vmatpush1.xpose.msra.mxu0 0.0
    %603 = vmatprep.subr.mxu0 0.0
    %604 = vmatpush1.xpose.msra.mxu0 0.0
    %605 = vmatprep.subr.mxu0 0.0
    %606 = vmatpush1.xpose.msra.mxu0 0.0
    %607 = vmatprep.subr.mxu0 0.0
    %608 = vmatpush1.xpose.msra.mxu0 0.0
    %609 = vmatprep.subr.mxu0 0.0
    %610 = vmatpush1.xpose.msra.mxu0 0.0
    %611 = vmatprep.subr.mxu0 0.0
    %612 = vmatpush1.xpose.msra.mxu0 0.0
    %613 = vmatprep.subr.mxu0 0.0
    %614 = vmatpush1.xpose.msra.mxu0 0.0
    %615 = vmatprep.subr.mxu0 0.0
    %616 = vmatpush1.xpose.msra.mxu0 0.0
    %617 = vmatprep.subr.mxu0 0.0
    %618 = vmatpush1.xpose.msra.mxu0 0.0
    %619 = vmatprep.subr.mxu0 0.0
    %620 = vmatpush1.xpose.msra.mxu0 0.0
    %621 = vmatprep.subr.mxu0 0.0
    %622 = vmatpush1.xpose.msra.mxu0 0.0
    %623 = vmatprep.subr.mxu0 0.0
    %624 = vmatpush1.xpose.msra.mxu0 0.0
    %625 = vmatprep.subr.mxu0 0.0
    %626 = vmatpush1.xpose.msra.mxu0 0.0
    %627 = vmatprep.subr.mxu0 0.0
    %628 = vmatpush1.xpose.msra.mxu0 0.0
    %629 = vmatprep.subr.mxu0 0.0
    %630 = vmatpush1.xpose.msra.mxu0 0.0
    %631 = vmatprep.subr.mxu0 0.0
    %632 = vmatpush1.xpose.msra.mxu0 0.0
    %633 = vmatprep.mubr.f32.mxu0 0.0
    %634 = vmatmul.mubr.f32.gmra.mrb[0].mxu0 %v555
    %v635 = vpop.f32.mrb[0].mxu0
    %v636 = vadd.f32 0.0, %v635
    %v637 = vpop.f32.mrb[0].mxu0
    %638 = vmatprep.mubr.f32.mxu0 0.0
    %639 = vmatmul.mubr.f32.gmra.mrb[0].mxu0 %v558
    %v640 = vpop.f32.mrb[0].mxu0
    %v641 = vadd.f32 0.0, %v640
    %v642 = vpop.f32.mrb[0].mxu0
    %643 = vmatprep.mubr.f32.mxu0 0.0
    %644 = vmatmul.mubr.f32.gmra.mrb[0].mxu0 %v561
    %v645 = vpop.f32.mrb[0].mxu0
    %v646 = vadd.f32 0.0, %v645
    %v647 = vpop.f32.mrb[0].mxu0
    %648 = vdwg.mxu0
    %vm649 = vcmask 138240
    %v650 = vsel %vm649, %v636, -inf
    %651 = vmax.xlane.f32.xlu0 %v650
    %v652 = vpop.xlane.xlu0 %651
    %v653 = vsel %vm649, %v641, -inf
    %654 = vmax.xlane.f32.xlu0 %v653
    %v655 = vpop.xlane.xlu0 %654
    %vm656 = vcmask 131072
    %v657 = vsel %vm656, %v646, -inf
    %658 = vmax.xlane.f32.xlu0 %v657
    %v659 = vpop.xlane.xlu0 %658
    %v660 = vsub.f32 %v636, %v652
    %v661 = vsub.f32 %v641, %v655
    %v662 = vsub.f32 %v646, %v659
    %v663 = vmul.f32 %v660, 1.442695
    %v664 = vpow.pop %v663
    %v665 = vmul.f32 %v661, 1.442695
    %v666 = vpow.pop %v665
    %v667 = vmul.f32 %v662, 1.442695
    %v668 = vpow.pop %v667
    %v669 = vsel %vm649, %v664, 0.0
    %670 = vadd.xlane.f32.xlu0 %v669
    %v671 = vpop.xlane.xlu0 %670
    %v672 = vsel %vm649, %v666, 0.0
    %673 = vadd.xlane.f32.xlu0 %v672
    %v674 = vpop.xlane.xlu0 %673
    %v675 = vsel %vm656, %v668, 0.0
    %676 = vadd.xlane.f32.xlu0 %v675
    %v677 = vpop.xlane.xlu0 %676
    %v678 = vrcp.pop %v671
    %v679 = vrcp.pop %v674
    %v680 = vrcp.pop %v677
    %v681 = vmul.f32 %v664, %v678
    %v682 = vmul.f32 %v666, %v679
    %v683 = vmul.f32 %v668, %v680
    %684 = vrot.lane.b32.xlu0 %v514, 64
    %v685 = vpop.permute.xlu0 %684
    %686 = vrot.lane.b32.xlu0 %v519, 64
    %v687 = vpop.permute.xlu0 %686
    %688 = vrot.lane.b32.xlu0 %v524, 64
    %v689 = vpop.permute.xlu0 %688
    %v693 = vsel %vm649, %v681, 0
    %v696 = vsel %vm649, %v682, 0
    %v699 = vsel %vm649, %v683, 0
    %v701 = vsel %vm225, %v689, 0
    %703 = vmatprep.subr.mxu0 0.0
    %704 = vmatpush1.msra.mxu0 %v685
    %705 = vmatprep.subr.mxu0 0.0
    %706 = vmatpush1.msra.mxu0 %v687
    %707 = vmatprep.subr.mxu0 0.0
    %708 = vmatpush1.msra.mxu0 %v701
    %709 = vmatprep.subr.mxu0 0.0
    %710 = vmatpush1.msra.mxu0 0.0
    %711 = vmatprep.subr.mxu0 0.0
    %712 = vmatpush1.msra.mxu0 0.0
    %713 = vmatprep.subr.mxu0 0.0
    %714 = vmatpush1.msra.mxu0 0.0
    %715 = vmatprep.subr.mxu0 0.0
    %716 = vmatpush1.msra.mxu0 0.0
    %717 = vmatprep.subr.mxu0 0.0
    %718 = vmatpush1.msra.mxu0 0.0
    %719 = vmatprep.subr.mxu0 0.0
    %720 = vmatpush1.msra.mxu0 0.0
    %721 = vmatprep.subr.mxu0 0.0
    %722 = vmatpush1.msra.mxu0 0.0
    %723 = vmatprep.subr.mxu0 0.0
    %724 = vmatpush1.msra.mxu0 0.0
    %725 = vmatprep.subr.mxu0 0.0
    %726 = vmatpush1.msra.mxu0 0.0
    %727 = vmatprep.subr.mxu0 0.0
    %728 = vmatpush1.msra.mxu0 0.0
    %729 = vmatprep.subr.mxu0 0.0
    %730 = vmatpush1.msra.mxu0 0.0
    %731 = vmatprep.subr.mxu0 0.0
    %732 = vmatpush1.msra.mxu0 0.0
    %733 = vmatprep.subr.mxu0 0.0
    %734 = vmatpush1.msra.mxu0 0.0
    %735 = vmatprep.subr.mxu0 0.0
    %736 = vmatpush1.msra.mxu0 0.0
    %737 = vmatprep.subr.mxu0 0.0
    %738 = vmatpush1.msra.mxu0 0.0
    %739 = vmatprep.subr.mxu0 0.0
    %740 = vmatpush1.msra.mxu0 0.0
    %741 = vmatprep.subr.mxu0 0.0
    %742 = vmatpush1.msra.mxu0 0.0
    %743 = vmatprep.subr.mxu0 0.0
    %744 = vmatpush1.msra.mxu0 0.0
    %745 = vmatprep.subr.mxu0 0.0
    %746 = vmatpush1.msra.mxu0 0.0
    %747 = vmatprep.subr.mxu0 0.0
    %748 = vmatpush1.msra.mxu0 0.0
    %749 = vmatprep.subr.mxu0 0.0
    %750 = vmatpush1.msra.mxu0 0.0
    %751 = vmatprep.subr.mxu0 0.0
    %752 = vmatpush1.msra.mxu0 0.0
    %753 = vmatprep.subr.mxu0 0.0
    %754 = vmatpush1.msra.mxu0 0.0
    %755 = vmatprep.subr.mxu0 0.0
    %756 = vmatpush1.msra.mxu0 0.0
    %757 = vmatprep.subr.mxu0 0.0
    %758 = vmatpush1.msra.mxu0 0.0
    %759 = vmatprep.subr.mxu0 0.0
    %760 = vmatpush1.msra.mxu0 0.0
    %761 = vmatprep.subr.mxu0 0.0
    %762 = vmatpush1.msra.mxu0 0.0
    %763 = vmatprep.subr.mxu0 0.0
    %764 = vmatpush1.msra.mxu0 0.0
    %765 = vmatprep.subr.mxu0 0.0
    %766 = vmatpush1.msra.mxu0 0.0
    %767 = vmatprep.mubr.f32.mxu0 0.0
    %768 = vmatmul.mubr.f32.gmra.mrb[0].mxu0 %v693
    %v769 = vpop.f32.mrb[0].mxu0
    %v770 = vadd.f32 0.0, %v769
    %v771 = vpop.f32.mrb[0].mxu0
    %772 = vmatprep.mubr.f32.mxu0 0.0
    %773 = vmatmul.mubr.f32.gmra.mrb[0].mxu0 %v696
    %v774 = vpop.f32.mrb[0].mxu0
    %v775 = vadd.f32 0.0, %v774
    %v776 = vpop.f32.mrb[0].mxu0
    %777 = vmatprep.mubr.f32.mxu0 0.0
    %778 = vmatmul.mubr.f32.gmra.mrb[0].mxu0 %v699
    %v779 = vpop.f32.mrb[0].mxu0
    %v780 = vadd.f32 0.0, %v779
    %v781 = vpop.f32.mrb[0].mxu0
    %782 = vdwg.mxu0
    %783 = vrot.lane.b32.xlu0 %v541, 120
    %v784 = vpop.permute.xlu0 %783
    %785 = vrot.lane.b32.xlu0 %v542, 120
    %v786 = vpop.permute.xlu0 %785
    %787 = vrot.lane.b32.xlu0 %v543, 120
    %v788 = vpop.permute.xlu0 %787
    %789 = vrot.lane.b32.xlu0 %v514, 88
    %v790 = vpop.permute.xlu0 %789
    %791 = vrot.lane.b32.xlu0 %v519, 88
    %v792 = vpop.permute.xlu0 %791
    %793 = vrot.lane.b32.xlu0 %v524, 88
    %v794 = vpop.permute.xlu0 %793
    %v795 = vsel %vm553, %v784, 0
    %v797 = vsel %vm553, %v786, 0
    %v799 = vsel %vm553, %v788, 0
    %v801 = vsel %vm553, %v790, 0
    %v803 = vsel %vm553, %v792, 0
    %v805 = vsel %vm553, %v794, 0
    %807 = vmatprep.subr.mxu0 0.0
    %808 = vmatpush1.xpose.msra.mxu0 %v801
    %809 = vmatprep.subr.mxu0 0.0
    %810 = vmatpush1.xpose.msra.mxu0 %v803
    %811 = vmatprep.subr.mxu0 0.0
    %812 = vmatpush1.xpose.msra.mxu0 %v805
    %813 = vmatprep.subr.mxu0 0.0
    %814 = vmatpush1.xpose.msra.mxu0 0.0
    %815 = vmatprep.subr.mxu0 0.0
    %816 = vmatpush1.xpose.msra.mxu0 0.0
    %817 = vmatprep.subr.mxu0 0.0
    %818 = vmatpush1.xpose.msra.mxu0 0.0
    %819 = vmatprep.subr.mxu0 0.0
    %820 = vmatpush1.xpose.msra.mxu0 0.0
    %821 = vmatprep.subr.mxu0 0.0
    %822 = vmatpush1.xpose.msra.mxu0 0.0
    %823 = vmatprep.subr.mxu0 0.0
    %824 = vmatpush1.xpose.msra.mxu0 0.0
    %825 = vmatprep.subr.mxu0 0.0
    %826 = vmatpush1.xpose.msra.mxu0 0.0
    %827 = vmatprep.subr.mxu0 0.0
    %828 = vmatpush1.xpose.msra.mxu0 0.0
    %829 = vmatprep.subr.mxu0 0.0
    %830 = vmatpush1.xpose.msra.mxu0 0.0
    %831 = vmatprep.subr.mxu0 0.0
    %832 = vmatpush1.xpose.msra.mxu0 0.0
    %833 = vmatprep.subr.mxu0 0.0
    %834 = vmatpush1.xpose.msra.mxu0 0.0
    %835 = vmatprep.subr.mxu0 0.0
    %836 = vmatpush1.xpose.msra.mxu0 0.0
    %837 = vmatprep.subr.mxu0 0.0
    %838 = vmatpush1.xpose.msra.mxu0 0.0
    %839 = vmatprep.subr.mxu0 0.0
    %840 = vmatpush1.xpose.msra.mxu0 0.0
    %841 = vmatprep.subr.mxu0 0.0
    %842 = vmatpush1.xpose.msra.mxu0 0.0
    %843 = vmatprep.subr.mxu0 0.0
    %844 = vmatpush1.xpose.msra.mxu0 0.0
    %845 = vmatprep.subr.mxu0 0.0
    %846 = vmatpush1.xpose.msra.mxu0 0.0
    %847 = vmatprep.subr.mxu0 0.0
    %848 = vmatpush1.xpose.msra.mxu0 0.0
    %849 = vmatprep.subr.mxu0 0.0
    %850 = vmatpush1.xpose.msra.mxu0 0.0
    %851 = vmatprep.subr.mxu0 0.0
    %852 = vmatpush1.xpose.msra.mxu0 0.0
    %853 = vmatprep.subr.mxu0 0.0
    %854 = vmatpush1.xpose.msra.mxu0 0.0
    %855 = vmatprep.subr.mxu0 0.0
    %856 = vmatpush1.xpose.msra.mxu0 0.0
    %857 = vmatprep.subr.mxu0 0.0
    %858 = vmatpush1.xpose.msra.mxu0 0.0
    %859 = vmatprep.subr.mxu0 0.0
    %860 = vmatpush1.xpose.msra.mxu0 0.0
    %861 = vmatprep.subr.mxu0 0.0
    %862 = vmatpush1.xpose.msra.mxu0 0.0
    %863 = vmatprep.subr.mxu0 0.0
    %864 = vmatpush1.xpose.msra.mxu0 0.0
    %865 = vmatprep.subr.mxu0 0.0
    %866 = vmatpush1.xpose.msra.mxu0 0.0
    %867 = vmatprep.subr.mxu0 0.0
    %868 = vmatpush1.xpose.msra.mxu0 0.0
    %869 = vmatprep.subr.mxu0 0.0
    %870 = vmatpush1.xpose.msra.mxu0 0.0
    %871 = vmatprep.mubr.f32.mxu0 0.0
    %872 = vmatmul.mubr.f32.gmra.mrb[0].mxu0 %v795
    %v873 = vpop.f32.mrb[0].mxu0
    %v874 = vadd.f32 0.0, %v873
    %v875 = vpop.f32.mrb[0].mxu0
    %876 = vmatprep.mubr.f32.mxu0 0.0
    %877 = vmatmul.mubr.f32.gmra.mrb[0].mxu0 %v797
    %v878 = vpop.f32.mrb[0].mxu0
    %v879 = vadd.f32 0.0, %v878
    %v880 = vpop.f32.mrb[0].mxu0
    %881 = vmatprep.mubr.f32.mxu0 0.0
    %882 = vmatmul.mubr.f32.gmra.mrb[0].mxu0 %v799
    %v883 = vpop.f32.mrb[0].mxu0
    %v884 = vadd.f32 0.0, %v883
    %v885 = vpop.f32.mrb[0].mxu0
    %886 = vdwg.mxu0
    %v887 = vsel %vm649, %v874, -inf
    %888 = vmax.xlane.f32.xlu0 %v887
    %v889 = vpop.xlane.xlu0 %888
    %v890 = vsel %vm649, %v879, -inf
    %891 = vmax.xlane.f32.xlu0 %v890
    %v892 = vpop.xlane.xlu0 %891
    %v893 = vsel %vm656, %v884, -inf
    %894 = vmax.xlane.f32.xlu0 %v893
    %v895 = vpop.xlane.xlu0 %894
    %v896 = vsub.f32 %v874, %v889
    %v897 = vsub.f32 %v879, %v892
    %v898 = vsub.f32 %v884, %v895
    %v899 = vmul.f32 %v896, 1.442695
    %v900 = vpow.pop %v899
    %v901 = vmul.f32 %v897, 1.442695
    %v902 = vpow.pop %v901
    %v903 = vmul.f32 %v898, 1.442695
    %v904 = vpow.pop %v903
    %v905 = vsel %vm649, %v900, 0.0
    %906 = vadd.xlane.f32.xlu0 %v905
    %v907 = vpop.xlane.xlu0 %906
    %v908 = vsel %vm649, %v902, 0.0
    %909 = vadd.xlane.f32.xlu0 %v908
    %v910 = vpop.xlane.xlu0 %909
    %v911 = vsel %vm656, %v904, 0.0
    %912 = vadd.xlane.f32.xlu0 %v911
    %v913 = vpop.xlane.xlu0 %912
    %v914 = vrcp.pop %v907
    %v915 = vrcp.pop %v910
    %v916 = vrcp.pop %v913
    %v917 = vmul.f32 %v900, %v914
    %v918 = vmul.f32 %v902, %v915
    %v919 = vmul.f32 %v904, %v916
    %920 = vrot.lane.b32.xlu0 %v514, 56
    %v921 = vpop.permute.xlu0 %920
    %922 = vrot.lane.b32.xlu0 %v519, 56
    %v923 = vpop.permute.xlu0 %922
    %924 = vrot.lane.b32.xlu0 %v524, 56
    %v925 = vpop.permute.xlu0 %924
    %v929 = vsel %vm649, %v917, 0
    %v932 = vsel %vm649, %v918, 0
    %v935 = vsel %vm649, %v919, 0
    %v937 = vsel %vm225, %v925, 0
    %939 = vmatprep.subr.mxu0 0.0
    %940 = vmatpush1.msra.mxu0 %v921
    %941 = vmatprep.subr.mxu0 0.0
    %942 = vmatpush1.msra.mxu0 %v923
    %943 = vmatprep.subr.mxu0 0.0
    %944 = vmatpush1.msra.mxu0 %v937
    %945 = vmatprep.subr.mxu0 0.0
    %946 = vmatpush1.msra.mxu0 0.0
    %947 = vmatprep.subr.mxu0 0.0
    %948 = vmatpush1.msra.mxu0 0.0
    %949 = vmatprep.subr.mxu0 0.0
    %950 = vmatpush1.msra.mxu0 0.0
    %951 = vmatprep.subr.mxu0 0.0
    %952 = vmatpush1.msra.mxu0 0.0
    %953 = vmatprep.subr.mxu0 0.0
    %954 = vmatpush1.msra.mxu0 0.0
    %955 = vmatprep.subr.mxu0 0.0
    %956 = vmatpush1.msra.mxu0 0.0
    %957 = vmatprep.subr.mxu0 0.0
    %958 = vmatpush1.msra.mxu0 0.0
    %959 = vmatprep.subr.mxu0 0.0
    %960 = vmatpush1.msra.mxu0 0.0
    %961 = vmatprep.subr.mxu0 0.0
    %962 = vmatpush1.msra.mxu0 0.0
    %963 = vmatprep.subr.mxu0 0.0
    %964 = vmatpush1.msra.mxu0 0.0
    %965 = vmatprep.subr.mxu0 0.0
    %966 = vmatpush1.msra.mxu0 0.0
    %967 = vmatprep.subr.mxu0 0.0
    %968 = vmatpush1.msra.mxu0 0.0
    %969 = vmatprep.subr.mxu0 0.0
    %970 = vmatpush1.msra.mxu0 0.0
    %971 = vmatprep.subr.mxu0 0.0
    %972 = vmatpush1.msra.mxu0 0.0
    %973 = vmatprep.subr.mxu0 0.0
    %974 = vmatpush1.msra.mxu0 0.0
    %975 = vmatprep.subr.mxu0 0.0
    %976 = vmatpush1.msra.mxu0 0.0
    %977 = vmatprep.subr.mxu0 0.0
    %978 = vmatpush1.msra.mxu0 0.0
    %979 = vmatprep.subr.mxu0 0.0
    %980 = vmatpush1.msra.mxu0 0.0
    %981 = vmatprep.subr.mxu0 0.0
    %982 = vmatpush1.msra.mxu0 0.0
    %983 = vmatprep.subr.mxu0 0.0
    %984 = vmatpush1.msra.mxu0 0.0
    %985 = vmatprep.subr.mxu0 0.0
    %986 = vmatpush1.msra.mxu0 0.0
    %987 = vmatprep.subr.mxu0 0.0
    %988 = vmatpush1.msra.mxu0 0.0
    %989 = vmatprep.subr.mxu0 0.0
    %990 = vmatpush1.msra.mxu0 0.0
    %991 = vmatprep.subr.mxu0 0.0
    %992 = vmatpush1.msra.mxu0 0.0
    %993 = vmatprep.subr.mxu0 0.0
    %994 = vmatpush1.msra.mxu0 0.0
    %995 = vmatprep.subr.mxu0 0.0
    %996 = vmatpush1.msra.mxu0 0.0
    %997 = vmatprep.subr.mxu0 0.0
    %998 = vmatpush1.msra.mxu0 0.0
    %999 = vmatprep.subr.mxu0 0.0
    %1000 = vmatpush1.msra.mxu0 0.0
    %1001 = vmatprep.subr.mxu0 0.0
    %1002 = vmatpush1.msra.mxu0 0.0
    %1003 = vmatprep.mubr.f32.mxu0 0.0
    %1004 = vmatmul.mubr.f32.gmra.mrb[0].mxu0 %v929
    %v1005 = vpop.f32.mrb[0].mxu0
    %v1006 = vadd.f32 0.0, %v1005
    %v1007 = vpop.f32.mrb[0].mxu0
    %1008 = vmatprep.mubr.f32.mxu0 0.0
    %1009 = vmatmul.mubr.f32.gmra.mrb[0].mxu0 %v932
    %v1010 = vpop.f32.mrb[0].mxu0
    %v1011 = vadd.f32 0.0, %v1010
    %v1012 = vpop.f32.mrb[0].mxu0
    %1013 = vmatprep.mubr.f32.mxu0 0.0
    %1014 = vmatmul.mubr.f32.gmra.mrb[0].mxu0 %v935
    %v1015 = vpop.f32.mrb[0].mxu0
    %v1016 = vadd.f32 0.0, %v1015
    %v1017 = vpop.f32.mrb[0].mxu0
    %1018 = vdwg.mxu0
    %v1020 = vsel %vm553, %v1006, 0
    %v1023 = vsel %vm553, %v1011, 0
    %v1026 = vsel %vm553, %v1016, 0
    %1028 = vmatprep.subr.mxu0 0.0
    %1029 = vmatpush1.msra.mxu0 %v538
    %1030 = vmatprep.subr.mxu0 0.0
    %1031 = vmatpush1.msra.mxu0 0.0
    %1032 = vmatprep.subr.mxu0 0.0
    %1033 = vmatpush1.msra.mxu0 0.0
    %1034 = vmatprep.subr.mxu0 0.0
    %1035 = vmatpush1.msra.mxu0 0.0
    %1036 = vmatprep.subr.mxu0 0.0
    %1037 = vmatpush1.msra.mxu0 0.0
    %1038 = vmatprep.subr.mxu0 0.0
    %1039 = vmatpush1.msra.mxu0 0.0
    %1040 = vmatprep.subr.mxu0 0.0
    %1041 = vmatpush1.msra.mxu0 0.0
    %1042 = vmatprep.subr.mxu0 0.0
    %1043 = vmatpush1.msra.mxu0 0.0
    %1044 = vmatprep.subr.mxu0 0.0
    %1045 = vmatpush1.msra.mxu0 0.0
    %1046 = vmatprep.subr.mxu0 0.0
    %1047 = vmatpush1.msra.mxu0 0.0
    %1048 = vmatprep.subr.mxu0 0.0
    %1049 = vmatpush1.msra.mxu0 0.0
    %1050 = vmatprep.subr.mxu0 0.0
    %1051 = vmatpush1.msra.mxu0 0.0
    %1052 = vmatprep.subr.mxu0 0.0
    %1053 = vmatpush1.msra.mxu0 0.0
    %1054 = vmatprep.subr.mxu0 0.0
    %1055 = vmatpush1.msra.mxu0 0.0
    %1056 = vmatprep.subr.mxu0 0.0
    %1057 = vmatpush1.msra.mxu0 0.0
    %1058 = vmatprep.subr.mxu0 0.0
    %1059 = vmatpush1.msra.mxu0 0.0
    %1060 = vmatprep.subr.mxu0 0.0
    %1061 = vmatpush1.msra.mxu0 0.0
    %1062 = vmatprep.subr.mxu0 0.0
    %1063 = vmatpush1.msra.mxu0 0.0
    %1064 = vmatprep.subr.mxu0 0.0
    %1065 = vmatpush1.msra.mxu0 0.0
    %1066 = vmatprep.subr.mxu0 0.0
    %1067 = vmatpush1.msra.mxu0 0.0
    %1068 = vmatprep.subr.mxu0 0.0
    %1069 = vmatpush1.msra.mxu0 0.0
    %1070 = vmatprep.subr.mxu0 0.0
    %1071 = vmatpush1.msra.mxu0 0.0
    %1072 = vmatprep.subr.mxu0 0.0
    %1073 = vmatpush1.msra.mxu0 0.0
    %1074 = vmatprep.subr.mxu0 0.0
    %1075 = vmatpush1.msra.mxu0 0.0
    %1076 = vmatprep.subr.mxu0 0.0
    %1077 = vmatpush1.msra.mxu0 0.0
    %1078 = vmatprep.subr.mxu0 0.0
    %1079 = vmatpush1.msra.mxu0 0.0
    %1080 = vmatprep.subr.mxu0 0.0
    %1081 = vmatpush1.msra.mxu0 0.0
    %1082 = vmatprep.subr.mxu0 0.0
    %1083 = vmatpush1.msra.mxu0 0.0
    %1084 = vmatprep.subr.mxu0 0.0
    %1085 = vmatpush1.msra.mxu0 0.0
    %1086 = vmatprep.subr.mxu0 0.0
    %1087 = vmatpush1.msra.mxu0 0.0
    %1088 = vmatprep.subr.mxu0 0.0
    %1089 = vmatpush1.msra.mxu0 0.0
    %1090 = vmatprep.subr.mxu0 0.0
    %1091 = vmatpush1.msra.mxu0 0.0
    %1092 = vmatprep.mubr.f32.mxu0 0.0
    %1093 = vmatmul.mubr.f32.gmra.mrb[0].mxu0 %v1020
    %v1094 = vpop.f32.mrb[0].mxu0
    %v1095 = vadd.f32 0.0, %v1094
    %v1096 = vpop.f32.mrb[0].mxu0
    %1097 = vmatprep.mubr.f32.mxu0 0.0
    %1098 = vmatmul.mubr.f32.gmra.mrb[0].mxu0 %v1023
    %v1099 = vpop.f32.mrb[0].mxu0
    %v1100 = vadd.f32 0.0, %v1099
    %v1101 = vpop.f32.mrb[0].mxu0
    %1102 = vmatprep.mubr.f32.mxu0 0.0
    %1103 = vmatmul.mubr.f32.gmra.mrb[0].mxu0 %v1026
    %v1104 = vpop.f32.mrb[0].mxu0
    %v1105 = vadd.f32 0.0, %v1104
    %v1106 = vpop.f32.mrb[0].mxu0
    %1107 = vdwg.mxu0
    %v1109 = vsel %vm553, %v770, 0
    %v1112 = vsel %vm553, %v775, 0
    %v1115 = vsel %vm553, %v780, 0
    %1117 = vmatprep.subr.mxu0 0.0
    %1118 = vmatpush1.msra.mxu0 %v537
    %1119 = vmatprep.subr.mxu0 0.0
    %1120 = vmatpush1.msra.mxu0 0.0
    %1121 = vmatprep.subr.mxu0 0.0
    %1122 = vmatpush1.msra.mxu0 0.0
    %1123 = vmatprep.subr.mxu0 0.0
    %1124 = vmatpush1.msra.mxu0 0.0
    %1125 = vmatprep.subr.mxu0 0.0
    %1126 = vmatpush1.msra.mxu0 0.0
    %1127 = vmatprep.subr.mxu0 0.0
    %1128 = vmatpush1.msra.mxu0 0.0
    %1129 = vmatprep.subr.mxu0 0.0
    %1130 = vmatpush1.msra.mxu0 0.0
    %1131 = vmatprep.subr.mxu0 0.0
    %1132 = vmatpush1.msra.mxu0 0.0
    %1133 = vmatprep.subr.mxu0 0.0
    %1134 = vmatpush1.msra.mxu0 0.0
    %1135 = vmatprep.subr.mxu0 0.0
    %1136 = vmatpush1.msra.mxu0 0.0
    %1137 = vmatprep.subr.mxu0 0.0
    %1138 = vmatpush1.msra.mxu0 0.0
    %1139 = vmatprep.subr.mxu0 0.0
    %1140 = vmatpush1.msra.mxu0 0.0
    %1141 = vmatprep.subr.mxu0 0.0
    %1142 = vmatpush1.msra.mxu0 0.0
    %1143 = vmatprep.subr.mxu0 0.0
    %1144 = vmatpush1.msra.mxu0 0.0
    %1145 = vmatprep.subr.mxu0 0.0
    %1146 = vmatpush1.msra.mxu0 0.0
    %1147 = vmatprep.subr.mxu0 0.0
    %1148 = vmatpush1.msra.mxu0 0.0
    %1149 = vmatprep.subr.mxu0 0.0
    %1150 = vmatpush1.msra.mxu0 0.0
    %1151 = vmatprep.subr.mxu0 0.0
    %1152 = vmatpush1.msra.mxu0 0.0
    %1153 = vmatprep.subr.mxu0 0.0
    %1154 = vmatpush1.msra.mxu0 0.0
    %1155 = vmatprep.subr.mxu0 0.0
    %1156 = vmatpush1.msra.mxu0 0.0
    %1157 = vmatprep.subr.mxu0 0.0
    %1158 = vmatpush1.msra.mxu0 0.0
    %1159 = vmatprep.subr.mxu0 0.0
    %1160 = vmatpush1.msra.mxu0 0.0
    %1161 = vmatprep.subr.mxu0 0.0
    %1162 = vmatpush1.msra.mxu0 0.0
    %1163 = vmatprep.subr.mxu0 0.0
    %1164 = vmatpush1.msra.mxu0 0.0
    %1165 = vmatprep.subr.mxu0 0.0
    %1166 = vmatpush1.msra.mxu0 0.0
    %1167 = vmatprep.subr.mxu0 0.0
    %1168 = vmatpush1.msra.mxu0 0.0
    %1169 = vmatprep.subr.mxu0 0.0
    %1170 = vmatpush1.msra.mxu0 0.0
    %1171 = vmatprep.subr.mxu0 0.0
    %1172 = vmatpush1.msra.mxu0 0.0
    %1173 = vmatprep.subr.mxu0 0.0
    %1174 = vmatpush1.msra.mxu0 0.0
    %1175 = vmatprep.subr.mxu0 0.0
    %1176 = vmatpush1.msra.mxu0 0.0
    %1177 = vmatprep.subr.mxu0 0.0
    %1178 = vmatpush1.msra.mxu0 0.0
    %1179 = vmatprep.subr.mxu0 0.0
    %1180 = vmatpush1.msra.mxu0 0.0
    %1181 = vmatprep.mubr.f32.mxu0 0.0
    %1182 = vmatmul.mubr.f32.gmra.mrb[0].mxu0 %v1109
    %v1183 = vpop.f32.mrb[0].mxu0
    %v1184 = vadd.f32 %v1095, %v1183
    %v1185 = vpop.f32.mrb[0].mxu0
    %1186 = vmatprep.mubr.f32.mxu0 0.0
    %1187 = vmatmul.mubr.f32.gmra.mrb[0].mxu0 %v1112
    %v1188 = vpop.f32.mrb[0].mxu0
    %v1189 = vadd.f32 %v1100, %v1188
    %v1190 = vpop.f32.mrb[0].mxu0
    %1191 = vmatprep.mubr.f32.mxu0 0.0
    %1192 = vmatmul.mubr.f32.gmra.mrb[0].mxu0 %v1115
    %v1193 = vpop.f32.mrb[0].mxu0
    %v1194 = vadd.f32 %v1105, %v1193
    %v1195 = vpop.f32.mrb[0].mxu0
    %1196 = vdwg.mxu0
    %1197 = vrot.lane.b32.xlu0 %v541, 112
    %v1198 = vpop.permute.xlu0 %1197
    %1199 = vrot.lane.b32.xlu0 %v542, 112
    %v1200 = vpop.permute.xlu0 %1199
    %1201 = vrot.lane.b32.xlu0 %v543, 112
    %v1202 = vpop.permute.xlu0 %1201
    %1203 = vrot.lane.b32.xlu0 %v514, 80
    %v1204 = vpop.permute.xlu0 %1203
    %1205 = vrot.lane.b32.xlu0 %v519, 80
    %v1206 = vpop.permute.xlu0 %1205
    %1207 = vrot.lane.b32.xlu0 %v524, 80
    %v1208 = vpop.permute.xlu0 %1207
    %v1209 = vsel %vm553, %v1198, 0
    %v1211 = vsel %vm553, %v1200, 0
    %v1213 = vsel %vm553, %v1202, 0
    %v1215 = vsel %vm553, %v1204, 0
    %v1217 = vsel %vm553, %v1206, 0
    %v1219 = vsel %vm553, %v1208, 0
    %1221 = vmatprep.subr.mxu0 0.0
    %1222 = vmatpush1.xpose.msra.mxu0 %v1215
    %1223 = vmatprep.subr.mxu0 0.0
    %1224 = vmatpush1.xpose.msra.mxu0 %v1217
    %1225 = vmatprep.subr.mxu0 0.0
    %1226 = vmatpush1.xpose.msra.mxu0 %v1219
    %1227 = vmatprep.subr.mxu0 0.0
    %1228 = vmatpush1.xpose.msra.mxu0 0.0
    %1229 = vmatprep.subr.mxu0 0.0
    %1230 = vmatpush1.xpose.msra.mxu0 0.0
    %1231 = vmatprep.subr.mxu0 0.0
    %1232 = vmatpush1.xpose.msra.mxu0 0.0
    %1233 = vmatprep.subr.mxu0 0.0
    %1234 = vmatpush1.xpose.msra.mxu0 0.0
    %1235 = vmatprep.subr.mxu0 0.0
    %1236 = vmatpush1.xpose.msra.mxu0 0.0
    %1237 = vmatprep.subr.mxu0 0.0
    %1238 = vmatpush1.xpose.msra.mxu0 0.0
    %1239 = vmatprep.subr.mxu0 0.0
    %1240 = vmatpush1.xpose.msra.mxu0 0.0
    %1241 = vmatprep.subr.mxu0 0.0
    %1242 = vmatpush1.xpose.msra.mxu0 0.0
    %1243 = vmatprep.subr.mxu0 0.0
    %1244 = vmatpush1.xpose.msra.mxu0 0.0
    %1245 = vmatprep.subr.mxu0 0.0
    %1246 = vmatpush1.xpose.msra.mxu0 0.0
    %1247 = vmatprep.subr.mxu0 0.0
    %1248 = vmatpush1.xpose.msra.mxu0 0.0
    %1249 = vmatprep.subr.mxu0 0.0
    %1250 = vmatpush1.xpose.msra.mxu0 0.0
    %1251 = vmatprep.subr.mxu0 0.0
    %1252 = vmatpush1.xpose.msra.mxu0 0.0
    %1253 = vmatprep.subr.mxu0 0.0
    %1254 = vmatpush1.xpose.msra.mxu0 0.0
    %1255 = vmatprep.subr.mxu0 0.0
    %1256 = vmatpush1.xpose.msra.mxu0 0.0
    %1257 = vmatprep.subr.mxu0 0.0
    %1258 = vmatpush1.xpose.msra.mxu0 0.0
    %1259 = vmatprep.subr.mxu0 0.0
    %1260 = vmatpush1.xpose.msra.mxu0 0.0
    %1261 = vmatprep.subr.mxu0 0.0
    %1262 = vmatpush1.xpose.msra.mxu0 0.0
    %1263 = vmatprep.subr.mxu0 0.0
    %1264 = vmatpush1.xpose.msra.mxu0 0.0
    %1265 = vmatprep.subr.mxu0 0.0
    %1266 = vmatpush1.xpose.msra.mxu0 0.0
    %1267 = vmatprep.subr.mxu0 0.0
    %1268 = vmatpush1.xpose.msra.mxu0 0.0
    %1269 = vmatprep.subr.mxu0 0.0
    %1270 = vmatpush1.xpose.msra.mxu0 0.0
    %1271 = vmatprep.subr.mxu0 0.0
    %1272 = vmatpush1.xpose.msra.mxu0 0.0
    %1273 = vmatprep.subr.mxu0 0.0
    %1274 = vmatpush1.xpose.msra.mxu0 0.0
    %1275 = vmatprep.subr.mxu0 0.0
    %1276 = vmatpush1.xpose.msra.mxu0 0.0
    %1277 = vmatprep.subr.mxu0 0.0
    %1278 = vmatpush1.xpose.msra.mxu0 0.0
    %1279 = vmatprep.subr.mxu0 0.0
    %1280 = vmatpush1.xpose.msra.mxu0 0.0
    %1281 = vmatprep.subr.mxu0 0.0
    %1282 = vmatpush1.xpose.msra.mxu0 0.0
    %1283 = vmatprep.subr.mxu0 0.0
    %1284 = vmatpush1.xpose.msra.mxu0 0.0
    %1285 = vmatprep.mubr.f32.mxu0 0.0
    %1286 = vmatmul.mubr.f32.gmra.mrb[0].mxu0 %v1209
    %v1287 = vpop.f32.mrb[0].mxu0
    %v1288 = vadd.f32 0.0, %v1287
    %v1289 = vpop.f32.mrb[0].mxu0
    %1290 = vmatprep.mubr.f32.mxu0 0.0
    %1291 = vmatmul.mubr.f32.gmra.mrb[0].mxu0 %v1211
    %v1292 = vpop.f32.mrb[0].mxu0
    %v1293 = vadd.f32 0.0, %v1292
    %v1294 = vpop.f32.mrb[0].mxu0
    %1295 = vmatprep.mubr.f32.mxu0 0.0
    %1296 = vmatmul.mubr.f32.gmra.mrb[0].mxu0 %v1213
    %v1297 = vpop.f32.mrb[0].mxu0
    %v1298 = vadd.f32 0.0, %v1297
    %v1299 = vpop.f32.mrb[0].mxu0
    %1300 = vdwg.mxu0
    %v1301 = vsel %vm649, %v1288, -inf
    %1302 = vmax.xlane.f32.xlu0 %v1301
    %v1303 = vpop.xlane.xlu0 %1302
    %v1304 = vsel %vm649, %v1293, -inf
    %1305 = vmax.xlane.f32.xlu0 %v1304
    %v1306 = vpop.xlane.xlu0 %1305
    %v1307 = vsel %vm656, %v1298, -inf
    %1308 = vmax.xlane.f32.xlu0 %v1307
    %v1309 = vpop.xlane.xlu0 %1308
    %v1310 = vsub.f32 %v1288, %v1303
    %v1311 = vsub.f32 %v1293, %v1306
    %v1312 = vsub.f32 %v1298, %v1309
    %v1313 = vmul.f32 %v1310, 1.442695
    %v1314 = vpow.pop %v1313
    %v1315 = vmul.f32 %v1311, 1.442695
    %v1316 = vpow.pop %v1315
    %v1317 = vmul.f32 %v1312, 1.442695
    %v1318 = vpow.pop %v1317
    %v1319 = vsel %vm649, %v1314, 0.0
    %1320 = vadd.xlane.f32.xlu0 %v1319
    %v1321 = vpop.xlane.xlu0 %1320
    %v1322 = vsel %vm649, %v1316, 0.0
    %1323 = vadd.xlane.f32.xlu0 %v1322
    %v1324 = vpop.xlane.xlu0 %1323
    %v1325 = vsel %vm656, %v1318, 0.0
    %1326 = vadd.xlane.f32.xlu0 %v1325
    %v1327 = vpop.xlane.xlu0 %1326
    %v1328 = vrcp.pop %v1321
    %v1329 = vrcp.pop %v1324
    %v1330 = vrcp.pop %v1327
    %v1331 = vmul.f32 %v1314, %v1328
    %v1332 = vmul.f32 %v1316, %v1329
    %v1333 = vmul.f32 %v1318, %v1330
    %1334 = vrot.lane.b32.xlu0 %v514, 48
    %v1335 = vpop.permute.xlu0 %1334
    %1336 = vrot.lane.b32.xlu0 %v519, 48
    %v1337 = vpop.permute.xlu0 %1336
    %1338 = vrot.lane.b32.xlu0 %v524, 48
    %v1339 = vpop.permute.xlu0 %1338
    %v1343 = vsel %vm649, %v1331, 0
    %v1346 = vsel %vm649, %v1332, 0
    %v1349 = vsel %vm649, %v1333, 0
    %v1351 = vsel %vm225, %v1339, 0
    %1353 = vmatprep.subr.mxu0 0.0
    %1354 = vmatpush1.msra.mxu0 %v1335
    %1355 = vmatprep.subr.mxu0 0.0
    %1356 = vmatpush1.msra.mxu0 %v1337
    %1357 = vmatprep.subr.mxu0 0.0
    %1358 = vmatpush1.msra.mxu0 %v1351
    %1359 = vmatprep.subr.mxu0 0.0
    %1360 = vmatpush1.msra.mxu0 0.0
    %1361 = vmatprep.subr.mxu0 0.0
    %1362 = vmatpush1.msra.mxu0 0.0
    %1363 = vmatprep.subr.mxu0 0.0
    %1364 = vmatpush1.msra.mxu0 0.0
    %1365 = vmatprep.subr.mxu0 0.0
    %1366 = vmatpush1.msra.mxu0 0.0
    %1367 = vmatprep.subr.mxu0 0.0
    %1368 = vmatpush1.msra.mxu0 0.0
    %1369 = vmatprep.subr.mxu0 0.0
    %1370 = vmatpush1.msra.mxu0 0.0
    %1371 = vmatprep.subr.mxu0 0.0
    %1372 = vmatpush1.msra.mxu0 0.0
    %1373 = vmatprep.subr.mxu0 0.0
    %1374 = vmatpush1.msra.mxu0 0.0
    %1375 = vmatprep.subr.mxu0 0.0
    %1376 = vmatpush1.msra.mxu0 0.0
    %1377 = vmatprep.subr.mxu0 0.0
    %1378 = vmatpush1.msra.mxu0 0.0
    %1379 = vmatprep.subr.mxu0 0.0
    %1380 = vmatpush1.msra.mxu0 0.0
    %1381 = vmatprep.subr.mxu0 0.0
    %1382 = vmatpush1.msra.mxu0 0.0
    %1383 = vmatprep.subr.mxu0 0.0
    %1384 = vmatpush1.msra.mxu0 0.0
    %1385 = vmatprep.subr.mxu0 0.0
    %1386 = vmatpush1.msra.mxu0 0.0
    %1387 = vmatprep.subr.mxu0 0.0
    %1388 = vmatpush1.msra.mxu0 0.0
    %1389 = vmatprep.subr.mxu0 0.0
    %1390 = vmatpush1.msra.mxu0 0.0
    %1391 = vmatprep.subr.mxu0 0.0
    %1392 = vmatpush1.msra.mxu0 0.0
    %1393 = vmatprep.subr.mxu0 0.0
    %1394 = vmatpush1.msra.mxu0 0.0
    %1395 = vmatprep.subr.mxu0 0.0
    %1396 = vmatpush1.msra.mxu0 0.0
    %1397 = vmatprep.subr.mxu0 0.0
    %1398 = vmatpush1.msra.mxu0 0.0
    %1399 = vmatprep.subr.mxu0 0.0
    %1400 = vmatpush1.msra.mxu0 0.0
    %1401 = vmatprep.subr.mxu0 0.0
    %1402 = vmatpush1.msra.mxu0 0.0
    %1403 = vmatprep.subr.mxu0 0.0
    %1404 = vmatpush1.msra.mxu0 0.0
    %1405 = vmatprep.subr.mxu0 0.0
    %1406 = vmatpush1.msra.mxu0 0.0
    %1407 = vmatprep.subr.mxu0 0.0
    %1408 = vmatpush1.msra.mxu0 0.0
    %1409 = vmatprep.subr.mxu0 0.0
    %1410 = vmatpush1.msra.mxu0 0.0
    %1411 = vmatprep.subr.mxu0 0.0
    %1412 = vmatpush1.msra.mxu0 0.0
    %1413 = vmatprep.subr.mxu0 0.0
    %1414 = vmatpush1.msra.mxu0 0.0
    %1415 = vmatprep.subr.mxu0 0.0
    %1416 = vmatpush1.msra.mxu0 0.0
    %1417 = vmatprep.mubr.f32.mxu0 0.0
    %1418 = vmatmul.mubr.f32.gmra.mrb[0].mxu0 %v1343
    %v1419 = vpop.f32.mrb[0].mxu0
    %v1420 = vadd.f32 0.0, %v1419
    %v1421 = vpop.f32.mrb[0].mxu0
    %1422 = vmatprep.mubr.f32.mxu0 0.0
    %1423 = vmatmul.mubr.f32.gmra.mrb[0].mxu0 %v1346
    %v1424 = vpop.f32.mrb[0].mxu0
    %v1425 = vadd.f32 0.0, %v1424
    %v1426 = vpop.f32.mrb[0].mxu0
    %1427 = vmatprep.mubr.f32.mxu0 0.0
    %1428 = vmatmul.mubr.f32.gmra.mrb[0].mxu0 %v1349
    %v1429 = vpop.f32.mrb[0].mxu0
    %v1430 = vadd.f32 0.0, %v1429
    %v1431 = vpop.f32.mrb[0].mxu0
    %1432 = vdwg.mxu0
    %v1434 = vsel %vm553, %v1420, 0
    %v1437 = vsel %vm553, %v1425, 0
    %v1440 = vsel %vm553, %v1430, 0
    %1442 = vmatprep.subr.mxu0 0.0
    %1443 = vmatpush1.msra.mxu0 %v539
    %1444 = vmatprep.subr.mxu0 0.0
    %1445 = vmatpush1.msra.mxu0 0.0
    %1446 = vmatprep.subr.mxu0 0.0
    %1447 = vmatpush1.msra.mxu0 0.0
    %1448 = vmatprep.subr.mxu0 0.0
    %1449 = vmatpush1.msra.mxu0 0.0
    %1450 = vmatprep.subr.mxu0 0.0
    %1451 = vmatpush1.msra.mxu0 0.0
    %1452 = vmatprep.subr.mxu0 0.0
    %1453 = vmatpush1.msra.mxu0 0.0
    %1454 = vmatprep.subr.mxu0 0.0
    %1455 = vmatpush1.msra.mxu0 0.0
    %1456 = vmatprep.subr.mxu0 0.0
    %1457 = vmatpush1.msra.mxu0 0.0
    %1458 = vmatprep.subr.mxu0 0.0
    %1459 = vmatpush1.msra.mxu0 0.0
    %1460 = vmatprep.subr.mxu0 0.0
    %1461 = vmatpush1.msra.mxu0 0.0
    %1462 = vmatprep.subr.mxu0 0.0
    %1463 = vmatpush1.msra.mxu0 0.0
    %1464 = vmatprep.subr.mxu0 0.0
    %1465 = vmatpush1.msra.mxu0 0.0
    %1466 = vmatprep.subr.mxu0 0.0
    %1467 = vmatpush1.msra.mxu0 0.0
    %1468 = vmatprep.subr.mxu0 0.0
    %1469 = vmatpush1.msra.mxu0 0.0
    %1470 = vmatprep.subr.mxu0 0.0
    %1471 = vmatpush1.msra.mxu0 0.0
    %1472 = vmatprep.subr.mxu0 0.0
    %1473 = vmatpush1.msra.mxu0 0.0
    %1474 = vmatprep.subr.mxu0 0.0
    %1475 = vmatpush1.msra.mxu0 0.0
    %1476 = vmatprep.subr.mxu0 0.0
    %1477 = vmatpush1.msra.mxu0 0.0
    %1478 = vmatprep.subr.mxu0 0.0
    %1479 = vmatpush1.msra.mxu0 0.0
    %1480 = vmatprep.subr.mxu0 0.0
    %1481 = vmatpush1.msra.mxu0 0.0
    %1482 = vmatprep.subr.mxu0 0.0
    %1483 = vmatpush1.msra.mxu0 0.0
    %1484 = vmatprep.subr.mxu0 0.0
    %1485 = vmatpush1.msra.mxu0 0.0
    %1486 = vmatprep.subr.mxu0 0.0
    %1487 = vmatpush1.msra.mxu0 0.0
    %1488 = vmatprep.subr.mxu0 0.0
    %1489 = vmatpush1.msra.mxu0 0.0
    %1490 = vmatprep.subr.mxu0 0.0
    %1491 = vmatpush1.msra.mxu0 0.0
    %1492 = vmatprep.subr.mxu0 0.0
    %1493 = vmatpush1.msra.mxu0 0.0
    %1494 = vmatprep.subr.mxu0 0.0
    %1495 = vmatpush1.msra.mxu0 0.0
    %1496 = vmatprep.subr.mxu0 0.0
    %1497 = vmatpush1.msra.mxu0 0.0
    %1498 = vmatprep.subr.mxu0 0.0
    %1499 = vmatpush1.msra.mxu0 0.0
    %1500 = vmatprep.subr.mxu0 0.0
    %1501 = vmatpush1.msra.mxu0 0.0
    %1502 = vmatprep.subr.mxu0 0.0
    %1503 = vmatpush1.msra.mxu0 0.0
    %1504 = vmatprep.subr.mxu0 0.0
    %1505 = vmatpush1.msra.mxu0 0.0
    %1506 = vmatprep.mubr.f32.mxu0 0.0
    %1507 = vmatmul.mubr.f32.gmra.mrb[0].mxu0 %v1434
    %v1508 = vpop.f32.mrb[0].mxu0
    %v1509 = vadd.f32 0.0, %v1508
    %v1510 = vpop.f32.mrb[0].mxu0
    %1511 = vmatprep.mubr.f32.mxu0 0.0
    %1512 = vmatmul.mubr.f32.gmra.mrb[0].mxu0 %v1437
    %v1513 = vpop.f32.mrb[0].mxu0
    %v1514 = vadd.f32 0.0, %v1513
    %v1515 = vpop.f32.mrb[0].mxu0
    %1516 = vmatprep.mubr.f32.mxu0 0.0
    %1517 = vmatmul.mubr.f32.gmra.mrb[0].mxu0 %v1440
    %v1518 = vpop.f32.mrb[0].mxu0
    %v1519 = vadd.f32 0.0, %v1518
    %v1520 = vpop.f32.mrb[0].mxu0
    %1521 = vdwg.mxu0
    %v1522 = vadd.f32 %v1184, %v1509
    %v1523 = vadd.f32 %v1189, %v1514
    %v1524 = vadd.f32 %v1194, %v1519
    %1525 = vrot.lane.b32.xlu0 %v541, 104
    %v1526 = vpop.permute.xlu0 %1525
    %1527 = vrot.lane.b32.xlu0 %v542, 104
    %v1528 = vpop.permute.xlu0 %1527
    %1529 = vrot.lane.b32.xlu0 %v543, 104
    %v1530 = vpop.permute.xlu0 %1529
    %1531 = vrot.lane.b32.xlu0 %v514, 72
    %v1532 = vpop.permute.xlu0 %1531
    %1533 = vrot.lane.b32.xlu0 %v519, 72
    %v1534 = vpop.permute.xlu0 %1533
    %1535 = vrot.lane.b32.xlu0 %v524, 72
    %v1536 = vpop.permute.xlu0 %1535
    %v1537 = vsel %vm553, %v1526, 0
    %v1539 = vsel %vm553, %v1528, 0
    %v1541 = vsel %vm553, %v1530, 0
    %v1543 = vsel %vm553, %v1532, 0
    %v1545 = vsel %vm553, %v1534, 0
    %v1547 = vsel %vm553, %v1536, 0
    %1549 = vmatprep.subr.mxu0 0.0
    %1550 = vmatpush1.xpose.msra.mxu0 %v1543
    %1551 = vmatprep.subr.mxu0 0.0
    %1552 = vmatpush1.xpose.msra.mxu0 %v1545
    %1553 = vmatprep.subr.mxu0 0.0
    %1554 = vmatpush1.xpose.msra.mxu0 %v1547
    %1555 = vmatprep.subr.mxu0 0.0
    %1556 = vmatpush1.xpose.msra.mxu0 0.0
    %1557 = vmatprep.subr.mxu0 0.0
    %1558 = vmatpush1.xpose.msra.mxu0 0.0
    %1559 = vmatprep.subr.mxu0 0.0
    %1560 = vmatpush1.xpose.msra.mxu0 0.0
    %1561 = vmatprep.subr.mxu0 0.0
    %1562 = vmatpush1.xpose.msra.mxu0 0.0
    %1563 = vmatprep.subr.mxu0 0.0
    %1564 = vmatpush1.xpose.msra.mxu0 0.0
    %1565 = vmatprep.subr.mxu0 0.0
    %1566 = vmatpush1.xpose.msra.mxu0 0.0
    %1567 = vmatprep.subr.mxu0 0.0
    %1568 = vmatpush1.xpose.msra.mxu0 0.0
    %1569 = vmatprep.subr.mxu0 0.0
    %1570 = vmatpush1.xpose.msra.mxu0 0.0
    %1571 = vmatprep.subr.mxu0 0.0
    %1572 = vmatpush1.xpose.msra.mxu0 0.0
    %1573 = vmatprep.subr.mxu0 0.0
    %1574 = vmatpush1.xpose.msra.mxu0 0.0
    %1575 = vmatprep.subr.mxu0 0.0
    %1576 = vmatpush1.xpose.msra.mxu0 0.0
    %1577 = vmatprep.subr.mxu0 0.0
    %1578 = vmatpush1.xpose.msra.mxu0 0.0
    %1579 = vmatprep.subr.mxu0 0.0
    %1580 = vmatpush1.xpose.msra.mxu0 0.0
    %1581 = vmatprep.subr.mxu0 0.0
    %1582 = vmatpush1.xpose.msra.mxu0 0.0
    %1583 = vmatprep.subr.mxu0 0.0
    %1584 = vmatpush1.xpose.msra.mxu0 0.0
    %1585 = vmatprep.subr.mxu0 0.0
    %1586 = vmatpush1.xpose.msra.mxu0 0.0
    %1587 = vmatprep.subr.mxu0 0.0
    %1588 = vmatpush1.xpose.msra.mxu0 0.0
    %1589 = vmatprep.subr.mxu0 0.0
    %1590 = vmatpush1.xpose.msra.mxu0 0.0
    %1591 = vmatprep.subr.mxu0 0.0
    %1592 = vmatpush1.xpose.msra.mxu0 0.0
    %1593 = vmatprep.subr.mxu0 0.0
    %1594 = vmatpush1.xpose.msra.mxu0 0.0
    %1595 = vmatprep.subr.mxu0 0.0
    %1596 = vmatpush1.xpose.msra.mxu0 0.0
    %1597 = vmatprep.subr.mxu0 0.0
    %1598 = vmatpush1.xpose.msra.mxu0 0.0
    %1599 = vmatprep.subr.mxu0 0.0
    %1600 = vmatpush1.xpose.msra.mxu0 0.0
    %1601 = vmatprep.subr.mxu0 0.0
    %1602 = vmatpush1.xpose.msra.mxu0 0.0
    %1603 = vmatprep.subr.mxu0 0.0
    %1604 = vmatpush1.xpose.msra.mxu0 0.0
    %1605 = vmatprep.subr.mxu0 0.0
    %1606 = vmatpush1.xpose.msra.mxu0 0.0
    %1607 = vmatprep.subr.mxu0 0.0
    %1608 = vmatpush1.xpose.msra.mxu0 0.0
    %1609 = vmatprep.subr.mxu0 0.0
    %1610 = vmatpush1.xpose.msra.mxu0 0.0
    %1611 = vmatprep.subr.mxu0 0.0
    %1612 = vmatpush1.xpose.msra.mxu0 0.0
    %1613 = vmatprep.mubr.f32.mxu0 0.0
    %1614 = vmatmul.mubr.f32.gmra.mrb[0].mxu0 %v1537
    %v1615 = vpop.f32.mrb[0].mxu0
    %v1616 = vadd.f32 0.0, %v1615
    %v1617 = vpop.f32.mrb[0].mxu0
    %1618 = vmatprep.mubr.f32.mxu0 0.0
    %1619 = vmatmul.mubr.f32.gmra.mrb[0].mxu0 %v1539
    %v1620 = vpop.f32.mrb[0].mxu0
    %v1621 = vadd.f32 0.0, %v1620
    %v1622 = vpop.f32.mrb[0].mxu0
    %1623 = vmatprep.mubr.f32.mxu0 0.0
    %1624 = vmatmul.mubr.f32.gmra.mrb[0].mxu0 %v1541
    %v1625 = vpop.f32.mrb[0].mxu0
    %v1626 = vadd.f32 0.0, %v1625
    %v1627 = vpop.f32.mrb[0].mxu0
    %1628 = vdwg.mxu0
    %v1629 = vsel %vm649, %v1616, -inf
    %1630 = vmax.xlane.f32.xlu0 %v1629
    %v1631 = vpop.xlane.xlu0 %1630
    %v1632 = vsel %vm649, %v1621, -inf
    %1633 = vmax.xlane.f32.xlu0 %v1632
    %v1634 = vpop.xlane.xlu0 %1633
    %v1635 = vsel %vm656, %v1626, -inf
    %1636 = vmax.xlane.f32.xlu0 %v1635
    %v1637 = vpop.xlane.xlu0 %1636
    %v1638 = vsub.f32 %v1616, %v1631
    %v1639 = vsub.f32 %v1621, %v1634
    %v1640 = vsub.f32 %v1626, %v1637
    %v1641 = vmul.f32 %v1638, 1.442695
    %v1642 = vpow.pop %v1641
    %v1643 = vmul.f32 %v1639, 1.442695
    %v1644 = vpow.pop %v1643
    %v1645 = vmul.f32 %v1640, 1.442695
    %v1646 = vpow.pop %v1645
    %v1647 = vsel %vm649, %v1642, 0.0
    %1648 = vadd.xlane.f32.xlu0 %v1647
    %v1649 = vpop.xlane.xlu0 %1648
    %v1650 = vsel %vm649, %v1644, 0.0
    %1651 = vadd.xlane.f32.xlu0 %v1650
    %v1652 = vpop.xlane.xlu0 %1651
    %v1653 = vsel %vm656, %v1646, 0.0
    %1654 = vadd.xlane.f32.xlu0 %v1653
    %v1655 = vpop.xlane.xlu0 %1654
    %v1656 = vrcp.pop %v1649
    %v1657 = vrcp.pop %v1652
    %v1658 = vrcp.pop %v1655
    %v1659 = vmul.f32 %v1642, %v1656
    %v1660 = vmul.f32 %v1644, %v1657
    %v1661 = vmul.f32 %v1646, %v1658
    %1662 = vrot.lane.b32.xlu0 %v514, 40
    %v1663 = vpop.permute.xlu0 %1662
    %1664 = vrot.lane.b32.xlu0 %v519, 40
    %v1665 = vpop.permute.xlu0 %1664
    %1666 = vrot.lane.b32.xlu0 %v524, 40
    %v1667 = vpop.permute.xlu0 %1666
    %v1671 = vsel %vm649, %v1659, 0
    %v1674 = vsel %vm649, %v1660, 0
    %v1677 = vsel %vm649, %v1661, 0
    %v1679 = vsel %vm225, %v1667, 0
    %1681 = vmatprep.subr.mxu0 0.0
    %1682 = vmatpush1.msra.mxu0 %v1663
    %1683 = vmatprep.subr.mxu0 0.0
    %1684 = vmatpush1.msra.mxu0 %v1665
    %1685 = vmatprep.subr.mxu0 0.0
    %1686 = vmatpush1.msra.mxu0 %v1679
    %1687 = vmatprep.subr.mxu0 0.0
    %1688 = vmatpush1.msra.mxu0 0.0
    %1689 = vmatprep.subr.mxu0 0.0
    %1690 = vmatpush1.msra.mxu0 0.0
    %1691 = vmatprep.subr.mxu0 0.0
    %1692 = vmatpush1.msra.mxu0 0.0
    %1693 = vmatprep.subr.mxu0 0.0
    %1694 = vmatpush1.msra.mxu0 0.0
    %1695 = vmatprep.subr.mxu0 0.0
    %1696 = vmatpush1.msra.mxu0 0.0
    %1697 = vmatprep.subr.mxu0 0.0
    %1698 = vmatpush1.msra.mxu0 0.0
    %1699 = vmatprep.subr.mxu0 0.0
    %1700 = vmatpush1.msra.mxu0 0.0
    %1701 = vmatprep.subr.mxu0 0.0
    %1702 = vmatpush1.msra.mxu0 0.0
    %1703 = vmatprep.subr.mxu0 0.0
    %1704 = vmatpush1.msra.mxu0 0.0
    %1705 = vmatprep.subr.mxu0 0.0
    %1706 = vmatpush1.msra.mxu0 0.0
    %1707 = vmatprep.subr.mxu0 0.0
    %1708 = vmatpush1.msra.mxu0 0.0
    %1709 = vmatprep.subr.mxu0 0.0
    %1710 = vmatpush1.msra.mxu0 0.0
    %1711 = vmatprep.subr.mxu0 0.0
    %1712 = vmatpush1.msra.mxu0 0.0
    %1713 = vmatprep.subr.mxu0 0.0
    %1714 = vmatpush1.msra.mxu0 0.0
    %1715 = vmatprep.subr.mxu0 0.0
    %1716 = vmatpush1.msra.mxu0 0.0
    %1717 = vmatprep.subr.mxu0 0.0
    %1718 = vmatpush1.msra.mxu0 0.0
    %1719 = vmatprep.subr.mxu0 0.0
    %1720 = vmatpush1.msra.mxu0 0.0
    %1721 = vmatprep.subr.mxu0 0.0
    %1722 = vmatpush1.msra.mxu0 0.0
    %1723 = vmatprep.subr.mxu0 0.0
    %1724 = vmatpush1.msra.mxu0 0.0
    %1725 = vmatprep.subr.mxu0 0.0
    %1726 = vmatpush1.msra.mxu0 0.0
    %1727 = vmatprep.subr.mxu0 0.0
    %1728 = vmatpush1.msra.mxu0 0.0
    %1729 = vmatprep.subr.mxu0 0.0
    %1730 = vmatpush1.msra.mxu0 0.0
    %1731 = vmatprep.subr.mxu0 0.0
    %1732 = vmatpush1.msra.mxu0 0.0
    %1733 = vmatprep.subr.mxu0 0.0
    %1734 = vmatpush1.msra.mxu0 0.0
    %1735 = vmatprep.subr.mxu0 0.0
    %1736 = vmatpush1.msra.mxu0 0.0
    %1737 = vmatprep.subr.mxu0 0.0
    %1738 = vmatpush1.msra.mxu0 0.0
    %1739 = vmatprep.subr.mxu0 0.0
    %1740 = vmatpush1.msra.mxu0 0.0
    %1741 = vmatprep.subr.mxu0 0.0
    %1742 = vmatpush1.msra.mxu0 0.0
    %1743 = vmatprep.subr.mxu0 0.0
    %1744 = vmatpush1.msra.mxu0 0.0
    %1745 = vmatprep.mubr.f32.mxu0 0.0
    %1746 = vmatmul.mubr.f32.gmra.mrb[0].mxu0 %v1671
    %v1747 = vpop.f32.mrb[0].mxu0
    %v1748 = vadd.f32 0.0, %v1747
    %v1749 = vpop.f32.mrb[0].mxu0
    %1750 = vmatprep.mubr.f32.mxu0 0.0
    %1751 = vmatmul.mubr.f32.gmra.mrb[0].mxu0 %v1674
    %v1752 = vpop.f32.mrb[0].mxu0
    %v1753 = vadd.f32 0.0, %v1752
    %v1754 = vpop.f32.mrb[0].mxu0
    %1755 = vmatprep.mubr.f32.mxu0 0.0
    %1756 = vmatmul.mubr.f32.gmra.mrb[0].mxu0 %v1677
    %v1757 = vpop.f32.mrb[0].mxu0
    %v1758 = vadd.f32 0.0, %v1757
    %v1759 = vpop.f32.mrb[0].mxu0
    %1760 = vdwg.mxu0
    %v1762 = vsel %vm553, %v1748, 0
    %v1765 = vsel %vm553, %v1753, 0
    %v1768 = vsel %vm553, %v1758, 0
    %1770 = vmatprep.subr.mxu0 0.0
    %1771 = vmatpush1.msra.mxu0 %v540
    %1772 = vmatprep.subr.mxu0 0.0
    %1773 = vmatpush1.msra.mxu0 0.0
    %1774 = vmatprep.subr.mxu0 0.0
    %1775 = vmatpush1.msra.mxu0 0.0
    %1776 = vmatprep.subr.mxu0 0.0
    %1777 = vmatpush1.msra.mxu0 0.0
    %1778 = vmatprep.subr.mxu0 0.0
    %1779 = vmatpush1.msra.mxu0 0.0
    %1780 = vmatprep.subr.mxu0 0.0
    %1781 = vmatpush1.msra.mxu0 0.0
    %1782 = vmatprep.subr.mxu0 0.0
    %1783 = vmatpush1.msra.mxu0 0.0
    %1784 = vmatprep.subr.mxu0 0.0
    %1785 = vmatpush1.msra.mxu0 0.0
    %1786 = vmatprep.subr.mxu0 0.0
    %1787 = vmatpush1.msra.mxu0 0.0
    %1788 = vmatprep.subr.mxu0 0.0
    %1789 = vmatpush1.msra.mxu0 0.0
    %1790 = vmatprep.subr.mxu0 0.0
    %1791 = vmatpush1.msra.mxu0 0.0
    %1792 = vmatprep.subr.mxu0 0.0
    %1793 = vmatpush1.msra.mxu0 0.0
    %1794 = vmatprep.subr.mxu0 0.0
    %1795 = vmatpush1.msra.mxu0 0.0
    %1796 = vmatprep.subr.mxu0 0.0
    %1797 = vmatpush1.msra.mxu0 0.0
    %1798 = vmatprep.subr.mxu0 0.0
    %1799 = vmatpush1.msra.mxu0 0.0
    %1800 = vmatprep.subr.mxu0 0.0
    %1801 = vmatpush1.msra.mxu0 0.0
    %1802 = vmatprep.subr.mxu0 0.0
    %1803 = vmatpush1.msra.mxu0 0.0
    %1804 = vmatprep.subr.mxu0 0.0
    %1805 = vmatpush1.msra.mxu0 0.0
    %1806 = vmatprep.subr.mxu0 0.0
    %1807 = vmatpush1.msra.mxu0 0.0
    %1808 = vmatprep.subr.mxu0 0.0
    %1809 = vmatpush1.msra.mxu0 0.0
    %1810 = vmatprep.subr.mxu0 0.0
    %1811 = vmatpush1.msra.mxu0 0.0
    %1812 = vmatprep.subr.mxu0 0.0
    %1813 = vmatpush1.msra.mxu0 0.0
    %1814 = vmatprep.subr.mxu0 0.0
    %1815 = vmatpush1.msra.mxu0 0.0
    %1816 = vmatprep.subr.mxu0 0.0
    %1817 = vmatpush1.msra.mxu0 0.0
    %1818 = vmatprep.subr.mxu0 0.0
    %1819 = vmatpush1.msra.mxu0 0.0
    %1820 = vmatprep.subr.mxu0 0.0
    %1821 = vmatpush1.msra.mxu0 0.0
    %1822 = vmatprep.subr.mxu0 0.0
    %1823 = vmatpush1.msra.mxu0 0.0
    %1824 = vmatprep.subr.mxu0 0.0
    %1825 = vmatpush1.msra.mxu0 0.0
    %1826 = vmatprep.subr.mxu0 0.0
    %1827 = vmatpush1.msra.mxu0 0.0
    %1828 = vmatprep.subr.mxu0 0.0
    %1829 = vmatpush1.msra.mxu0 0.0
    %1830 = vmatprep.subr.mxu0 0.0
    %1831 = vmatpush1.msra.mxu0 0.0
    %1832 = vmatprep.subr.mxu0 0.0
    %1833 = vmatpush1.msra.mxu0 0.0
    %1834 = vmatprep.mubr.f32.mxu0 0.0
    %1835 = vmatmul.mubr.f32.gmra.mrb[0].mxu0 %v1762
    %v1836 = vpop.f32.mrb[0].mxu0
    %v1837 = vadd.f32 0.0, %v1836
    %v1838 = vpop.f32.mrb[0].mxu0
    %1839 = vmatprep.mubr.f32.mxu0 0.0
    %1840 = vmatmul.mubr.f32.gmra.mrb[0].mxu0 %v1765
    %v1841 = vpop.f32.mrb[0].mxu0
    %v1842 = vadd.f32 0.0, %v1841
    %v1843 = vpop.f32.mrb[0].mxu0
    %1844 = vmatprep.mubr.f32.mxu0 0.0
    %1845 = vmatmul.mubr.f32.gmra.mrb[0].mxu0 %v1768
    %v1846 = vpop.f32.mrb[0].mxu0
    %v1847 = vadd.f32 0.0, %v1846
    %v1848 = vpop.f32.mrb[0].mxu0
    %1849 = vdwg.mxu0
    %v1850 = vadd.f32 %v1522, %v1837
    %v1851 = vadd.f32 %v1523, %v1842
    %v1852 = vadd.f32 %v1524, %v1847
    %v1853 = vmul.f32 %v529, 0.35355338
    %v1854 = vmul.f32 %v534, 0.35355338
    %vm1857 = vcmask 1046528
    %v1858 = vrot.slane %v543, 1
    %v1859 = vrot.slane %v1853, 1
    %v1860 = vsel %vm1857, %v1858, %v1859
    %v1861 = vrot.slane %v1854, 1
    %v1862 = vsel %vm1857, %v1859, %v1861
    %v1865 = vrot.slane %v524, 1
    %v1866 = vrot.slane %v529, 1
    %v1867 = vsel %vm1857, %v1865, %v1866
    %v1868 = vrot.slane %v534, 1
    %v1869 = vsel %vm1857, %v1866, %v1868
    %1870 = vrot.lane.b32.xlu0 %v1867, 96
    %v1871 = vpop.permute.xlu0 %1870
    %1872 = vrot.lane.b32.xlu0 %v1869, 96
    %v1873 = vpop.permute.xlu0 %1872
    %1874 = vrot.lane.b32.xlu0 %v1868, 96
    %v1875 = vpop.permute.xlu0 %1874
    %v1876 = vsel %vm553, %v1860, 0
    %v1878 = vsel %vm553, %v1862, 0
    %v1880 = vsel %vm553, %v1861, 0
    %v1882 = vsel %vm553, %v1871, 0
    %v1884 = vsel %vm553, %v1873, 0
    %v1886 = vsel %vm553, %v1875, 0
    %1888 = vmatprep.subr.mxu0 0.0
    %1889 = vmatpush1.xpose.msra.mxu0 %v1882
    %1890 = vmatprep.subr.mxu0 0.0
    %1891 = vmatpush1.xpose.msra.mxu0 %v1884
    %1892 = vmatprep.subr.mxu0 0.0
    %1893 = vmatpush1.xpose.msra.mxu0 %v1886
    %1894 = vmatprep.subr.mxu0 0.0
    %1895 = vmatpush1.xpose.msra.mxu0 0.0
    %1896 = vmatprep.subr.mxu0 0.0
    %1897 = vmatpush1.xpose.msra.mxu0 0.0
    %1898 = vmatprep.subr.mxu0 0.0
    %1899 = vmatpush1.xpose.msra.mxu0 0.0
    %1900 = vmatprep.subr.mxu0 0.0
    %1901 = vmatpush1.xpose.msra.mxu0 0.0
    %1902 = vmatprep.subr.mxu0 0.0
    %1903 = vmatpush1.xpose.msra.mxu0 0.0
    %1904 = vmatprep.subr.mxu0 0.0
    %1905 = vmatpush1.xpose.msra.mxu0 0.0
    %1906 = vmatprep.subr.mxu0 0.0
    %1907 = vmatpush1.xpose.msra.mxu0 0.0
    %1908 = vmatprep.subr.mxu0 0.0
    %1909 = vmatpush1.xpose.msra.mxu0 0.0
    %1910 = vmatprep.subr.mxu0 0.0
    %1911 = vmatpush1.xpose.msra.mxu0 0.0
    %1912 = vmatprep.subr.mxu0 0.0
    %1913 = vmatpush1.xpose.msra.mxu0 0.0
    %1914 = vmatprep.subr.mxu0 0.0
    %1915 = vmatpush1.xpose.msra.mxu0 0.0
    %1916 = vmatprep.subr.mxu0 0.0
    %1917 = vmatpush1.xpose.msra.mxu0 0.0
    %1918 = vmatprep.subr.mxu0 0.0
    %1919 = vmatpush1.xpose.msra.mxu0 0.0
    %1920 = vmatprep.subr.mxu0 0.0
    %1921 = vmatpush1.xpose.msra.mxu0 0.0
    %1922 = vmatprep.subr.mxu0 0.0
    %1923 = vmatpush1.xpose.msra.mxu0 0.0
    %1924 = vmatprep.subr.mxu0 0.0
    %1925 = vmatpush1.xpose.msra.mxu0 0.0
    %1926 = vmatprep.subr.mxu0 0.0
    %1927 = vmatpush1.xpose.msra.mxu0 0.0
    %1928 = vmatprep.subr.mxu0 0.0
    %1929 = vmatpush1.xpose.msra.mxu0 0.0
    %1930 = vmatprep.subr.mxu0 0.0
    %1931 = vmatpush1.xpose.msra.mxu0 0.0
    %1932 = vmatprep.subr.mxu0 0.0
    %1933 = vmatpush1.xpose.msra.mxu0 0.0
    %1934 = vmatprep.subr.mxu0 0.0
    %1935 = vmatpush1.xpose.msra.mxu0 0.0
    %1936 = vmatprep.subr.mxu0 0.0
    %1937 = vmatpush1.xpose.msra.mxu0 0.0
    %1938 = vmatprep.subr.mxu0 0.0
    %1939 = vmatpush1.xpose.msra.mxu0 0.0
    %1940 = vmatprep.subr.mxu0 0.0
    %1941 = vmatpush1.xpose.msra.mxu0 0.0
    %1942 = vmatprep.subr.mxu0 0.0
    %1943 = vmatpush1.xpose.msra.mxu0 0.0
    %1944 = vmatprep.subr.mxu0 0.0
    %1945 = vmatpush1.xpose.msra.mxu0 0.0
    %1946 = vmatprep.subr.mxu0 0.0
    %1947 = vmatpush1.xpose.msra.mxu0 0.0
    %1948 = vmatprep.subr.mxu0 0.0
    %1949 = vmatpush1.xpose.msra.mxu0 0.0
    %1950 = vmatprep.subr.mxu0 0.0
    %1951 = vmatpush1.xpose.msra.mxu0 0.0
    %1952 = vmatprep.mubr.f32.mxu0 0.0
    %1953 = vmatmul.mubr.f32.gmra.mrb[0].mxu0 %v1876
    %v1954 = vpop.f32.mrb[0].mxu0
    %v1955 = vadd.f32 0.0, %v1954
    %v1956 = vpop.f32.mrb[0].mxu0
    %1957 = vmatprep.mubr.f32.mxu0 0.0
    %1958 = vmatmul.mubr.f32.gmra.mrb[0].mxu0 %v1878
    %v1959 = vpop.f32.mrb[0].mxu0
    %v1960 = vadd.f32 0.0, %v1959
    %v1961 = vpop.f32.mrb[0].mxu0
    %1962 = vmatprep.mubr.f32.mxu0 0.0
    %1963 = vmatmul.mubr.f32.gmra.mrb[0].mxu0 %v1880
    %v1964 = vpop.f32.mrb[0].mxu0
    %v1965 = vadd.f32 0.0, %v1964
    %v1966 = vpop.f32.mrb[0].mxu0
    %1967 = vdwg.mxu0
    %v1968 = vsel %vm649, %v1955, -inf
    %1969 = vmax.xlane.f32.xlu0 %v1968
    %v1970 = vpop.xlane.xlu0 %1969
    %v1971 = vsel %vm649, %v1960, -inf
    %1972 = vmax.xlane.f32.xlu0 %v1971
    %v1973 = vpop.xlane.xlu0 %1972
    %v1974 = vsel %vm656, %v1965, -inf
    %1975 = vmax.xlane.f32.xlu0 %v1974
    %v1976 = vpop.xlane.xlu0 %1975
    %v1977 = vsub.f32 %v1955, %v1970
    %v1978 = vsub.f32 %v1960, %v1973
    %v1979 = vsub.f32 %v1965, %v1976
    %v1980 = vmul.f32 %v1977, 1.442695
    %v1981 = vpow.pop %v1980
    %v1982 = vmul.f32 %v1978, 1.442695
    %v1983 = vpow.pop %v1982
    %v1984 = vmul.f32 %v1979, 1.442695
    %v1985 = vpow.pop %v1984
    %v1986 = vsel %vm649, %v1981, 0.0
    %1987 = vadd.xlane.f32.xlu0 %v1986
    %v1988 = vpop.xlane.xlu0 %1987
    %v1989 = vsel %vm649, %v1983, 0.0
    %1990 = vadd.xlane.f32.xlu0 %v1989
    %v1991 = vpop.xlane.xlu0 %1990
    %v1992 = vsel %vm656, %v1985, 0.0
    %1993 = vadd.xlane.f32.xlu0 %v1992
    %v1994 = vpop.xlane.xlu0 %1993
    %v1995 = vrcp.pop %v1988
    %v1996 = vrcp.pop %v1991
    %v1997 = vrcp.pop %v1994
    %v1998 = vmul.f32 %v1981, %v1995
    %v1999 = vmul.f32 %v1983, %v1996
    %v2000 = vmul.f32 %v1985, %v1997
    %2001 = vrot.lane.b32.xlu0 %v1867, 64
    %v2002 = vpop.permute.xlu0 %2001
    %2003 = vrot.lane.b32.xlu0 %v1869, 64
    %v2004 = vpop.permute.xlu0 %2003
    %2005 = vrot.lane.b32.xlu0 %v1868, 64
    %v2006 = vpop.permute.xlu0 %2005
    %v2010 = vsel %vm649, %v1998, 0
    %v2013 = vsel %vm649, %v1999, 0
    %v2016 = vsel %vm649, %v2000, 0
    %v2018 = vsel %vm225, %v2006, 0
    %2020 = vmatprep.subr.mxu0 0.0
    %2021 = vmatpush1.msra.mxu0 %v2002
    %2022 = vmatprep.subr.mxu0 0.0
    %2023 = vmatpush1.msra.mxu0 %v2004
    %2024 = vmatprep.subr.mxu0 0.0
    %2025 = vmatpush1.msra.mxu0 %v2018
    %2026 = vmatprep.subr.mxu0 0.0
    %2027 = vmatpush1.msra.mxu0 0.0
    %2028 = vmatprep.subr.mxu0 0.0
    %2029 = vmatpush1.msra.mxu0 0.0
    %2030 = vmatprep.subr.mxu0 0.0
    %2031 = vmatpush1.msra.mxu0 0.0
    %2032 = vmatprep.subr.mxu0 0.0
    %2033 = vmatpush1.msra.mxu0 0.0
    %2034 = vmatprep.subr.mxu0 0.0
    %2035 = vmatpush1.msra.mxu0 0.0
    %2036 = vmatprep.subr.mxu0 0.0
    %2037 = vmatpush1.msra.mxu0 0.0
    %2038 = vmatprep.subr.mxu0 0.0
    %2039 = vmatpush1.msra.mxu0 0.0
    %2040 = vmatprep.subr.mxu0 0.0
    %2041 = vmatpush1.msra.mxu0 0.0
    %2042 = vmatprep.subr.mxu0 0.0
    %2043 = vmatpush1.msra.mxu0 0.0
    %2044 = vmatprep.subr.mxu0 0.0
    %2045 = vmatpush1.msra.mxu0 0.0
    %2046 = vmatprep.subr.mxu0 0.0
    %2047 = vmatpush1.msra.mxu0 0.0
    %2048 = vmatprep.subr.mxu0 0.0
    %2049 = vmatpush1.msra.mxu0 0.0
    %2050 = vmatprep.subr.mxu0 0.0
    %2051 = vmatpush1.msra.mxu0 0.0
    %2052 = vmatprep.subr.mxu0 0.0
    %2053 = vmatpush1.msra.mxu0 0.0
    %2054 = vmatprep.subr.mxu0 0.0
    %2055 = vmatpush1.msra.mxu0 0.0
    %2056 = vmatprep.subr.mxu0 0.0
    %2057 = vmatpush1.msra.mxu0 0.0
    %2058 = vmatprep.subr.mxu0 0.0
    %2059 = vmatpush1.msra.mxu0 0.0
    %2060 = vmatprep.subr.mxu0 0.0
    %2061 = vmatpush1.msra.mxu0 0.0
    %2062 = vmatprep.subr.mxu0 0.0
    %2063 = vmatpush1.msra.mxu0 0.0
    %2064 = vmatprep.subr.mxu0 0.0
    %2065 = vmatpush1.msra.mxu0 0.0
    %2066 = vmatprep.subr.mxu0 0.0
    %2067 = vmatpush1.msra.mxu0 0.0
    %2068 = vmatprep.subr.mxu0 0.0
    %2069 = vmatpush1.msra.mxu0 0.0
    %2070 = vmatprep.subr.mxu0 0.0
    %2071 = vmatpush1.msra.mxu0 0.0
    %2072 = vmatprep.subr.mxu0 0.0
    %2073 = vmatpush1.msra.mxu0 0.0
    %2074 = vmatprep.subr.mxu0 0.0
    %2075 = vmatpush1.msra.mxu0 0.0
    %2076 = vmatprep.subr.mxu0 0.0
    %2077 = vmatpush1.msra.mxu0 0.0
    %2078 = vmatprep.subr.mxu0 0.0
    %2079 = vmatpush1.msra.mxu0 0.0
    %2080 = vmatprep.subr.mxu0 0.0
    %2081 = vmatpush1.msra.mxu0 0.0
    %2082 = vmatprep.subr.mxu0 0.0
    %2083 = vmatpush1.msra.mxu0 0.0
    %2084 = vmatprep.mubr.f32.mxu0 0.0
    %2085 = vmatmul.mubr.f32.gmra.mrb[0].mxu0 %v2010
    %v2086 = vpop.f32.mrb[0].mxu0
    %v2087 = vadd.f32 0.0, %v2086
    %v2088 = vpop.f32.mrb[0].mxu0
    %2089 = vmatprep.mubr.f32.mxu0 0.0
    %2090 = vmatmul.mubr.f32.gmra.mrb[0].mxu0 %v2013
    %v2091 = vpop.f32.mrb[0].mxu0
    %v2092 = vadd.f32 0.0, %v2091
    %v2093 = vpop.f32.mrb[0].mxu0
    %2094 = vmatprep.mubr.f32.mxu0 0.0
    %2095 = vmatmul.mubr.f32.gmra.mrb[0].mxu0 %v2016
    %v2096 = vpop.f32.mrb[0].mxu0
    %v2097 = vadd.f32 0.0, %v2096
    %v2098 = vpop.f32.mrb[0].mxu0
    %2099 = vdwg.mxu0
    %2100 = vrot.lane.b32.xlu0 %v1860, 120
    %v2101 = vpop.permute.xlu0 %2100
    %2102 = vrot.lane.b32.xlu0 %v1862, 120
    %v2103 = vpop.permute.xlu0 %2102
    %2104 = vrot.lane.b32.xlu0 %v1861, 120
    %v2105 = vpop.permute.xlu0 %2104
    %2106 = vrot.lane.b32.xlu0 %v1867, 88
    %v2107 = vpop.permute.xlu0 %2106
    %2108 = vrot.lane.b32.xlu0 %v1869, 88
    %v2109 = vpop.permute.xlu0 %2108
    %2110 = vrot.lane.b32.xlu0 %v1868, 88
    %v2111 = vpop.permute.xlu0 %2110
    %v2112 = vsel %vm553, %v2101, 0
    %v2114 = vsel %vm553, %v2103, 0
    %v2116 = vsel %vm553, %v2105, 0
    %v2118 = vsel %vm553, %v2107, 0
    %v2120 = vsel %vm553, %v2109, 0
    %v2122 = vsel %vm553, %v2111, 0
    %2124 = vmatprep.subr.mxu0 0.0
    %2125 = vmatpush1.xpose.msra.mxu0 %v2118
    %2126 = vmatprep.subr.mxu0 0.0
    %2127 = vmatpush1.xpose.msra.mxu0 %v2120
    %2128 = vmatprep.subr.mxu0 0.0
    %2129 = vmatpush1.xpose.msra.mxu0 %v2122
    %2130 = vmatprep.subr.mxu0 0.0
    %2131 = vmatpush1.xpose.msra.mxu0 0.0
    %2132 = vmatprep.subr.mxu0 0.0
    %2133 = vmatpush1.xpose.msra.mxu0 0.0
    %2134 = vmatprep.subr.mxu0 0.0
    %2135 = vmatpush1.xpose.msra.mxu0 0.0
    %2136 = vmatprep.subr.mxu0 0.0
    %2137 = vmatpush1.xpose.msra.mxu0 0.0
    %2138 = vmatprep.subr.mxu0 0.0
    %2139 = vmatpush1.xpose.msra.mxu0 0.0
    %2140 = vmatprep.subr.mxu0 0.0
    %2141 = vmatpush1.xpose.msra.mxu0 0.0
    %2142 = vmatprep.subr.mxu0 0.0
    %2143 = vmatpush1.xpose.msra.mxu0 0.0
    %2144 = vmatprep.subr.mxu0 0.0
    %2145 = vmatpush1.xpose.msra.mxu0 0.0
    %2146 = vmatprep.subr.mxu0 0.0
    %2147 = vmatpush1.xpose.msra.mxu0 0.0
    %2148 = vmatprep.subr.mxu0 0.0
    %2149 = vmatpush1.xpose.msra.mxu0 0.0
    %2150 = vmatprep.subr.mxu0 0.0
    %2151 = vmatpush1.xpose.msra.mxu0 0.0
    %2152 = vmatprep.subr.mxu0 0.0
    %2153 = vmatpush1.xpose.msra.mxu0 0.0
    %2154 = vmatprep.subr.mxu0 0.0
    %2155 = vmatpush1.xpose.msra.mxu0 0.0
    %2156 = vmatprep.subr.mxu0 0.0
    %2157 = vmatpush1.xpose.msra.mxu0 0.0
    %2158 = vmatprep.subr.mxu0 0.0
    %2159 = vmatpush1.xpose.msra.mxu0 0.0
    %2160 = vmatprep.subr.mxu0 0.0
    %2161 = vmatpush1.xpose.msra.mxu0 0.0
    %2162 = vmatprep.subr.mxu0 0.0
    %2163 = vmatpush1.xpose.msra.mxu0 0.0
    %2164 = vmatprep.subr.mxu0 0.0
    %2165 = vmatpush1.xpose.msra.mxu0 0.0
    %2166 = vmatprep.subr.mxu0 0.0
    %2167 = vmatpush1.xpose.msra.mxu0 0.0
    %2168 = vmatprep.subr.mxu0 0.0
    %2169 = vmatpush1.xpose.msra.mxu0 0.0
    %2170 = vmatprep.subr.mxu0 0.0
    %2171 = vmatpush1.xpose.msra.mxu0 0.0
    %2172 = vmatprep.subr.mxu0 0.0
    %2173 = vmatpush1.xpose.msra.mxu0 0.0
    %2174 = vmatprep.subr.mxu0 0.0
    %2175 = vmatpush1.xpose.msra.mxu0 0.0
    %2176 = vmatprep.subr.mxu0 0.0
    %2177 = vmatpush1.xpose.msra.mxu0 0.0
    %2178 = vmatprep.subr.mxu0 0.0
    %2179 = vmatpush1.xpose.msra.mxu0 0.0
    %2180 = vmatprep.subr.mxu0 0.0
    %2181 = vmatpush1.xpose.msra.mxu0 0.0
    %2182 = vmatprep.subr.mxu0 0.0
    %2183 = vmatpush1.xpose.msra.mxu0 0.0
    %2184 = vmatprep.subr.mxu0 0.0
    %2185 = vmatpush1.xpose.msra.mxu0 0.0
    %2186 = vmatprep.subr.mxu0 0.0
    %2187 = vmatpush1.xpose.msra.mxu0 0.0
    %2188 = vmatprep.mubr.f32.mxu0 0.0
    %2189 = vmatmul.mubr.f32.gmra.mrb[0].mxu0 %v2112
    %v2190 = vpop.f32.mrb[0].mxu0
    %v2191 = vadd.f32 0.0, %v2190
    %v2192 = vpop.f32.mrb[0].mxu0
    %2193 = vmatprep.mubr.f32.mxu0 0.0
    %2194 = vmatmul.mubr.f32.gmra.mrb[0].mxu0 %v2114
    %v2195 = vpop.f32.mrb[0].mxu0
    %v2196 = vadd.f32 0.0, %v2195
    %v2197 = vpop.f32.mrb[0].mxu0
    %2198 = vmatprep.mubr.f32.mxu0 0.0
    %2199 = vmatmul.mubr.f32.gmra.mrb[0].mxu0 %v2116
    %v2200 = vpop.f32.mrb[0].mxu0
    %v2201 = vadd.f32 0.0, %v2200
    %v2202 = vpop.f32.mrb[0].mxu0
    %2203 = vdwg.mxu0
    %v2204 = vsel %vm649, %v2191, -inf
    %2205 = vmax.xlane.f32.xlu0 %v2204
    %v2206 = vpop.xlane.xlu0 %2205
    %v2207 = vsel %vm649, %v2196, -inf
    %2208 = vmax.xlane.f32.xlu0 %v2207
    %v2209 = vpop.xlane.xlu0 %2208
    %v2210 = vsel %vm656, %v2201, -inf
    %2211 = vmax.xlane.f32.xlu0 %v2210
    %v2212 = vpop.xlane.xlu0 %2211
    %v2213 = vsub.f32 %v2191, %v2206
    %v2214 = vsub.f32 %v2196, %v2209
    %v2215 = vsub.f32 %v2201, %v2212
    %v2216 = vmul.f32 %v2213, 1.442695
    %v2217 = vpow.pop %v2216
    %v2218 = vmul.f32 %v2214, 1.442695
    %v2219 = vpow.pop %v2218
    %v2220 = vmul.f32 %v2215, 1.442695
    %v2221 = vpow.pop %v2220
    %v2222 = vsel %vm649, %v2217, 0.0
    %2223 = vadd.xlane.f32.xlu0 %v2222
    %v2224 = vpop.xlane.xlu0 %2223
    %v2225 = vsel %vm649, %v2219, 0.0
    %2226 = vadd.xlane.f32.xlu0 %v2225
    %v2227 = vpop.xlane.xlu0 %2226
    %v2228 = vsel %vm656, %v2221, 0.0
    %2229 = vadd.xlane.f32.xlu0 %v2228
    %v2230 = vpop.xlane.xlu0 %2229
    %v2231 = vrcp.pop %v2224
    %v2232 = vrcp.pop %v2227
    %v2233 = vrcp.pop %v2230
    %v2234 = vmul.f32 %v2217, %v2231
    %v2235 = vmul.f32 %v2219, %v2232
    %v2236 = vmul.f32 %v2221, %v2233
    %2237 = vrot.lane.b32.xlu0 %v1867, 56
    %v2238 = vpop.permute.xlu0 %2237
    %2239 = vrot.lane.b32.xlu0 %v1869, 56
    %v2240 = vpop.permute.xlu0 %2239
    %2241 = vrot.lane.b32.xlu0 %v1868, 56
    %v2242 = vpop.permute.xlu0 %2241
    %v2246 = vsel %vm649, %v2234, 0
    %v2249 = vsel %vm649, %v2235, 0
    %v2252 = vsel %vm649, %v2236, 0
    %v2254 = vsel %vm225, %v2242, 0
    %2256 = vmatprep.subr.mxu0 0.0
    %2257 = vmatpush1.msra.mxu0 %v2238
    %2258 = vmatprep.subr.mxu0 0.0
    %2259 = vmatpush1.msra.mxu0 %v2240
    %2260 = vmatprep.subr.mxu0 0.0
    %2261 = vmatpush1.msra.mxu0 %v2254
    %2262 = vmatprep.subr.mxu0 0.0
    %2263 = vmatpush1.msra.mxu0 0.0
    %2264 = vmatprep.subr.mxu0 0.0
    %2265 = vmatpush1.msra.mxu0 0.0
    %2266 = vmatprep.subr.mxu0 0.0
    %2267 = vmatpush1.msra.mxu0 0.0
    %2268 = vmatprep.subr.mxu0 0.0
    %2269 = vmatpush1.msra.mxu0 0.0
    %2270 = vmatprep.subr.mxu0 0.0
    %2271 = vmatpush1.msra.mxu0 0.0
    %2272 = vmatprep.subr.mxu0 0.0
    %2273 = vmatpush1.msra.mxu0 0.0
    %2274 = vmatprep.subr.mxu0 0.0
    %2275 = vmatpush1.msra.mxu0 0.0
    %2276 = vmatprep.subr.mxu0 0.0
    %2277 = vmatpush1.msra.mxu0 0.0
    %2278 = vmatprep.subr.mxu0 0.0
    %2279 = vmatpush1.msra.mxu0 0.0
    %2280 = vmatprep.subr.mxu0 0.0
    %2281 = vmatpush1.msra.mxu0 0.0
    %2282 = vmatprep.subr.mxu0 0.0
    %2283 = vmatpush1.msra.mxu0 0.0
    %2284 = vmatprep.subr.mxu0 0.0
    %2285 = vmatpush1.msra.mxu0 0.0
    %2286 = vmatprep.subr.mxu0 0.0
    %2287 = vmatpush1.msra.mxu0 0.0
    %2288 = vmatprep.subr.mxu0 0.0
    %2289 = vmatpush1.msra.mxu0 0.0
    %2290 = vmatprep.subr.mxu0 0.0
    %2291 = vmatpush1.msra.mxu0 0.0
    %2292 = vmatprep.subr.mxu0 0.0
    %2293 = vmatpush1.msra.mxu0 0.0
    %2294 = vmatprep.subr.mxu0 0.0
    %2295 = vmatpush1.msra.mxu0 0.0
    %2296 = vmatprep.subr.mxu0 0.0
    %2297 = vmatpush1.msra.mxu0 0.0
    %2298 = vmatprep.subr.mxu0 0.0
    %2299 = vmatpush1.msra.mxu0 0.0
    %2300 = vmatprep.subr.mxu0 0.0
    %2301 = vmatpush1.msra.mxu0 0.0
    %2302 = vmatprep.subr.mxu0 0.0
    %2303 = vmatpush1.msra.mxu0 0.0
    %2304 = vmatprep.subr.mxu0 0.0
    %2305 = vmatpush1.msra.mxu0 0.0
    %2306 = vmatprep.subr.mxu0 0.0
    %2307 = vmatpush1.msra.mxu0 0.0
    %2308 = vmatprep.subr.mxu0 0.0
    %2309 = vmatpush1.msra.mxu0 0.0
    %2310 = vmatprep.subr.mxu0 0.0
    %2311 = vmatpush1.msra.mxu0 0.0
    %2312 = vmatprep.subr.mxu0 0.0
    %2313 = vmatpush1.msra.mxu0 0.0
    %2314 = vmatprep.subr.mxu0 0.0
    %2315 = vmatpush1.msra.mxu0 0.0
    %2316 = vmatprep.subr.mxu0 0.0
    %2317 = vmatpush1.msra.mxu0 0.0
    %2318 = vmatprep.subr.mxu0 0.0
    %2319 = vmatpush1.msra.mxu0 0.0
    %2320 = vmatprep.mubr.f32.mxu0 0.0
    %2321 = vmatmul.mubr.f32.gmra.mrb[0].mxu0 %v2246
    %v2322 = vpop.f32.mrb[0].mxu0
    %v2323 = vadd.f32 0.0, %v2322
    %v2324 = vpop.f32.mrb[0].mxu0
    %2325 = vmatprep.mubr.f32.mxu0 0.0
    %2326 = vmatmul.mubr.f32.gmra.mrb[0].mxu0 %v2249
    %v2327 = vpop.f32.mrb[0].mxu0
    %v2328 = vadd.f32 0.0, %v2327
    %v2329 = vpop.f32.mrb[0].mxu0
    %2330 = vmatprep.mubr.f32.mxu0 0.0
    %2331 = vmatmul.mubr.f32.gmra.mrb[0].mxu0 %v2252
    %v2332 = vpop.f32.mrb[0].mxu0
    %v2333 = vadd.f32 0.0, %v2332
    %v2334 = vpop.f32.mrb[0].mxu0
    %2335 = vdwg.mxu0
    %v2337 = vsel %vm553, %v2323, 0
    %v2340 = vsel %vm553, %v2328, 0
    %v2343 = vsel %vm553, %v2333, 0
    %2345 = vmatprep.subr.mxu0 0.0
    %2346 = vmatpush1.msra.mxu0 %v538
    %2347 = vmatprep.subr.mxu0 0.0
    %2348 = vmatpush1.msra.mxu0 0.0
    %2349 = vmatprep.subr.mxu0 0.0
    %2350 = vmatpush1.msra.mxu0 0.0
    %2351 = vmatprep.subr.mxu0 0.0
    %2352 = vmatpush1.msra.mxu0 0.0
    %2353 = vmatprep.subr.mxu0 0.0
    %2354 = vmatpush1.msra.mxu0 0.0
    %2355 = vmatprep.subr.mxu0 0.0
    %2356 = vmatpush1.msra.mxu0 0.0
    %2357 = vmatprep.subr.mxu0 0.0
    %2358 = vmatpush1.msra.mxu0 0.0
    %2359 = vmatprep.subr.mxu0 0.0
    %2360 = vmatpush1.msra.mxu0 0.0
    %2361 = vmatprep.subr.mxu0 0.0
    %2362 = vmatpush1.msra.mxu0 0.0
    %2363 = vmatprep.subr.mxu0 0.0
    %2364 = vmatpush1.msra.mxu0 0.0
    %2365 = vmatprep.subr.mxu0 0.0
    %2366 = vmatpush1.msra.mxu0 0.0
    %2367 = vmatprep.subr.mxu0 0.0
    %2368 = vmatpush1.msra.mxu0 0.0
    %2369 = vmatprep.subr.mxu0 0.0
    %2370 = vmatpush1.msra.mxu0 0.0
    %2371 = vmatprep.subr.mxu0 0.0
    %2372 = vmatpush1.msra.mxu0 0.0
    %2373 = vmatprep.subr.mxu0 0.0
    %2374 = vmatpush1.msra.mxu0 0.0
    %2375 = vmatprep.subr.mxu0 0.0
    %2376 = vmatpush1.msra.mxu0 0.0
    %2377 = vmatprep.subr.mxu0 0.0
    %2378 = vmatpush1.msra.mxu0 0.0
    %2379 = vmatprep.subr.mxu0 0.0
    %2380 = vmatpush1.msra.mxu0 0.0
    %2381 = vmatprep.subr.mxu0 0.0
    %2382 = vmatpush1.msra.mxu0 0.0
    %2383 = vmatprep.subr.mxu0 0.0
    %2384 = vmatpush1.msra.mxu0 0.0
    %2385 = vmatprep.subr.mxu0 0.0
    %2386 = vmatpush1.msra.mxu0 0.0
    %2387 = vmatprep.subr.mxu0 0.0
    %2388 = vmatpush1.msra.mxu0 0.0
    %2389 = vmatprep.subr.mxu0 0.0
    %2390 = vmatpush1.msra.mxu0 0.0
    %2391 = vmatprep.subr.mxu0 0.0
    %2392 = vmatpush1.msra.mxu0 0.0
    %2393 = vmatprep.subr.mxu0 0.0
    %2394 = vmatpush1.msra.mxu0 0.0
    %2395 = vmatprep.subr.mxu0 0.0
    %2396 = vmatpush1.msra.mxu0 0.0
    %2397 = vmatprep.subr.mxu0 0.0
    %2398 = vmatpush1.msra.mxu0 0.0
    %2399 = vmatprep.subr.mxu0 0.0
    %2400 = vmatpush1.msra.mxu0 0.0
    %2401 = vmatprep.subr.mxu0 0.0
    %2402 = vmatpush1.msra.mxu0 0.0
    %2403 = vmatprep.subr.mxu0 0.0
    %2404 = vmatpush1.msra.mxu0 0.0
    %2405 = vmatprep.subr.mxu0 0.0
    %2406 = vmatpush1.msra.mxu0 0.0
    %2407 = vmatprep.subr.mxu0 0.0
    %2408 = vmatpush1.msra.mxu0 0.0
    %2409 = vmatprep.mubr.f32.mxu0 0.0
    %2410 = vmatmul.mubr.f32.gmra.mrb[0].mxu0 %v2337
    %v2411 = vpop.f32.mrb[0].mxu0
    %v2412 = vadd.f32 0.0, %v2411
    %v2413 = vpop.f32.mrb[0].mxu0
    %2414 = vmatprep.mubr.f32.mxu0 0.0
    %2415 = vmatmul.mubr.f32.gmra.mrb[0].mxu0 %v2340
    %v2416 = vpop.f32.mrb[0].mxu0
    %v2417 = vadd.f32 0.0, %v2416
    %v2418 = vpop.f32.mrb[0].mxu0
    %2419 = vmatprep.mubr.f32.mxu0 0.0
    %2420 = vmatmul.mubr.f32.gmra.mrb[0].mxu0 %v2343
    %v2421 = vpop.f32.mrb[0].mxu0
    %v2422 = vadd.f32 0.0, %v2421
    %v2423 = vpop.f32.mrb[0].mxu0
    %2424 = vdwg.mxu0
    %v2426 = vsel %vm553, %v2087, 0
    %v2429 = vsel %vm553, %v2092, 0
    %v2432 = vsel %vm553, %v2097, 0
    %2434 = vmatprep.subr.mxu0 0.0
    %2435 = vmatpush1.msra.mxu0 %v537
    %2436 = vmatprep.subr.mxu0 0.0
    %2437 = vmatpush1.msra.mxu0 0.0
    %2438 = vmatprep.subr.mxu0 0.0
    %2439 = vmatpush1.msra.mxu0 0.0
    %2440 = vmatprep.subr.mxu0 0.0
    %2441 = vmatpush1.msra.mxu0 0.0
    %2442 = vmatprep.subr.mxu0 0.0
    %2443 = vmatpush1.msra.mxu0 0.0
    %2444 = vmatprep.subr.mxu0 0.0
    %2445 = vmatpush1.msra.mxu0 0.0
    %2446 = vmatprep.subr.mxu0 0.0
    %2447 = vmatpush1.msra.mxu0 0.0
    %2448 = vmatprep.subr.mxu0 0.0
    %2449 = vmatpush1.msra.mxu0 0.0
    %2450 = vmatprep.subr.mxu0 0.0
    %2451 = vmatpush1.msra.mxu0 0.0
    %2452 = vmatprep.subr.mxu0 0.0
    %2453 = vmatpush1.msra.mxu0 0.0
    %2454 = vmatprep.subr.mxu0 0.0
    %2455 = vmatpush1.msra.mxu0 0.0
    %2456 = vmatprep.subr.mxu0 0.0
    %2457 = vmatpush1.msra.mxu0 0.0
    %2458 = vmatprep.subr.mxu0 0.0
    %2459 = vmatpush1.msra.mxu0 0.0
    %2460 = vmatprep.subr.mxu0 0.0
    %2461 = vmatpush1.msra.mxu0 0.0
    %2462 = vmatprep.subr.mxu0 0.0
    %2463 = vmatpush1.msra.mxu0 0.0
    %2464 = vmatprep.subr.mxu0 0.0
    %2465 = vmatpush1.msra.mxu0 0.0
    %2466 = vmatprep.subr.mxu0 0.0
    %2467 = vmatpush1.msra.mxu0 0.0
    %2468 = vmatprep.subr.mxu0 0.0
    %2469 = vmatpush1.msra.mxu0 0.0
    %2470 = vmatprep.subr.mxu0 0.0
    %2471 = vmatpush1.msra.mxu0 0.0
    %2472 = vmatprep.subr.mxu0 0.0
    %2473 = vmatpush1.msra.mxu0 0.0
    %2474 = vmatprep.subr.mxu0 0.0
    %2475 = vmatpush1.msra.mxu0 0.0
    %2476 = vmatprep.subr.mxu0 0.0
    %2477 = vmatpush1.msra.mxu0 0.0
    %2478 = vmatprep.subr.mxu0 0.0
    %2479 = vmatpush1.msra.mxu0 0.0
    %2480 = vmatprep.subr.mxu0 0.0
    %2481 = vmatpush1.msra.mxu0 0.0
    %2482 = vmatprep.subr.mxu0 0.0
    %2483 = vmatpush1.msra.mxu0 0.0
    %2484 = vmatprep.subr.mxu0 0.0
    %2485 = vmatpush1.msra.mxu0 0.0
    %2486 = vmatprep.subr.mxu0 0.0
    %2487 = vmatpush1.msra.mxu0 0.0
    %2488 = vmatprep.subr.mxu0 0.0
    %2489 = vmatpush1.msra.mxu0 0.0
    %2490 = vmatprep.subr.mxu0 0.0
    %2491 = vmatpush1.msra.mxu0 0.0
    %2492 = vmatprep.subr.mxu0 0.0
    %2493 = vmatpush1.msra.mxu0 0.0
    %2494 = vmatprep.subr.mxu0 0.0
    %2495 = vmatpush1.msra.mxu0 0.0
    %2496 = vmatprep.subr.mxu0 0.0
    %2497 = vmatpush1.msra.mxu0 0.0
    %2498 = vmatprep.mubr.f32.mxu0 0.0
    %2499 = vmatmul.mubr.f32.gmra.mrb[0].mxu0 %v2426
    %v2500 = vpop.f32.mrb[0].mxu0
    %v2501 = vadd.f32 %v2412, %v2500
    %v2502 = vpop.f32.mrb[0].mxu0
    %2503 = vmatprep.mubr.f32.mxu0 0.0
    %2504 = vmatmul.mubr.f32.gmra.mrb[0].mxu0 %v2429
    %v2505 = vpop.f32.mrb[0].mxu0
    %v2506 = vadd.f32 %v2417, %v2505
    %v2507 = vpop.f32.mrb[0].mxu0
    %2508 = vmatprep.mubr.f32.mxu0 0.0
    %2509 = vmatmul.mubr.f32.gmra.mrb[0].mxu0 %v2432
    %v2510 = vpop.f32.mrb[0].mxu0
    %v2511 = vadd.f32 %v2422, %v2510
    %v2512 = vpop.f32.mrb[0].mxu0
    %2513 = vdwg.mxu0
    %2514 = vrot.lane.b32.xlu0 %v1860, 112
    %v2515 = vpop.permute.xlu0 %2514
    %2516 = vrot.lane.b32.xlu0 %v1862, 112
    %v2517 = vpop.permute.xlu0 %2516
    %2518 = vrot.lane.b32.xlu0 %v1861, 112
    %v2519 = vpop.permute.xlu0 %2518
    %2520 = vrot.lane.b32.xlu0 %v1867, 80
    %v2521 = vpop.permute.xlu0 %2520
    %2522 = vrot.lane.b32.xlu0 %v1869, 80
    %v2523 = vpop.permute.xlu0 %2522
    %2524 = vrot.lane.b32.xlu0 %v1868, 80
    %v2525 = vpop.permute.xlu0 %2524
    %v2526 = vsel %vm553, %v2515, 0
    %v2528 = vsel %vm553, %v2517, 0
    %v2530 = vsel %vm553, %v2519, 0
    %v2532 = vsel %vm553, %v2521, 0
    %v2534 = vsel %vm553, %v2523, 0
    %v2536 = vsel %vm553, %v2525, 0
    %2538 = vmatprep.subr.mxu0 0.0
    %2539 = vmatpush1.xpose.msra.mxu0 %v2532
    %2540 = vmatprep.subr.mxu0 0.0
    %2541 = vmatpush1.xpose.msra.mxu0 %v2534
    %2542 = vmatprep.subr.mxu0 0.0
    %2543 = vmatpush1.xpose.msra.mxu0 %v2536
    %2544 = vmatprep.subr.mxu0 0.0
    %2545 = vmatpush1.xpose.msra.mxu0 0.0
    %2546 = vmatprep.subr.mxu0 0.0
    %2547 = vmatpush1.xpose.msra.mxu0 0.0
    %2548 = vmatprep.subr.mxu0 0.0
    %2549 = vmatpush1.xpose.msra.mxu0 0.0
    %2550 = vmatprep.subr.mxu0 0.0
    %2551 = vmatpush1.xpose.msra.mxu0 0.0
    %2552 = vmatprep.subr.mxu0 0.0
    %2553 = vmatpush1.xpose.msra.mxu0 0.0
    %2554 = vmatprep.subr.mxu0 0.0
    %2555 = vmatpush1.xpose.msra.mxu0 0.0
    %2556 = vmatprep.subr.mxu0 0.0
    %2557 = vmatpush1.xpose.msra.mxu0 0.0
    %2558 = vmatprep.subr.mxu0 0.0
    %2559 = vmatpush1.xpose.msra.mxu0 0.0
    %2560 = vmatprep.subr.mxu0 0.0
    %2561 = vmatpush1.xpose.msra.mxu0 0.0
    %2562 = vmatprep.subr.mxu0 0.0
    %2563 = vmatpush1.xpose.msra.mxu0 0.0
    %2564 = vmatprep.subr.mxu0 0.0
    %2565 = vmatpush1.xpose.msra.mxu0 0.0
    %2566 = vmatprep.subr.mxu0 0.0
    %2567 = vmatpush1.xpose.msra.mxu0 0.0
    %2568 = vmatprep.subr.mxu0 0.0
    %2569 = vmatpush1.xpose.msra.mxu0 0.0
    %2570 = vmatprep.subr.mxu0 0.0
    %2571 = vmatpush1.xpose.msra.mxu0 0.0
    %2572 = vmatprep.subr.mxu0 0.0
    %2573 = vmatpush1.xpose.msra.mxu0 0.0
    %2574 = vmatprep.subr.mxu0 0.0
    %2575 = vmatpush1.xpose.msra.mxu0 0.0
    %2576 = vmatprep.subr.mxu0 0.0
    %2577 = vmatpush1.xpose.msra.mxu0 0.0
    %2578 = vmatprep.subr.mxu0 0.0
    %2579 = vmatpush1.xpose.msra.mxu0 0.0
    %2580 = vmatprep.subr.mxu0 0.0
    %2581 = vmatpush1.xpose.msra.mxu0 0.0
    %2582 = vmatprep.subr.mxu0 0.0
    %2583 = vmatpush1.xpose.msra.mxu0 0.0
    %2584 = vmatprep.subr.mxu0 0.0
    %2585 = vmatpush1.xpose.msra.mxu0 0.0
    %2586 = vmatprep.subr.mxu0 0.0
    %2587 = vmatpush1.xpose.msra.mxu0 0.0
    %2588 = vmatprep.subr.mxu0 0.0
    %2589 = vmatpush1.xpose.msra.mxu0 0.0
    %2590 = vmatprep.subr.mxu0 0.0
    %2591 = vmatpush1.xpose.msra.mxu0 0.0
    %2592 = vmatprep.subr.mxu0 0.0
    %2593 = vmatpush1.xpose.msra.mxu0 0.0
    %2594 = vmatprep.subr.mxu0 0.0
    %2595 = vmatpush1.xpose.msra.mxu0 0.0
    %2596 = vmatprep.subr.mxu0 0.0
    %2597 = vmatpush1.xpose.msra.mxu0 0.0
    %2598 = vmatprep.subr.mxu0 0.0
    %2599 = vmatpush1.xpose.msra.mxu0 0.0
    %2600 = vmatprep.subr.mxu0 0.0
    %2601 = vmatpush1.xpose.msra.mxu0 0.0
    %2602 = vmatprep.mubr.f32.mxu0 0.0
    %2603 = vmatmul.mubr.f32.gmra.mrb[0].mxu0 %v2526
    %v2604 = vpop.f32.mrb[0].mxu0
    %v2605 = vadd.f32 0.0, %v2604
    %v2606 = vpop.f32.mrb[0].mxu0
    %2607 = vmatprep.mubr.f32.mxu0 0.0
    %2608 = vmatmul.mubr.f32.gmra.mrb[0].mxu0 %v2528
    %v2609 = vpop.f32.mrb[0].mxu0
    %v2610 = vadd.f32 0.0, %v2609
    %v2611 = vpop.f32.mrb[0].mxu0
    %2612 = vmatprep.mubr.f32.mxu0 0.0
    %2613 = vmatmul.mubr.f32.gmra.mrb[0].mxu0 %v2530
    %v2614 = vpop.f32.mrb[0].mxu0
    %v2615 = vadd.f32 0.0, %v2614
    %v2616 = vpop.f32.mrb[0].mxu0
    %2617 = vdwg.mxu0
    %v2618 = vsel %vm649, %v2605, -inf
    %2619 = vmax.xlane.f32.xlu0 %v2618
    %v2620 = vpop.xlane.xlu0 %2619
    %v2621 = vsel %vm649, %v2610, -inf
    %2622 = vmax.xlane.f32.xlu0 %v2621
    %v2623 = vpop.xlane.xlu0 %2622
    %v2624 = vsel %vm656, %v2615, -inf
    %2625 = vmax.xlane.f32.xlu0 %v2624
    %v2626 = vpop.xlane.xlu0 %2625
    %v2627 = vsub.f32 %v2605, %v2620
    %v2628 = vsub.f32 %v2610, %v2623
    %v2629 = vsub.f32 %v2615, %v2626
    %v2630 = vmul.f32 %v2627, 1.442695
    %v2631 = vpow.pop %v2630
    %v2632 = vmul.f32 %v2628, 1.442695
    %v2633 = vpow.pop %v2632
    %v2634 = vmul.f32 %v2629, 1.442695
    %v2635 = vpow.pop %v2634
    %v2636 = vsel %vm649, %v2631, 0.0
    %2637 = vadd.xlane.f32.xlu0 %v2636
    %v2638 = vpop.xlane.xlu0 %2637
    %v2639 = vsel %vm649, %v2633, 0.0
    %2640 = vadd.xlane.f32.xlu0 %v2639
    %v2641 = vpop.xlane.xlu0 %2640
    %v2642 = vsel %vm656, %v2635, 0.0
    %2643 = vadd.xlane.f32.xlu0 %v2642
    %v2644 = vpop.xlane.xlu0 %2643
    %v2645 = vrcp.pop %v2638
    %v2646 = vrcp.pop %v2641
    %v2647 = vrcp.pop %v2644
    %v2648 = vmul.f32 %v2631, %v2645
    %v2649 = vmul.f32 %v2633, %v2646
    %v2650 = vmul.f32 %v2635, %v2647
    %2651 = vrot.lane.b32.xlu0 %v1867, 48
    %v2652 = vpop.permute.xlu0 %2651
    %2653 = vrot.lane.b32.xlu0 %v1869, 48
    %v2654 = vpop.permute.xlu0 %2653
    %2655 = vrot.lane.b32.xlu0 %v1868, 48
    %v2656 = vpop.permute.xlu0 %2655
    %v2660 = vsel %vm649, %v2648, 0
    %v2663 = vsel %vm649, %v2649, 0
    %v2666 = vsel %vm649, %v2650, 0
    %v2668 = vsel %vm225, %v2656, 0
    %2670 = vmatprep.subr.mxu0 0.0
    %2671 = vmatpush1.msra.mxu0 %v2652
    %2672 = vmatprep.subr.mxu0 0.0
    %2673 = vmatpush1.msra.mxu0 %v2654
    %2674 = vmatprep.subr.mxu0 0.0
    %2675 = vmatpush1.msra.mxu0 %v2668
    %2676 = vmatprep.subr.mxu0 0.0
    %2677 = vmatpush1.msra.mxu0 0.0
    %2678 = vmatprep.subr.mxu0 0.0
    %2679 = vmatpush1.msra.mxu0 0.0
    %2680 = vmatprep.subr.mxu0 0.0
    %2681 = vmatpush1.msra.mxu0 0.0
    %2682 = vmatprep.subr.mxu0 0.0
    %2683 = vmatpush1.msra.mxu0 0.0
    %2684 = vmatprep.subr.mxu0 0.0
    %2685 = vmatpush1.msra.mxu0 0.0
    %2686 = vmatprep.subr.mxu0 0.0
    %2687 = vmatpush1.msra.mxu0 0.0
    %2688 = vmatprep.subr.mxu0 0.0
    %2689 = vmatpush1.msra.mxu0 0.0
    %2690 = vmatprep.subr.mxu0 0.0
    %2691 = vmatpush1.msra.mxu0 0.0
    %2692 = vmatprep.subr.mxu0 0.0
    %2693 = vmatpush1.msra.mxu0 0.0
    %2694 = vmatprep.subr.mxu0 0.0
    %2695 = vmatpush1.msra.mxu0 0.0
    %2696 = vmatprep.subr.mxu0 0.0
    %2697 = vmatpush1.msra.mxu0 0.0
    %2698 = vmatprep.subr.mxu0 0.0
    %2699 = vmatpush1.msra.mxu0 0.0
    %2700 = vmatprep.subr.mxu0 0.0
    %2701 = vmatpush1.msra.mxu0 0.0
    %2702 = vmatprep.subr.mxu0 0.0
    %2703 = vmatpush1.msra.mxu0 0.0
    %2704 = vmatprep.subr.mxu0 0.0
    %2705 = vmatpush1.msra.mxu0 0.0
    %2706 = vmatprep.subr.mxu0 0.0
    %2707 = vmatpush1.msra.mxu0 0.0
    %2708 = vmatprep.subr.mxu0 0.0
    %2709 = vmatpush1.msra.mxu0 0.0
    %2710 = vmatprep.subr.mxu0 0.0
    %2711 = vmatpush1.msra.mxu0 0.0
    %2712 = vmatprep.subr.mxu0 0.0
    %2713 = vmatpush1.msra.mxu0 0.0
    %2714 = vmatprep.subr.mxu0 0.0
    %2715 = vmatpush1.msra.mxu0 0.0
    %2716 = vmatprep.subr.mxu0 0.0
    %2717 = vmatpush1.msra.mxu0 0.0
    %2718 = vmatprep.subr.mxu0 0.0
    %2719 = vmatpush1.msra.mxu0 0.0
    %2720 = vmatprep.subr.mxu0 0.0
    %2721 = vmatpush1.msra.mxu0 0.0
    %2722 = vmatprep.subr.mxu0 0.0
    %2723 = vmatpush1.msra.mxu0 0.0
    %2724 = vmatprep.subr.mxu0 0.0
    %2725 = vmatpush1.msra.mxu0 0.0
    %2726 = vmatprep.subr.mxu0 0.0
    %2727 = vmatpush1.msra.mxu0 0.0
    %2728 = vmatprep.subr.mxu0 0.0
    %2729 = vmatpush1.msra.mxu0 0.0
    %2730 = vmatprep.subr.mxu0 0.0
    %2731 = vmatpush1.msra.mxu0 0.0
    %2732 = vmatprep.subr.mxu0 0.0
    %2733 = vmatpush1.msra.mxu0 0.0
    %2734 = vmatprep.mubr.f32.mxu0 0.0
    %2735 = vmatmul.mubr.f32.gmra.mrb[0].mxu0 %v2660
    %v2736 = vpop.f32.mrb[0].mxu0
    %v2737 = vadd.f32 0.0, %v2736
    %v2738 = vpop.f32.mrb[0].mxu0
    %2739 = vmatprep.mubr.f32.mxu0 0.0
    %2740 = vmatmul.mubr.f32.gmra.mrb[0].mxu0 %v2663
    %v2741 = vpop.f32.mrb[0].mxu0
    %v2742 = vadd.f32 0.0, %v2741
    %v2743 = vpop.f32.mrb[0].mxu0
    %2744 = vmatprep.mubr.f32.mxu0 0.0
    %2745 = vmatmul.mubr.f32.gmra.mrb[0].mxu0 %v2666
    %v2746 = vpop.f32.mrb[0].mxu0
    %v2747 = vadd.f32 0.0, %v2746
    %v2748 = vpop.f32.mrb[0].mxu0
    %2749 = vdwg.mxu0
    %v2751 = vsel %vm553, %v2737, 0
    %v2754 = vsel %vm553, %v2742, 0
    %v2757 = vsel %vm553, %v2747, 0
    %2759 = vmatprep.subr.mxu0 0.0
    %2760 = vmatpush1.msra.mxu0 %v539
    %2761 = vmatprep.subr.mxu0 0.0
    %2762 = vmatpush1.msra.mxu0 0.0
    %2763 = vmatprep.subr.mxu0 0.0
    %2764 = vmatpush1.msra.mxu0 0.0
    %2765 = vmatprep.subr.mxu0 0.0
    %2766 = vmatpush1.msra.mxu0 0.0
    %2767 = vmatprep.subr.mxu0 0.0
    %2768 = vmatpush1.msra.mxu0 0.0
    %2769 = vmatprep.subr.mxu0 0.0
    %2770 = vmatpush1.msra.mxu0 0.0
    %2771 = vmatprep.subr.mxu0 0.0
    %2772 = vmatpush1.msra.mxu0 0.0
    %2773 = vmatprep.subr.mxu0 0.0
    %2774 = vmatpush1.msra.mxu0 0.0
    %2775 = vmatprep.subr.mxu0 0.0
    %2776 = vmatpush1.msra.mxu0 0.0
    %2777 = vmatprep.subr.mxu0 0.0
    %2778 = vmatpush1.msra.mxu0 0.0
    %2779 = vmatprep.subr.mxu0 0.0
    %2780 = vmatpush1.msra.mxu0 0.0
    %2781 = vmatprep.subr.mxu0 0.0
    %2782 = vmatpush1.msra.mxu0 0.0
    %2783 = vmatprep.subr.mxu0 0.0
    %2784 = vmatpush1.msra.mxu0 0.0
    %2785 = vmatprep.subr.mxu0 0.0
    %2786 = vmatpush1.msra.mxu0 0.0
    %2787 = vmatprep.subr.mxu0 0.0
    %2788 = vmatpush1.msra.mxu0 0.0
    %2789 = vmatprep.subr.mxu0 0.0
    %2790 = vmatpush1.msra.mxu0 0.0
    %2791 = vmatprep.subr.mxu0 0.0
    %2792 = vmatpush1.msra.mxu0 0.0
    %2793 = vmatprep.subr.mxu0 0.0
    %2794 = vmatpush1.msra.mxu0 0.0
    %2795 = vmatprep.subr.mxu0 0.0
    %2796 = vmatpush1.msra.mxu0 0.0
    %2797 = vmatprep.subr.mxu0 0.0
    %2798 = vmatpush1.msra.mxu0 0.0
    %2799 = vmatprep.subr.mxu0 0.0
    %2800 = vmatpush1.msra.mxu0 0.0
    %2801 = vmatprep.subr.mxu0 0.0
    %2802 = vmatpush1.msra.mxu0 0.0
    %2803 = vmatprep.subr.mxu0 0.0
    %2804 = vmatpush1.msra.mxu0 0.0
    %2805 = vmatprep.subr.mxu0 0.0
    %2806 = vmatpush1.msra.mxu0 0.0
    %2807 = vmatprep.subr.mxu0 0.0
    %2808 = vmatpush1.msra.mxu0 0.0
    %2809 = vmatprep.subr.mxu0 0.0
    %2810 = vmatpush1.msra.mxu0 0.0
    %2811 = vmatprep.subr.mxu0 0.0
    %2812 = vmatpush1.msra.mxu0 0.0
    %2813 = vmatprep.subr.mxu0 0.0
    %2814 = vmatpush1.msra.mxu0 0.0
    %2815 = vmatprep.subr.mxu0 0.0
    %2816 = vmatpush1.msra.mxu0 0.0
    %2817 = vmatprep.subr.mxu0 0.0
    %2818 = vmatpush1.msra.mxu0 0.0
    %2819 = vmatprep.subr.mxu0 0.0
    %2820 = vmatpush1.msra.mxu0 0.0
    %2821 = vmatprep.subr.mxu0 0.0
    %2822 = vmatpush1.msra.mxu0 0.0
    %2823 = vmatprep.mubr.f32.mxu0 0.0
    %2824 = vmatmul.mubr.f32.gmra.mrb[0].mxu0 %v2751
    %v2825 = vpop.f32.mrb[0].mxu0
    %v2826 = vadd.f32 0.0, %v2825
    %v2827 = vpop.f32.mrb[0].mxu0
    %2828 = vmatprep.mubr.f32.mxu0 0.0
    %2829 = vmatmul.mubr.f32.gmra.mrb[0].mxu0 %v2754
    %v2830 = vpop.f32.mrb[0].mxu0
    %v2831 = vadd.f32 0.0, %v2830
    %v2832 = vpop.f32.mrb[0].mxu0
    %2833 = vmatprep.mubr.f32.mxu0 0.0
    %2834 = vmatmul.mubr.f32.gmra.mrb[0].mxu0 %v2757
    %v2835 = vpop.f32.mrb[0].mxu0
    %v2836 = vadd.f32 0.0, %v2835
    %v2837 = vpop.f32.mrb[0].mxu0
    %2838 = vdwg.mxu0
    %v2839 = vadd.f32 %v2501, %v2826
    %v2840 = vadd.f32 %v2506, %v2831
    %v2841 = vadd.f32 %v2511, %v2836
    %2842 = vrot.lane.b32.xlu0 %v1860, 104
    %v2843 = vpop.permute.xlu0 %2842
    %2844 = vrot.lane.b32.xlu0 %v1862, 104
    %v2845 = vpop.permute.xlu0 %2844
    %2846 = vrot.lane.b32.xlu0 %v1861, 104
    %v2847 = vpop.permute.xlu0 %2846
    %2848 = vrot.lane.b32.xlu0 %v1867, 72
    %v2849 = vpop.permute.xlu0 %2848
    %2850 = vrot.lane.b32.xlu0 %v1869, 72
    %v2851 = vpop.permute.xlu0 %2850
    %2852 = vrot.lane.b32.xlu0 %v1868, 72
    %v2853 = vpop.permute.xlu0 %2852
    %v2854 = vsel %vm553, %v2843, 0
    %v2856 = vsel %vm553, %v2845, 0
    %v2858 = vsel %vm553, %v2847, 0
    %v2860 = vsel %vm553, %v2849, 0
    %v2862 = vsel %vm553, %v2851, 0
    %v2864 = vsel %vm553, %v2853, 0
    %2866 = vmatprep.subr.mxu0 0.0
    %2867 = vmatpush1.xpose.msra.mxu0 %v2860
    %2868 = vmatprep.subr.mxu0 0.0
    %2869 = vmatpush1.xpose.msra.mxu0 %v2862
    %2870 = vmatprep.subr.mxu0 0.0
    %2871 = vmatpush1.xpose.msra.mxu0 %v2864
    %2872 = vmatprep.subr.mxu0 0.0
    %2873 = vmatpush1.xpose.msra.mxu0 0.0
    %2874 = vmatprep.subr.mxu0 0.0
    %2875 = vmatpush1.xpose.msra.mxu0 0.0
    %2876 = vmatprep.subr.mxu0 0.0
    %2877 = vmatpush1.xpose.msra.mxu0 0.0
    %2878 = vmatprep.subr.mxu0 0.0
    %2879 = vmatpush1.xpose.msra.mxu0 0.0
    %2880 = vmatprep.subr.mxu0 0.0
    %2881 = vmatpush1.xpose.msra.mxu0 0.0
    %2882 = vmatprep.subr.mxu0 0.0
    %2883 = vmatpush1.xpose.msra.mxu0 0.0
    %2884 = vmatprep.subr.mxu0 0.0
    %2885 = vmatpush1.xpose.msra.mxu0 0.0
    %2886 = vmatprep.subr.mxu0 0.0
    %2887 = vmatpush1.xpose.msra.mxu0 0.0
    %2888 = vmatprep.subr.mxu0 0.0
    %2889 = vmatpush1.xpose.msra.mxu0 0.0
    %2890 = vmatprep.subr.mxu0 0.0
    %2891 = vmatpush1.xpose.msra.mxu0 0.0
    %2892 = vmatprep.subr.mxu0 0.0
    %2893 = vmatpush1.xpose.msra.mxu0 0.0
    %2894 = vmatprep.subr.mxu0 0.0
    %2895 = vmatpush1.xpose.msra.mxu0 0.0
    %2896 = vmatprep.subr.mxu0 0.0
    %2897 = vmatpush1.xpose.msra.mxu0 0.0
    %2898 = vmatprep.subr.mxu0 0.0
    %2899 = vmatpush1.xpose.msra.mxu0 0.0
    %2900 = vmatprep.subr.mxu0 0.0
    %2901 = vmatpush1.xpose.msra.mxu0 0.0
    %2902 = vmatprep.subr.mxu0 0.0
    %2903 = vmatpush1.xpose.msra.mxu0 0.0
    %2904 = vmatprep.subr.mxu0 0.0
    %2905 = vmatpush1.xpose.msra.mxu0 0.0
    %2906 = vmatprep.subr.mxu0 0.0
    %2907 = vmatpush1.xpose.msra.mxu0 0.0
    %2908 = vmatprep.subr.mxu0 0.0
    %2909 = vmatpush1.xpose.msra.mxu0 0.0
    %2910 = vmatprep.subr.mxu0 0.0
    %2911 = vmatpush1.xpose.msra.mxu0 0.0
    %2912 = vmatprep.subr.mxu0 0.0
    %2913 = vmatpush1.xpose.msra.mxu0 0.0
    %2914 = vmatprep.subr.mxu0 0.0
    %2915 = vmatpush1.xpose.msra.mxu0 0.0
    %2916 = vmatprep.subr.mxu0 0.0
    %2917 = vmatpush1.xpose.msra.mxu0 0.0
    %2918 = vmatprep.subr.mxu0 0.0
    %2919 = vmatpush1.xpose.msra.mxu0 0.0
    %2920 = vmatprep.subr.mxu0 0.0
    %2921 = vmatpush1.xpose.msra.mxu0 0.0
    %2922 = vmatprep.subr.mxu0 0.0
    %2923 = vmatpush1.xpose.msra.mxu0 0.0
    %2924 = vmatprep.subr.mxu0 0.0
    %2925 = vmatpush1.xpose.msra.mxu0 0.0
    %2926 = vmatprep.subr.mxu0 0.0
    %2927 = vmatpush1.xpose.msra.mxu0 0.0
    %2928 = vmatprep.subr.mxu0 0.0
    %2929 = vmatpush1.xpose.msra.mxu0 0.0
    %2930 = vmatprep.mubr.f32.mxu0 0.0
    %2931 = vmatmul.mubr.f32.gmra.mrb[0].mxu0 %v2854
    %v2932 = vpop.f32.mrb[0].mxu0
    %v2933 = vadd.f32 0.0, %v2932
    %v2934 = vpop.f32.mrb[0].mxu0
    %2935 = vmatprep.mubr.f32.mxu0 0.0
    %2936 = vmatmul.mubr.f32.gmra.mrb[0].mxu0 %v2856
    %v2937 = vpop.f32.mrb[0].mxu0
    %v2938 = vadd.f32 0.0, %v2937
    %v2939 = vpop.f32.mrb[0].mxu0
    %2940 = vmatprep.mubr.f32.mxu0 0.0
    %2941 = vmatmul.mubr.f32.gmra.mrb[0].mxu0 %v2858
    %v2942 = vpop.f32.mrb[0].mxu0
    %v2943 = vadd.f32 0.0, %v2942
    %v2944 = vpop.f32.mrb[0].mxu0
    %2945 = vdwg.mxu0
    %v2946 = vsel %vm649, %v2933, -inf
    %2947 = vmax.xlane.f32.xlu0 %v2946
    %v2948 = vpop.xlane.xlu0 %2947
    %v2949 = vsel %vm649, %v2938, -inf
    %2950 = vmax.xlane.f32.xlu0 %v2949
    %v2951 = vpop.xlane.xlu0 %2950
    %v2952 = vsel %vm656, %v2943, -inf
    %2953 = vmax.xlane.f32.xlu0 %v2952
    %v2954 = vpop.xlane.xlu0 %2953
    %v2955 = vsub.f32 %v2933, %v2948
    %v2956 = vsub.f32 %v2938, %v2951
    %v2957 = vsub.f32 %v2943, %v2954
    %v2958 = vmul.f32 %v2955, 1.442695
    %v2959 = vpow.pop %v2958
    %v2960 = vmul.f32 %v2956, 1.442695
    %v2961 = vpow.pop %v2960
    %v2962 = vmul.f32 %v2957, 1.442695
    %v2963 = vpow.pop %v2962
    %v2964 = vsel %vm649, %v2959, 0.0
    %2965 = vadd.xlane.f32.xlu0 %v2964
    %v2966 = vpop.xlane.xlu0 %2965
    %v2967 = vsel %vm649, %v2961, 0.0
    %2968 = vadd.xlane.f32.xlu0 %v2967
    %v2969 = vpop.xlane.xlu0 %2968
    %v2970 = vsel %vm656, %v2963, 0.0
    %2971 = vadd.xlane.f32.xlu0 %v2970
    %v2972 = vpop.xlane.xlu0 %2971
    %v2973 = vrcp.pop %v2966
    %v2974 = vrcp.pop %v2969
    %v2975 = vrcp.pop %v2972
    %v2976 = vmul.f32 %v2959, %v2973
    %v2977 = vmul.f32 %v2961, %v2974
    %v2978 = vmul.f32 %v2963, %v2975
    %2979 = vrot.lane.b32.xlu0 %v1867, 40
    %v2980 = vpop.permute.xlu0 %2979
    %2981 = vrot.lane.b32.xlu0 %v1869, 40
    %v2982 = vpop.permute.xlu0 %2981
    %2983 = vrot.lane.b32.xlu0 %v1868, 40
    %v2984 = vpop.permute.xlu0 %2983
    %v2988 = vsel %vm649, %v2976, 0
    %v2991 = vsel %vm649, %v2977, 0
    %v2994 = vsel %vm649, %v2978, 0
    %v2996 = vsel %vm225, %v2984, 0
    %2998 = vmatprep.subr.mxu0 0.0
    %2999 = vmatpush1.msra.mxu0 %v2980
    %3000 = vmatprep.subr.mxu0 0.0
    %3001 = vmatpush1.msra.mxu0 %v2982
    %3002 = vmatprep.subr.mxu0 0.0
    %3003 = vmatpush1.msra.mxu0 %v2996
    %3004 = vmatprep.subr.mxu0 0.0
    %3005 = vmatpush1.msra.mxu0 0.0
    %3006 = vmatprep.subr.mxu0 0.0
    %3007 = vmatpush1.msra.mxu0 0.0
    %3008 = vmatprep.subr.mxu0 0.0
    %3009 = vmatpush1.msra.mxu0 0.0
    %3010 = vmatprep.subr.mxu0 0.0
    %3011 = vmatpush1.msra.mxu0 0.0
    %3012 = vmatprep.subr.mxu0 0.0
    %3013 = vmatpush1.msra.mxu0 0.0
    %3014 = vmatprep.subr.mxu0 0.0
    %3015 = vmatpush1.msra.mxu0 0.0
    %3016 = vmatprep.subr.mxu0 0.0
    %3017 = vmatpush1.msra.mxu0 0.0
    %3018 = vmatprep.subr.mxu0 0.0
    %3019 = vmatpush1.msra.mxu0 0.0
    %3020 = vmatprep.subr.mxu0 0.0
    %3021 = vmatpush1.msra.mxu0 0.0
    %3022 = vmatprep.subr.mxu0 0.0
    %3023 = vmatpush1.msra.mxu0 0.0
    %3024 = vmatprep.subr.mxu0 0.0
    %3025 = vmatpush1.msra.mxu0 0.0
    %3026 = vmatprep.subr.mxu0 0.0
    %3027 = vmatpush1.msra.mxu0 0.0
    %3028 = vmatprep.subr.mxu0 0.0
    %3029 = vmatpush1.msra.mxu0 0.0
    %3030 = vmatprep.subr.mxu0 0.0
    %3031 = vmatpush1.msra.mxu0 0.0
    %3032 = vmatprep.subr.mxu0 0.0
    %3033 = vmatpush1.msra.mxu0 0.0
    %3034 = vmatprep.subr.mxu0 0.0
    %3035 = vmatpush1.msra.mxu0 0.0
    %3036 = vmatprep.subr.mxu0 0.0
    %3037 = vmatpush1.msra.mxu0 0.0
    %3038 = vmatprep.subr.mxu0 0.0
    %3039 = vmatpush1.msra.mxu0 0.0
    %3040 = vmatprep.subr.mxu0 0.0
    %3041 = vmatpush1.msra.mxu0 0.0
    %3042 = vmatprep.subr.mxu0 0.0
    %3043 = vmatpush1.msra.mxu0 0.0
    %3044 = vmatprep.subr.mxu0 0.0
    %3045 = vmatpush1.msra.mxu0 0.0
    %3046 = vmatprep.subr.mxu0 0.0
    %3047 = vmatpush1.msra.mxu0 0.0
    %3048 = vmatprep.subr.mxu0 0.0
    %3049 = vmatpush1.msra.mxu0 0.0
    %3050 = vmatprep.subr.mxu0 0.0
    %3051 = vmatpush1.msra.mxu0 0.0
    %3052 = vmatprep.subr.mxu0 0.0
    %3053 = vmatpush1.msra.mxu0 0.0
    %3054 = vmatprep.subr.mxu0 0.0
    %3055 = vmatpush1.msra.mxu0 0.0
    %3056 = vmatprep.subr.mxu0 0.0
    %3057 = vmatpush1.msra.mxu0 0.0
    %3058 = vmatprep.subr.mxu0 0.0
    %3059 = vmatpush1.msra.mxu0 0.0
    %3060 = vmatprep.subr.mxu0 0.0
    %3061 = vmatpush1.msra.mxu0 0.0
    %3062 = vmatprep.mubr.f32.mxu0 0.0
    %3063 = vmatmul.mubr.f32.gmra.mrb[0].mxu0 %v2988
    %v3064 = vpop.f32.mrb[0].mxu0
    %v3065 = vadd.f32 0.0, %v3064
    %v3066 = vpop.f32.mrb[0].mxu0
    %3067 = vmatprep.mubr.f32.mxu0 0.0
    %3068 = vmatmul.mubr.f32.gmra.mrb[0].mxu0 %v2991
    %v3069 = vpop.f32.mrb[0].mxu0
    %v3070 = vadd.f32 0.0, %v3069
    %v3071 = vpop.f32.mrb[0].mxu0
    %3072 = vmatprep.mubr.f32.mxu0 0.0
    %3073 = vmatmul.mubr.f32.gmra.mrb[0].mxu0 %v2994
    %v3074 = vpop.f32.mrb[0].mxu0
    %v3075 = vadd.f32 0.0, %v3074
    %v3076 = vpop.f32.mrb[0].mxu0
    %3077 = vdwg.mxu0
    %v3079 = vsel %vm553, %v3065, 0
    %v3082 = vsel %vm553, %v3070, 0
    %v3085 = vsel %vm553, %v3075, 0
    %3087 = vmatprep.subr.mxu0 0.0
    %3088 = vmatpush1.msra.mxu0 %v540
    %3089 = vmatprep.subr.mxu0 0.0
    %3090 = vmatpush1.msra.mxu0 0.0
    %3091 = vmatprep.subr.mxu0 0.0
    %3092 = vmatpush1.msra.mxu0 0.0
    %3093 = vmatprep.subr.mxu0 0.0
    %3094 = vmatpush1.msra.mxu0 0.0
    %3095 = vmatprep.subr.mxu0 0.0
    %3096 = vmatpush1.msra.mxu0 0.0
    %3097 = vmatprep.subr.mxu0 0.0
    %3098 = vmatpush1.msra.mxu0 0.0
    %3099 = vmatprep.subr.mxu0 0.0
    %3100 = vmatpush1.msra.mxu0 0.0
    %3101 = vmatprep.subr.mxu0 0.0
    %3102 = vmatpush1.msra.mxu0 0.0
    %3103 = vmatprep.subr.mxu0 0.0
    %3104 = vmatpush1.msra.mxu0 0.0
    %3105 = vmatprep.subr.mxu0 0.0
    %3106 = vmatpush1.msra.mxu0 0.0
    %3107 = vmatprep.subr.mxu0 0.0
    %3108 = vmatpush1.msra.mxu0 0.0
    %3109 = vmatprep.subr.mxu0 0.0
    %3110 = vmatpush1.msra.mxu0 0.0
    %3111 = vmatprep.subr.mxu0 0.0
    %3112 = vmatpush1.msra.mxu0 0.0
    %3113 = vmatprep.subr.mxu0 0.0
    %3114 = vmatpush1.msra.mxu0 0.0
    %3115 = vmatprep.subr.mxu0 0.0
    %3116 = vmatpush1.msra.mxu0 0.0
    %3117 = vmatprep.subr.mxu0 0.0
    %3118 = vmatpush1.msra.mxu0 0.0
    %3119 = vmatprep.subr.mxu0 0.0
    %3120 = vmatpush1.msra.mxu0 0.0
    %3121 = vmatprep.subr.mxu0 0.0
    %3122 = vmatpush1.msra.mxu0 0.0
    %3123 = vmatprep.subr.mxu0 0.0
    %3124 = vmatpush1.msra.mxu0 0.0
    %3125 = vmatprep.subr.mxu0 0.0
    %3126 = vmatpush1.msra.mxu0 0.0
    %3127 = vmatprep.subr.mxu0 0.0
    %3128 = vmatpush1.msra.mxu0 0.0
    %3129 = vmatprep.subr.mxu0 0.0
    %3130 = vmatpush1.msra.mxu0 0.0
    %3131 = vmatprep.subr.mxu0 0.0
    %3132 = vmatpush1.msra.mxu0 0.0
    %3133 = vmatprep.subr.mxu0 0.0
    %3134 = vmatpush1.msra.mxu0 0.0
    %3135 = vmatprep.subr.mxu0 0.0
    %3136 = vmatpush1.msra.mxu0 0.0
    %3137 = vmatprep.subr.mxu0 0.0
    %3138 = vmatpush1.msra.mxu0 0.0
    %3139 = vmatprep.subr.mxu0 0.0
    %3140 = vmatpush1.msra.mxu0 0.0
    %3141 = vmatprep.subr.mxu0 0.0
    %3142 = vmatpush1.msra.mxu0 0.0
    %3143 = vmatprep.subr.mxu0 0.0
    %3144 = vmatpush1.msra.mxu0 0.0
    %3145 = vmatprep.subr.mxu0 0.0
    %3146 = vmatpush1.msra.mxu0 0.0
    %3147 = vmatprep.subr.mxu0 0.0
    %3148 = vmatpush1.msra.mxu0 0.0
    %3149 = vmatprep.subr.mxu0 0.0
    %3150 = vmatpush1.msra.mxu0 0.0
    %3151 = vmatprep.mubr.f32.mxu0 0.0
    %3152 = vmatmul.mubr.f32.gmra.mrb[0].mxu0 %v3079
    %v3153 = vpop.f32.mrb[0].mxu0
    %v3154 = vadd.f32 0.0, %v3153
    %v3155 = vpop.f32.mrb[0].mxu0
    %3156 = vmatprep.mubr.f32.mxu0 0.0
    %3157 = vmatmul.mubr.f32.gmra.mrb[0].mxu0 %v3082
    %v3158 = vpop.f32.mrb[0].mxu0
    %v3159 = vadd.f32 0.0, %v3158
    %v3160 = vpop.f32.mrb[0].mxu0
    %3161 = vmatprep.mubr.f32.mxu0 0.0
    %3162 = vmatmul.mubr.f32.gmra.mrb[0].mxu0 %v3085
    %v3163 = vpop.f32.mrb[0].mxu0
    %v3164 = vadd.f32 0.0, %v3163
    %v3165 = vpop.f32.mrb[0].mxu0
    %3166 = vdwg.mxu0
    %v3167 = vadd.f32 %v2839, %v3154
    %v3168 = vadd.f32 %v2840, %v3159
    %v3169 = vadd.f32 %v2841, %v3164
    %v3173 = vrot.slane %v3167, 7
    %v3174 = vrot.slane %v3168, 7
    %v3175 = vsel %vm225, %v3173, %v3174
    %v3176 = vrot.slane %v3169, 7
    %v3177 = vsel %vm225, %v3174, %v3176
    %v3181 = vsel %vm225, %v1852, %v3173
    %v3182 = vld [vmem:[%s11] sm:$0x1]
    %v3184 = vlaneseq
    %v3185 = vshrl.u32 %v3184, 7
    %v3186 = vsub.s32 0, %v3185
    %v3187 = vrot.slane %v3182, %v3186
    %v3189 = vadd.f32 %v1850, %v3187
    %v3190 = vadd.f32 %v1851, %v3187
    %v3191 = vadd.f32 %v3181, %v3187
    %v3192 = vadd.f32 %v3175, %v3187
    %v3193 = vadd.f32 %v3177, %v3187
    %v3194 = vadd.f32 %v327, %v3189
    %v3195 = vadd.f32 %v328, %v3190
    %v3196 = vadd.f32 %v329, %v3191
    %v3197 = vadd.f32 %v330, %v3192
    %v3198 = vadd.f32 %v331, %v3193
    %v3199 = vld [vmem:[%s12] sm:$0x1]
    %v3200 = vld [vmem:[%s13] sm:$0x1]
    %v3201 = vsel %vm242, %v3194, 0.0
    %3202 = vadd.xlane.f32.xlu0 %v3201
    %v3203 = vpop.xlane.xlu0 %3202
    %v3204 = vsel %vm242, %v3195, 0.0
    %3205 = vadd.xlane.f32.xlu0 %v3204
    %v3206 = vpop.xlane.xlu0 %3205
    %v3207 = vsel %vm242, %v3196, 0.0
    %3208 = vadd.xlane.f32.xlu0 %v3207
    %v3209 = vpop.xlane.xlu0 %3208
    %v3210 = vsel %vm242, %v3197, 0.0
    %3211 = vadd.xlane.f32.xlu0 %v3210
    %v3212 = vpop.xlane.xlu0 %3211
    %v3213 = vsel %vm255, %v3198, 0.0
    %3214 = vadd.xlane.f32.xlu0 %v3213
    %v3215 = vpop.xlane.xlu0 %3214
    %v3216 = vmul.f32 %v3203, %v259
    %v3217 = vmul.f32 %v3206, %v259
    %v3218 = vmul.f32 %v3209, %v259
    %v3219 = vmul.f32 %v3212, %v259
    %v3220 = vmul.f32 %v3215, %v259
    %v3221 = vsub.f32 %v3194, %v3216
    %v3222 = vsub.f32 %v3195, %v3217
    %v3223 = vsub.f32 %v3196, %v3218
    %v3224 = vsub.f32 %v3197, %v3219
    %v3225 = vsub.f32 %v3198, %v3220
    %v3226 = vmul.f32 %v3221, %v3221
    %v3227 = vmul.f32 %v3222, %v3222
    %v3228 = vmul.f32 %v3223, %v3223
    %v3229 = vmul.f32 %v3224, %v3224
    %v3230 = vmul.f32 %v3225, %v3225
    %v3231 = vsel %vm242, %v3226, 0.0
    %3232 = vadd.xlane.f32.xlu0 %v3231
    %v3233 = vpop.xlane.xlu0 %3232
    %v3234 = vsel %vm242, %v3227, 0.0
    %3235 = vadd.xlane.f32.xlu0 %v3234
    %v3236 = vpop.xlane.xlu0 %3235
    %v3237 = vsel %vm242, %v3228, 0.0
    %3238 = vadd.xlane.f32.xlu0 %v3237
    %v3239 = vpop.xlane.xlu0 %3238
    %v3240 = vsel %vm242, %v3229, 0.0
    %3241 = vadd.xlane.f32.xlu0 %v3240
    %v3242 = vpop.xlane.xlu0 %3241
    %v3243 = vsel %vm255, %v3230, 0.0
    %3244 = vadd.xlane.f32.xlu0 %v3243
    %v3245 = vpop.xlane.xlu0 %3244
    %v3246 = vmul.f32 %v3233, %v259
    %v3247 = vmul.f32 %v3236, %v259
    %v3248 = vmul.f32 %v3239, %v259
    %v3249 = vmul.f32 %v3242, %v259
    %v3250 = vmul.f32 %v3245, %v259
    %v3251 = vadd.f32 %v3246, 1e-05
    %v3252 = vadd.f32 %v3247, 1e-05
    %v3253 = vadd.f32 %v3248, 1e-05
    %v3254 = vadd.f32 %v3249, 1e-05
    %v3255 = vadd.f32 %v3250, 1e-05
    %v3256 = vrsqrt.pop %v3251
    %v3257 = vrsqrt.pop %v3252
    %v3258 = vrsqrt.pop %v3253
    %v3259 = vrsqrt.pop %v3254
    %v3260 = vrsqrt.pop %v3255
    %v3261 = vmul.f32 %v3221, %v3256
    %v3262 = vmul.f32 %v3222, %v3257
    %v3263 = vmul.f32 %v3223, %v3258
    %v3264 = vmul.f32 %v3224, %v3259
    %v3265 = vmul.f32 %v3225, %v3260
    %v3267 = vlaneseq
    %v3268 = vshrl.u32 %v3267, 7
    %v3269 = vsub.s32 0, %v3268
    %v3270 = vrot.slane %v3199, %v3269
    %v3272 = vmul.f32 %v3261, %v3270
    %v3273 = vmul.f32 %v3262, %v3270
    %v3274 = vmul.f32 %v3263, %v3270
    %v3275 = vmul.f32 %v3264, %v3270
    %v3276 = vmul.f32 %v3265, %v3270
    %v3278 = vlaneseq
    %v3279 = vshrl.u32 %v3278, 7
    %v3280 = vsub.s32 0, %v3279
    %v3281 = vrot.slane %v3200, %v3280
    %v3283 = vadd.f32 %v3272, %v3281
    %v3284 = vadd.f32 %v3273, %v3281
    %v3285 = vadd.f32 %v3274, %v3281
    %v3286 = vadd.f32 %v3275, %v3281
    %v3287 = vadd.f32 %v3276, %v3281
    %v3288 = vld [vmem:[%s14] sm:$0xff]
    %v3289 = vld [vmem:[%s14 + $0x8] sm:$0xff]
    %v3290 = vld [vmem:[%s14 + $0x10] sm:$0xff]
    %v3291 = vld [vmem:[%s14 + $0x18] sm:$0xff]
    %v3292 = vld [vmem:[%s15] sm:$0x1]
    %v3294 = vlaneseq
    %v3295 = vshrl.u32 %v3294, 7
    %v3296 = vsub.s32 0, %v3295
    %v3297 = vrot.slane %v3292, %v3296
    %v3300 = vsel %vm242, %v3283, 0
    %v3303 = vsel %vm242, %v3284, 0
    %v3306 = vsel %vm242, %v3285, 0
    %v3309 = vsel %vm242, %v3286, 0
    %v3312 = vsel %vm242, %v3287, 0
    %3314 = vmatprep.subr.mxu0 0.0
    %3315 = vmatpush1.msra.mxu0 %v3288
    %3316 = vmatprep.subr.mxu0 0.0
    %3317 = vmatpush1.msra.mxu0 %v3289
    %3318 = vmatprep.subr.mxu0 0.0
    %3319 = vmatpush1.msra.mxu0 %v3290
    %3320 = vmatprep.subr.mxu0 0.0
    %3321 = vmatpush1.msra.mxu0 %v3291
    %3322 = vmatprep.subr.mxu0 0.0
    %3323 = vmatpush1.msra.mxu0 0.0
    %3324 = vmatprep.subr.mxu0 0.0
    %3325 = vmatpush1.msra.mxu0 0.0
    %3326 = vmatprep.subr.mxu0 0.0
    %3327 = vmatpush1.msra.mxu0 0.0
    %3328 = vmatprep.subr.mxu0 0.0
    %3329 = vmatpush1.msra.mxu0 0.0
    %3330 = vmatprep.subr.mxu0 0.0
    %3331 = vmatpush1.msra.mxu0 0.0
    %3332 = vmatprep.subr.mxu0 0.0
    %3333 = vmatpush1.msra.mxu0 0.0
    %3334 = vmatprep.subr.mxu0 0.0
    %3335 = vmatpush1.msra.mxu0 0.0
    %3336 = vmatprep.subr.mxu0 0.0
    %3337 = vmatpush1.msra.mxu0 0.0
    %3338 = vmatprep.subr.mxu0 0.0
    %3339 = vmatpush1.msra.mxu0 0.0
    %3340 = vmatprep.subr.mxu0 0.0
    %3341 = vmatpush1.msra.mxu0 0.0
    %3342 = vmatprep.subr.mxu0 0.0
    %3343 = vmatpush1.msra.mxu0 0.0
    %3344 = vmatprep.subr.mxu0 0.0
    %3345 = vmatpush1.msra.mxu0 0.0
    %3346 = vmatprep.subr.mxu0 0.0
    %3347 = vmatpush1.msra.mxu0 0.0
    %3348 = vmatprep.subr.mxu0 0.0
    %3349 = vmatpush1.msra.mxu0 0.0
    %3350 = vmatprep.subr.mxu0 0.0
    %3351 = vmatpush1.msra.mxu0 0.0
    %3352 = vmatprep.subr.mxu0 0.0
    %3353 = vmatpush1.msra.mxu0 0.0
    %3354 = vmatprep.subr.mxu0 0.0
    %3355 = vmatpush1.msra.mxu0 0.0
    %3356 = vmatprep.subr.mxu0 0.0
    %3357 = vmatpush1.msra.mxu0 0.0
    %3358 = vmatprep.subr.mxu0 0.0
    %3359 = vmatpush1.msra.mxu0 0.0
    %3360 = vmatprep.subr.mxu0 0.0
    %3361 = vmatpush1.msra.mxu0 0.0
    %3362 = vmatprep.subr.mxu0 0.0
    %3363 = vmatpush1.msra.mxu0 0.0
    %3364 = vmatprep.subr.mxu0 0.0
    %3365 = vmatpush1.msra.mxu0 0.0
    %3366 = vmatprep.subr.mxu0 0.0
    %3367 = vmatpush1.msra.mxu0 0.0
    %3368 = vmatprep.subr.mxu0 0.0
    %3369 = vmatpush1.msra.mxu0 0.0
    %3370 = vmatprep.subr.mxu0 0.0
    %3371 = vmatpush1.msra.mxu0 0.0
    %3372 = vmatprep.subr.mxu0 0.0
    %3373 = vmatpush1.msra.mxu0 0.0
    %3374 = vmatprep.subr.mxu0 0.0
    %3375 = vmatpush1.msra.mxu0 0.0
    %3376 = vmatprep.subr.mxu0 0.0
    %3377 = vmatpush1.msra.mxu0 0.0
    %3378 = vmatprep.mubr.f32.mxu0 0.0
    %3379 = vmatmul.mubr.f32.gmra.mrb[0].mxu0 %v3300
    %v3380 = vpop.f32.mrb[0].mxu0
    %v3381 = vadd.f32 %v3297, %v3380
    %v3382 = vpop.f32.mrb[0].mxu0
    %3383 = vmatprep.mubr.f32.mxu0 0.0
    %3384 = vmatmul.mubr.f32.gmra.mrb[0].mxu0 %v3303
    %v3385 = vpop.f32.mrb[0].mxu0
    %v3386 = vadd.f32 %v3297, %v3385
    %v3387 = vpop.f32.mrb[0].mxu0
    %3388 = vmatprep.mubr.f32.mxu0 0.0
    %3389 = vmatmul.mubr.f32.gmra.mrb[0].mxu0 %v3306
    %v3390 = vpop.f32.mrb[0].mxu0
    %v3391 = vadd.f32 %v3297, %v3390
    %v3392 = vpop.f32.mrb[0].mxu0
    %3393 = vmatprep.mubr.f32.mxu0 0.0
    %3394 = vmatmul.mubr.f32.gmra.mrb[0].mxu0 %v3309
    %v3395 = vpop.f32.mrb[0].mxu0
    %v3396 = vadd.f32 %v3297, %v3395
    %v3397 = vpop.f32.mrb[0].mxu0
    %3398 = vmatprep.mubr.f32.mxu0 0.0
    %3399 = vmatmul.mubr.f32.gmra.mrb[0].mxu0 %v3312
    %v3400 = vpop.f32.mrb[0].mxu0
    %v3401 = vadd.f32 %v3297, %v3400
    %v3402 = vpop.f32.mrb[0].mxu0
    %3403 = vdwg.mxu0
    %v3404 = vmul.f32 %v3381, 1.702
    %v3405 = vmul.f32 %v3386, 1.702
    %v3406 = vmul.f32 %v3391, 1.702
    %v3407 = vmul.f32 %v3396, 1.702
    %v3408 = vmul.f32 %v3401, 1.702
    %v3409 = vxor.u32 %v3404, 2147483648
    %v3410 = vxor.u32 %v3405, 2147483648
    %v3411 = vxor.u32 %v3406, 2147483648
    %v3412 = vxor.u32 %v3407, 2147483648
    %v3413 = vxor.u32 %v3408, 2147483648
    %v3414 = vmul.f32 %v3409, 1.442695
    %v3415 = vpow.pop %v3414
    %v3416 = vmul.f32 %v3410, 1.442695
    %v3417 = vpow.pop %v3416
    %v3418 = vmul.f32 %v3411, 1.442695
    %v3419 = vpow.pop %v3418
    %v3420 = vmul.f32 %v3412, 1.442695
    %v3421 = vpow.pop %v3420
    %v3422 = vmul.f32 %v3413, 1.442695
    %v3423 = vpow.pop %v3422
    %v3424 = vadd.f32 %v3415, 1.0
    %v3425 = vadd.f32 %v3417, 1.0
    %v3426 = vadd.f32 %v3419, 1.0
    %v3427 = vadd.f32 %v3421, 1.0
    %v3428 = vadd.f32 %v3423, 1.0
    %v3429 = vrcp.pop %v3424
    %v3430 = vmul.f32 1.0, %v3429
    %v3431 = vrcp.pop %v3425
    %v3432 = vmul.f32 1.0, %v3431
    %v3433 = vrcp.pop %v3426
    %v3434 = vmul.f32 1.0, %v3433
    %v3435 = vrcp.pop %v3427
    %v3436 = vmul.f32 1.0, %v3435
    %v3437 = vrcp.pop %v3428
    %v3438 = vmul.f32 1.0, %v3437
    %v3439 = vmul.f32 %v3381, %v3430
    %v3440 = vmul.f32 %v3386, %v3432
    %v3441 = vmul.f32 %v3391, %v3434
    %v3442 = vmul.f32 %v3396, %v3436
    %v3443 = vmul.f32 %v3401, %v3438
    %v3444 = vld [vmem:[%s16] sm:$0xff]
    %v3445 = vld [vmem:[%s16 + $0x8] sm:$0xff]
    %v3446 = vld [vmem:[%s16 + $0x10] sm:$0xff]
    %v3447 = vld [vmem:[%s16 + $0x18] sm:$0xff]
    %v3448 = vld [vmem:[%s16 + $0x20] sm:$0xff]
    %v3449 = vld [vmem:[%s16 + $0x28] sm:$0xff]
    %v3450 = vld [vmem:[%s16 + $0x30] sm:$0xff]
    %v3451 = vld [vmem:[%s16 + $0x38] sm:$0xff]
    %v3452 = vld [vmem:[%s16 + $0x40] sm:$0xff]
    %v3453 = vld [vmem:[%s16 + $0x48] sm:$0xff]
    %v3454 = vld [vmem:[%s16 + $0x50] sm:$0xff]
    %v3455 = vld [vmem:[%s16 + $0x58] sm:$0xff]
    %v3456 = vld [vmem:[%s16 + $0x60] sm:$0xff]
    %v3457 = vld [vmem:[%s16 + $0x68] sm:$0xff]
    %v3458 = vld [vmem:[%s16 + $0x70] sm:$0xff]
    %v3459 = vld [vmem:[%s16 + $0x78] sm:$0xff]
    %3460 = vmatprep.subr.mxu0 0.0
    %3461 = vmatpush1.msra.mxu0 %v3444
    %3462 = vmatprep.subr.mxu0 0.0
    %3463 = vmatpush1.msra.mxu0 %v3445
    %3464 = vmatprep.subr.mxu0 0.0
    %3465 = vmatpush1.msra.mxu0 %v3446
    %3466 = vmatprep.subr.mxu0 0.0
    %3467 = vmatpush1.msra.mxu0 %v3447
    %3468 = vmatprep.subr.mxu0 0.0
    %3469 = vmatpush1.msra.mxu0 %v3448
    %3470 = vmatprep.subr.mxu0 0.0
    %3471 = vmatpush1.msra.mxu0 %v3449
    %3472 = vmatprep.subr.mxu0 0.0
    %3473 = vmatpush1.msra.mxu0 %v3450
    %3474 = vmatprep.subr.mxu0 0.0
    %3475 = vmatpush1.msra.mxu0 %v3451
    %3476 = vmatprep.subr.mxu0 0.0
    %3477 = vmatpush1.msra.mxu0 %v3452
    %3478 = vmatprep.subr.mxu0 0.0
    %3479 = vmatpush1.msra.mxu0 %v3453
    %3480 = vmatprep.subr.mxu0 0.0
    %3481 = vmatpush1.msra.mxu0 %v3454
    %3482 = vmatprep.subr.mxu0 0.0
    %3483 = vmatpush1.msra.mxu0 %v3455
    %3484 = vmatprep.subr.mxu0 0.0
    %3485 = vmatpush1.msra.mxu0 %v3456
    %3486 = vmatprep.subr.mxu0 0.0
    %3487 = vmatpush1.msra.mxu0 %v3457
    %3488 = vmatprep.subr.mxu0 0.0
    %3489 = vmatpush1.msra.mxu0 %v3458
    %3490 = vmatprep.subr.mxu0 0.0
    %3491 = vmatpush1.msra.mxu0 %v3459
    %3492 = vmatprep.subr.mxu0 0.0
    %3493 = vmatpush1.msra.mxu0 0.0
    %3494 = vmatprep.subr.mxu0 0.0
    %3495 = vmatpush1.msra.mxu0 0.0
    %3496 = vmatprep.subr.mxu0 0.0
    %3497 = vmatpush1.msra.mxu0 0.0
    %3498 = vmatprep.subr.mxu0 0.0
    %3499 = vmatpush1.msra.mxu0 0.0
    %3500 = vmatprep.subr.mxu0 0.0
    %3501 = vmatpush1.msra.mxu0 0.0
    %3502 = vmatprep.subr.mxu0 0.0
    %3503 = vmatpush1.msra.mxu0 0.0
    %3504 = vmatprep.subr.mxu0 0.0
    %3505 = vmatpush1.msra.mxu0 0.0
    %3506 = vmatprep.subr.mxu0 0.0
    %3507 = vmatpush1.msra.mxu0 0.0
    %3508 = vmatprep.subr.mxu0 0.0
    %3509 = vmatpush1.msra.mxu0 0.0
    %3510 = vmatprep.subr.mxu0 0.0
    %3511 = vmatpush1.msra.mxu0 0.0
    %3512 = vmatprep.subr.mxu0 0.0
    %3513 = vmatpush1.msra.mxu0 0.0
    %3514 = vmatprep.subr.mxu0 0.0
    %3515 = vmatpush1.msra.mxu0 0.0
    %3516 = vmatprep.subr.mxu0 0.0
    %3517 = vmatpush1.msra.mxu0 0.0
    %3518 = vmatprep.subr.mxu0 0.0
    %3519 = vmatpush1.msra.mxu0 0.0
    %3520 = vmatprep.subr.mxu0 0.0
    %3521 = vmatpush1.msra.mxu0 0.0
    %3522 = vmatprep.subr.mxu0 0.0
    %3523 = vmatpush1.msra.mxu0 0.0
    %3524 = vmatprep.mubr.f32.mxu0 0.0
    %3525 = vmatmul.mubr.f32.gmra.mrb[0].mxu0 %v3439
    %v3526 = vpop.f32.mrb[0].mxu0
    %v3527 = vadd.f32 0.0, %v3526
    %v3528 = vpop.f32.mrb[0].mxu0
    %3529 = vmatprep.mubr.f32.mxu0 0.0
    %3530 = vmatmul.mubr.f32.gmra.mrb[0].mxu0 %v3440
    %v3531 = vpop.f32.mrb[0].mxu0
    %v3532 = vadd.f32 0.0, %v3531
    %v3533 = vpop.f32.mrb[0].mxu0
    %3534 = vmatprep.mubr.f32.mxu0 0.0
    %3535 = vmatmul.mubr.f32.gmra.mrb[0].mxu0 %v3441
    %v3536 = vpop.f32.mrb[0].mxu0
    %v3537 = vadd.f32 0.0, %v3536
    %v3538 = vpop.f32.mrb[0].mxu0
    %3539 = vmatprep.mubr.f32.mxu0 0.0
    %3540 = vmatmul.mubr.f32.gmra.mrb[0].mxu0 %v3442
    %v3541 = vpop.f32.mrb[0].mxu0
    %v3542 = vadd.f32 0.0, %v3541
    %v3543 = vpop.f32.mrb[0].mxu0
    %3544 = vmatprep.mubr.f32.mxu0 0.0
    %3545 = vmatmul.mubr.f32.gmra.mrb[0].mxu0 %v3443
    %v3546 = vpop.f32.mrb[0].mxu0
    %v3547 = vadd.f32 0.0, %v3546
    %v3548 = vpop.f32.mrb[0].mxu0
    %3549 = vdwg.mxu0
    %v3550 = vadd.f32 %v3194, %v3527
    %v3551 = vadd.f32 %v3195, %v3532
    %v3552 = vadd.f32 %v3196, %v3537
    %v3553 = vadd.f32 %v3197, %v3542
    %v3554 = vadd.f32 %v3198, %v3547
    %v3555 = vld [vmem:[%s17] sm:$0x1]
    %v3557 = vlaneseq
    %v3558 = vshrl.u32 %v3557, 7
    %v3559 = vsub.s32 0, %v3558
    %v3560 = vrot.slane %v3555, %v3559
    %v3562 = vadd.f32 %v3550, %v3560
    %v3563 = vadd.f32 %v3551, %v3560
    %v3564 = vadd.f32 %v3552, %v3560
    %v3565 = vadd.f32 %v3553, %v3560
    %v3566 = vadd.f32 %v3554, %v3560
    %s3567 = scalar_lea.vmem %s6, 1
    %v3568 = vld [vmem:[%s3567] sm:$0x1]
    %s3569 = scalar_lea.vmem %s7, 1
    %v3570 = vld [vmem:[%s3569] sm:$0x1]
    %v3571 = vsel %vm242, %v3562, 0.0
    %3572 = vadd.xlane.f32.xlu0 %v3571
    %v3573 = vpop.xlane.xlu0 %3572
    %v3574 = vsel %vm242, %v3563, 0.0
    %3575 = vadd.xlane.f32.xlu0 %v3574
    %v3576 = vpop.xlane.xlu0 %3575
    %v3577 = vsel %vm242, %v3564, 0.0
    %3578 = vadd.xlane.f32.xlu0 %v3577
    %v3579 = vpop.xlane.xlu0 %3578
    %v3580 = vsel %vm242, %v3565, 0.0
    %3581 = vadd.xlane.f32.xlu0 %v3580
    %v3582 = vpop.xlane.xlu0 %3581
    %v3583 = vsel %vm255, %v3566, 0.0
    %3584 = vadd.xlane.f32.xlu0 %v3583
    %v3585 = vpop.xlane.xlu0 %3584
    %v3586 = vmul.f32 %v3573, %v259
    %v3587 = vmul.f32 %v3576, %v259
    %v3588 = vmul.f32 %v3579, %v259
    %v3589 = vmul.f32 %v3582, %v259
    %v3590 = vmul.f32 %v3585, %v259
    %v3591 = vsub.f32 %v3562, %v3586
    %v3592 = vsub.f32 %v3563, %v3587
    %v3593 = vsub.f32 %v3564, %v3588
    %v3594 = vsub.f32 %v3565, %v3589
    %v3595 = vsub.f32 %v3566, %v3590
    %v3596 = vmul.f32 %v3591, %v3591
    %v3597 = vmul.f32 %v3592, %v3592
    %v3598 = vmul.f32 %v3593, %v3593
    %v3599 = vmul.f32 %v3594, %v3594
    %v3600 = vmul.f32 %v3595, %v3595
    %v3601 = vsel %vm242, %v3596, 0.0
    %3602 = vadd.xlane.f32.xlu0 %v3601
    %v3603 = vpop.xlane.xlu0 %3602
    %v3604 = vsel %vm242, %v3597, 0.0
    %3605 = vadd.xlane.f32.xlu0 %v3604
    %v3606 = vpop.xlane.xlu0 %3605
    %v3607 = vsel %vm242, %v3598, 0.0
    %3608 = vadd.xlane.f32.xlu0 %v3607
    %v3609 = vpop.xlane.xlu0 %3608
    %v3610 = vsel %vm242, %v3599, 0.0
    %3611 = vadd.xlane.f32.xlu0 %v3610
    %v3612 = vpop.xlane.xlu0 %3611
    %v3613 = vsel %vm255, %v3600, 0.0
    %3614 = vadd.xlane.f32.xlu0 %v3613
    %v3615 = vpop.xlane.xlu0 %3614
    %v3616 = vmul.f32 %v3603, %v259
    %v3617 = vmul.f32 %v3606, %v259
    %v3618 = vmul.f32 %v3609, %v259
    %v3619 = vmul.f32 %v3612, %v259
    %v3620 = vmul.f32 %v3615, %v259
    %v3621 = vadd.f32 %v3616, 1e-05
    %v3622 = vadd.f32 %v3617, 1e-05
    %v3623 = vadd.f32 %v3618, 1e-05
    %v3624 = vadd.f32 %v3619, 1e-05
    %v3625 = vadd.f32 %v3620, 1e-05
    %v3626 = vrsqrt.pop %v3621
    %v3627 = vrsqrt.pop %v3622
    %v3628 = vrsqrt.pop %v3623
    %v3629 = vrsqrt.pop %v3624
    %v3630 = vrsqrt.pop %v3625
    %v3631 = vmul.f32 %v3591, %v3626
    %v3632 = vmul.f32 %v3592, %v3627
    %v3633 = vmul.f32 %v3593, %v3628
    %v3634 = vmul.f32 %v3594, %v3629
    %v3635 = vmul.f32 %v3595, %v3630
    %v3637 = vlaneseq
    %v3638 = vshrl.u32 %v3637, 7
    %v3639 = vsub.s32 0, %v3638
    %v3640 = vrot.slane %v3568, %v3639
    %v3642 = vmul.f32 %v3631, %v3640
    %v3643 = vmul.f32 %v3632, %v3640
    %v3644 = vmul.f32 %v3633, %v3640
    %v3645 = vmul.f32 %v3634, %v3640
    %v3646 = vmul.f32 %v3635, %v3640
    %v3648 = vlaneseq
    %v3649 = vshrl.u32 %v3648, 7
    %v3650 = vsub.s32 0, %v3649
    %v3651 = vrot.slane %v3570, %v3650
    %v3653 = vadd.f32 %v3642, %v3651
    %v3654 = vadd.f32 %v3643, %v3651
    %v3655 = vadd.f32 %v3644, %v3651
    %v3656 = vadd.f32 %v3645, %v3651
    %v3657 = vadd.f32 %v3646, %v3651
    %s3658 = scalar_lea.vmem %s8, 32
    %v3659 = vld [vmem:[%s3658] sm:$0xff]
    %v3660 = vld [vmem:[%s3658 + $0x8] sm:$0xff]
    %v3661 = vld [vmem:[%s3658 + $0x10] sm:$0xff]
    %v3662 = vld [vmem:[%s3658 + $0x18] sm:$0xff]
    %s3663 = scalar_lea.vmem %s9, 1
    %v3664 = vld [vmem:[%s3663] sm:$0x1]
    %v3666 = vlaneseq
    %v3667 = vshrl.u32 %v3666, 7
    %v3668 = vsub.s32 0, %v3667
    %v3669 = vrot.slane %v3664, %v3668
    %v3672 = vsel %vm242, %v3653, 0
    %v3675 = vsel %vm242, %v3654, 0
    %v3678 = vsel %vm242, %v3655, 0
    %v3681 = vsel %vm242, %v3656, 0
    %v3684 = vsel %vm242, %v3657, 0
    %3686 = vmatprep.subr.mxu0 0.0
    %3687 = vmatpush1.msra.mxu0 %v3659
    %3688 = vmatprep.subr.mxu0 0.0
    %3689 = vmatpush1.msra.mxu0 %v3660
    %3690 = vmatprep.subr.mxu0 0.0
    %3691 = vmatpush1.msra.mxu0 %v3661
    %3692 = vmatprep.subr.mxu0 0.0
    %3693 = vmatpush1.msra.mxu0 %v3662
    %3694 = vmatprep.subr.mxu0 0.0
    %3695 = vmatpush1.msra.mxu0 0.0
    %3696 = vmatprep.subr.mxu0 0.0
    %3697 = vmatpush1.msra.mxu0 0.0
    %3698 = vmatprep.subr.mxu0 0.0
    %3699 = vmatpush1.msra.mxu0 0.0
    %3700 = vmatprep.subr.mxu0 0.0
    %3701 = vmatpush1.msra.mxu0 0.0
    %3702 = vmatprep.subr.mxu0 0.0
    %3703 = vmatpush1.msra.mxu0 0.0
    %3704 = vmatprep.subr.mxu0 0.0
    %3705 = vmatpush1.msra.mxu0 0.0
    %3706 = vmatprep.subr.mxu0 0.0
    %3707 = vmatpush1.msra.mxu0 0.0
    %3708 = vmatprep.subr.mxu0 0.0
    %3709 = vmatpush1.msra.mxu0 0.0
    %3710 = vmatprep.subr.mxu0 0.0
    %3711 = vmatpush1.msra.mxu0 0.0
    %3712 = vmatprep.subr.mxu0 0.0
    %3713 = vmatpush1.msra.mxu0 0.0
    %3714 = vmatprep.subr.mxu0 0.0
    %3715 = vmatpush1.msra.mxu0 0.0
    %3716 = vmatprep.subr.mxu0 0.0
    %3717 = vmatpush1.msra.mxu0 0.0
    %3718 = vmatprep.subr.mxu0 0.0
    %3719 = vmatpush1.msra.mxu0 0.0
    %3720 = vmatprep.subr.mxu0 0.0
    %3721 = vmatpush1.msra.mxu0 0.0
    %3722 = vmatprep.subr.mxu0 0.0
    %3723 = vmatpush1.msra.mxu0 0.0
    %3724 = vmatprep.subr.mxu0 0.0
    %3725 = vmatpush1.msra.mxu0 0.0
    %3726 = vmatprep.subr.mxu0 0.0
    %3727 = vmatpush1.msra.mxu0 0.0
    %3728 = vmatprep.subr.mxu0 0.0
    %3729 = vmatpush1.msra.mxu0 0.0
    %3730 = vmatprep.subr.mxu0 0.0
    %3731 = vmatpush1.msra.mxu0 0.0
    %3732 = vmatprep.subr.mxu0 0.0
    %3733 = vmatpush1.msra.mxu0 0.0
    %3734 = vmatprep.subr.mxu0 0.0
    %3735 = vmatpush1.msra.mxu0 0.0
    %3736 = vmatprep.subr.mxu0 0.0
    %3737 = vmatpush1.msra.mxu0 0.0
    %3738 = vmatprep.subr.mxu0 0.0
    %3739 = vmatpush1.msra.mxu0 0.0
    %3740 = vmatprep.subr.mxu0 0.0
    %3741 = vmatpush1.msra.mxu0 0.0
    %3742 = vmatprep.subr.mxu0 0.0
    %3743 = vmatpush1.msra.mxu0 0.0
    %3744 = vmatprep.subr.mxu0 0.0
    %3745 = vmatpush1.msra.mxu0 0.0
    %3746 = vmatprep.subr.mxu0 0.0
    %3747 = vmatpush1.msra.mxu0 0.0
    %3748 = vmatprep.subr.mxu0 0.0
    %3749 = vmatpush1.msra.mxu0 0.0
    %3750 = vmatprep.mubr.f32.mxu0 0.0
    %3751 = vmatmul.mubr.f32.gmra.mrb[0].mxu0 %v3672
    %v3752 = vpop.f32.mrb[0].mxu0
    %v3753 = vadd.f32 %v3669, %v3752
    %v3754 = vpop.f32.mrb[0].mxu0
    %3755 = vmatprep.mubr.f32.mxu0 0.0
    %3756 = vmatmul.mubr.f32.gmra.mrb[0].mxu0 %v3675
    %v3757 = vpop.f32.mrb[0].mxu0
    %v3758 = vadd.f32 %v3669, %v3757
    %v3759 = vpop.f32.mrb[0].mxu0
    %3760 = vmatprep.mubr.f32.mxu0 0.0
    %3761 = vmatmul.mubr.f32.gmra.mrb[0].mxu0 %v3678
    %v3762 = vpop.f32.mrb[0].mxu0
    %v3763 = vadd.f32 %v3669, %v3762
    %v3764 = vpop.f32.mrb[0].mxu0
    %3765 = vmatprep.mubr.f32.mxu0 0.0
    %3766 = vmatmul.mubr.f32.gmra.mrb[0].mxu0 %v3681
    %v3767 = vpop.f32.mrb[0].mxu0
    %v3768 = vadd.f32 %v3669, %v3767
    %v3769 = vpop.f32.mrb[0].mxu0
    %3770 = vmatprep.mubr.f32.mxu0 0.0
    %3771 = vmatmul.mubr.f32.gmra.mrb[0].mxu0 %v3684
    %v3772 = vpop.f32.mrb[0].mxu0
    %v3773 = vadd.f32 %v3669, %v3772
    %v3774 = vpop.f32.mrb[0].mxu0
    %3775 = vdwg.mxu0
    %s3776 = scalar_lea.vmem %s10, 32
    %v3777 = vld [vmem:[%s3776] sm:$0xff]
    %v3778 = vld [vmem:[%s3776 + $0x8] sm:$0xff]
    %v3779 = vld [vmem:[%s3776 + $0x10] sm:$0xff]
    %v3780 = vld [vmem:[%s3776 + $0x18] sm:$0xff]
    %v3781 = vmul.f32 %v3753, 0.35355338
    %v3782 = vmul.f32 %v3758, 0.35355338
    %v3783 = vmul.f32 %v3763, 0.35355338
    %3787 = vrot.lane.b32.xlu0 %v3753, 96
    %v3788 = vpop.permute.xlu0 %3787
    %3789 = vrot.lane.b32.xlu0 %v3758, 96
    %v3790 = vpop.permute.xlu0 %3789
    %3791 = vrot.lane.b32.xlu0 %v3763, 96
    %v3792 = vpop.permute.xlu0 %3791
    %v3794 = vsel %vm553, %v3781, 0
    %v3797 = vsel %vm553, %v3782, 0
    %v3800 = vsel %vm553, %v3783, 0
    %v3802 = vsel %vm553, %v3788, 0
    %v3804 = vsel %vm553, %v3790, 0
    %v3806 = vsel %vm553, %v3792, 0
    %3808 = vmatprep.subr.mxu0 0.0
    %3809 = vmatpush1.xpose.msra.mxu0 %v3802
    %3810 = vmatprep.subr.mxu0 0.0
    %3811 = vmatpush1.xpose.msra.mxu0 %v3804
    %3812 = vmatprep.subr.mxu0 0.0
    %3813 = vmatpush1.xpose.msra.mxu0 %v3806
    %3814 = vmatprep.subr.mxu0 0.0
    %3815 = vmatpush1.xpose.msra.mxu0 0.0
    %3816 = vmatprep.subr.mxu0 0.0
    %3817 = vmatpush1.xpose.msra.mxu0 0.0
    %3818 = vmatprep.subr.mxu0 0.0
    %3819 = vmatpush1.xpose.msra.mxu0 0.0
    %3820 = vmatprep.subr.mxu0 0.0
    %3821 = vmatpush1.xpose.msra.mxu0 0.0
    %3822 = vmatprep.subr.mxu0 0.0
    %3823 = vmatpush1.xpose.msra.mxu0 0.0
    %3824 = vmatprep.subr.mxu0 0.0
    %3825 = vmatpush1.xpose.msra.mxu0 0.0
    %3826 = vmatprep.subr.mxu0 0.0
    %3827 = vmatpush1.xpose.msra.mxu0 0.0
    %3828 = vmatprep.subr.mxu0 0.0
    %3829 = vmatpush1.xpose.msra.mxu0 0.0
    %3830 = vmatprep.subr.mxu0 0.0
    %3831 = vmatpush1.xpose.msra.mxu0 0.0
    %3832 = vmatprep.subr.mxu0 0.0
    %3833 = vmatpush1.xpose.msra.mxu0 0.0
    %3834 = vmatprep.subr.mxu0 0.0
    %3835 = vmatpush1.xpose.msra.mxu0 0.0
    %3836 = vmatprep.subr.mxu0 0.0
    %3837 = vmatpush1.xpose.msra.mxu0 0.0
    %3838 = vmatprep.subr.mxu0 0.0
    %3839 = vmatpush1.xpose.msra.mxu0 0.0
    %3840 = vmatprep.subr.mxu0 0.0
    %3841 = vmatpush1.xpose.msra.mxu0 0.0
    %3842 = vmatprep.subr.mxu0 0.0
    %3843 = vmatpush1.xpose.msra.mxu0 0.0
    %3844 = vmatprep.subr.mxu0 0.0
    %3845 = vmatpush1.xpose.msra.mxu0 0.0
    %3846 = vmatprep.subr.mxu0 0.0
    %3847 = vmatpush1.xpose.msra.mxu0 0.0
    %3848 = vmatprep.subr.mxu0 0.0
    %3849 = vmatpush1.xpose.msra.mxu0 0.0
    %3850 = vmatprep.subr.mxu0 0.0
    %3851 = vmatpush1.xpose.msra.mxu0 0.0
    %3852 = vmatprep.subr.mxu0 0.0
    %3853 = vmatpush1.xpose.msra.mxu0 0.0
    %3854 = vmatprep.subr.mxu0 0.0
    %3855 = vmatpush1.xpose.msra.mxu0 0.0
    %3856 = vmatprep.subr.mxu0 0.0
    %3857 = vmatpush1.xpose.msra.mxu0 0.0
    %3858 = vmatprep.subr.mxu0 0.0
    %3859 = vmatpush1.xpose.msra.mxu0 0.0
    %3860 = vmatprep.subr.mxu0 0.0
    %3861 = vmatpush1.xpose.msra.mxu0 0.0
    %3862 = vmatprep.subr.mxu0 0.0
    %3863 = vmatpush1.xpose.msra.mxu0 0.0
    %3864 = vmatprep.subr.mxu0 0.0
    %3865 = vmatpush1.xpose.msra.mxu0 0.0
    %3866 = vmatprep.subr.mxu0 0.0
    %3867 = vmatpush1.xpose.msra.mxu0 0.0
    %3868 = vmatprep.subr.mxu0 0.0
    %3869 = vmatpush1.xpose.msra.mxu0 0.0
    %3870 = vmatprep.subr.mxu0 0.0
    %3871 = vmatpush1.xpose.msra.mxu0 0.0
    %3872 = vmatprep.mubr.f32.mxu0 0.0
    %3873 = vmatmul.mubr.f32.gmra.mrb[0].mxu0 %v3794
    %v3874 = vpop.f32.mrb[0].mxu0
    %v3875 = vadd.f32 0.0, %v3874
    %v3876 = vpop.f32.mrb[0].mxu0
    %3877 = vmatprep.mubr.f32.mxu0 0.0
    %3878 = vmatmul.mubr.f32.gmra.mrb[0].mxu0 %v3797
    %v3879 = vpop.f32.mrb[0].mxu0
    %v3880 = vadd.f32 0.0, %v3879
    %v3881 = vpop.f32.mrb[0].mxu0
    %3882 = vmatprep.mubr.f32.mxu0 0.0
    %3883 = vmatmul.mubr.f32.gmra.mrb[0].mxu0 %v3800
    %v3884 = vpop.f32.mrb[0].mxu0
    %v3885 = vadd.f32 0.0, %v3884
    %v3886 = vpop.f32.mrb[0].mxu0
    %3887 = vdwg.mxu0
    %v3888 = vsel %vm649, %v3875, -inf
    %3889 = vmax.xlane.f32.xlu0 %v3888
    %v3890 = vpop.xlane.xlu0 %3889
    %v3891 = vsel %vm649, %v3880, -inf
    %3892 = vmax.xlane.f32.xlu0 %v3891
    %v3893 = vpop.xlane.xlu0 %3892
    %v3894 = vsel %vm656, %v3885, -inf
    %3895 = vmax.xlane.f32.xlu0 %v3894
    %v3896 = vpop.xlane.xlu0 %3895
    %v3897 = vsub.f32 %v3875, %v3890
    %v3898 = vsub.f32 %v3880, %v3893
    %v3899 = vsub.f32 %v3885, %v3896
    %v3900 = vmul.f32 %v3897, 1.442695
    %v3901 = vpow.pop %v3900
    %v3902 = vmul.f32 %v3898, 1.442695
    %v3903 = vpow.pop %v3902
    %v3904 = vmul.f32 %v3899, 1.442695
    %v3905 = vpow.pop %v3904
    %v3906 = vsel %vm649, %v3901, 0.0
    %3907 = vadd.xlane.f32.xlu0 %v3906
    %v3908 = vpop.xlane.xlu0 %3907
    %v3909 = vsel %vm649, %v3903, 0.0
    %3910 = vadd.xlane.f32.xlu0 %v3909
    %v3911 = vpop.xlane.xlu0 %3910
    %v3912 = vsel %vm656, %v3905, 0.0
    %3913 = vadd.xlane.f32.xlu0 %v3912
    %v3914 = vpop.xlane.xlu0 %3913
    %v3915 = vrcp.pop %v3908
    %v3916 = vrcp.pop %v3911
    %v3917 = vrcp.pop %v3914
    %v3918 = vmul.f32 %v3901, %v3915
    %v3919 = vmul.f32 %v3903, %v3916
    %v3920 = vmul.f32 %v3905, %v3917
    %3921 = vrot.lane.b32.xlu0 %v3753, 64
    %v3922 = vpop.permute.xlu0 %3921
    %3923 = vrot.lane.b32.xlu0 %v3758, 64
    %v3924 = vpop.permute.xlu0 %3923
    %3925 = vrot.lane.b32.xlu0 %v3763, 64
    %v3926 = vpop.permute.xlu0 %3925
    %v3930 = vsel %vm649, %v3918, 0
    %v3933 = vsel %vm649, %v3919, 0
    %v3936 = vsel %vm649, %v3920, 0
    %v3938 = vsel %vm225, %v3926, 0
    %3940 = vmatprep.subr.mxu0 0.0
    %3941 = vmatpush1.msra.mxu0 %v3922
    %3942 = vmatprep.subr.mxu0 0.0
    %3943 = vmatpush1.msra.mxu0 %v3924
    %3944 = vmatprep.subr.mxu0 0.0
    %3945 = vmatpush1.msra.mxu0 %v3938
    %3946 = vmatprep.subr.mxu0 0.0
    %3947 = vmatpush1.msra.mxu0 0.0
    %3948 = vmatprep.subr.mxu0 0.0
    %3949 = vmatpush1.msra.mxu0 0.0
    %3950 = vmatprep.subr.mxu0 0.0
    %3951 = vmatpush1.msra.mxu0 0.0
    %3952 = vmatprep.subr.mxu0 0.0
    %3953 = vmatpush1.msra.mxu0 0.0
    %3954 = vmatprep.subr.mxu0 0.0
    %3955 = vmatpush1.msra.mxu0 0.0
    %3956 = vmatprep.subr.mxu0 0.0
    %3957 = vmatpush1.msra.mxu0 0.0
    %3958 = vmatprep.subr.mxu0 0.0
    %3959 = vmatpush1.msra.mxu0 0.0
    %3960 = vmatprep.subr.mxu0 0.0
    %3961 = vmatpush1.msra.mxu0 0.0
    %3962 = vmatprep.subr.mxu0 0.0
    %3963 = vmatpush1.msra.mxu0 0.0
    %3964 = vmatprep.subr.mxu0 0.0
    %3965 = vmatpush1.msra.mxu0 0.0
    %3966 = vmatprep.subr.mxu0 0.0
    %3967 = vmatpush1.msra.mxu0 0.0
    %3968 = vmatprep.subr.mxu0 0.0
    %3969 = vmatpush1.msra.mxu0 0.0
    %3970 = vmatprep.subr.mxu0 0.0
    %3971 = vmatpush1.msra.mxu0 0.0
    %3972 = vmatprep.subr.mxu0 0.0
    %3973 = vmatpush1.msra.mxu0 0.0
    %3974 = vmatprep.subr.mxu0 0.0
    %3975 = vmatpush1.msra.mxu0 0.0
    %3976 = vmatprep.subr.mxu0 0.0
    %3977 = vmatpush1.msra.mxu0 0.0
    %3978 = vmatprep.subr.mxu0 0.0
    %3979 = vmatpush1.msra.mxu0 0.0
    %3980 = vmatprep.subr.mxu0 0.0
    %3981 = vmatpush1.msra.mxu0 0.0
    %3982 = vmatprep.subr.mxu0 0.0
    %3983 = vmatpush1.msra.mxu0 0.0
    %3984 = vmatprep.subr.mxu0 0.0
    %3985 = vmatpush1.msra.mxu0 0.0
    %3986 = vmatprep.subr.mxu0 0.0
    %3987 = vmatpush1.msra.mxu0 0.0
    %3988 = vmatprep.subr.mxu0 0.0
    %3989 = vmatpush1.msra.mxu0 0.0
    %3990 = vmatprep.subr.mxu0 0.0
    %3991 = vmatpush1.msra.mxu0 0.0
    %3992 = vmatprep.subr.mxu0 0.0
    %3993 = vmatpush1.msra.mxu0 0.0
    %3994 = vmatprep.subr.mxu0 0.0
    %3995 = vmatpush1.msra.mxu0 0.0
    %3996 = vmatprep.subr.mxu0 0.0
    %3997 = vmatpush1.msra.mxu0 0.0
    %3998 = vmatprep.subr.mxu0 0.0
    %3999 = vmatpush1.msra.mxu0 0.0
    %4000 = vmatprep.subr.mxu0 0.0
    %4001 = vmatpush1.msra.mxu0 0.0
    %4002 = vmatprep.subr.mxu0 0.0
    %4003 = vmatpush1.msra.mxu0 0.0
    %4004 = vmatprep.mubr.f32.mxu0 0.0
    %4005 = vmatmul.mubr.f32.gmra.mrb[0].mxu0 %v3930
    %v4006 = vpop.f32.mrb[0].mxu0
    %v4007 = vadd.f32 0.0, %v4006
    %v4008 = vpop.f32.mrb[0].mxu0
    %4009 = vmatprep.mubr.f32.mxu0 0.0
    %4010 = vmatmul.mubr.f32.gmra.mrb[0].mxu0 %v3933
    %v4011 = vpop.f32.mrb[0].mxu0
    %v4012 = vadd.f32 0.0, %v4011
    %v4013 = vpop.f32.mrb[0].mxu0
    %4014 = vmatprep.mubr.f32.mxu0 0.0
    %4015 = vmatmul.mubr.f32.gmra.mrb[0].mxu0 %v3936
    %v4016 = vpop.f32.mrb[0].mxu0
    %v4017 = vadd.f32 0.0, %v4016
    %v4018 = vpop.f32.mrb[0].mxu0
    %4019 = vdwg.mxu0
    %4020 = vrot.lane.b32.xlu0 %v3781, 120
    %v4021 = vpop.permute.xlu0 %4020
    %4022 = vrot.lane.b32.xlu0 %v3782, 120
    %v4023 = vpop.permute.xlu0 %4022
    %4024 = vrot.lane.b32.xlu0 %v3783, 120
    %v4025 = vpop.permute.xlu0 %4024
    %4026 = vrot.lane.b32.xlu0 %v3753, 88
    %v4027 = vpop.permute.xlu0 %4026
    %4028 = vrot.lane.b32.xlu0 %v3758, 88
    %v4029 = vpop.permute.xlu0 %4028
    %4030 = vrot.lane.b32.xlu0 %v3763, 88
    %v4031 = vpop.permute.xlu0 %4030
    %v4032 = vsel %vm553, %v4021, 0
    %v4034 = vsel %vm553, %v4023, 0
    %v4036 = vsel %vm553, %v4025, 0
    %v4038 = vsel %vm553, %v4027, 0
    %v4040 = vsel %vm553, %v4029, 0
    %v4042 = vsel %vm553, %v4031, 0
    %4044 = vmatprep.subr.mxu0 0.0
    %4045 = vmatpush1.xpose.msra.mxu0 %v4038
    %4046 = vmatprep.subr.mxu0 0.0
    %4047 = vmatpush1.xpose.msra.mxu0 %v4040
    %4048 = vmatprep.subr.mxu0 0.0
    %4049 = vmatpush1.xpose.msra.mxu0 %v4042
    %4050 = vmatprep.subr.mxu0 0.0
    %4051 = vmatpush1.xpose.msra.mxu0 0.0
    %4052 = vmatprep.subr.mxu0 0.0
    %4053 = vmatpush1.xpose.msra.mxu0 0.0
    %4054 = vmatprep.subr.mxu0 0.0
    %4055 = vmatpush1.xpose.msra.mxu0 0.0
    %4056 = vmatprep.subr.mxu0 0.0
    %4057 = vmatpush1.xpose.msra.mxu0 0.0
    %4058 = vmatprep.subr.mxu0 0.0
    %4059 = vmatpush1.xpose.msra.mxu0 0.0
    %4060 = vmatprep.subr.mxu0 0.0
    %4061 = vmatpush1.xpose.msra.mxu0 0.0
    %4062 = vmatprep.subr.mxu0 0.0
    %4063 = vmatpush1.xpose.msra.mxu0 0.0
    %4064 = vmatprep.subr.mxu0 0.0
    %4065 = vmatpush1.xpose.msra.mxu0 0.0
    %4066 = vmatprep.subr.mxu0 0.0
    %4067 = vmatpush1.xpose.msra.mxu0 0.0
    %4068 = vmatprep.subr.mxu0 0.0
    %4069 = vmatpush1.xpose.msra.mxu0 0.0
    %4070 = vmatprep.subr.mxu0 0.0
    %4071 = vmatpush1.xpose.msra.mxu0 0.0
    %4072 = vmatprep.subr.mxu0 0.0
    %4073 = vmatpush1.xpose.msra.mxu0 0.0
    %4074 = vmatprep.subr.mxu0 0.0
    %4075 = vmatpush1.xpose.msra.mxu0 0.0
    %4076 = vmatprep.subr.mxu0 0.0
    %4077 = vmatpush1.xpose.msra.mxu0 0.0
    %4078 = vmatprep.subr.mxu0 0.0
    %4079 = vmatpush1.xpose.msra.mxu0 0.0
    %4080 = vmatprep.subr.mxu0 0.0
    %4081 = vmatpush1.xpose.msra.mxu0 0.0
    %4082 = vmatprep.subr.mxu0 0.0
    %4083 = vmatpush1.xpose.msra.mxu0 0.0
    %4084 = vmatprep.subr.mxu0 0.0
    %4085 = vmatpush1.xpose.msra.mxu0 0.0
    %4086 = vmatprep.subr.mxu0 0.0
    %4087 = vmatpush1.xpose.msra.mxu0 0.0
    %4088 = vmatprep.subr.mxu0 0.0
    %4089 = vmatpush1.xpose.msra.mxu0 0.0
    %4090 = vmatprep.subr.mxu0 0.0
    %4091 = vmatpush1.xpose.msra.mxu0 0.0
    %4092 = vmatprep.subr.mxu0 0.0
    %4093 = vmatpush1.xpose.msra.mxu0 0.0
    %4094 = vmatprep.subr.mxu0 0.0
    %4095 = vmatpush1.xpose.msra.mxu0 0.0
    %4096 = vmatprep.subr.mxu0 0.0
    %4097 = vmatpush1.xpose.msra.mxu0 0.0
    %4098 = vmatprep.subr.mxu0 0.0
    %4099 = vmatpush1.xpose.msra.mxu0 0.0
    %4100 = vmatprep.subr.mxu0 0.0
    %4101 = vmatpush1.xpose.msra.mxu0 0.0
    %4102 = vmatprep.subr.mxu0 0.0
    %4103 = vmatpush1.xpose.msra.mxu0 0.0
    %4104 = vmatprep.subr.mxu0 0.0
    %4105 = vmatpush1.xpose.msra.mxu0 0.0
    %4106 = vmatprep.subr.mxu0 0.0
    %4107 = vmatpush1.xpose.msra.mxu0 0.0
    %4108 = vmatprep.mubr.f32.mxu0 0.0
    %4109 = vmatmul.mubr.f32.gmra.mrb[0].mxu0 %v4032
    %v4110 = vpop.f32.mrb[0].mxu0
    %v4111 = vadd.f32 0.0, %v4110
    %v4112 = vpop.f32.mrb[0].mxu0
    %4113 = vmatprep.mubr.f32.mxu0 0.0
    %4114 = vmatmul.mubr.f32.gmra.mrb[0].mxu0 %v4034
    %v4115 = vpop.f32.mrb[0].mxu0
    %v4116 = vadd.f32 0.0, %v4115
    %v4117 = vpop.f32.mrb[0].mxu0
    %4118 = vmatprep.mubr.f32.mxu0 0.0
    %4119 = vmatmul.mubr.f32.gmra.mrb[0].mxu0 %v4036
    %v4120 = vpop.f32.mrb[0].mxu0
    %v4121 = vadd.f32 0.0, %v4120
    %v4122 = vpop.f32.mrb[0].mxu0
    %4123 = vdwg.mxu0
    %v4124 = vsel %vm649, %v4111, -inf
    %4125 = vmax.xlane.f32.xlu0 %v4124
    %v4126 = vpop.xlane.xlu0 %4125
    %v4127 = vsel %vm649, %v4116, -inf
    %4128 = vmax.xlane.f32.xlu0 %v4127
    %v4129 = vpop.xlane.xlu0 %4128
    %v4130 = vsel %vm656, %v4121, -inf
    %4131 = vmax.xlane.f32.xlu0 %v4130
    %v4132 = vpop.xlane.xlu0 %4131
    %v4133 = vsub.f32 %v4111, %v4126
    %v4134 = vsub.f32 %v4116, %v4129
    %v4135 = vsub.f32 %v4121, %v4132
    %v4136 = vmul.f32 %v4133, 1.442695
    %v4137 = vpow.pop %v4136
    %v4138 = vmul.f32 %v4134, 1.442695
    %v4139 = vpow.pop %v4138
    %v4140 = vmul.f32 %v4135, 1.442695
    %v4141 = vpow.pop %v4140
    %v4142 = vsel %vm649, %v4137, 0.0
    %4143 = vadd.xlane.f32.xlu0 %v4142
    %v4144 = vpop.xlane.xlu0 %4143
    %v4145 = vsel %vm649, %v4139, 0.0
    %4146 = vadd.xlane.f32.xlu0 %v4145
    %v4147 = vpop.xlane.xlu0 %4146
    %v4148 = vsel %vm656, %v4141, 0.0
    %4149 = vadd.xlane.f32.xlu0 %v4148
    %v4150 = vpop.xlane.xlu0 %4149
    %v4151 = vrcp.pop %v4144
    %v4152 = vrcp.pop %v4147
    %v4153 = vrcp.pop %v4150
    %v4154 = vmul.f32 %v4137, %v4151
    %v4155 = vmul.f32 %v4139, %v4152
    %v4156 = vmul.f32 %v4141, %v4153
    %4157 = vrot.lane.b32.xlu0 %v3753, 56
    %v4158 = vpop.permute.xlu0 %4157
    %4159 = vrot.lane.b32.xlu0 %v3758, 56
    %v4160 = vpop.permute.xlu0 %4159
    %4161 = vrot.lane.b32.xlu0 %v3763, 56
    %v4162 = vpop.permute.xlu0 %4161
    %v4166 = vsel %vm649, %v4154, 0
    %v4169 = vsel %vm649, %v4155, 0
    %v4172 = vsel %vm649, %v4156, 0
    %v4174 = vsel %vm225, %v4162, 0
    %4176 = vmatprep.subr.mxu0 0.0
    %4177 = vmatpush1.msra.mxu0 %v4158
    %4178 = vmatprep.subr.mxu0 0.0
    %4179 = vmatpush1.msra.mxu0 %v4160
    %4180 = vmatprep.subr.mxu0 0.0
    %4181 = vmatpush1.msra.mxu0 %v4174
    %4182 = vmatprep.subr.mxu0 0.0
    %4183 = vmatpush1.msra.mxu0 0.0
    %4184 = vmatprep.subr.mxu0 0.0
    %4185 = vmatpush1.msra.mxu0 0.0
    %4186 = vmatprep.subr.mxu0 0.0
    %4187 = vmatpush1.msra.mxu0 0.0
    %4188 = vmatprep.subr.mxu0 0.0
    %4189 = vmatpush1.msra.mxu0 0.0
    %4190 = vmatprep.subr.mxu0 0.0
    %4191 = vmatpush1.msra.mxu0 0.0
    %4192 = vmatprep.subr.mxu0 0.0
    %4193 = vmatpush1.msra.mxu0 0.0
    %4194 = vmatprep.subr.mxu0 0.0
    %4195 = vmatpush1.msra.mxu0 0.0
    %4196 = vmatprep.subr.mxu0 0.0
    %4197 = vmatpush1.msra.mxu0 0.0
    %4198 = vmatprep.subr.mxu0 0.0
    %4199 = vmatpush1.msra.mxu0 0.0
    %4200 = vmatprep.subr.mxu0 0.0
    %4201 = vmatpush1.msra.mxu0 0.0
    %4202 = vmatprep.subr.mxu0 0.0
    %4203 = vmatpush1.msra.mxu0 0.0
    %4204 = vmatprep.subr.mxu0 0.0
    %4205 = vmatpush1.msra.mxu0 0.0
    %4206 = vmatprep.subr.mxu0 0.0
    %4207 = vmatpush1.msra.mxu0 0.0
    %4208 = vmatprep.subr.mxu0 0.0
    %4209 = vmatpush1.msra.mxu0 0.0
    %4210 = vmatprep.subr.mxu0 0.0
    %4211 = vmatpush1.msra.mxu0 0.0
    %4212 = vmatprep.subr.mxu0 0.0
    %4213 = vmatpush1.msra.mxu0 0.0
    %4214 = vmatprep.subr.mxu0 0.0
    %4215 = vmatpush1.msra.mxu0 0.0
    %4216 = vmatprep.subr.mxu0 0.0
    %4217 = vmatpush1.msra.mxu0 0.0
    %4218 = vmatprep.subr.mxu0 0.0
    %4219 = vmatpush1.msra.mxu0 0.0
    %4220 = vmatprep.subr.mxu0 0.0
    %4221 = vmatpush1.msra.mxu0 0.0
    %4222 = vmatprep.subr.mxu0 0.0
    %4223 = vmatpush1.msra.mxu0 0.0
    %4224 = vmatprep.subr.mxu0 0.0
    %4225 = vmatpush1.msra.mxu0 0.0
    %4226 = vmatprep.subr.mxu0 0.0
    %4227 = vmatpush1.msra.mxu0 0.0
    %4228 = vmatprep.subr.mxu0 0.0
    %4229 = vmatpush1.msra.mxu0 0.0
    %4230 = vmatprep.subr.mxu0 0.0
    %4231 = vmatpush1.msra.mxu0 0.0
    %4232 = vmatprep.subr.mxu0 0.0
    %4233 = vmatpush1.msra.mxu0 0.0
    %4234 = vmatprep.subr.mxu0 0.0
    %4235 = vmatpush1.msra.mxu0 0.0
    %4236 = vmatprep.subr.mxu0 0.0
    %4237 = vmatpush1.msra.mxu0 0.0
    %4238 = vmatprep.subr.mxu0 0.0
    %4239 = vmatpush1.msra.mxu0 0.0
    %4240 = vmatprep.mubr.f32.mxu0 0.0
    %4241 = vmatmul.mubr.f32.gmra.mrb[0].mxu0 %v4166
    %v4242 = vpop.f32.mrb[0].mxu0
    %v4243 = vadd.f32 0.0, %v4242
    %v4244 = vpop.f32.mrb[0].mxu0
    %4245 = vmatprep.mubr.f32.mxu0 0.0
    %4246 = vmatmul.mubr.f32.gmra.mrb[0].mxu0 %v4169
    %v4247 = vpop.f32.mrb[0].mxu0
    %v4248 = vadd.f32 0.0, %v4247
    %v4249 = vpop.f32.mrb[0].mxu0
    %4250 = vmatprep.mubr.f32.mxu0 0.0
    %4251 = vmatmul.mubr.f32.gmra.mrb[0].mxu0 %v4172
    %v4252 = vpop.f32.mrb[0].mxu0
    %v4253 = vadd.f32 0.0, %v4252
    %v4254 = vpop.f32.mrb[0].mxu0
    %4255 = vdwg.mxu0
    %v4257 = vsel %vm553, %v4243, 0
    %v4260 = vsel %vm553, %v4248, 0
    %v4263 = vsel %vm553, %v4253, 0
    %4265 = vmatprep.subr.mxu0 0.0
    %4266 = vmatpush1.msra.mxu0 %v3778
    %4267 = vmatprep.subr.mxu0 0.0
    %4268 = vmatpush1.msra.mxu0 0.0
    %4269 = vmatprep.subr.mxu0 0.0
    %4270 = vmatpush1.msra.mxu0 0.0
    %4271 = vmatprep.subr.mxu0 0.0
    %4272 = vmatpush1.msra.mxu0 0.0
    %4273 = vmatprep.subr.mxu0 0.0
    %4274 = vmatpush1.msra.mxu0 0.0
    %4275 = vmatprep.subr.mxu0 0.0
    %4276 = vmatpush1.msra.mxu0 0.0
    %4277 = vmatprep.subr.mxu0 0.0
    %4278 = vmatpush1.msra.mxu0 0.0
    %4279 = vmatprep.subr.mxu0 0.0
    %4280 = vmatpush1.msra.mxu0 0.0
    %4281 = vmatprep.subr.mxu0 0.0
    %4282 = vmatpush1.msra.mxu0 0.0
    %4283 = vmatprep.subr.mxu0 0.0
    %4284 = vmatpush1.msra.mxu0 0.0
    %4285 = vmatprep.subr.mxu0 0.0
    %4286 = vmatpush1.msra.mxu0 0.0
    %4287 = vmatprep.subr.mxu0 0.0
    %4288 = vmatpush1.msra.mxu0 0.0
    %4289 = vmatprep.subr.mxu0 0.0
    %4290 = vmatpush1.msra.mxu0 0.0
    %4291 = vmatprep.subr.mxu0 0.0
    %4292 = vmatpush1.msra.mxu0 0.0
    %4293 = vmatprep.subr.mxu0 0.0
    %4294 = vmatpush1.msra.mxu0 0.0
    %4295 = vmatprep.subr.mxu0 0.0
    %4296 = vmatpush1.msra.mxu0 0.0
    %4297 = vmatprep.subr.mxu0 0.0
    %4298 = vmatpush1.msra.mxu0 0.0
    %4299 = vmatprep.subr.mxu0 0.0
    %4300 = vmatpush1.msra.mxu0 0.0
    %4301 = vmatprep.subr.mxu0 0.0
    %4302 = vmatpush1.msra.mxu0 0.0
    %4303 = vmatprep.subr.mxu0 0.0
    %4304 = vmatpush1.msra.mxu0 0.0
    %4305 = vmatprep.subr.mxu0 0.0
    %4306 = vmatpush1.msra.mxu0 0.0
    %4307 = vmatprep.subr.mxu0 0.0
    %4308 = vmatpush1.msra.mxu0 0.0
    %4309 = vmatprep.subr.mxu0 0.0
    %4310 = vmatpush1.msra.mxu0 0.0
    %4311 = vmatprep.subr.mxu0 0.0
    %4312 = vmatpush1.msra.mxu0 0.0
    %4313 = vmatprep.subr.mxu0 0.0
    %4314 = vmatpush1.msra.mxu0 0.0
    %4315 = vmatprep.subr.mxu0 0.0
    %4316 = vmatpush1.msra.mxu0 0.0
    %4317 = vmatprep.subr.mxu0 0.0
    %4318 = vmatpush1.msra.mxu0 0.0
    %4319 = vmatprep.subr.mxu0 0.0
    %4320 = vmatpush1.msra.mxu0 0.0
    %4321 = vmatprep.subr.mxu0 0.0
    %4322 = vmatpush1.msra.mxu0 0.0
    %4323 = vmatprep.subr.mxu0 0.0
    %4324 = vmatpush1.msra.mxu0 0.0
    %4325 = vmatprep.subr.mxu0 0.0
    %4326 = vmatpush1.msra.mxu0 0.0
    %4327 = vmatprep.subr.mxu0 0.0
    %4328 = vmatpush1.msra.mxu0 0.0
    %4329 = vmatprep.mubr.f32.mxu0 0.0
    %4330 = vmatmul.mubr.f32.gmra.mrb[0].mxu0 %v4257
    %v4331 = vpop.f32.mrb[0].mxu0
    %v4332 = vadd.f32 0.0, %v4331
    %v4333 = vpop.f32.mrb[0].mxu0
    %4334 = vmatprep.mubr.f32.mxu0 0.0
    %4335 = vmatmul.mubr.f32.gmra.mrb[0].mxu0 %v4260
    %v4336 = vpop.f32.mrb[0].mxu0
    %v4337 = vadd.f32 0.0, %v4336
    %v4338 = vpop.f32.mrb[0].mxu0
    %4339 = vmatprep.mubr.f32.mxu0 0.0
    %4340 = vmatmul.mubr.f32.gmra.mrb[0].mxu0 %v4263
    %v4341 = vpop.f32.mrb[0].mxu0
    %v4342 = vadd.f32 0.0, %v4341
    %v4343 = vpop.f32.mrb[0].mxu0
    %4344 = vdwg.mxu0
    %v4346 = vsel %vm553, %v4007, 0
    %v4349 = vsel %vm553, %v4012, 0
    %v4352 = vsel %vm553, %v4017, 0
    %4354 = vmatprep.subr.mxu0 0.0
    %4355 = vmatpush1.msra.mxu0 %v3777
    %4356 = vmatprep.subr.mxu0 0.0
    %4357 = vmatpush1.msra.mxu0 0.0
    %4358 = vmatprep.subr.mxu0 0.0
    %4359 = vmatpush1.msra.mxu0 0.0
    %4360 = vmatprep.subr.mxu0 0.0
    %4361 = vmatpush1.msra.mxu0 0.0
    %4362 = vmatprep.subr.mxu0 0.0
    %4363 = vmatpush1.msra.mxu0 0.0
    %4364 = vmatprep.subr.mxu0 0.0
    %4365 = vmatpush1.msra.mxu0 0.0
    %4366 = vmatprep.subr.mxu0 0.0
    %4367 = vmatpush1.msra.mxu0 0.0
    %4368 = vmatprep.subr.mxu0 0.0
    %4369 = vmatpush1.msra.mxu0 0.0
    %4370 = vmatprep.subr.mxu0 0.0
    %4371 = vmatpush1.msra.mxu0 0.0
    %4372 = vmatprep.subr.mxu0 0.0
    %4373 = vmatpush1.msra.mxu0 0.0
    %4374 = vmatprep.subr.mxu0 0.0
    %4375 = vmatpush1.msra.mxu0 0.0
    %4376 = vmatprep.subr.mxu0 0.0
    %4377 = vmatpush1.msra.mxu0 0.0
    %4378 = vmatprep.subr.mxu0 0.0
    %4379 = vmatpush1.msra.mxu0 0.0
    %4380 = vmatprep.subr.mxu0 0.0
    %4381 = vmatpush1.msra.mxu0 0.0
    %4382 = vmatprep.subr.mxu0 0.0
    %4383 = vmatpush1.msra.mxu0 0.0
    %4384 = vmatprep.subr.mxu0 0.0
    %4385 = vmatpush1.msra.mxu0 0.0
    %4386 = vmatprep.subr.mxu0 0.0
    %4387 = vmatpush1.msra.mxu0 0.0
    %4388 = vmatprep.subr.mxu0 0.0
    %4389 = vmatpush1.msra.mxu0 0.0
    %4390 = vmatprep.subr.mxu0 0.0
    %4391 = vmatpush1.msra.mxu0 0.0
    %4392 = vmatprep.subr.mxu0 0.0
    %4393 = vmatpush1.msra.mxu0 0.0
    %4394 = vmatprep.subr.mxu0 0.0
    %4395 = vmatpush1.msra.mxu0 0.0
    %4396 = vmatprep.subr.mxu0 0.0
    %4397 = vmatpush1.msra.mxu0 0.0
    %4398 = vmatprep.subr.mxu0 0.0
    %4399 = vmatpush1.msra.mxu0 0.0
    %4400 = vmatprep.subr.mxu0 0.0
    %4401 = vmatpush1.msra.mxu0 0.0
    %4402 = vmatprep.subr.mxu0 0.0
    %4403 = vmatpush1.msra.mxu0 0.0
    %4404 = vmatprep.subr.mxu0 0.0
    %4405 = vmatpush1.msra.mxu0 0.0
    %4406 = vmatprep.subr.mxu0 0.0
    %4407 = vmatpush1.msra.mxu0 0.0
    %4408 = vmatprep.subr.mxu0 0.0
    %4409 = vmatpush1.msra.mxu0 0.0
    %4410 = vmatprep.subr.mxu0 0.0
    %4411 = vmatpush1.msra.mxu0 0.0
    %4412 = vmatprep.subr.mxu0 0.0
    %4413 = vmatpush1.msra.mxu0 0.0
    %4414 = vmatprep.subr.mxu0 0.0
    %4415 = vmatpush1.msra.mxu0 0.0
    %4416 = vmatprep.subr.mxu0 0.0
    %4417 = vmatpush1.msra.mxu0 0.0
    %4418 = vmatprep.mubr.f32.mxu0 0.0
    %4419 = vmatmul.mubr.f32.gmra.mrb[0].mxu0 %v4346
    %v4420 = vpop.f32.mrb[0].mxu0
    %v4421 = vadd.f32 %v4332, %v4420
    %v4422 = vpop.f32.mrb[0].mxu0
    %4423 = vmatprep.mubr.f32.mxu0 0.0
    %4424 = vmatmul.mubr.f32.gmra.mrb[0].mxu0 %v4349
    %v4425 = vpop.f32.mrb[0].mxu0
    %v4426 = vadd.f32 %v4337, %v4425
    %v4427 = vpop.f32.mrb[0].mxu0
    %4428 = vmatprep.mubr.f32.mxu0 0.0
    %4429 = vmatmul.mubr.f32.gmra.mrb[0].mxu0 %v4352
    %v4430 = vpop.f32.mrb[0].mxu0
    %v4431 = vadd.f32 %v4342, %v4430
    %v4432 = vpop.f32.mrb[0].mxu0
    %4433 = vdwg.mxu0
    %4434 = vrot.lane.b32.xlu0 %v3781, 112
    %v4435 = vpop.permute.xlu0 %4434
    %4436 = vrot.lane.b32.xlu0 %v3782, 112
    %v4437 = vpop.permute.xlu0 %4436
    %4438 = vrot.lane.b32.xlu0 %v3783, 112
    %v4439 = vpop.permute.xlu0 %4438
    %4440 = vrot.lane.b32.xlu0 %v3753, 80
    %v4441 = vpop.permute.xlu0 %4440
    %4442 = vrot.lane.b32.xlu0 %v3758, 80
    %v4443 = vpop.permute.xlu0 %4442
    %4444 = vrot.lane.b32.xlu0 %v3763, 80
    %v4445 = vpop.permute.xlu0 %4444
    %v4446 = vsel %vm553, %v4435, 0
    %v4448 = vsel %vm553, %v4437, 0
    %v4450 = vsel %vm553, %v4439, 0
    %v4452 = vsel %vm553, %v4441, 0
    %v4454 = vsel %vm553, %v4443, 0
    %v4456 = vsel %vm553, %v4445, 0
    %4458 = vmatprep.subr.mxu0 0.0
    %4459 = vmatpush1.xpose.msra.mxu0 %v4452
    %4460 = vmatprep.subr.mxu0 0.0
    %4461 = vmatpush1.xpose.msra.mxu0 %v4454
    %4462 = vmatprep.subr.mxu0 0.0
    %4463 = vmatpush1.xpose.msra.mxu0 %v4456
    %4464 = vmatprep.subr.mxu0 0.0
    %4465 = vmatpush1.xpose.msra.mxu0 0.0
    %4466 = vmatprep.subr.mxu0 0.0
    %4467 = vmatpush1.xpose.msra.mxu0 0.0
    %4468 = vmatprep.subr.mxu0 0.0
    %4469 = vmatpush1.xpose.msra.mxu0 0.0
    %4470 = vmatprep.subr.mxu0 0.0
    %4471 = vmatpush1.xpose.msra.mxu0 0.0
    %4472 = vmatprep.subr.mxu0 0.0
    %4473 = vmatpush1.xpose.msra.mxu0 0.0
    %4474 = vmatprep.subr.mxu0 0.0
    %4475 = vmatpush1.xpose.msra.mxu0 0.0
    %4476 = vmatprep.subr.mxu0 0.0
    %4477 = vmatpush1.xpose.msra.mxu0 0.0
    %4478 = vmatprep.subr.mxu0 0.0
    %4479 = vmatpush1.xpose.msra.mxu0 0.0
    %4480 = vmatprep.subr.mxu0 0.0
    %4481 = vmatpush1.xpose.msra.mxu0 0.0
    %4482 = vmatprep.subr.mxu0 0.0
    %4483 = vmatpush1.xpose.msra.mxu0 0.0
    %4484 = vmatprep.subr.mxu0 0.0
    %4485 = vmatpush1.xpose.msra.mxu0 0.0
    %4486 = vmatprep.subr.mxu0 0.0
    %4487 = vmatpush1.xpose.msra.mxu0 0.0
    %4488 = vmatprep.subr.mxu0 0.0
    %4489 = vmatpush1.xpose.msra.mxu0 0.0
    %4490 = vmatprep.subr.mxu0 0.0
    %4491 = vmatpush1.xpose.msra.mxu0 0.0
    %4492 = vmatprep.subr.mxu0 0.0
    %4493 = vmatpush1.xpose.msra.mxu0 0.0
    %4494 = vmatprep.subr.mxu0 0.0
    %4495 = vmatpush1.xpose.msra.mxu0 0.0
    %4496 = vmatprep.subr.mxu0 0.0
    %4497 = vmatpush1.xpose.msra.mxu0 0.0
    %4498 = vmatprep.subr.mxu0 0.0
    %4499 = vmatpush1.xpose.msra.mxu0 0.0
    %4500 = vmatprep.subr.mxu0 0.0
    %4501 = vmatpush1.xpose.msra.mxu0 0.0
    %4502 = vmatprep.subr.mxu0 0.0
    %4503 = vmatpush1.xpose.msra.mxu0 0.0
    %4504 = vmatprep.subr.mxu0 0.0
    %4505 = vmatpush1.xpose.msra.mxu0 0.0
    %4506 = vmatprep.subr.mxu0 0.0
    %4507 = vmatpush1.xpose.msra.mxu0 0.0
    %4508 = vmatprep.subr.mxu0 0.0
    %4509 = vmatpush1.xpose.msra.mxu0 0.0
    %4510 = vmatprep.subr.mxu0 0.0
    %4511 = vmatpush1.xpose.msra.mxu0 0.0
    %4512 = vmatprep.subr.mxu0 0.0
    %4513 = vmatpush1.xpose.msra.mxu0 0.0
    %4514 = vmatprep.subr.mxu0 0.0
    %4515 = vmatpush1.xpose.msra.mxu0 0.0
    %4516 = vmatprep.subr.mxu0 0.0
    %4517 = vmatpush1.xpose.msra.mxu0 0.0
    %4518 = vmatprep.subr.mxu0 0.0
    %4519 = vmatpush1.xpose.msra.mxu0 0.0
    %4520 = vmatprep.subr.mxu0 0.0
    %4521 = vmatpush1.xpose.msra.mxu0 0.0
    %4522 = vmatprep.mubr.f32.mxu0 0.0
    %4523 = vmatmul.mubr.f32.gmra.mrb[0].mxu0 %v4446
    %v4524 = vpop.f32.mrb[0].mxu0
    %v4525 = vadd.f32 0.0, %v4524
    %v4526 = vpop.f32.mrb[0].mxu0
    %4527 = vmatprep.mubr.f32.mxu0 0.0
    %4528 = vmatmul.mubr.f32.gmra.mrb[0].mxu0 %v4448
    %v4529 = vpop.f32.mrb[0].mxu0
    %v4530 = vadd.f32 0.0, %v4529
    %v4531 = vpop.f32.mrb[0].mxu0
    %4532 = vmatprep.mubr.f32.mxu0 0.0
    %4533 = vmatmul.mubr.f32.gmra.mrb[0].mxu0 %v4450
    %v4534 = vpop.f32.mrb[0].mxu0
    %v4535 = vadd.f32 0.0, %v4534
    %v4536 = vpop.f32.mrb[0].mxu0
    %4537 = vdwg.mxu0
    %v4538 = vsel %vm649, %v4525, -inf
    %4539 = vmax.xlane.f32.xlu0 %v4538
    %v4540 = vpop.xlane.xlu0 %4539
    %v4541 = vsel %vm649, %v4530, -inf
    %4542 = vmax.xlane.f32.xlu0 %v4541
    %v4543 = vpop.xlane.xlu0 %4542
    %v4544 = vsel %vm656, %v4535, -inf
    %4545 = vmax.xlane.f32.xlu0 %v4544
    %v4546 = vpop.xlane.xlu0 %4545
    %v4547 = vsub.f32 %v4525, %v4540
    %v4548 = vsub.f32 %v4530, %v4543
    %v4549 = vsub.f32 %v4535, %v4546
    %v4550 = vmul.f32 %v4547, 1.442695
    %v4551 = vpow.pop %v4550
    %v4552 = vmul.f32 %v4548, 1.442695
    %v4553 = vpow.pop %v4552
    %v4554 = vmul.f32 %v4549, 1.442695
    %v4555 = vpow.pop %v4554
    %v4556 = vsel %vm649, %v4551, 0.0
    %4557 = vadd.xlane.f32.xlu0 %v4556
    %v4558 = vpop.xlane.xlu0 %4557
    %v4559 = vsel %vm649, %v4553, 0.0
    %4560 = vadd.xlane.f32.xlu0 %v4559
    %v4561 = vpop.xlane.xlu0 %4560
    %v4562 = vsel %vm656, %v4555, 0.0
    %4563 = vadd.xlane.f32.xlu0 %v4562
    %v4564 = vpop.xlane.xlu0 %4563
    %v4565 = vrcp.pop %v4558
    %v4566 = vrcp.pop %v4561
    %v4567 = vrcp.pop %v4564
    %v4568 = vmul.f32 %v4551, %v4565
    %v4569 = vmul.f32 %v4553, %v4566
    %v4570 = vmul.f32 %v4555, %v4567
    %4571 = vrot.lane.b32.xlu0 %v3753, 48
    %v4572 = vpop.permute.xlu0 %4571
    %4573 = vrot.lane.b32.xlu0 %v3758, 48
    %v4574 = vpop.permute.xlu0 %4573
    %4575 = vrot.lane.b32.xlu0 %v3763, 48
    %v4576 = vpop.permute.xlu0 %4575
    %v4580 = vsel %vm649, %v4568, 0
    %v4583 = vsel %vm649, %v4569, 0
    %v4586 = vsel %vm649, %v4570, 0
    %v4588 = vsel %vm225, %v4576, 0
    %4590 = vmatprep.subr.mxu0 0.0
    %4591 = vmatpush1.msra.mxu0 %v4572
    %4592 = vmatprep.subr.mxu0 0.0
    %4593 = vmatpush1.msra.mxu0 %v4574
    %4594 = vmatprep.subr.mxu0 0.0
    %4595 = vmatpush1.msra.mxu0 %v4588
    %4596 = vmatprep.subr.mxu0 0.0
    %4597 = vmatpush1.msra.mxu0 0.0
    %4598 = vmatprep.subr.mxu0 0.0
    %4599 = vmatpush1.msra.mxu0 0.0
    %4600 = vmatprep.subr.mxu0 0.0
    %4601 = vmatpush1.msra.mxu0 0.0
    %4602 = vmatprep.subr.mxu0 0.0
    %4603 = vmatpush1.msra.mxu0 0.0
    %4604 = vmatprep.subr.mxu0 0.0
    %4605 = vmatpush1.msra.mxu0 0.0
    %4606 = vmatprep.subr.mxu0 0.0
    %4607 = vmatpush1.msra.mxu0 0.0
    %4608 = vmatprep.subr.mxu0 0.0
    %4609 = vmatpush1.msra.mxu0 0.0
    %4610 = vmatprep.subr.mxu0 0.0
    %4611 = vmatpush1.msra.mxu0 0.0
    %4612 = vmatprep.subr.mxu0 0.0
    %4613 = vmatpush1.msra.mxu0 0.0
    %4614 = vmatprep.subr.mxu0 0.0
    %4615 = vmatpush1.msra.mxu0 0.0
    %4616 = vmatprep.subr.mxu0 0.0
    %4617 = vmatpush1.msra.mxu0 0.0
    %4618 = vmatprep.subr.mxu0 0.0
    %4619 = vmatpush1.msra.mxu0 0.0
    %4620 = vmatprep.subr.mxu0 0.0
    %4621 = vmatpush1.msra.mxu0 0.0
    %4622 = vmatprep.subr.mxu0 0.0
    %4623 = vmatpush1.msra.mxu0 0.0
    %4624 = vmatprep.subr.mxu0 0.0
    %4625 = vmatpush1.msra.mxu0 0.0
    %4626 = vmatprep.subr.mxu0 0.0
    %4627 = vmatpush1.msra.mxu0 0.0
    %4628 = vmatprep.subr.mxu0 0.0
    %4629 = vmatpush1.msra.mxu0 0.0
    %4630 = vmatprep.subr.mxu0 0.0
    %4631 = vmatpush1.msra.mxu0 0.0
    %4632 = vmatprep.subr.mxu0 0.0
    %4633 = vmatpush1.msra.mxu0 0.0
    %4634 = vmatprep.subr.mxu0 0.0
    %4635 = vmatpush1.msra.mxu0 0.0
    %4636 = vmatprep.subr.mxu0 0.0
    %4637 = vmatpush1.msra.mxu0 0.0
    %4638 = vmatprep.subr.mxu0 0.0
    %4639 = vmatpush1.msra.mxu0 0.0
    %4640 = vmatprep.subr.mxu0 0.0
    %4641 = vmatpush1.msra.mxu0 0.0
    %4642 = vmatprep.subr.mxu0 0.0
    %4643 = vmatpush1.msra.mxu0 0.0
    %4644 = vmatprep.subr.mxu0 0.0
    %4645 = vmatpush1.msra.mxu0 0.0
    %4646 = vmatprep.subr.mxu0 0.0
    %4647 = vmatpush1.msra.mxu0 0.0
    %4648 = vmatprep.subr.mxu0 0.0
    %4649 = vmatpush1.msra.mxu0 0.0
    %4650 = vmatprep.subr.mxu0 0.0
    %4651 = vmatpush1.msra.mxu0 0.0
    %4652 = vmatprep.subr.mxu0 0.0
    %4653 = vmatpush1.msra.mxu0 0.0
    %4654 = vmatprep.mubr.f32.mxu0 0.0
    %4655 = vmatmul.mubr.f32.gmra.mrb[0].mxu0 %v4580
    %v4656 = vpop.f32.mrb[0].mxu0
    %v4657 = vadd.f32 0.0, %v4656
    %v4658 = vpop.f32.mrb[0].mxu0
    %4659 = vmatprep.mubr.f32.mxu0 0.0
    %4660 = vmatmul.mubr.f32.gmra.mrb[0].mxu0 %v4583
    %v4661 = vpop.f32.mrb[0].mxu0
    %v4662 = vadd.f32 0.0, %v4661
    %v4663 = vpop.f32.mrb[0].mxu0
    %4664 = vmatprep.mubr.f32.mxu0 0.0
    %4665 = vmatmul.mubr.f32.gmra.mrb[0].mxu0 %v4586
    %v4666 = vpop.f32.mrb[0].mxu0
    %v4667 = vadd.f32 0.0, %v4666
    %v4668 = vpop.f32.mrb[0].mxu0
    %4669 = vdwg.mxu0
    %v4671 = vsel %vm553, %v4657, 0
    %v4674 = vsel %vm553, %v4662, 0
    %v4677 = vsel %vm553, %v4667, 0
    %4679 = vmatprep.subr.mxu0 0.0
    %4680 = vmatpush1.msra.mxu0 %v3779
    %4681 = vmatprep.subr.mxu0 0.0
    %4682 = vmatpush1.msra.mxu0 0.0
    %4683 = vmatprep.subr.mxu0 0.0
    %4684 = vmatpush1.msra.mxu0 0.0
    %4685 = vmatprep.subr.mxu0 0.0
    %4686 = vmatpush1.msra.mxu0 0.0
    %4687 = vmatprep.subr.mxu0 0.0
    %4688 = vmatpush1.msra.mxu0 0.0
    %4689 = vmatprep.subr.mxu0 0.0
    %4690 = vmatpush1.msra.mxu0 0.0
    %4691 = vmatprep.subr.mxu0 0.0
    %4692 = vmatpush1.msra.mxu0 0.0
    %4693 = vmatprep.subr.mxu0 0.0
    %4694 = vmatpush1.msra.mxu0 0.0
    %4695 = vmatprep.subr.mxu0 0.0
    %4696 = vmatpush1.msra.mxu0 0.0
    %4697 = vmatprep.subr.mxu0 0.0
    %4698 = vmatpush1.msra.mxu0 0.0
    %4699 = vmatprep.subr.mxu0 0.0
    %4700 = vmatpush1.msra.mxu0 0.0
    %4701 = vmatprep.subr.mxu0 0.0
    %4702 = vmatpush1.msra.mxu0 0.0
    %4703 = vmatprep.subr.mxu0 0.0
    %4704 = vmatpush1.msra.mxu0 0.0
    %4705 = vmatprep.subr.mxu0 0.0
    %4706 = vmatpush1.msra.mxu0 0.0
    %4707 = vmatprep.subr.mxu0 0.0
    %4708 = vmatpush1.msra.mxu0 0.0
    %4709 = vmatprep.subr.mxu0 0.0
    %4710 = vmatpush1.msra.mxu0 0.0
    %4711 = vmatprep.subr.mxu0 0.0
    %4712 = vmatpush1.msra.mxu0 0.0
    %4713 = vmatprep.subr.mxu0 0.0
    %4714 = vmatpush1.msra.mxu0 0.0
    %4715 = vmatprep.subr.mxu0 0.0
    %4716 = vmatpush1.msra.mxu0 0.0
    %4717 = vmatprep.subr.mxu0 0.0
    %4718 = vmatpush1.msra.mxu0 0.0
    %4719 = vmatprep.subr.mxu0 0.0
    %4720 = vmatpush1.msra.mxu0 0.0
    %4721 = vmatprep.subr.mxu0 0.0
    %4722 = vmatpush1.msra.mxu0 0.0
    %4723 = vmatprep.subr.mxu0 0.0
    %4724 = vmatpush1.msra.mxu0 0.0
    %4725 = vmatprep.subr.mxu0 0.0
    %4726 = vmatpush1.msra.mxu0 0.0
    %4727 = vmatprep.subr.mxu0 0.0
    %4728 = vmatpush1.msra.mxu0 0.0
    %4729 = vmatprep.subr.mxu0 0.0
    %4730 = vmatpush1.msra.mxu0 0.0
    %4731 = vmatprep.subr.mxu0 0.0
    %4732 = vmatpush1.msra.mxu0 0.0
    %4733 = vmatprep.subr.mxu0 0.0
    %4734 = vmatpush1.msra.mxu0 0.0
    %4735 = vmatprep.subr.mxu0 0.0
    %4736 = vmatpush1.msra.mxu0 0.0
    %4737 = vmatprep.subr.mxu0 0.0
    %4738 = vmatpush1.msra.mxu0 0.0
    %4739 = vmatprep.subr.mxu0 0.0
    %4740 = vmatpush1.msra.mxu0 0.0
    %4741 = vmatprep.subr.mxu0 0.0
    %4742 = vmatpush1.msra.mxu0 0.0
    %4743 = vmatprep.mubr.f32.mxu0 0.0
    %4744 = vmatmul.mubr.f32.gmra.mrb[0].mxu0 %v4671
    %v4745 = vpop.f32.mrb[0].mxu0
    %v4746 = vadd.f32 0.0, %v4745
    %v4747 = vpop.f32.mrb[0].mxu0
    %4748 = vmatprep.mubr.f32.mxu0 0.0
    %4749 = vmatmul.mubr.f32.gmra.mrb[0].mxu0 %v4674
    %v4750 = vpop.f32.mrb[0].mxu0
    %v4751 = vadd.f32 0.0, %v4750
    %v4752 = vpop.f32.mrb[0].mxu0
    %4753 = vmatprep.mubr.f32.mxu0 0.0
    %4754 = vmatmul.mubr.f32.gmra.mrb[0].mxu0 %v4677
    %v4755 = vpop.f32.mrb[0].mxu0
    %v4756 = vadd.f32 0.0, %v4755
    %v4757 = vpop.f32.mrb[0].mxu0
    %4758 = vdwg.mxu0
    %v4759 = vadd.f32 %v4421, %v4746
    %v4760 = vadd.f32 %v4426, %v4751
    %v4761 = vadd.f32 %v4431, %v4756
    %4762 = vrot.lane.b32.xlu0 %v3781, 104
    %v4763 = vpop.permute.xlu0 %4762
    %4764 = vrot.lane.b32.xlu0 %v3782, 104
    %v4765 = vpop.permute.xlu0 %4764
    %4766 = vrot.lane.b32.xlu0 %v3783, 104
    %v4767 = vpop.permute.xlu0 %4766
    %4768 = vrot.lane.b32.xlu0 %v3753, 72
    %v4769 = vpop.permute.xlu0 %4768
    %4770 = vrot.lane.b32.xlu0 %v3758, 72
    %v4771 = vpop.permute.xlu0 %4770
    %4772 = vrot.lane.b32.xlu0 %v3763, 72
    %v4773 = vpop.permute.xlu0 %4772
    %v4774 = vsel %vm553, %v4763, 0
    %v4776 = vsel %vm553, %v4765, 0
    %v4778 = vsel %vm553, %v4767, 0
    %v4780 = vsel %vm553, %v4769, 0
    %v4782 = vsel %vm553, %v4771, 0
    %v4784 = vsel %vm553, %v4773, 0
    %4786 = vmatprep.subr.mxu0 0.0
    %4787 = vmatpush1.xpose.msra.mxu0 %v4780
    %4788 = vmatprep.subr.mxu0 0.0
    %4789 = vmatpush1.xpose.msra.mxu0 %v4782
    %4790 = vmatprep.subr.mxu0 0.0
    %4791 = vmatpush1.xpose.msra.mxu0 %v4784
    %4792 = vmatprep.subr.mxu0 0.0
    %4793 = vmatpush1.xpose.msra.mxu0 0.0
    %4794 = vmatprep.subr.mxu0 0.0
    %4795 = vmatpush1.xpose.msra.mxu0 0.0
    %4796 = vmatprep.subr.mxu0 0.0
    %4797 = vmatpush1.xpose.msra.mxu0 0.0
    %4798 = vmatprep.subr.mxu0 0.0
    %4799 = vmatpush1.xpose.msra.mxu0 0.0
    %4800 = vmatprep.subr.mxu0 0.0
    %4801 = vmatpush1.xpose.msra.mxu0 0.0
    %4802 = vmatprep.subr.mxu0 0.0
    %4803 = vmatpush1.xpose.msra.mxu0 0.0
    %4804 = vmatprep.subr.mxu0 0.0
    %4805 = vmatpush1.xpose.msra.mxu0 0.0
    %4806 = vmatprep.subr.mxu0 0.0
    %4807 = vmatpush1.xpose.msra.mxu0 0.0
    %4808 = vmatprep.subr.mxu0 0.0
    %4809 = vmatpush1.xpose.msra.mxu0 0.0
    %4810 = vmatprep.subr.mxu0 0.0
    %4811 = vmatpush1.xpose.msra.mxu0 0.0
    %4812 = vmatprep.subr.mxu0 0.0
    %4813 = vmatpush1.xpose.msra.mxu0 0.0
    %4814 = vmatprep.subr.mxu0 0.0
    %4815 = vmatpush1.xpose.msra.mxu0 0.0
    %4816 = vmatprep.subr.mxu0 0.0
    %4817 = vmatpush1.xpose.msra.mxu0 0.0
    %4818 = vmatprep.subr.mxu0 0.0
    %4819 = vmatpush1.xpose.msra.mxu0 0.0
    %4820 = vmatprep.subr.mxu0 0.0
    %4821 = vmatpush1.xpose.msra.mxu0 0.0
    %4822 = vmatprep.subr.mxu0 0.0
    %4823 = vmatpush1.xpose.msra.mxu0 0.0
    %4824 = vmatprep.subr.mxu0 0.0
    %4825 = vmatpush1.xpose.msra.mxu0 0.0
    %4826 = vmatprep.subr.mxu0 0.0
    %4827 = vmatpush1.xpose.msra.mxu0 0.0
    %4828 = vmatprep.subr.mxu0 0.0
    %4829 = vmatpush1.xpose.msra.mxu0 0.0
    %4830 = vmatprep.subr.mxu0 0.0
    %4831 = vmatpush1.xpose.msra.mxu0 0.0
    %4832 = vmatprep.subr.mxu0 0.0
    %4833 = vmatpush1.xpose.msra.mxu0 0.0
    %4834 = vmatprep.subr.mxu0 0.0
    %4835 = vmatpush1.xpose.msra.mxu0 0.0
    %4836 = vmatprep.subr.mxu0 0.0
    %4837 = vmatpush1.xpose.msra.mxu0 0.0
    %4838 = vmatprep.subr.mxu0 0.0
    %4839 = vmatpush1.xpose.msra.mxu0 0.0
    %4840 = vmatprep.subr.mxu0 0.0
    %4841 = vmatpush1.xpose.msra.mxu0 0.0
    %4842 = vmatprep.subr.mxu0 0.0
    %4843 = vmatpush1.xpose.msra.mxu0 0.0
    %4844 = vmatprep.subr.mxu0 0.0
    %4845 = vmatpush1.xpose.msra.mxu0 0.0
    %4846 = vmatprep.subr.mxu0 0.0
    %4847 = vmatpush1.xpose.msra.mxu0 0.0
    %4848 = vmatprep.subr.mxu0 0.0
    %4849 = vmatpush1.xpose.msra.mxu0 0.0
    %4850 = vmatprep.mubr.f32.mxu0 0.0
    %4851 = vmatmul.mubr.f32.gmra.mrb[0].mxu0 %v4774
    %v4852 = vpop.f32.mrb[0].mxu0
    %v4853 = vadd.f32 0.0, %v4852
    %v4854 = vpop.f32.mrb[0].mxu0
    %4855 = vmatprep.mubr.f32.mxu0 0.0
    %4856 = vmatmul.mubr.f32.gmra.mrb[0].mxu0 %v4776
    %v4857 = vpop.f32.mrb[0].mxu0
    %v4858 = vadd.f32 0.0, %v4857
    %v4859 = vpop.f32.mrb[0].mxu0
    %4860 = vmatprep.mubr.f32.mxu0 0.0
    %4861 = vmatmul.mubr.f32.gmra.mrb[0].mxu0 %v4778
    %v4862 = vpop.f32.mrb[0].mxu0
    %v4863 = vadd.f32 0.0, %v4862
    %v4864 = vpop.f32.mrb[0].mxu0
    %4865 = vdwg.mxu0
    %v4866 = vsel %vm649, %v4853, -inf
    %4867 = vmax.xlane.f32.xlu0 %v4866
    %v4868 = vpop.xlane.xlu0 %4867
    %v4869 = vsel %vm649, %v4858, -inf
    %4870 = vmax.xlane.f32.xlu0 %v4869
    %v4871 = vpop.xlane.xlu0 %4870
    %v4872 = vsel %vm656, %v4863, -inf
    %4873 = vmax.xlane.f32.xlu0 %v4872
    %v4874 = vpop.xlane.xlu0 %4873
    %v4875 = vsub.f32 %v4853, %v4868
    %v4876 = vsub.f32 %v4858, %v4871
    %v4877 = vsub.f32 %v4863, %v4874
    %v4878 = vmul.f32 %v4875, 1.442695
    %v4879 = vpow.pop %v4878
    %v4880 = vmul.f32 %v4876, 1.442695
    %v4881 = vpow.pop %v4880
    %v4882 = vmul.f32 %v4877, 1.442695
    %v4883 = vpow.pop %v4882
    %v4884 = vsel %vm649, %v4879, 0.0
    %4885 = vadd.xlane.f32.xlu0 %v4884
    %v4886 = vpop.xlane.xlu0 %4885
    %v4887 = vsel %vm649, %v4881, 0.0
    %4888 = vadd.xlane.f32.xlu0 %v4887
    %v4889 = vpop.xlane.xlu0 %4888
    %v4890 = vsel %vm656, %v4883, 0.0
    %4891 = vadd.xlane.f32.xlu0 %v4890
    %v4892 = vpop.xlane.xlu0 %4891
    %v4893 = vrcp.pop %v4886
    %v4894 = vrcp.pop %v4889
    %v4895 = vrcp.pop %v4892
    %v4896 = vmul.f32 %v4879, %v4893
    %v4897 = vmul.f32 %v4881, %v4894
    %v4898 = vmul.f32 %v4883, %v4895
    %4899 = vrot.lane.b32.xlu0 %v3753, 40
    %v4900 = vpop.permute.xlu0 %4899
    %4901 = vrot.lane.b32.xlu0 %v3758, 40
    %v4902 = vpop.permute.xlu0 %4901
    %4903 = vrot.lane.b32.xlu0 %v3763, 40
    %v4904 = vpop.permute.xlu0 %4903
    %v4908 = vsel %vm649, %v4896, 0
    %v4911 = vsel %vm649, %v4897, 0
    %v4914 = vsel %vm649, %v4898, 0
    %v4916 = vsel %vm225, %v4904, 0
    %4918 = vmatprep.subr.mxu0 0.0
    %4919 = vmatpush1.msra.mxu0 %v4900
    %4920 = vmatprep.subr.mxu0 0.0
    %4921 = vmatpush1.msra.mxu0 %v4902
    %4922 = vmatprep.subr.mxu0 0.0
    %4923 = vmatpush1.msra.mxu0 %v4916
    %4924 = vmatprep.subr.mxu0 0.0
    %4925 = vmatpush1.msra.mxu0 0.0
    %4926 = vmatprep.subr.mxu0 0.0
    %4927 = vmatpush1.msra.mxu0 0.0
    %4928 = vmatprep.subr.mxu0 0.0
    %4929 = vmatpush1.msra.mxu0 0.0
    %4930 = vmatprep.subr.mxu0 0.0
    %4931 = vmatpush1.msra.mxu0 0.0
    %4932 = vmatprep.subr.mxu0 0.0
    %4933 = vmatpush1.msra.mxu0 0.0
    %4934 = vmatprep.subr.mxu0 0.0
    %4935 = vmatpush1.msra.mxu0 0.0
    %4936 = vmatprep.subr.mxu0 0.0
    %4937 = vmatpush1.msra.mxu0 0.0
    %4938 = vmatprep.subr.mxu0 0.0
    %4939 = vmatpush1.msra.mxu0 0.0
    %4940 = vmatprep.subr.mxu0 0.0
    %4941 = vmatpush1.msra.mxu0 0.0
    %4942 = vmatprep.subr.mxu0 0.0
    %4943 = vmatpush1.msra.mxu0 0.0
    %4944 = vmatprep.subr.mxu0 0.0
    %4945 = vmatpush1.msra.mxu0 0.0
    %4946 = vmatprep.subr.mxu0 0.0
    %4947 = vmatpush1.msra.mxu0 0.0
    %4948 = vmatprep.subr.mxu0 0.0
    %4949 = vmatpush1.msra.mxu0 0.0
    %4950 = vmatprep.subr.mxu0 0.0
    %4951 = vmatpush1.msra.mxu0 0.0
    %4952 = vmatprep.subr.mxu0 0.0
    %4953 = vmatpush1.msra.mxu0 0.0
    %4954 = vmatprep.subr.mxu0 0.0
    %4955 = vmatpush1.msra.mxu0 0.0
    %4956 = vmatprep.subr.mxu0 0.0
    %4957 = vmatpush1.msra.mxu0 0.0
    %4958 = vmatprep.subr.mxu0 0.0
    %4959 = vmatpush1.msra.mxu0 0.0
    %4960 = vmatprep.subr.mxu0 0.0
    %4961 = vmatpush1.msra.mxu0 0.0
    %4962 = vmatprep.subr.mxu0 0.0
    %4963 = vmatpush1.msra.mxu0 0.0
    %4964 = vmatprep.subr.mxu0 0.0
    %4965 = vmatpush1.msra.mxu0 0.0
    %4966 = vmatprep.subr.mxu0 0.0
    %4967 = vmatpush1.msra.mxu0 0.0
    %4968 = vmatprep.subr.mxu0 0.0
    %4969 = vmatpush1.msra.mxu0 0.0
    %4970 = vmatprep.subr.mxu0 0.0
    %4971 = vmatpush1.msra.mxu0 0.0
    %4972 = vmatprep.subr.mxu0 0.0
    %4973 = vmatpush1.msra.mxu0 0.0
    %4974 = vmatprep.subr.mxu0 0.0
    %4975 = vmatpush1.msra.mxu0 0.0
    %4976 = vmatprep.subr.mxu0 0.0
    %4977 = vmatpush1.msra.mxu0 0.0
    %4978 = vmatprep.subr.mxu0 0.0
    %4979 = vmatpush1.msra.mxu0 0.0
    %4980 = vmatprep.subr.mxu0 0.0
    %4981 = vmatpush1.msra.mxu0 0.0
    %4982 = vmatprep.mubr.f32.mxu0 0.0
    %4983 = vmatmul.mubr.f32.gmra.mrb[0].mxu0 %v4908
    %v4984 = vpop.f32.mrb[0].mxu0
    %v4985 = vadd.f32 0.0, %v4984
    %v4986 = vpop.f32.mrb[0].mxu0
    %4987 = vmatprep.mubr.f32.mxu0 0.0
    %4988 = vmatmul.mubr.f32.gmra.mrb[0].mxu0 %v4911
    %v4989 = vpop.f32.mrb[0].mxu0
    %v4990 = vadd.f32 0.0, %v4989
    %v4991 = vpop.f32.mrb[0].mxu0
    %4992 = vmatprep.mubr.f32.mxu0 0.0
    %4993 = vmatmul.mubr.f32.gmra.mrb[0].mxu0 %v4914
    %v4994 = vpop.f32.mrb[0].mxu0
    %v4995 = vadd.f32 0.0, %v4994
    %v4996 = vpop.f32.mrb[0].mxu0
    %4997 = vdwg.mxu0
    %v4999 = vsel %vm553, %v4985, 0
    %v5002 = vsel %vm553, %v4990, 0
    %v5005 = vsel %vm553, %v4995, 0
    %5007 = vmatprep.subr.mxu0 0.0
    %5008 = vmatpush1.msra.mxu0 %v3780
    %5009 = vmatprep.subr.mxu0 0.0
    %5010 = vmatpush1.msra.mxu0 0.0
    %5011 = vmatprep.subr.mxu0 0.0
    %5012 = vmatpush1.msra.mxu0 0.0
    %5013 = vmatprep.subr.mxu0 0.0
    %5014 = vmatpush1.msra.mxu0 0.0
    %5015 = vmatprep.subr.mxu0 0.0
    %5016 = vmatpush1.msra.mxu0 0.0
    %5017 = vmatprep.subr.mxu0 0.0
    %5018 = vmatpush1.msra.mxu0 0.0
    %5019 = vmatprep.subr.mxu0 0.0
    %5020 = vmatpush1.msra.mxu0 0.0
    %5021 = vmatprep.subr.mxu0 0.0
    %5022 = vmatpush1.msra.mxu0 0.0
    %5023 = vmatprep.subr.mxu0 0.0
    %5024 = vmatpush1.msra.mxu0 0.0
    %5025 = vmatprep.subr.mxu0 0.0
    %5026 = vmatpush1.msra.mxu0 0.0
    %5027 = vmatprep.subr.mxu0 0.0
    %5028 = vmatpush1.msra.mxu0 0.0
    %5029 = vmatprep.subr.mxu0 0.0
    %5030 = vmatpush1.msra.mxu0 0.0
    %5031 = vmatprep.subr.mxu0 0.0
    %5032 = vmatpush1.msra.mxu0 0.0
    %5033 = vmatprep.subr.mxu0 0.0
    %5034 = vmatpush1.msra.mxu0 0.0
    %5035 = vmatprep.subr.mxu0 0.0
    %5036 = vmatpush1.msra.mxu0 0.0
    %5037 = vmatprep.subr.mxu0 0.0
    %5038 = vmatpush1.msra.mxu0 0.0
    %5039 = vmatprep.subr.mxu0 0.0
    %5040 = vmatpush1.msra.mxu0 0.0
    %5041 = vmatprep.subr.mxu0 0.0
    %5042 = vmatpush1.msra.mxu0 0.0
    %5043 = vmatprep.subr.mxu0 0.0
    %5044 = vmatpush1.msra.mxu0 0.0
    %5045 = vmatprep.subr.mxu0 0.0
    %5046 = vmatpush1.msra.mxu0 0.0
    %5047 = vmatprep.subr.mxu0 0.0
    %5048 = vmatpush1.msra.mxu0 0.0
    %5049 = vmatprep.subr.mxu0 0.0
    %5050 = vmatpush1.msra.mxu0 0.0
    %5051 = vmatprep.subr.mxu0 0.0
    %5052 = vmatpush1.msra.mxu0 0.0
    %5053 = vmatprep.subr.mxu0 0.0
    %5054 = vmatpush1.msra.mxu0 0.0
    %5055 = vmatprep.subr.mxu0 0.0
    %5056 = vmatpush1.msra.mxu0 0.0
    %5057 = vmatprep.subr.mxu0 0.0
    %5058 = vmatpush1.msra.mxu0 0.0
    %5059 = vmatprep.subr.mxu0 0.0
    %5060 = vmatpush1.msra.mxu0 0.0
    %5061 = vmatprep.subr.mxu0 0.0
    %5062 = vmatpush1.msra.mxu0 0.0
    %5063 = vmatprep.subr.mxu0 0.0
    %5064 = vmatpush1.msra.mxu0 0.0
    %5065 = vmatprep.subr.mxu0 0.0
    %5066 = vmatpush1.msra.mxu0 0.0
    %5067 = vmatprep.subr.mxu0 0.0
    %5068 = vmatpush1.msra.mxu0 0.0
    %5069 = vmatprep.subr.mxu0 0.0
    %5070 = vmatpush1.msra.mxu0 0.0
    %5071 = vmatprep.mubr.f32.mxu0 0.0
    %5072 = vmatmul.mubr.f32.gmra.mrb[0].mxu0 %v4999
    %v5073 = vpop.f32.mrb[0].mxu0
    %v5074 = vadd.f32 0.0, %v5073
    %v5075 = vpop.f32.mrb[0].mxu0
    %5076 = vmatprep.mubr.f32.mxu0 0.0
    %5077 = vmatmul.mubr.f32.gmra.mrb[0].mxu0 %v5002
    %v5078 = vpop.f32.mrb[0].mxu0
    %v5079 = vadd.f32 0.0, %v5078
    %v5080 = vpop.f32.mrb[0].mxu0
    %5081 = vmatprep.mubr.f32.mxu0 0.0
    %5082 = vmatmul.mubr.f32.gmra.mrb[0].mxu0 %v5005
    %v5083 = vpop.f32.mrb[0].mxu0
    %v5084 = vadd.f32 0.0, %v5083
    %v5085 = vpop.f32.mrb[0].mxu0
    %5086 = vdwg.mxu0
    %v5087 = vadd.f32 %v4759, %v5074
    %v5088 = vadd.f32 %v4760, %v5079
    %v5089 = vadd.f32 %v4761, %v5084
    %v5090 = vmul.f32 %v3768, 0.35355338
    %v5091 = vmul.f32 %v3773, 0.35355338
    %v5094 = vrot.slane %v3783, 1
    %v5095 = vrot.slane %v5090, 1
    %v5096 = vsel %vm1857, %v5094, %v5095
    %v5097 = vrot.slane %v5091, 1
    %v5098 = vsel %vm1857, %v5095, %v5097
    %v5101 = vrot.slane %v3763, 1
    %v5102 = vrot.slane %v3768, 1
    %v5103 = vsel %vm1857, %v5101, %v5102
    %v5104 = vrot.slane %v3773, 1
    %v5105 = vsel %vm1857, %v5102, %v5104
    %5106 = vrot.lane.b32.xlu0 %v5103, 96
    %v5107 = vpop.permute.xlu0 %5106
    %5108 = vrot.lane.b32.xlu0 %v5105, 96
    %v5109 = vpop.permute.xlu0 %5108
    %5110 = vrot.lane.b32.xlu0 %v5104, 96
    %v5111 = vpop.permute.xlu0 %5110
    %v5112 = vsel %vm553, %v5096, 0
    %v5114 = vsel %vm553, %v5098, 0
    %v5116 = vsel %vm553, %v5097, 0
    %v5118 = vsel %vm553, %v5107, 0
    %v5120 = vsel %vm553, %v5109, 0
    %v5122 = vsel %vm553, %v5111, 0
    %5124 = vmatprep.subr.mxu0 0.0
    %5125 = vmatpush1.xpose.msra.mxu0 %v5118
    %5126 = vmatprep.subr.mxu0 0.0
    %5127 = vmatpush1.xpose.msra.mxu0 %v5120
    %5128 = vmatprep.subr.mxu0 0.0
    %5129 = vmatpush1.xpose.msra.mxu0 %v5122
    %5130 = vmatprep.subr.mxu0 0.0
    %5131 = vmatpush1.xpose.msra.mxu0 0.0
    %5132 = vmatprep.subr.mxu0 0.0
    %5133 = vmatpush1.xpose.msra.mxu0 0.0
    %5134 = vmatprep.subr.mxu0 0.0
    %5135 = vmatpush1.xpose.msra.mxu0 0.0
    %5136 = vmatprep.subr.mxu0 0.0
    %5137 = vmatpush1.xpose.msra.mxu0 0.0
    %5138 = vmatprep.subr.mxu0 0.0
    %5139 = vmatpush1.xpose.msra.mxu0 0.0
    %5140 = vmatprep.subr.mxu0 0.0
    %5141 = vmatpush1.xpose.msra.mxu0 0.0
    %5142 = vmatprep.subr.mxu0 0.0
    %5143 = vmatpush1.xpose.msra.mxu0 0.0
    %5144 = vmatprep.subr.mxu0 0.0
    %5145 = vmatpush1.xpose.msra.mxu0 0.0
    %5146 = vmatprep.subr.mxu0 0.0
    %5147 = vmatpush1.xpose.msra.mxu0 0.0
    %5148 = vmatprep.subr.mxu0 0.0
    %5149 = vmatpush1.xpose.msra.mxu0 0.0
    %5150 = vmatprep.subr.mxu0 0.0
    %5151 = vmatpush1.xpose.msra.mxu0 0.0
    %5152 = vmatprep.subr.mxu0 0.0
    %5153 = vmatpush1.xpose.msra.mxu0 0.0
    %5154 = vmatprep.subr.mxu0 0.0
    %5155 = vmatpush1.xpose.msra.mxu0 0.0
    %5156 = vmatprep.subr.mxu0 0.0
    %5157 = vmatpush1.xpose.msra.mxu0 0.0
    %5158 = vmatprep.subr.mxu0 0.0
    %5159 = vmatpush1.xpose.msra.mxu0 0.0
    %5160 = vmatprep.subr.mxu0 0.0
    %5161 = vmatpush1.xpose.msra.mxu0 0.0
    %5162 = vmatprep.subr.mxu0 0.0
    %5163 = vmatpush1.xpose.msra.mxu0 0.0
    %5164 = vmatprep.subr.mxu0 0.0
    %5165 = vmatpush1.xpose.msra.mxu0 0.0
    %5166 = vmatprep.subr.mxu0 0.0
    %5167 = vmatpush1.xpose.msra.mxu0 0.0
    %5168 = vmatprep.subr.mxu0 0.0
    %5169 = vmatpush1.xpose.msra.mxu0 0.0
    %5170 = vmatprep.subr.mxu0 0.0
    %5171 = vmatpush1.xpose.msra.mxu0 0.0
    %5172 = vmatprep.subr.mxu0 0.0
    %5173 = vmatpush1.xpose.msra.mxu0 0.0
    %5174 = vmatprep.subr.mxu0 0.0
    %5175 = vmatpush1.xpose.msra.mxu0 0.0
    %5176 = vmatprep.subr.mxu0 0.0
    %5177 = vmatpush1.xpose.msra.mxu0 0.0
    %5178 = vmatprep.subr.mxu0 0.0
    %5179 = vmatpush1.xpose.msra.mxu0 0.0
    %5180 = vmatprep.subr.mxu0 0.0
    %5181 = vmatpush1.xpose.msra.mxu0 0.0
    %5182 = vmatprep.subr.mxu0 0.0
    %5183 = vmatpush1.xpose.msra.mxu0 0.0
    %5184 = vmatprep.subr.mxu0 0.0
    %5185 = vmatpush1.xpose.msra.mxu0 0.0
    %5186 = vmatprep.subr.mxu0 0.0
    %5187 = vmatpush1.xpose.msra.mxu0 0.0
    %5188 = vmatprep.mubr.f32.mxu0 0.0
    %5189 = vmatmul.mubr.f32.gmra.mrb[0].mxu0 %v5112
    %v5190 = vpop.f32.mrb[0].mxu0
    %v5191 = vadd.f32 0.0, %v5190
    %v5192 = vpop.f32.mrb[0].mxu0
    %5193 = vmatprep.mubr.f32.mxu0 0.0
    %5194 = vmatmul.mubr.f32.gmra.mrb[0].mxu0 %v5114
    %v5195 = vpop.f32.mrb[0].mxu0
    %v5196 = vadd.f32 0.0, %v5195
    %v5197 = vpop.f32.mrb[0].mxu0
    %5198 = vmatprep.mubr.f32.mxu0 0.0
    %5199 = vmatmul.mubr.f32.gmra.mrb[0].mxu0 %v5116
    %v5200 = vpop.f32.mrb[0].mxu0
    %v5201 = vadd.f32 0.0, %v5200
    %v5202 = vpop.f32.mrb[0].mxu0
    %5203 = vdwg.mxu0
    %v5204 = vsel %vm649, %v5191, -inf
    %5205 = vmax.xlane.f32.xlu0 %v5204
    %v5206 = vpop.xlane.xlu0 %5205
    %v5207 = vsel %vm649, %v5196, -inf
    %5208 = vmax.xlane.f32.xlu0 %v5207
    %v5209 = vpop.xlane.xlu0 %5208
    %v5210 = vsel %vm656, %v5201, -inf
    %5211 = vmax.xlane.f32.xlu0 %v5210
    %v5212 = vpop.xlane.xlu0 %5211
    %v5213 = vsub.f32 %v5191, %v5206
    %v5214 = vsub.f32 %v5196, %v5209
    %v5215 = vsub.f32 %v5201, %v5212
    %v5216 = vmul.f32 %v5213, 1.442695
    %v5217 = vpow.pop %v5216
    %v5218 = vmul.f32 %v5214, 1.442695
    %v5219 = vpow.pop %v5218
    %v5220 = vmul.f32 %v5215, 1.442695
    %v5221 = vpow.pop %v5220
    %v5222 = vsel %vm649, %v5217, 0.0
    %5223 = vadd.xlane.f32.xlu0 %v5222
    %v5224 = vpop.xlane.xlu0 %5223
    %v5225 = vsel %vm649, %v5219, 0.0
    %5226 = vadd.xlane.f32.xlu0 %v5225
    %v5227 = vpop.xlane.xlu0 %5226
    %v5228 = vsel %vm656, %v5221, 0.0
    %5229 = vadd.xlane.f32.xlu0 %v5228
    %v5230 = vpop.xlane.xlu0 %5229
    %v5231 = vrcp.pop %v5224
    %v5232 = vrcp.pop %v5227
    %v5233 = vrcp.pop %v5230
    %v5234 = vmul.f32 %v5217, %v5231
    %v5235 = vmul.f32 %v5219, %v5232
    %v5236 = vmul.f32 %v5221, %v5233
    %5237 = vrot.lane.b32.xlu0 %v5103, 64
    %v5238 = vpop.permute.xlu0 %5237
    %5239 = vrot.lane.b32.xlu0 %v5105, 64
    %v5240 = vpop.permute.xlu0 %5239
    %5241 = vrot.lane.b32.xlu0 %v5104, 64
    %v5242 = vpop.permute.xlu0 %5241
    %v5246 = vsel %vm649, %v5234, 0
    %v5249 = vsel %vm649, %v5235, 0
    %v5252 = vsel %vm649, %v5236, 0
    %v5254 = vsel %vm225, %v5242, 0
    %5256 = vmatprep.subr.mxu0 0.0
    %5257 = vmatpush1.msra.mxu0 %v5238
    %5258 = vmatprep.subr.mxu0 0.0
    %5259 = vmatpush1.msra.mxu0 %v5240
    %5260 = vmatprep.subr.mxu0 0.0
    %5261 = vmatpush1.msra.mxu0 %v5254
    %5262 = vmatprep.subr.mxu0 0.0
    %5263 = vmatpush1.msra.mxu0 0.0
    %5264 = vmatprep.subr.mxu0 0.0
    %5265 = vmatpush1.msra.mxu0 0.0
    %5266 = vmatprep.subr.mxu0 0.0
    %5267 = vmatpush1.msra.mxu0 0.0
    %5268 = vmatprep.subr.mxu0 0.0
    %5269 = vmatpush1.msra.mxu0 0.0
    %5270 = vmatprep.subr.mxu0 0.0
    %5271 = vmatpush1.msra.mxu0 0.0
    %5272 = vmatprep.subr.mxu0 0.0
    %5273 = vmatpush1.msra.mxu0 0.0
    %5274 = vmatprep.subr.mxu0 0.0
    %5275 = vmatpush1.msra.mxu0 0.0
    %5276 = vmatprep.subr.mxu0 0.0
    %5277 = vmatpush1.msra.mxu0 0.0
    %5278 = vmatprep.subr.mxu0 0.0
    %5279 = vmatpush1.msra.mxu0 0.0
    %5280 = vmatprep.subr.mxu0 0.0
    %5281 = vmatpush1.msra.mxu0 0.0
    %5282 = vmatprep.subr.mxu0 0.0
    %5283 = vmatpush1.msra.mxu0 0.0
    %5284 = vmatprep.subr.mxu0 0.0
    %5285 = vmatpush1.msra.mxu0 0.0
    %5286 = vmatprep.subr.mxu0 0.0
    %5287 = vmatpush1.msra.mxu0 0.0
    %5288 = vmatprep.subr.mxu0 0.0
    %5289 = vmatpush1.msra.mxu0 0.0
    %5290 = vmatprep.subr.mxu0 0.0
    %5291 = vmatpush1.msra.mxu0 0.0
    %5292 = vmatprep.subr.mxu0 0.0
    %5293 = vmatpush1.msra.mxu0 0.0
    %5294 = vmatprep.subr.mxu0 0.0
    %5295 = vmatpush1.msra.mxu0 0.0
    %5296 = vmatprep.subr.mxu0 0.0
    %5297 = vmatpush1.msra.mxu0 0.0
    %5298 = vmatprep.subr.mxu0 0.0
    %5299 = vmatpush1.msra.mxu0 0.0
    %5300 = vmatprep.subr.mxu0 0.0
    %5301 = vmatpush1.msra.mxu0 0.0
    %5302 = vmatprep.subr.mxu0 0.0
    %5303 = vmatpush1.msra.mxu0 0.0
    %5304 = vmatprep.subr.mxu0 0.0
    %5305 = vmatpush1.msra.mxu0 0.0
    %5306 = vmatprep.subr.mxu0 0.0
    %5307 = vmatpush1.msra.mxu0 0.0
    %5308 = vmatprep.subr.mxu0 0.0
    %5309 = vmatpush1.msra.mxu0 0.0
    %5310 = vmatprep.subr.mxu0 0.0
    %5311 = vmatpush1.msra.mxu0 0.0
    %5312 = vmatprep.subr.mxu0 0.0
    %5313 = vmatpush1.msra.mxu0 0.0
    %5314 = vmatprep.subr.mxu0 0.0
    %5315 = vmatpush1.msra.mxu0 0.0
    %5316 = vmatprep.subr.mxu0 0.0
    %5317 = vmatpush1.msra.mxu0 0.0
    %5318 = vmatprep.subr.mxu0 0.0
    %5319 = vmatpush1.msra.mxu0 0.0
    %5320 = vmatprep.mubr.f32.mxu0 0.0
    %5321 = vmatmul.mubr.f32.gmra.mrb[0].mxu0 %v5246
    %v5322 = vpop.f32.mrb[0].mxu0
    %v5323 = vadd.f32 0.0, %v5322
    %v5324 = vpop.f32.mrb[0].mxu0
    %5325 = vmatprep.mubr.f32.mxu0 0.0
    %5326 = vmatmul.mubr.f32.gmra.mrb[0].mxu0 %v5249
    %v5327 = vpop.f32.mrb[0].mxu0
    %v5328 = vadd.f32 0.0, %v5327
    %v5329 = vpop.f32.mrb[0].mxu0
    %5330 = vmatprep.mubr.f32.mxu0 0.0
    %5331 = vmatmul.mubr.f32.gmra.mrb[0].mxu0 %v5252
    %v5332 = vpop.f32.mrb[0].mxu0
    %v5333 = vadd.f32 0.0, %v5332
    %v5334 = vpop.f32.mrb[0].mxu0
    %5335 = vdwg.mxu0
    %5336 = vrot.lane.b32.xlu0 %v5096, 120
    %v5337 = vpop.permute.xlu0 %5336
    %5338 = vrot.lane.b32.xlu0 %v5098, 120
    %v5339 = vpop.permute.xlu0 %5338
    %5340 = vrot.lane.b32.xlu0 %v5097, 120
    %v5341 = vpop.permute.xlu0 %5340
    %5342 = vrot.lane.b32.xlu0 %v5103, 88
    %v5343 = vpop.permute.xlu0 %5342
    %5344 = vrot.lane.b32.xlu0 %v5105, 88
    %v5345 = vpop.permute.xlu0 %5344
    %5346 = vrot.lane.b32.xlu0 %v5104, 88
    %v5347 = vpop.permute.xlu0 %5346
    %v5348 = vsel %vm553, %v5337, 0
    %v5350 = vsel %vm553, %v5339, 0
    %v5352 = vsel %vm553, %v5341, 0
    %v5354 = vsel %vm553, %v5343, 0
    %v5356 = vsel %vm553, %v5345, 0
    %v5358 = vsel %vm553, %v5347, 0
    %5360 = vmatprep.subr.mxu0 0.0
    %5361 = vmatpush1.xpose.msra.mxu0 %v5354
    %5362 = vmatprep.subr.mxu0 0.0
    %5363 = vmatpush1.xpose.msra.mxu0 %v5356
    %5364 = vmatprep.subr.mxu0 0.0
    %5365 = vmatpush1.xpose.msra.mxu0 %v5358
    %5366 = vmatprep.subr.mxu0 0.0
    %5367 = vmatpush1.xpose.msra.mxu0 0.0
    %5368 = vmatprep.subr.mxu0 0.0
    %5369 = vmatpush1.xpose.msra.mxu0 0.0
    %5370 = vmatprep.subr.mxu0 0.0
    %5371 = vmatpush1.xpose.msra.mxu0 0.0
    %5372 = vmatprep.subr.mxu0 0.0
    %5373 = vmatpush1.xpose.msra.mxu0 0.0
    %5374 = vmatprep.subr.mxu0 0.0
    %5375 = vmatpush1.xpose.msra.mxu0 0.0
    %5376 = vmatprep.subr.mxu0 0.0
    %5377 = vmatpush1.xpose.msra.mxu0 0.0
    %5378 = vmatprep.subr.mxu0 0.0
    %5379 = vmatpush1.xpose.msra.mxu0 0.0
    %5380 = vmatprep.subr.mxu0 0.0
    %5381 = vmatpush1.xpose.msra.mxu0 0.0
    %5382 = vmatprep.subr.mxu0 0.0
    %5383 = vmatpush1.xpose.msra.mxu0 0.0
    %5384 = vmatprep.subr.mxu0 0.0
    %5385 = vmatpush1.xpose.msra.mxu0 0.0
    %5386 = vmatprep.subr.mxu0 0.0
    %5387 = vmatpush1.xpose.msra.mxu0 0.0
    %5388 = vmatprep.subr.mxu0 0.0
    %5389 = vmatpush1.xpose.msra.mxu0 0.0
    %5390 = vmatprep.subr.mxu0 0.0
    %5391 = vmatpush1.xpose.msra.mxu0 0.0
    %5392 = vmatprep.subr.mxu0 0.0
    %5393 = vmatpush1.xpose.msra.mxu0 0.0
    %5394 = vmatprep.subr.mxu0 0.0
    %5395 = vmatpush1.xpose.msra.mxu0 0.0
    %5396 = vmatprep.subr.mxu0 0.0
    %5397 = vmatpush1.xpose.msra.mxu0 0.0
    %5398 = vmatprep.subr.mxu0 0.0
    %5399 = vmatpush1.xpose.msra.mxu0 0.0
    %5400 = vmatprep.subr.mxu0 0.0
    %5401 = vmatpush1.xpose.msra.mxu0 0.0
    %5402 = vmatprep.subr.mxu0 0.0
    %5403 = vmatpush1.xpose.msra.mxu0 0.0
    %5404 = vmatprep.subr.mxu0 0.0
    %5405 = vmatpush1.xpose.msra.mxu0 0.0
    %5406 = vmatprep.subr.mxu0 0.0
    %5407 = vmatpush1.xpose.msra.mxu0 0.0
    %5408 = vmatprep.subr.mxu0 0.0
    %5409 = vmatpush1.xpose.msra.mxu0 0.0
    %5410 = vmatprep.subr.mxu0 0.0
    %5411 = vmatpush1.xpose.msra.mxu0 0.0
    %5412 = vmatprep.subr.mxu0 0.0
    %5413 = vmatpush1.xpose.msra.mxu0 0.0
    %5414 = vmatprep.subr.mxu0 0.0
    %5415 = vmatpush1.xpose.msra.mxu0 0.0
    %5416 = vmatprep.subr.mxu0 0.0
    %5417 = vmatpush1.xpose.msra.mxu0 0.0
    %5418 = vmatprep.subr.mxu0 0.0
    %5419 = vmatpush1.xpose.msra.mxu0 0.0
    %5420 = vmatprep.subr.mxu0 0.0
    %5421 = vmatpush1.xpose.msra.mxu0 0.0
    %5422 = vmatprep.subr.mxu0 0.0
    %5423 = vmatpush1.xpose.msra.mxu0 0.0
    %5424 = vmatprep.mubr.f32.mxu0 0.0
    %5425 = vmatmul.mubr.f32.gmra.mrb[0].mxu0 %v5348
    %v5426 = vpop.f32.mrb[0].mxu0
    %v5427 = vadd.f32 0.0, %v5426
    %v5428 = vpop.f32.mrb[0].mxu0
    %5429 = vmatprep.mubr.f32.mxu0 0.0
    %5430 = vmatmul.mubr.f32.gmra.mrb[0].mxu0 %v5350
    %v5431 = vpop.f32.mrb[0].mxu0
    %v5432 = vadd.f32 0.0, %v5431
    %v5433 = vpop.f32.mrb[0].mxu0
    %5434 = vmatprep.mubr.f32.mxu0 0.0
    %5435 = vmatmul.mubr.f32.gmra.mrb[0].mxu0 %v5352
    %v5436 = vpop.f32.mrb[0].mxu0
    %v5437 = vadd.f32 0.0, %v5436
    %v5438 = vpop.f32.mrb[0].mxu0
    %5439 = vdwg.mxu0
    %v5440 = vsel %vm649, %v5427, -inf
    %5441 = vmax.xlane.f32.xlu0 %v5440
    %v5442 = vpop.xlane.xlu0 %5441
    %v5443 = vsel %vm649, %v5432, -inf
    %5444 = vmax.xlane.f32.xlu0 %v5443
    %v5445 = vpop.xlane.xlu0 %5444
    %v5446 = vsel %vm656, %v5437, -inf
    %5447 = vmax.xlane.f32.xlu0 %v5446
    %v5448 = vpop.xlane.xlu0 %5447
    %v5449 = vsub.f32 %v5427, %v5442
    %v5450 = vsub.f32 %v5432, %v5445
    %v5451 = vsub.f32 %v5437, %v5448
    %v5452 = vmul.f32 %v5449, 1.442695
    %v5453 = vpow.pop %v5452
    %v5454 = vmul.f32 %v5450, 1.442695
    %v5455 = vpow.pop %v5454
    %v5456 = vmul.f32 %v5451, 1.442695
    %v5457 = vpow.pop %v5456
    %v5458 = vsel %vm649, %v5453, 0.0
    %5459 = vadd.xlane.f32.xlu0 %v5458
    %v5460 = vpop.xlane.xlu0 %5459
    %v5461 = vsel %vm649, %v5455, 0.0
    %5462 = vadd.xlane.f32.xlu0 %v5461
    %v5463 = vpop.xlane.xlu0 %5462
    %v5464 = vsel %vm656, %v5457, 0.0
    %5465 = vadd.xlane.f32.xlu0 %v5464
    %v5466 = vpop.xlane.xlu0 %5465
    %v5467 = vrcp.pop %v5460
    %v5468 = vrcp.pop %v5463
    %v5469 = vrcp.pop %v5466
    %v5470 = vmul.f32 %v5453, %v5467
    %v5471 = vmul.f32 %v5455, %v5468
    %v5472 = vmul.f32 %v5457, %v5469
    %5473 = vrot.lane.b32.xlu0 %v5103, 56
    %v5474 = vpop.permute.xlu0 %5473
    %5475 = vrot.lane.b32.xlu0 %v5105, 56
    %v5476 = vpop.permute.xlu0 %5475
    %5477 = vrot.lane.b32.xlu0 %v5104, 56
    %v5478 = vpop.permute.xlu0 %5477
    %v5482 = vsel %vm649, %v5470, 0
    %v5485 = vsel %vm649, %v5471, 0
    %v5488 = vsel %vm649, %v5472, 0
    %v5490 = vsel %vm225, %v5478, 0
    %5492 = vmatprep.subr.mxu0 0.0
    %5493 = vmatpush1.msra.mxu0 %v5474
    %5494 = vmatprep.subr.mxu0 0.0
    %5495 = vmatpush1.msra.mxu0 %v5476
    %5496 = vmatprep.subr.mxu0 0.0
    %5497 = vmatpush1.msra.mxu0 %v5490
    %5498 = vmatprep.subr.mxu0 0.0
    %5499 = vmatpush1.msra.mxu0 0.0
    %5500 = vmatprep.subr.mxu0 0.0
    %5501 = vmatpush1.msra.mxu0 0.0
    %5502 = vmatprep.subr.mxu0 0.0
    %5503 = vmatpush1.msra.mxu0 0.0
    %5504 = vmatprep.subr.mxu0 0.0
    %5505 = vmatpush1.msra.mxu0 0.0
    %5506 = vmatprep.subr.mxu0 0.0
    %5507 = vmatpush1.msra.mxu0 0.0
    %5508 = vmatprep.subr.mxu0 0.0
    %5509 = vmatpush1.msra.mxu0 0.0
    %5510 = vmatprep.subr.mxu0 0.0
    %5511 = vmatpush1.msra.mxu0 0.0
    %5512 = vmatprep.subr.mxu0 0.0
    %5513 = vmatpush1.msra.mxu0 0.0
    %5514 = vmatprep.subr.mxu0 0.0
    %5515 = vmatpush1.msra.mxu0 0.0
    %5516 = vmatprep.subr.mxu0 0.0
    %5517 = vmatpush1.msra.mxu0 0.0
    %5518 = vmatprep.subr.mxu0 0.0
    %5519 = vmatpush1.msra.mxu0 0.0
    %5520 = vmatprep.subr.mxu0 0.0
    %5521 = vmatpush1.msra.mxu0 0.0
    %5522 = vmatprep.subr.mxu0 0.0
    %5523 = vmatpush1.msra.mxu0 0.0
    %5524 = vmatprep.subr.mxu0 0.0
    %5525 = vmatpush1.msra.mxu0 0.0
    %5526 = vmatprep.subr.mxu0 0.0
    %5527 = vmatpush1.msra.mxu0 0.0
    %5528 = vmatprep.subr.mxu0 0.0
    %5529 = vmatpush1.msra.mxu0 0.0
    %5530 = vmatprep.subr.mxu0 0.0
    %5531 = vmatpush1.msra.mxu0 0.0
    %5532 = vmatprep.subr.mxu0 0.0
    %5533 = vmatpush1.msra.mxu0 0.0
    %5534 = vmatprep.subr.mxu0 0.0
    %5535 = vmatpush1.msra.mxu0 0.0
    %5536 = vmatprep.subr.mxu0 0.0
    %5537 = vmatpush1.msra.mxu0 0.0
    %5538 = vmatprep.subr.mxu0 0.0
    %5539 = vmatpush1.msra.mxu0 0.0
    %5540 = vmatprep.subr.mxu0 0.0
    %5541 = vmatpush1.msra.mxu0 0.0
    %5542 = vmatprep.subr.mxu0 0.0
    %5543 = vmatpush1.msra.mxu0 0.0
    %5544 = vmatprep.subr.mxu0 0.0
    %5545 = vmatpush1.msra.mxu0 0.0
    %5546 = vmatprep.subr.mxu0 0.0
    %5547 = vmatpush1.msra.mxu0 0.0
    %5548 = vmatprep.subr.mxu0 0.0
    %5549 = vmatpush1.msra.mxu0 0.0
    %5550 = vmatprep.subr.mxu0 0.0
    %5551 = vmatpush1.msra.mxu0 0.0
    %5552 = vmatprep.subr.mxu0 0.0
    %5553 = vmatpush1.msra.mxu0 0.0
    %5554 = vmatprep.subr.mxu0 0.0
    %5555 = vmatpush1.msra.mxu0 0.0
    %5556 = vmatprep.mubr.f32.mxu0 0.0
    %5557 = vmatmul.mubr.f32.gmra.mrb[0].mxu0 %v5482
    %v5558 = vpop.f32.mrb[0].mxu0
    %v5559 = vadd.f32 0.0, %v5558
    %v5560 = vpop.f32.mrb[0].mxu0
    %5561 = vmatprep.mubr.f32.mxu0 0.0
    %5562 = vmatmul.mubr.f32.gmra.mrb[0].mxu0 %v5485
    %v5563 = vpop.f32.mrb[0].mxu0
    %v5564 = vadd.f32 0.0, %v5563
    %v5565 = vpop.f32.mrb[0].mxu0
    %5566 = vmatprep.mubr.f32.mxu0 0.0
    %5567 = vmatmul.mubr.f32.gmra.mrb[0].mxu0 %v5488
    %v5568 = vpop.f32.mrb[0].mxu0
    %v5569 = vadd.f32 0.0, %v5568
    %v5570 = vpop.f32.mrb[0].mxu0
    %5571 = vdwg.mxu0
    %v5573 = vsel %vm553, %v5559, 0
    %v5576 = vsel %vm553, %v5564, 0
    %v5579 = vsel %vm553, %v5569, 0
    %5581 = vmatprep.subr.mxu0 0.0
    %5582 = vmatpush1.msra.mxu0 %v3778
    %5583 = vmatprep.subr.mxu0 0.0
    %5584 = vmatpush1.msra.mxu0 0.0
    %5585 = vmatprep.subr.mxu0 0.0
    %5586 = vmatpush1.msra.mxu0 0.0
    %5587 = vmatprep.subr.mxu0 0.0
    %5588 = vmatpush1.msra.mxu0 0.0
    %5589 = vmatprep.subr.mxu0 0.0
    %5590 = vmatpush1.msra.mxu0 0.0
    %5591 = vmatprep.subr.mxu0 0.0
    %5592 = vmatpush1.msra.mxu0 0.0
    %5593 = vmatprep.subr.mxu0 0.0
    %5594 = vmatpush1.msra.mxu0 0.0
    %5595 = vmatprep.subr.mxu0 0.0
    %5596 = vmatpush1.msra.mxu0 0.0
    %5597 = vmatprep.subr.mxu0 0.0
    %5598 = vmatpush1.msra.mxu0 0.0
    %5599 = vmatprep.subr.mxu0 0.0
    %5600 = vmatpush1.msra.mxu0 0.0
    %5601 = vmatprep.subr.mxu0 0.0
    %5602 = vmatpush1.msra.mxu0 0.0
    %5603 = vmatprep.subr.mxu0 0.0
    %5604 = vmatpush1.msra.mxu0 0.0
    %5605 = vmatprep.subr.mxu0 0.0
    %5606 = vmatpush1.msra.mxu0 0.0
    %5607 = vmatprep.subr.mxu0 0.0
    %5608 = vmatpush1.msra.mxu0 0.0
    %5609 = vmatprep.subr.mxu0 0.0
    %5610 = vmatpush1.msra.mxu0 0.0
    %5611 = vmatprep.subr.mxu0 0.0
    %5612 = vmatpush1.msra.mxu0 0.0
    %5613 = vmatprep.subr.mxu0 0.0
    %5614 = vmatpush1.msra.mxu0 0.0
    %5615 = vmatprep.subr.mxu0 0.0
    %5616 = vmatpush1.msra.mxu0 0.0
    %5617 = vmatprep.subr.mxu0 0.0
    %5618 = vmatpush1.msra.mxu0 0.0
    %5619 = vmatprep.subr.mxu0 0.0
    %5620 = vmatpush1.msra.mxu0 0.0
    %5621 = vmatprep.subr.mxu0 0.0
    %5622 = vmatpush1.msra.mxu0 0.0
    %5623 = vmatprep.subr.mxu0 0.0
    %5624 = vmatpush1.msra.mxu0 0.0
    %5625 = vmatprep.subr.mxu0 0.0
    %5626 = vmatpush1.msra.mxu0 0.0
    %5627 = vmatprep.subr.mxu0 0.0
    %5628 = vmatpush1.msra.mxu0 0.0
    %5629 = vmatprep.subr.mxu0 0.0
    %5630 = vmatpush1.msra.mxu0 0.0
    %5631 = vmatprep.subr.mxu0 0.0
    %5632 = vmatpush1.msra.mxu0 0.0
    %5633 = vmatprep.subr.mxu0 0.0
    %5634 = vmatpush1.msra.mxu0 0.0
    %5635 = vmatprep.subr.mxu0 0.0
    %5636 = vmatpush1.msra.mxu0 0.0
    %5637 = vmatprep.subr.mxu0 0.0
    %5638 = vmatpush1.msra.mxu0 0.0
    %5639 = vmatprep.subr.mxu0 0.0
    %5640 = vmatpush1.msra.mxu0 0.0
    %5641 = vmatprep.subr.mxu0 0.0
    %5642 = vmatpush1.msra.mxu0 0.0
    %5643 = vmatprep.subr.mxu0 0.0
    %5644 = vmatpush1.msra.mxu0 0.0
    %5645 = vmatprep.mubr.f32.mxu0 0.0
    %5646 = vmatmul.mubr.f32.gmra.mrb[0].mxu0 %v5573
    %v5647 = vpop.f32.mrb[0].mxu0
    %v5648 = vadd.f32 0.0, %v5647
    %v5649 = vpop.f32.mrb[0].mxu0
    %5650 = vmatprep.mubr.f32.mxu0 0.0
    %5651 = vmatmul.mubr.f32.gmra.mrb[0].mxu0 %v5576
    %v5652 = vpop.f32.mrb[0].mxu0
    %v5653 = vadd.f32 0.0, %v5652
    %v5654 = vpop.f32.mrb[0].mxu0
    %5655 = vmatprep.mubr.f32.mxu0 0.0
    %5656 = vmatmul.mubr.f32.gmra.mrb[0].mxu0 %v5579
    %v5657 = vpop.f32.mrb[0].mxu0
    %v5658 = vadd.f32 0.0, %v5657
    %v5659 = vpop.f32.mrb[0].mxu0
    %5660 = vdwg.mxu0
    %v5662 = vsel %vm553, %v5323, 0
    %v5665 = vsel %vm553, %v5328, 0
    %v5668 = vsel %vm553, %v5333, 0
    %5670 = vmatprep.subr.mxu0 0.0
    %5671 = vmatpush1.msra.mxu0 %v3777
    %5672 = vmatprep.subr.mxu0 0.0
    %5673 = vmatpush1.msra.mxu0 0.0
    %5674 = vmatprep.subr.mxu0 0.0
    %5675 = vmatpush1.msra.mxu0 0.0
    %5676 = vmatprep.subr.mxu0 0.0
    %5677 = vmatpush1.msra.mxu0 0.0
    %5678 = vmatprep.subr.mxu0 0.0
    %5679 = vmatpush1.msra.mxu0 0.0
    %5680 = vmatprep.subr.mxu0 0.0
    %5681 = vmatpush1.msra.mxu0 0.0
    %5682 = vmatprep.subr.mxu0 0.0
    %5683 = vmatpush1.msra.mxu0 0.0
    %5684 = vmatprep.subr.mxu0 0.0
    %5685 = vmatpush1.msra.mxu0 0.0
    %5686 = vmatprep.subr.mxu0 0.0
    %5687 = vmatpush1.msra.mxu0 0.0
    %5688 = vmatprep.subr.mxu0 0.0
    %5689 = vmatpush1.msra.mxu0 0.0
    %5690 = vmatprep.subr.mxu0 0.0
    %5691 = vmatpush1.msra.mxu0 0.0
    %5692 = vmatprep.subr.mxu0 0.0
    %5693 = vmatpush1.msra.mxu0 0.0
    %5694 = vmatprep.subr.mxu0 0.0
    %5695 = vmatpush1.msra.mxu0 0.0
    %5696 = vmatprep.subr.mxu0 0.0
    %5697 = vmatpush1.msra.mxu0 0.0
    %5698 = vmatprep.subr.mxu0 0.0
    %5699 = vmatpush1.msra.mxu0 0.0
    %5700 = vmatprep.subr.mxu0 0.0
    %5701 = vmatpush1.msra.mxu0 0.0
    %5702 = vmatprep.subr.mxu0 0.0
    %5703 = vmatpush1.msra.mxu0 0.0
    %5704 = vmatprep.subr.mxu0 0.0
    %5705 = vmatpush1.msra.mxu0 0.0
    %5706 = vmatprep.subr.mxu0 0.0
    %5707 = vmatpush1.msra.mxu0 0.0
    %5708 = vmatprep.subr.mxu0 0.0
    %5709 = vmatpush1.msra.mxu0 0.0
    %5710 = vmatprep.subr.mxu0 0.0
    %5711 = vmatpush1.msra.mxu0 0.0
    %5712 = vmatprep.subr.mxu0 0.0
    %5713 = vmatpush1.msra.mxu0 0.0
    %5714 = vmatprep.subr.mxu0 0.0
    %5715 = vmatpush1.msra.mxu0 0.0
    %5716 = vmatprep.subr.mxu0 0.0
    %5717 = vmatpush1.msra.mxu0 0.0
    %5718 = vmatprep.subr.mxu0 0.0
    %5719 = vmatpush1.msra.mxu0 0.0
    %5720 = vmatprep.subr.mxu0 0.0
    %5721 = vmatpush1.msra.mxu0 0.0
    %5722 = vmatprep.subr.mxu0 0.0
    %5723 = vmatpush1.msra.mxu0 0.0
    %5724 = vmatprep.subr.mxu0 0.0
    %5725 = vmatpush1.msra.mxu0 0.0
    %5726 = vmatprep.subr.mxu0 0.0
    %5727 = vmatpush1.msra.mxu0 0.0
    %5728 = vmatprep.subr.mxu0 0.0
    %5729 = vmatpush1.msra.mxu0 0.0
    %5730 = vmatprep.subr.mxu0 0.0
    %5731 = vmatpush1.msra.mxu0 0.0
    %5732 = vmatprep.subr.mxu0 0.0
    %5733 = vmatpush1.msra.mxu0 0.0
    %5734 = vmatprep.mubr.f32.mxu0 0.0
    %5735 = vmatmul.mubr.f32.gmra.mrb[0].mxu0 %v5662
    %v5736 = vpop.f32.mrb[0].mxu0
    %v5737 = vadd.f32 %v5648, %v5736
    %v5738 = vpop.f32.mrb[0].mxu0
    %5739 = vmatprep.mubr.f32.mxu0 0.0
    %5740 = vmatmul.mubr.f32.gmra.mrb[0].mxu0 %v5665
    %v5741 = vpop.f32.mrb[0].mxu0
    %v5742 = vadd.f32 %v5653, %v5741
    %v5743 = vpop.f32.mrb[0].mxu0
    %5744 = vmatprep.mubr.f32.mxu0 0.0
    %5745 = vmatmul.mubr.f32.gmra.mrb[0].mxu0 %v5668
    %v5746 = vpop.f32.mrb[0].mxu0
    %v5747 = vadd.f32 %v5658, %v5746
    %v5748 = vpop.f32.mrb[0].mxu0
    %5749 = vdwg.mxu0
    %5750 = vrot.lane.b32.xlu0 %v5096, 112
    %v5751 = vpop.permute.xlu0 %5750
    %5752 = vrot.lane.b32.xlu0 %v5098, 112
    %v5753 = vpop.permute.xlu0 %5752
    %5754 = vrot.lane.b32.xlu0 %v5097, 112
    %v5755 = vpop.permute.xlu0 %5754
    %5756 = vrot.lane.b32.xlu0 %v5103, 80
    %v5757 = vpop.permute.xlu0 %5756
    %5758 = vrot.lane.b32.xlu0 %v5105, 80
    %v5759 = vpop.permute.xlu0 %5758
    %5760 = vrot.lane.b32.xlu0 %v5104, 80
    %v5761 = vpop.permute.xlu0 %5760
    %v5762 = vsel %vm553, %v5751, 0
    %v5764 = vsel %vm553, %v5753, 0
    %v5766 = vsel %vm553, %v5755, 0
    %v5768 = vsel %vm553, %v5757, 0
    %v5770 = vsel %vm553, %v5759, 0
    %v5772 = vsel %vm553, %v5761, 0
    %5774 = vmatprep.subr.mxu0 0.0
    %5775 = vmatpush1.xpose.msra.mxu0 %v5768
    %5776 = vmatprep.subr.mxu0 0.0
    %5777 = vmatpush1.xpose.msra.mxu0 %v5770
    %5778 = vmatprep.subr.mxu0 0.0
    %5779 = vmatpush1.xpose.msra.mxu0 %v5772
    %5780 = vmatprep.subr.mxu0 0.0
    %5781 = vmatpush1.xpose.msra.mxu0 0.0
    %5782 = vmatprep.subr.mxu0 0.0
    %5783 = vmatpush1.xpose.msra.mxu0 0.0
    %5784 = vmatprep.subr.mxu0 0.0
    %5785 = vmatpush1.xpose.msra.mxu0 0.0
    %5786 = vmatprep.subr.mxu0 0.0
    %5787 = vmatpush1.xpose.msra.mxu0 0.0
    %5788 = vmatprep.subr.mxu0 0.0
    %5789 = vmatpush1.xpose.msra.mxu0 0.0
    %5790 = vmatprep.subr.mxu0 0.0
    %5791 = vmatpush1.xpose.msra.mxu0 0.0
    %5792 = vmatprep.subr.mxu0 0.0
    %5793 = vmatpush1.xpose.msra.mxu0 0.0
    %5794 = vmatprep.subr.mxu0 0.0
    %5795 = vmatpush1.xpose.msra.mxu0 0.0
    %5796 = vmatprep.subr.mxu0 0.0
    %5797 = vmatpush1.xpose.msra.mxu0 0.0
    %5798 = vmatprep.subr.mxu0 0.0
    %5799 = vmatpush1.xpose.msra.mxu0 0.0
    %5800 = vmatprep.subr.mxu0 0.0
    %5801 = vmatpush1.xpose.msra.mxu0 0.0
    %5802 = vmatprep.subr.mxu0 0.0
    %5803 = vmatpush1.xpose.msra.mxu0 0.0
    %5804 = vmatprep.subr.mxu0 0.0
    %5805 = vmatpush1.xpose.msra.mxu0 0.0
    %5806 = vmatprep.subr.mxu0 0.0
    %5807 = vmatpush1.xpose.msra.mxu0 0.0
    %5808 = vmatprep.subr.mxu0 0.0
    %5809 = vmatpush1.xpose.msra.mxu0 0.0
    %5810 = vmatprep.subr.mxu0 0.0
    %5811 = vmatpush1.xpose.msra.mxu0 0.0
    %5812 = vmatprep.subr.mxu0 0.0
    %5813 = vmatpush1.xpose.msra.mxu0 0.0
    %5814 = vmatprep.subr.mxu0 0.0
    %5815 = vmatpush1.xpose.msra.mxu0 0.0
    %5816 = vmatprep.subr.mxu0 0.0
    %5817 = vmatpush1.xpose.msra.mxu0 0.0
    %5818 = vmatprep.subr.mxu0 0.0
    %5819 = vmatpush1.xpose.msra.mxu0 0.0
    %5820 = vmatprep.subr.mxu0 0.0
    %5821 = vmatpush1.xpose.msra.mxu0 0.0
    %5822 = vmatprep.subr.mxu0 0.0
    %5823 = vmatpush1.xpose.msra.mxu0 0.0
    %5824 = vmatprep.subr.mxu0 0.0
    %5825 = vmatpush1.xpose.msra.mxu0 0.0
    %5826 = vmatprep.subr.mxu0 0.0
    %5827 = vmatpush1.xpose.msra.mxu0 0.0
    %5828 = vmatprep.subr.mxu0 0.0
    %5829 = vmatpush1.xpose.msra.mxu0 0.0
    %5830 = vmatprep.subr.mxu0 0.0
    %5831 = vmatpush1.xpose.msra.mxu0 0.0
    %5832 = vmatprep.subr.mxu0 0.0
    %5833 = vmatpush1.xpose.msra.mxu0 0.0
    %5834 = vmatprep.subr.mxu0 0.0
    %5835 = vmatpush1.xpose.msra.mxu0 0.0
    %5836 = vmatprep.subr.mxu0 0.0
    %5837 = vmatpush1.xpose.msra.mxu0 0.0
    %5838 = vmatprep.mubr.f32.mxu0 0.0
    %5839 = vmatmul.mubr.f32.gmra.mrb[0].mxu0 %v5762
    %v5840 = vpop.f32.mrb[0].mxu0
    %v5841 = vadd.f32 0.0, %v5840
    %v5842 = vpop.f32.mrb[0].mxu0
    %5843 = vmatprep.mubr.f32.mxu0 0.0
    %5844 = vmatmul.mubr.f32.gmra.mrb[0].mxu0 %v5764
    %v5845 = vpop.f32.mrb[0].mxu0
    %v5846 = vadd.f32 0.0, %v5845
    %v5847 = vpop.f32.mrb[0].mxu0
    %5848 = vmatprep.mubr.f32.mxu0 0.0
    %5849 = vmatmul.mubr.f32.gmra.mrb[0].mxu0 %v5766
    %v5850 = vpop.f32.mrb[0].mxu0
    %v5851 = vadd.f32 0.0, %v5850
    %v5852 = vpop.f32.mrb[0].mxu0
    %5853 = vdwg.mxu0
    %v5854 = vsel %vm649, %v5841, -inf
    %5855 = vmax.xlane.f32.xlu0 %v5854
    %v5856 = vpop.xlane.xlu0 %5855
    %v5857 = vsel %vm649, %v5846, -inf
    %5858 = vmax.xlane.f32.xlu0 %v5857
    %v5859 = vpop.xlane.xlu0 %5858
    %v5860 = vsel %vm656, %v5851, -inf
    %5861 = vmax.xlane.f32.xlu0 %v5860
    %v5862 = vpop.xlane.xlu0 %5861
    %v5863 = vsub.f32 %v5841, %v5856
    %v5864 = vsub.f32 %v5846, %v5859
    %v5865 = vsub.f32 %v5851, %v5862
    %v5866 = vmul.f32 %v5863, 1.442695
    %v5867 = vpow.pop %v5866
    %v5868 = vmul.f32 %v5864, 1.442695
    %v5869 = vpow.pop %v5868
    %v5870 = vmul.f32 %v5865, 1.442695
    %v5871 = vpow.pop %v5870
    %v5872 = vsel %vm649, %v5867, 0.0
    %5873 = vadd.xlane.f32.xlu0 %v5872
    %v5874 = vpop.xlane.xlu0 %5873
    %v5875 = vsel %vm649, %v5869, 0.0
    %5876 = vadd.xlane.f32.xlu0 %v5875
    %v5877 = vpop.xlane.xlu0 %5876
    %v5878 = vsel %vm656, %v5871, 0.0
    %5879 = vadd.xlane.f32.xlu0 %v5878
    %v5880 = vpop.xlane.xlu0 %5879
    %v5881 = vrcp.pop %v5874
    %v5882 = vrcp.pop %v5877
    %v5883 = vrcp.pop %v5880
    %v5884 = vmul.f32 %v5867, %v5881
    %v5885 = vmul.f32 %v5869, %v5882
    %v5886 = vmul.f32 %v5871, %v5883
    %5887 = vrot.lane.b32.xlu0 %v5103, 48
    %v5888 = vpop.permute.xlu0 %5887
    %5889 = vrot.lane.b32.xlu0 %v5105, 48
    %v5890 = vpop.permute.xlu0 %5889
    %5891 = vrot.lane.b32.xlu0 %v5104, 48
    %v5892 = vpop.permute.xlu0 %5891
    %v5896 = vsel %vm649, %v5884, 0
    %v5899 = vsel %vm649, %v5885, 0
    %v5902 = vsel %vm649, %v5886, 0
    %v5904 = vsel %vm225, %v5892, 0
    %5906 = vmatprep.subr.mxu0 0.0
    %5907 = vmatpush1.msra.mxu0 %v5888
    %5908 = vmatprep.subr.mxu0 0.0
    %5909 = vmatpush1.msra.mxu0 %v5890
    %5910 = vmatprep.subr.mxu0 0.0
    %5911 = vmatpush1.msra.mxu0 %v5904
    %5912 = vmatprep.subr.mxu0 0.0
    %5913 = vmatpush1.msra.mxu0 0.0
    %5914 = vmatprep.subr.mxu0 0.0
    %5915 = vmatpush1.msra.mxu0 0.0
    %5916 = vmatprep.subr.mxu0 0.0
    %5917 = vmatpush1.msra.mxu0 0.0
    %5918 = vmatprep.subr.mxu0 0.0
    %5919 = vmatpush1.msra.mxu0 0.0
    %5920 = vmatprep.subr.mxu0 0.0
    %5921 = vmatpush1.msra.mxu0 0.0
    %5922 = vmatprep.subr.mxu0 0.0
    %5923 = vmatpush1.msra.mxu0 0.0
    %5924 = vmatprep.subr.mxu0 0.0
    %5925 = vmatpush1.msra.mxu0 0.0
    %5926 = vmatprep.subr.mxu0 0.0
    %5927 = vmatpush1.msra.mxu0 0.0
    %5928 = vmatprep.subr.mxu0 0.0
    %5929 = vmatpush1.msra.mxu0 0.0
    %5930 = vmatprep.subr.mxu0 0.0
    %5931 = vmatpush1.msra.mxu0 0.0
    %5932 = vmatprep.subr.mxu0 0.0
    %5933 = vmatpush1.msra.mxu0 0.0
    %5934 = vmatprep.subr.mxu0 0.0
    %5935 = vmatpush1.msra.mxu0 0.0
    %5936 = vmatprep.subr.mxu0 0.0
    %5937 = vmatpush1.msra.mxu0 0.0
    %5938 = vmatprep.subr.mxu0 0.0
    %5939 = vmatpush1.msra.mxu0 0.0
    %5940 = vmatprep.subr.mxu0 0.0
    %5941 = vmatpush1.msra.mxu0 0.0
    %5942 = vmatprep.subr.mxu0 0.0
    %5943 = vmatpush1.msra.mxu0 0.0
    %5944 = vmatprep.subr.mxu0 0.0
    %5945 = vmatpush1.msra.mxu0 0.0
    %5946 = vmatprep.subr.mxu0 0.0
    %5947 = vmatpush1.msra.mxu0 0.0
    %5948 = vmatprep.subr.mxu0 0.0
    %5949 = vmatpush1.msra.mxu0 0.0
    %5950 = vmatprep.subr.mxu0 0.0
    %5951 = vmatpush1.msra.mxu0 0.0
    %5952 = vmatprep.subr.mxu0 0.0
    %5953 = vmatpush1.msra.mxu0 0.0
    %5954 = vmatprep.subr.mxu0 0.0
    %5955 = vmatpush1.msra.mxu0 0.0
    %5956 = vmatprep.subr.mxu0 0.0
    %5957 = vmatpush1.msra.mxu0 0.0
    %5958 = vmatprep.subr.mxu0 0.0
    %5959 = vmatpush1.msra.mxu0 0.0
    %5960 = vmatprep.subr.mxu0 0.0
    %5961 = vmatpush1.msra.mxu0 0.0
    %5962 = vmatprep.subr.mxu0 0.0
    %5963 = vmatpush1.msra.mxu0 0.0
    %5964 = vmatprep.subr.mxu0 0.0
    %5965 = vmatpush1.msra.mxu0 0.0
    %5966 = vmatprep.subr.mxu0 0.0
    %5967 = vmatpush1.msra.mxu0 0.0
    %5968 = vmatprep.subr.mxu0 0.0
    %5969 = vmatpush1.msra.mxu0 0.0
    %5970 = vmatprep.mubr.f32.mxu0 0.0
    %5971 = vmatmul.mubr.f32.gmra.mrb[0].mxu0 %v5896
    %v5972 = vpop.f32.mrb[0].mxu0
    %v5973 = vadd.f32 0.0, %v5972
    %v5974 = vpop.f32.mrb[0].mxu0
    %5975 = vmatprep.mubr.f32.mxu0 0.0
    %5976 = vmatmul.mubr.f32.gmra.mrb[0].mxu0 %v5899
    %v5977 = vpop.f32.mrb[0].mxu0
    %v5978 = vadd.f32 0.0, %v5977
    %v5979 = vpop.f32.mrb[0].mxu0
    %5980 = vmatprep.mubr.f32.mxu0 0.0
    %5981 = vmatmul.mubr.f32.gmra.mrb[0].mxu0 %v5902
    %v5982 = vpop.f32.mrb[0].mxu0
    %v5983 = vadd.f32 0.0, %v5982
    %v5984 = vpop.f32.mrb[0].mxu0
    %5985 = vdwg.mxu0
    %v5987 = vsel %vm553, %v5973, 0
    %v5990 = vsel %vm553, %v5978, 0
    %v5993 = vsel %vm553, %v5983, 0
    %5995 = vmatprep.subr.mxu0 0.0
    %5996 = vmatpush1.msra.mxu0 %v3779
    %5997 = vmatprep.subr.mxu0 0.0
    %5998 = vmatpush1.msra.mxu0 0.0
    %5999 = vmatprep.subr.mxu0 0.0
    %6000 = vmatpush1.msra.mxu0 0.0
    %6001 = vmatprep.subr.mxu0 0.0
    %6002 = vmatpush1.msra.mxu0 0.0
    %6003 = vmatprep.subr.mxu0 0.0
    %6004 = vmatpush1.msra.mxu0 0.0
    %6005 = vmatprep.subr.mxu0 0.0
    %6006 = vmatpush1.msra.mxu0 0.0
    %6007 = vmatprep.subr.mxu0 0.0
    %6008 = vmatpush1.msra.mxu0 0.0
    %6009 = vmatprep.subr.mxu0 0.0
    %6010 = vmatpush1.msra.mxu0 0.0
    %6011 = vmatprep.subr.mxu0 0.0
    %6012 = vmatpush1.msra.mxu0 0.0
    %6013 = vmatprep.subr.mxu0 0.0
    %6014 = vmatpush1.msra.mxu0 0.0
    %6015 = vmatprep.subr.mxu0 0.0
    %6016 = vmatpush1.msra.mxu0 0.0
    %6017 = vmatprep.subr.mxu0 0.0
    %6018 = vmatpush1.msra.mxu0 0.0
    %6019 = vmatprep.subr.mxu0 0.0
    %6020 = vmatpush1.msra.mxu0 0.0
    %6021 = vmatprep.subr.mxu0 0.0
    %6022 = vmatpush1.msra.mxu0 0.0
    %6023 = vmatprep.subr.mxu0 0.0
    %6024 = vmatpush1.msra.mxu0 0.0
    %6025 = vmatprep.subr.mxu0 0.0
    %6026 = vmatpush1.msra.mxu0 0.0
    %6027 = vmatprep.subr.mxu0 0.0
    %6028 = vmatpush1.msra.mxu0 0.0
    %6029 = vmatprep.subr.mxu0 0.0
    %6030 = vmatpush1.msra.mxu0 0.0
    %6031 = vmatprep.subr.mxu0 0.0
    %6032 = vmatpush1.msra.mxu0 0.0
    %6033 = vmatprep.subr.mxu0 0.0
    %6034 = vmatpush1.msra.mxu0 0.0
    %6035 = vmatprep.subr.mxu0 0.0
    %6036 = vmatpush1.msra.mxu0 0.0
    %6037 = vmatprep.subr.mxu0 0.0
    %6038 = vmatpush1.msra.mxu0 0.0
    %6039 = vmatprep.subr.mxu0 0.0
    %6040 = vmatpush1.msra.mxu0 0.0
    %6041 = vmatprep.subr.mxu0 0.0
    %6042 = vmatpush1.msra.mxu0 0.0
    %6043 = vmatprep.subr.mxu0 0.0
    %6044 = vmatpush1.msra.mxu0 0.0
    %6045 = vmatprep.subr.mxu0 0.0
    %6046 = vmatpush1.msra.mxu0 0.0
    %6047 = vmatprep.subr.mxu0 0.0
    %6048 = vmatpush1.msra.mxu0 0.0
    %6049 = vmatprep.subr.mxu0 0.0
    %6050 = vmatpush1.msra.mxu0 0.0
    %6051 = vmatprep.subr.mxu0 0.0
    %6052 = vmatpush1.msra.mxu0 0.0
    %6053 = vmatprep.subr.mxu0 0.0
    %6054 = vmatpush1.msra.mxu0 0.0
    %6055 = vmatprep.subr.mxu0 0.0
    %6056 = vmatpush1.msra.mxu0 0.0
    %6057 = vmatprep.subr.mxu0 0.0
    %6058 = vmatpush1.msra.mxu0 0.0
    %6059 = vmatprep.mubr.f32.mxu0 0.0
    %6060 = vmatmul.mubr.f32.gmra.mrb[0].mxu0 %v5987
    %v6061 = vpop.f32.mrb[0].mxu0
    %v6062 = vadd.f32 0.0, %v6061
    %v6063 = vpop.f32.mrb[0].mxu0
    %6064 = vmatprep.mubr.f32.mxu0 0.0
    %6065 = vmatmul.mubr.f32.gmra.mrb[0].mxu0 %v5990
    %v6066 = vpop.f32.mrb[0].mxu0
    %v6067 = vadd.f32 0.0, %v6066
    %v6068 = vpop.f32.mrb[0].mxu0
    %6069 = vmatprep.mubr.f32.mxu0 0.0
    %6070 = vmatmul.mubr.f32.gmra.mrb[0].mxu0 %v5993
    %v6071 = vpop.f32.mrb[0].mxu0
    %v6072 = vadd.f32 0.0, %v6071
    %v6073 = vpop.f32.mrb[0].mxu0
    %6074 = vdwg.mxu0
    %v6075 = vadd.f32 %v5737, %v6062
    %v6076 = vadd.f32 %v5742, %v6067
    %v6077 = vadd.f32 %v5747, %v6072
    %6078 = vrot.lane.b32.xlu0 %v5096, 104
    %v6079 = vpop.permute.xlu0 %6078
    %6080 = vrot.lane.b32.xlu0 %v5098, 104
    %v6081 = vpop.permute.xlu0 %6080
    %6082 = vrot.lane.b32.xlu0 %v5097, 104
    %v6083 = vpop.permute.xlu0 %6082
    %6084 = vrot.lane.b32.xlu0 %v5103, 72
    %v6085 = vpop.permute.xlu0 %6084
    %6086 = vrot.lane.b32.xlu0 %v5105, 72
    %v6087 = vpop.permute.xlu0 %6086
    %6088 = vrot.lane.b32.xlu0 %v5104, 72
    %v6089 = vpop.permute.xlu0 %6088
    %v6090 = vsel %vm553, %v6079, 0
    %v6092 = vsel %vm553, %v6081, 0
    %v6094 = vsel %vm553, %v6083, 0
    %v6096 = vsel %vm553, %v6085, 0
    %v6098 = vsel %vm553, %v6087, 0
    %v6100 = vsel %vm553, %v6089, 0
    %6102 = vmatprep.subr.mxu0 0.0
    %6103 = vmatpush1.xpose.msra.mxu0 %v6096
    %6104 = vmatprep.subr.mxu0 0.0
    %6105 = vmatpush1.xpose.msra.mxu0 %v6098
    %6106 = vmatprep.subr.mxu0 0.0
    %6107 = vmatpush1.xpose.msra.mxu0 %v6100
    %6108 = vmatprep.subr.mxu0 0.0
    %6109 = vmatpush1.xpose.msra.mxu0 0.0
    %6110 = vmatprep.subr.mxu0 0.0
    %6111 = vmatpush1.xpose.msra.mxu0 0.0
    %6112 = vmatprep.subr.mxu0 0.0
    %6113 = vmatpush1.xpose.msra.mxu0 0.0
    %6114 = vmatprep.subr.mxu0 0.0
    %6115 = vmatpush1.xpose.msra.mxu0 0.0
    %6116 = vmatprep.subr.mxu0 0.0
    %6117 = vmatpush1.xpose.msra.mxu0 0.0
    %6118 = vmatprep.subr.mxu0 0.0
    %6119 = vmatpush1.xpose.msra.mxu0 0.0
    %6120 = vmatprep.subr.mxu0 0.0
    %6121 = vmatpush1.xpose.msra.mxu0 0.0
    %6122 = vmatprep.subr.mxu0 0.0
    %6123 = vmatpush1.xpose.msra.mxu0 0.0
    %6124 = vmatprep.subr.mxu0 0.0
    %6125 = vmatpush1.xpose.msra.mxu0 0.0
    %6126 = vmatprep.subr.mxu0 0.0
    %6127 = vmatpush1.xpose.msra.mxu0 0.0
    %6128 = vmatprep.subr.mxu0 0.0
    %6129 = vmatpush1.xpose.msra.mxu0 0.0
    %6130 = vmatprep.subr.mxu0 0.0
    %6131 = vmatpush1.xpose.msra.mxu0 0.0
    %6132 = vmatprep.subr.mxu0 0.0
    %6133 = vmatpush1.xpose.msra.mxu0 0.0
    %6134 = vmatprep.subr.mxu0 0.0
    %6135 = vmatpush1.xpose.msra.mxu0 0.0
    %6136 = vmatprep.subr.mxu0 0.0
    %6137 = vmatpush1.xpose.msra.mxu0 0.0
    %6138 = vmatprep.subr.mxu0 0.0
    %6139 = vmatpush1.xpose.msra.mxu0 0.0
    %6140 = vmatprep.subr.mxu0 0.0
    %6141 = vmatpush1.xpose.msra.mxu0 0.0
    %6142 = vmatprep.subr.mxu0 0.0
    %6143 = vmatpush1.xpose.msra.mxu0 0.0
    %6144 = vmatprep.subr.mxu0 0.0
    %6145 = vmatpush1.xpose.msra.mxu0 0.0
    %6146 = vmatprep.subr.mxu0 0.0
    %6147 = vmatpush1.xpose.msra.mxu0 0.0
    %6148 = vmatprep.subr.mxu0 0.0
    %6149 = vmatpush1.xpose.msra.mxu0 0.0
    %6150 = vmatprep.subr.mxu0 0.0
    %6151 = vmatpush1.xpose.msra.mxu0 0.0
    %6152 = vmatprep.subr.mxu0 0.0
    %6153 = vmatpush1.xpose.msra.mxu0 0.0
    %6154 = vmatprep.subr.mxu0 0.0
    %6155 = vmatpush1.xpose.msra.mxu0 0.0
    %6156 = vmatprep.subr.mxu0 0.0
    %6157 = vmatpush1.xpose.msra.mxu0 0.0
    %6158 = vmatprep.subr.mxu0 0.0
    %6159 = vmatpush1.xpose.msra.mxu0 0.0
    %6160 = vmatprep.subr.mxu0 0.0
    %6161 = vmatpush1.xpose.msra.mxu0 0.0
    %6162 = vmatprep.subr.mxu0 0.0
    %6163 = vmatpush1.xpose.msra.mxu0 0.0
    %6164 = vmatprep.subr.mxu0 0.0
    %6165 = vmatpush1.xpose.msra.mxu0 0.0
    %6166 = vmatprep.mubr.f32.mxu0 0.0
    %6167 = vmatmul.mubr.f32.gmra.mrb[0].mxu0 %v6090
    %v6168 = vpop.f32.mrb[0].mxu0
    %v6169 = vadd.f32 0.0, %v6168
    %v6170 = vpop.f32.mrb[0].mxu0
    %6171 = vmatprep.mubr.f32.mxu0 0.0
    %6172 = vmatmul.mubr.f32.gmra.mrb[0].mxu0 %v6092
    %v6173 = vpop.f32.mrb[0].mxu0
    %v6174 = vadd.f32 0.0, %v6173
    %v6175 = vpop.f32.mrb[0].mxu0
    %6176 = vmatprep.mubr.f32.mxu0 0.0
    %6177 = vmatmul.mubr.f32.gmra.mrb[0].mxu0 %v6094
    %v6178 = vpop.f32.mrb[0].mxu0
    %v6179 = vadd.f32 0.0, %v6178
    %v6180 = vpop.f32.mrb[0].mxu0
    %6181 = vdwg.mxu0
    %v6182 = vsel %vm649, %v6169, -inf
    %6183 = vmax.xlane.f32.xlu0 %v6182
    %v6184 = vpop.xlane.xlu0 %6183
    %v6185 = vsel %vm649, %v6174, -inf
    %6186 = vmax.xlane.f32.xlu0 %v6185
    %v6187 = vpop.xlane.xlu0 %6186
    %v6188 = vsel %vm656, %v6179, -inf
    %6189 = vmax.xlane.f32.xlu0 %v6188
    %v6190 = vpop.xlane.xlu0 %6189
    %v6191 = vsub.f32 %v6169, %v6184
    %v6192 = vsub.f32 %v6174, %v6187
    %v6193 = vsub.f32 %v6179, %v6190
    %v6194 = vmul.f32 %v6191, 1.442695
    %v6195 = vpow.pop %v6194
    %v6196 = vmul.f32 %v6192, 1.442695
    %v6197 = vpow.pop %v6196
    %v6198 = vmul.f32 %v6193, 1.442695
    %v6199 = vpow.pop %v6198
    %v6200 = vsel %vm649, %v6195, 0.0
    %6201 = vadd.xlane.f32.xlu0 %v6200
    %v6202 = vpop.xlane.xlu0 %6201
    %v6203 = vsel %vm649, %v6197, 0.0
    %6204 = vadd.xlane.f32.xlu0 %v6203
    %v6205 = vpop.xlane.xlu0 %6204
    %v6206 = vsel %vm656, %v6199, 0.0
    %6207 = vadd.xlane.f32.xlu0 %v6206
    %v6208 = vpop.xlane.xlu0 %6207
    %v6209 = vrcp.pop %v6202
    %v6210 = vrcp.pop %v6205
    %v6211 = vrcp.pop %v6208
    %v6212 = vmul.f32 %v6195, %v6209
    %v6213 = vmul.f32 %v6197, %v6210
    %v6214 = vmul.f32 %v6199, %v6211
    %6215 = vrot.lane.b32.xlu0 %v5103, 40
    %v6216 = vpop.permute.xlu0 %6215
    %6217 = vrot.lane.b32.xlu0 %v5105, 40
    %v6218 = vpop.permute.xlu0 %6217
    %6219 = vrot.lane.b32.xlu0 %v5104, 40
    %v6220 = vpop.permute.xlu0 %6219
    %v6224 = vsel %vm649, %v6212, 0
    %v6227 = vsel %vm649, %v6213, 0
    %v6230 = vsel %vm649, %v6214, 0
    %v6232 = vsel %vm225, %v6220, 0
    %6234 = vmatprep.subr.mxu0 0.0
    %6235 = vmatpush1.msra.mxu0 %v6216
    %6236 = vmatprep.subr.mxu0 0.0
    %6237 = vmatpush1.msra.mxu0 %v6218
    %6238 = vmatprep.subr.mxu0 0.0
    %6239 = vmatpush1.msra.mxu0 %v6232
    %6240 = vmatprep.subr.mxu0 0.0
    %6241 = vmatpush1.msra.mxu0 0.0
    %6242 = vmatprep.subr.mxu0 0.0
    %6243 = vmatpush1.msra.mxu0 0.0
    %6244 = vmatprep.subr.mxu0 0.0
    %6245 = vmatpush1.msra.mxu0 0.0
    %6246 = vmatprep.subr.mxu0 0.0
    %6247 = vmatpush1.msra.mxu0 0.0
    %6248 = vmatprep.subr.mxu0 0.0
    %6249 = vmatpush1.msra.mxu0 0.0
    %6250 = vmatprep.subr.mxu0 0.0
    %6251 = vmatpush1.msra.mxu0 0.0
    %6252 = vmatprep.subr.mxu0 0.0
    %6253 = vmatpush1.msra.mxu0 0.0
    %6254 = vmatprep.subr.mxu0 0.0
    %6255 = vmatpush1.msra.mxu0 0.0
    %6256 = vmatprep.subr.mxu0 0.0
    %6257 = vmatpush1.msra.mxu0 0.0
    %6258 = vmatprep.subr.mxu0 0.0
    %6259 = vmatpush1.msra.mxu0 0.0
    %6260 = vmatprep.subr.mxu0 0.0
    %6261 = vmatpush1.msra.mxu0 0.0
    %6262 = vmatprep.subr.mxu0 0.0
    %6263 = vmatpush1.msra.mxu0 0.0
    %6264 = vmatprep.subr.mxu0 0.0
    %6265 = vmatpush1.msra.mxu0 0.0
    %6266 = vmatprep.subr.mxu0 0.0
    %6267 = vmatpush1.msra.mxu0 0.0
    %6268 = vmatprep.subr.mxu0 0.0
    %6269 = vmatpush1.msra.mxu0 0.0
    %6270 = vmatprep.subr.mxu0 0.0
    %6271 = vmatpush1.msra.mxu0 0.0
    %6272 = vmatprep.subr.mxu0 0.0
    %6273 = vmatpush1.msra.mxu0 0.0
    %6274 = vmatprep.subr.mxu0 0.0
    %6275 = vmatpush1.msra.mxu0 0.0
    %6276 = vmatprep.subr.mxu0 0.0
    %6277 = vmatpush1.msra.mxu0 0.0
    %6278 = vmatprep.subr.mxu0 0.0
    %6279 = vmatpush1.msra.mxu0 0.0
    %6280 = vmatprep.subr.mxu0 0.0
    %6281 = vmatpush1.msra.mxu0 0.0
    %6282 = vmatprep.subr.mxu0 0.0
    %6283 = vmatpush1.msra.mxu0 0.0
    %6284 = vmatprep.subr.mxu0 0.0
    %6285 = vmatpush1.msra.mxu0 0.0
    %6286 = vmatprep.subr.mxu0 0.0
    %6287 = vmatpush1.msra.mxu0 0.0
    %6288 = vmatprep.subr.mxu0 0.0
    %6289 = vmatpush1.msra.mxu0 0.0
    %6290 = vmatprep.subr.mxu0 0.0
    %6291 = vmatpush1.msra.mxu0 0.0
    %6292 = vmatprep.subr.mxu0 0.0
    %6293 = vmatpush1.msra.mxu0 0.0
    %6294 = vmatprep.subr.mxu0 0.0
    %6295 = vmatpush1.msra.mxu0 0.0
    %6296 = vmatprep.subr.mxu0 0.0
    %6297 = vmatpush1.msra.mxu0 0.0
    %6298 = vmatprep.mubr.f32.mxu0 0.0
    %6299 = vmatmul.mubr.f32.gmra.mrb[0].mxu0 %v6224
    %v6300 = vpop.f32.mrb[0].mxu0
    %v6301 = vadd.f32 0.0, %v6300
    %v6302 = vpop.f32.mrb[0].mxu0
    %6303 = vmatprep.mubr.f32.mxu0 0.0
    %6304 = vmatmul.mubr.f32.gmra.mrb[0].mxu0 %v6227
    %v6305 = vpop.f32.mrb[0].mxu0
    %v6306 = vadd.f32 0.0, %v6305
    %v6307 = vpop.f32.mrb[0].mxu0
    %6308 = vmatprep.mubr.f32.mxu0 0.0
    %6309 = vmatmul.mubr.f32.gmra.mrb[0].mxu0 %v6230
    %v6310 = vpop.f32.mrb[0].mxu0
    %v6311 = vadd.f32 0.0, %v6310
    %v6312 = vpop.f32.mrb[0].mxu0
    %6313 = vdwg.mxu0
    %v6315 = vsel %vm553, %v6301, 0
    %v6318 = vsel %vm553, %v6306, 0
    %v6321 = vsel %vm553, %v6311, 0
    %6323 = vmatprep.subr.mxu0 0.0
    %6324 = vmatpush1.msra.mxu0 %v3780
    %6325 = vmatprep.subr.mxu0 0.0
    %6326 = vmatpush1.msra.mxu0 0.0
    %6327 = vmatprep.subr.mxu0 0.0
    %6328 = vmatpush1.msra.mxu0 0.0
    %6329 = vmatprep.subr.mxu0 0.0
    %6330 = vmatpush1.msra.mxu0 0.0
    %6331 = vmatprep.subr.mxu0 0.0
    %6332 = vmatpush1.msra.mxu0 0.0
    %6333 = vmatprep.subr.mxu0 0.0
    %6334 = vmatpush1.msra.mxu0 0.0
    %6335 = vmatprep.subr.mxu0 0.0
    %6336 = vmatpush1.msra.mxu0 0.0
    %6337 = vmatprep.subr.mxu0 0.0
    %6338 = vmatpush1.msra.mxu0 0.0
    %6339 = vmatprep.subr.mxu0 0.0
    %6340 = vmatpush1.msra.mxu0 0.0
    %6341 = vmatprep.subr.mxu0 0.0
    %6342 = vmatpush1.msra.mxu0 0.0
    %6343 = vmatprep.subr.mxu0 0.0
    %6344 = vmatpush1.msra.mxu0 0.0
    %6345 = vmatprep.subr.mxu0 0.0
    %6346 = vmatpush1.msra.mxu0 0.0
    %6347 = vmatprep.subr.mxu0 0.0
    %6348 = vmatpush1.msra.mxu0 0.0
    %6349 = vmatprep.subr.mxu0 0.0
    %6350 = vmatpush1.msra.mxu0 0.0
    %6351 = vmatprep.subr.mxu0 0.0
    %6352 = vmatpush1.msra.mxu0 0.0
    %6353 = vmatprep.subr.mxu0 0.0
    %6354 = vmatpush1.msra.mxu0 0.0
    %6355 = vmatprep.subr.mxu0 0.0
    %6356 = vmatpush1.msra.mxu0 0.0
    %6357 = vmatprep.subr.mxu0 0.0
    %6358 = vmatpush1.msra.mxu0 0.0
    %6359 = vmatprep.subr.mxu0 0.0
    %6360 = vmatpush1.msra.mxu0 0.0
    %6361 = vmatprep.subr.mxu0 0.0
    %6362 = vmatpush1.msra.mxu0 0.0
    %6363 = vmatprep.subr.mxu0 0.0
    %6364 = vmatpush1.msra.mxu0 0.0
    %6365 = vmatprep.subr.mxu0 0.0
    %6366 = vmatpush1.msra.mxu0 0.0
    %6367 = vmatprep.subr.mxu0 0.0
    %6368 = vmatpush1.msra.mxu0 0.0
    %6369 = vmatprep.subr.mxu0 0.0
    %6370 = vmatpush1.msra.mxu0 0.0
    %6371 = vmatprep.subr.mxu0 0.0
    %6372 = vmatpush1.msra.mxu0 0.0
    %6373 = vmatprep.subr.mxu0 0.0
    %6374 = vmatpush1.msra.mxu0 0.0
    %6375 = vmatprep.subr.mxu0 0.0
    %6376 = vmatpush1.msra.mxu0 0.0
    %6377 = vmatprep.subr.mxu0 0.0
    %6378 = vmatpush1.msra.mxu0 0.0
    %6379 = vmatprep.subr.mxu0 0.0
    %6380 = vmatpush1.msra.mxu0 0.0
    %6381 = vmatprep.subr.mxu0 0.0
    %6382 = vmatpush1.msra.mxu0 0.0
    %6383 = vmatprep.subr.mxu0 0.0
    %6384 = vmatpush1.msra.mxu0 0.0
    %6385 = vmatprep.subr.mxu0 0.0
    %6386 = vmatpush1.msra.mxu0 0.0
    %6387 = vmatprep.mubr.f32.mxu0 0.0
    %6388 = vmatmul.mubr.f32.gmra.mrb[0].mxu0 %v6315
    %v6389 = vpop.f32.mrb[0].mxu0
    %v6390 = vadd.f32 0.0, %v6389
    %v6391 = vpop.f32.mrb[0].mxu0
    %6392 = vmatprep.mubr.f32.mxu0 0.0
    %6393 = vmatmul.mubr.f32.gmra.mrb[0].mxu0 %v6318
    %v6394 = vpop.f32.mrb[0].mxu0
    %v6395 = vadd.f32 0.0, %v6394
    %v6396 = vpop.f32.mrb[0].mxu0
    %6397 = vmatprep.mubr.f32.mxu0 0.0
    %6398 = vmatmul.mubr.f32.gmra.mrb[0].mxu0 %v6321
    %v6399 = vpop.f32.mrb[0].mxu0
    %v6400 = vadd.f32 0.0, %v6399
    %v6401 = vpop.f32.mrb[0].mxu0
    %6402 = vdwg.mxu0
    %v6403 = vadd.f32 %v6075, %v6390
    %v6404 = vadd.f32 %v6076, %v6395
    %v6405 = vadd.f32 %v6077, %v6400
    %v6409 = vrot.slane %v6403, 7
    %v6410 = vrot.slane %v6404, 7
    %v6411 = vsel %vm225, %v6409, %v6410
    %v6412 = vrot.slane %v6405, 7
    %v6413 = vsel %vm225, %v6410, %v6412
    %v6417 = vsel %vm225, %v5089, %v6409
    %s6418 = scalar_lea.vmem %s11, 1
    %v6419 = vld [vmem:[%s6418] sm:$0x1]
    %v6421 = vlaneseq
    %v6422 = vshrl.u32 %v6421, 7
    %v6423 = vsub.s32 0, %v6422
    %v6424 = vrot.slane %v6419, %v6423
    %v6426 = vadd.f32 %v5087, %v6424
    %v6427 = vadd.f32 %v5088, %v6424
    %v6428 = vadd.f32 %v6417, %v6424
    %v6429 = vadd.f32 %v6411, %v6424
    %v6430 = vadd.f32 %v6413, %v6424
    %v6431 = vadd.f32 %v3562, %v6426
    %v6432 = vadd.f32 %v3563, %v6427
    %v6433 = vadd.f32 %v3564, %v6428
    %v6434 = vadd.f32 %v3565, %v6429
    %v6435 = vadd.f32 %v3566, %v6430
    %s6436 = scalar_lea.vmem %s12, 1
    %v6437 = vld [vmem:[%s6436] sm:$0x1]
    %s6438 = scalar_lea.vmem %s13, 1
    %v6439 = vld [vmem:[%s6438] sm:$0x1]
    %v6440 = vsel %vm242, %v6431, 0.0
    %6441 = vadd.xlane.f32.xlu0 %v6440
    %v6442 = vpop.xlane.xlu0 %6441
    %v6443 = vsel %vm242, %v6432, 0.0
    %6444 = vadd.xlane.f32.xlu0 %v6443
    %v6445 = vpop.xlane.xlu0 %6444
    %v6446 = vsel %vm242, %v6433, 0.0
    %6447 = vadd.xlane.f32.xlu0 %v6446
    %v6448 = vpop.xlane.xlu0 %6447
    %v6449 = vsel %vm242, %v6434, 0.0
    %6450 = vadd.xlane.f32.xlu0 %v6449
    %v6451 = vpop.xlane.xlu0 %6450
    %v6452 = vsel %vm255, %v6435, 0.0
    %6453 = vadd.xlane.f32.xlu0 %v6452
    %v6454 = vpop.xlane.xlu0 %6453
    %v6455 = vmul.f32 %v6442, %v259
    %v6456 = vmul.f32 %v6445, %v259
    %v6457 = vmul.f32 %v6448, %v259
    %v6458 = vmul.f32 %v6451, %v259
    %v6459 = vmul.f32 %v6454, %v259
    %v6460 = vsub.f32 %v6431, %v6455
    %v6461 = vsub.f32 %v6432, %v6456
    %v6462 = vsub.f32 %v6433, %v6457
    %v6463 = vsub.f32 %v6434, %v6458
    %v6464 = vsub.f32 %v6435, %v6459
    %v6465 = vmul.f32 %v6460, %v6460
    %v6466 = vmul.f32 %v6461, %v6461
    %v6467 = vmul.f32 %v6462, %v6462
    %v6468 = vmul.f32 %v6463, %v6463
    %v6469 = vmul.f32 %v6464, %v6464
    %v6470 = vsel %vm242, %v6465, 0.0
    %6471 = vadd.xlane.f32.xlu0 %v6470
    %v6472 = vpop.xlane.xlu0 %6471
    %v6473 = vsel %vm242, %v6466, 0.0
    %6474 = vadd.xlane.f32.xlu0 %v6473
    %v6475 = vpop.xlane.xlu0 %6474
    %v6476 = vsel %vm242, %v6467, 0.0
    %6477 = vadd.xlane.f32.xlu0 %v6476
    %v6478 = vpop.xlane.xlu0 %6477
    %v6479 = vsel %vm242, %v6468, 0.0
    %6480 = vadd.xlane.f32.xlu0 %v6479
    %v6481 = vpop.xlane.xlu0 %6480
    %v6482 = vsel %vm255, %v6469, 0.0
    %6483 = vadd.xlane.f32.xlu0 %v6482
    %v6484 = vpop.xlane.xlu0 %6483
    %v6485 = vmul.f32 %v6472, %v259
    %v6486 = vmul.f32 %v6475, %v259
    %v6487 = vmul.f32 %v6478, %v259
    %v6488 = vmul.f32 %v6481, %v259
    %v6489 = vmul.f32 %v6484, %v259
    %v6490 = vadd.f32 %v6485, 1e-05
    %v6491 = vadd.f32 %v6486, 1e-05
    %v6492 = vadd.f32 %v6487, 1e-05
    %v6493 = vadd.f32 %v6488, 1e-05
    %v6494 = vadd.f32 %v6489, 1e-05
    %v6495 = vrsqrt.pop %v6490
    %v6496 = vrsqrt.pop %v6491
    %v6497 = vrsqrt.pop %v6492
    %v6498 = vrsqrt.pop %v6493
    %v6499 = vrsqrt.pop %v6494
    %v6500 = vmul.f32 %v6460, %v6495
    %v6501 = vmul.f32 %v6461, %v6496
    %v6502 = vmul.f32 %v6462, %v6497
    %v6503 = vmul.f32 %v6463, %v6498
    %v6504 = vmul.f32 %v6464, %v6499
    %v6506 = vlaneseq
    %v6507 = vshrl.u32 %v6506, 7
    %v6508 = vsub.s32 0, %v6507
    %v6509 = vrot.slane %v6437, %v6508
    %v6511 = vmul.f32 %v6500, %v6509
    %v6512 = vmul.f32 %v6501, %v6509
    %v6513 = vmul.f32 %v6502, %v6509
    %v6514 = vmul.f32 %v6503, %v6509
    %v6515 = vmul.f32 %v6504, %v6509
    %v6517 = vlaneseq
    %v6518 = vshrl.u32 %v6517, 7
    %v6519 = vsub.s32 0, %v6518
    %v6520 = vrot.slane %v6439, %v6519
    %v6522 = vadd.f32 %v6511, %v6520
    %v6523 = vadd.f32 %v6512, %v6520
    %v6524 = vadd.f32 %v6513, %v6520
    %v6525 = vadd.f32 %v6514, %v6520
    %v6526 = vadd.f32 %v6515, %v6520
    %s6527 = scalar_lea.vmem %s14, 32
    %v6528 = vld [vmem:[%s6527] sm:$0xff]
    %v6529 = vld [vmem:[%s6527 + $0x8] sm:$0xff]
    %v6530 = vld [vmem:[%s6527 + $0x10] sm:$0xff]
    %v6531 = vld [vmem:[%s6527 + $0x18] sm:$0xff]
    %s6532 = scalar_lea.vmem %s15, 1
    %v6533 = vld [vmem:[%s6532] sm:$0x1]
    %v6535 = vlaneseq
    %v6536 = vshrl.u32 %v6535, 7
    %v6537 = vsub.s32 0, %v6536
    %v6538 = vrot.slane %v6533, %v6537
    %v6541 = vsel %vm242, %v6522, 0
    %v6544 = vsel %vm242, %v6523, 0
    %v6547 = vsel %vm242, %v6524, 0
    %v6550 = vsel %vm242, %v6525, 0
    %v6553 = vsel %vm242, %v6526, 0
    %6555 = vmatprep.subr.mxu0 0.0
    %6556 = vmatpush1.msra.mxu0 %v6528
    %6557 = vmatprep.subr.mxu0 0.0
    %6558 = vmatpush1.msra.mxu0 %v6529
    %6559 = vmatprep.subr.mxu0 0.0
    %6560 = vmatpush1.msra.mxu0 %v6530
    %6561 = vmatprep.subr.mxu0 0.0
    %6562 = vmatpush1.msra.mxu0 %v6531
    %6563 = vmatprep.subr.mxu0 0.0
    %6564 = vmatpush1.msra.mxu0 0.0
    %6565 = vmatprep.subr.mxu0 0.0
    %6566 = vmatpush1.msra.mxu0 0.0
    %6567 = vmatprep.subr.mxu0 0.0
    %6568 = vmatpush1.msra.mxu0 0.0
    %6569 = vmatprep.subr.mxu0 0.0
    %6570 = vmatpush1.msra.mxu0 0.0
    %6571 = vmatprep.subr.mxu0 0.0
    %6572 = vmatpush1.msra.mxu0 0.0
    %6573 = vmatprep.subr.mxu0 0.0
    %6574 = vmatpush1.msra.mxu0 0.0
    %6575 = vmatprep.subr.mxu0 0.0
    %6576 = vmatpush1.msra.mxu0 0.0
    %6577 = vmatprep.subr.mxu0 0.0
    %6578 = vmatpush1.msra.mxu0 0.0
    %6579 = vmatprep.subr.mxu0 0.0
    %6580 = vmatpush1.msra.mxu0 0.0
    %6581 = vmatprep.subr.mxu0 0.0
    %6582 = vmatpush1.msra.mxu0 0.0
    %6583 = vmatprep.subr.mxu0 0.0
    %6584 = vmatpush1.msra.mxu0 0.0
    %6585 = vmatprep.subr.mxu0 0.0
    %6586 = vmatpush1.msra.mxu0 0.0
    %6587 = vmatprep.subr.mxu0 0.0
    %6588 = vmatpush1.msra.mxu0 0.0
    %6589 = vmatprep.subr.mxu0 0.0
    %6590 = vmatpush1.msra.mxu0 0.0
    %6591 = vmatprep.subr.mxu0 0.0
    %6592 = vmatpush1.msra.mxu0 0.0
    %6593 = vmatprep.subr.mxu0 0.0
    %6594 = vmatpush1.msra.mxu0 0.0
    %6595 = vmatprep.subr.mxu0 0.0
    %6596 = vmatpush1.msra.mxu0 0.0
    %6597 = vmatprep.subr.mxu0 0.0
    %6598 = vmatpush1.msra.mxu0 0.0
    %6599 = vmatprep.subr.mxu0 0.0
    %6600 = vmatpush1.msra.mxu0 0.0
    %6601 = vmatprep.subr.mxu0 0.0
    %6602 = vmatpush1.msra.mxu0 0.0
    %6603 = vmatprep.subr.mxu0 0.0
    %6604 = vmatpush1.msra.mxu0 0.0
    %6605 = vmatprep.subr.mxu0 0.0
    %6606 = vmatpush1.msra.mxu0 0.0
    %6607 = vmatprep.subr.mxu0 0.0
    %6608 = vmatpush1.msra.mxu0 0.0
    %6609 = vmatprep.subr.mxu0 0.0
    %6610 = vmatpush1.msra.mxu0 0.0
    %6611 = vmatprep.subr.mxu0 0.0
    %6612 = vmatpush1.msra.mxu0 0.0
    %6613 = vmatprep.subr.mxu0 0.0
    %6614 = vmatpush1.msra.mxu0 0.0
    %6615 = vmatprep.subr.mxu0 0.0
    %6616 = vmatpush1.msra.mxu0 0.0
    %6617 = vmatprep.subr.mxu0 0.0
    %6618 = vmatpush1.msra.mxu0 0.0
    %6619 = vmatprep.mubr.f32.mxu0 0.0
    %6620 = vmatmul.mubr.f32.gmra.mrb[0].mxu0 %v6541
    %v6621 = vpop.f32.mrb[0].mxu0
    %v6622 = vadd.f32 %v6538, %v6621
    %v6623 = vpop.f32.mrb[0].mxu0
    %6624 = vmatprep.mubr.f32.mxu0 0.0
    %6625 = vmatmul.mubr.f32.gmra.mrb[0].mxu0 %v6544
    %v6626 = vpop.f32.mrb[0].mxu0
    %v6627 = vadd.f32 %v6538, %v6626
    %v6628 = vpop.f32.mrb[0].mxu0
    %6629 = vmatprep.mubr.f32.mxu0 0.0
    %6630 = vmatmul.mubr.f32.gmra.mrb[0].mxu0 %v6547
    %v6631 = vpop.f32.mrb[0].mxu0
    %v6632 = vadd.f32 %v6538, %v6631
    %v6633 = vpop.f32.mrb[0].mxu0
    %6634 = vmatprep.mubr.f32.mxu0 0.0
    %6635 = vmatmul.mubr.f32.gmra.mrb[0].mxu0 %v6550
    %v6636 = vpop.f32.mrb[0].mxu0
    %v6637 = vadd.f32 %v6538, %v6636
    %v6638 = vpop.f32.mrb[0].mxu0
    %6639 = vmatprep.mubr.f32.mxu0 0.0
    %6640 = vmatmul.mubr.f32.gmra.mrb[0].mxu0 %v6553
    %v6641 = vpop.f32.mrb[0].mxu0
    %v6642 = vadd.f32 %v6538, %v6641
    %v6643 = vpop.f32.mrb[0].mxu0
    %6644 = vdwg.mxu0
    %v6645 = vmul.f32 %v6622, 1.702
    %v6646 = vmul.f32 %v6627, 1.702
    %v6647 = vmul.f32 %v6632, 1.702
    %v6648 = vmul.f32 %v6637, 1.702
    %v6649 = vmul.f32 %v6642, 1.702
    %v6650 = vxor.u32 %v6645, 2147483648
    %v6651 = vxor.u32 %v6646, 2147483648
    %v6652 = vxor.u32 %v6647, 2147483648
    %v6653 = vxor.u32 %v6648, 2147483648
    %v6654 = vxor.u32 %v6649, 2147483648
    %v6655 = vmul.f32 %v6650, 1.442695
    %v6656 = vpow.pop %v6655
    %v6657 = vmul.f32 %v6651, 1.442695
    %v6658 = vpow.pop %v6657
    %v6659 = vmul.f32 %v6652, 1.442695
    %v6660 = vpow.pop %v6659
    %v6661 = vmul.f32 %v6653, 1.442695
    %v6662 = vpow.pop %v6661
    %v6663 = vmul.f32 %v6654, 1.442695
    %v6664 = vpow.pop %v6663
    %v6665 = vadd.f32 %v6656, 1.0
    %v6666 = vadd.f32 %v6658, 1.0
    %v6667 = vadd.f32 %v6660, 1.0
    %v6668 = vadd.f32 %v6662, 1.0
    %v6669 = vadd.f32 %v6664, 1.0
    %v6670 = vrcp.pop %v6665
    %v6671 = vmul.f32 1.0, %v6670
    %v6672 = vrcp.pop %v6666
    %v6673 = vmul.f32 1.0, %v6672
    %v6674 = vrcp.pop %v6667
    %v6675 = vmul.f32 1.0, %v6674
    %v6676 = vrcp.pop %v6668
    %v6677 = vmul.f32 1.0, %v6676
    %v6678 = vrcp.pop %v6669
    %v6679 = vmul.f32 1.0, %v6678
    %v6680 = vmul.f32 %v6622, %v6671
    %v6681 = vmul.f32 %v6627, %v6673
    %v6682 = vmul.f32 %v6632, %v6675
    %v6683 = vmul.f32 %v6637, %v6677
    %v6684 = vmul.f32 %v6642, %v6679
    %s6685 = scalar_lea.vmem %s16, 128
    %v6686 = vld [vmem:[%s6685] sm:$0xff]
    %v6687 = vld [vmem:[%s6685 + $0x8] sm:$0xff]
    %v6688 = vld [vmem:[%s6685 + $0x10] sm:$0xff]
    %v6689 = vld [vmem:[%s6685 + $0x18] sm:$0xff]
    %v6690 = vld [vmem:[%s6685 + $0x20] sm:$0xff]
    %v6691 = vld [vmem:[%s6685 + $0x28] sm:$0xff]
    %v6692 = vld [vmem:[%s6685 + $0x30] sm:$0xff]
    %v6693 = vld [vmem:[%s6685 + $0x38] sm:$0xff]
    %v6694 = vld [vmem:[%s6685 + $0x40] sm:$0xff]
    %v6695 = vld [vmem:[%s6685 + $0x48] sm:$0xff]
    %v6696 = vld [vmem:[%s6685 + $0x50] sm:$0xff]
    %v6697 = vld [vmem:[%s6685 + $0x58] sm:$0xff]
    %v6698 = vld [vmem:[%s6685 + $0x60] sm:$0xff]
    %v6699 = vld [vmem:[%s6685 + $0x68] sm:$0xff]
    %v6700 = vld [vmem:[%s6685 + $0x70] sm:$0xff]
    %v6701 = vld [vmem:[%s6685 + $0x78] sm:$0xff]
    %6702 = vmatprep.subr.mxu0 0.0
    %6703 = vmatpush1.msra.mxu0 %v6686
    %6704 = vmatprep.subr.mxu0 0.0
    %6705 = vmatpush1.msra.mxu0 %v6687
    %6706 = vmatprep.subr.mxu0 0.0
    %6707 = vmatpush1.msra.mxu0 %v6688
    %6708 = vmatprep.subr.mxu0 0.0
    %6709 = vmatpush1.msra.mxu0 %v6689
    %6710 = vmatprep.subr.mxu0 0.0
    %6711 = vmatpush1.msra.mxu0 %v6690
    %6712 = vmatprep.subr.mxu0 0.0
    %6713 = vmatpush1.msra.mxu0 %v6691
    %6714 = vmatprep.subr.mxu0 0.0
    %6715 = vmatpush1.msra.mxu0 %v6692
    %6716 = vmatprep.subr.mxu0 0.0
    %6717 = vmatpush1.msra.mxu0 %v6693
    %6718 = vmatprep.subr.mxu0 0.0
    %6719 = vmatpush1.msra.mxu0 %v6694
    %6720 = vmatprep.subr.mxu0 0.0
    %6721 = vmatpush1.msra.mxu0 %v6695
    %6722 = vmatprep.subr.mxu0 0.0
    %6723 = vmatpush1.msra.mxu0 %v6696
    %6724 = vmatprep.subr.mxu0 0.0
    %6725 = vmatpush1.msra.mxu0 %v6697
    %6726 = vmatprep.subr.mxu0 0.0
    %6727 = vmatpush1.msra.mxu0 %v6698
    %6728 = vmatprep.subr.mxu0 0.0
    %6729 = vmatpush1.msra.mxu0 %v6699
    %6730 = vmatprep.subr.mxu0 0.0
    %6731 = vmatpush1.msra.mxu0 %v6700
    %6732 = vmatprep.subr.mxu0 0.0
    %6733 = vmatpush1.msra.mxu0 %v6701
    %6734 = vmatprep.subr.mxu0 0.0
    %6735 = vmatpush1.msra.mxu0 0.0
    %6736 = vmatprep.subr.mxu0 0.0
    %6737 = vmatpush1.msra.mxu0 0.0
    %6738 = vmatprep.subr.mxu0 0.0
    %6739 = vmatpush1.msra.mxu0 0.0
    %6740 = vmatprep.subr.mxu0 0.0
    %6741 = vmatpush1.msra.mxu0 0.0
    %6742 = vmatprep.subr.mxu0 0.0
    %6743 = vmatpush1.msra.mxu0 0.0
    %6744 = vmatprep.subr.mxu0 0.0
    %6745 = vmatpush1.msra.mxu0 0.0
    %6746 = vmatprep.subr.mxu0 0.0
    %6747 = vmatpush1.msra.mxu0 0.0
    %6748 = vmatprep.subr.mxu0 0.0
    %6749 = vmatpush1.msra.mxu0 0.0
    %6750 = vmatprep.subr.mxu0 0.0
    %6751 = vmatpush1.msra.mxu0 0.0
    %6752 = vmatprep.subr.mxu0 0.0
    %6753 = vmatpush1.msra.mxu0 0.0
    %6754 = vmatprep.subr.mxu0 0.0
    %6755 = vmatpush1.msra.mxu0 0.0
    %6756 = vmatprep.subr.mxu0 0.0
    %6757 = vmatpush1.msra.mxu0 0.0
    %6758 = vmatprep.subr.mxu0 0.0
    %6759 = vmatpush1.msra.mxu0 0.0
    %6760 = vmatprep.subr.mxu0 0.0
    %6761 = vmatpush1.msra.mxu0 0.0
    %6762 = vmatprep.subr.mxu0 0.0
    %6763 = vmatpush1.msra.mxu0 0.0
    %6764 = vmatprep.subr.mxu0 0.0
    %6765 = vmatpush1.msra.mxu0 0.0
    %6766 = vmatprep.mubr.f32.mxu0 0.0
    %6767 = vmatmul.mubr.f32.gmra.mrb[0].mxu0 %v6680
    %v6768 = vpop.f32.mrb[0].mxu0
    %v6769 = vadd.f32 0.0, %v6768
    %v6770 = vpop.f32.mrb[0].mxu0
    %6771 = vmatprep.mubr.f32.mxu0 0.0
    %6772 = vmatmul.mubr.f32.gmra.mrb[0].mxu0 %v6681
    %v6773 = vpop.f32.mrb[0].mxu0
    %v6774 = vpop.f32.mrb[0].mxu0
    %6775 = vmatprep.mubr.f32.mxu0 0.0
    %6776 = vmatmul.mubr.f32.gmra.mrb[0].mxu0 %v6682
    %v6777 = vpop.f32.mrb[0].mxu0
    %v6778 = vadd.f32 0.0, %v6777
    %v6779 = vpop.f32.mrb[0].mxu0
    %6780 = vmatprep.mubr.f32.mxu0 0.0
    %6781 = vmatmul.mubr.f32.gmra.mrb[0].mxu0 %v6683
    %v6782 = vpop.f32.mrb[0].mxu0
    %v6783 = vpop.f32.mrb[0].mxu0
    %6784 = vmatprep.mubr.f32.mxu0 0.0
    %6785 = vmatmul.mubr.f32.gmra.mrb[0].mxu0 %v6684
    %v6786 = vpop.f32.mrb[0].mxu0
    %v6787 = vpop.f32.mrb[0].mxu0
    %6788 = vdwg.mxu0
    %v6789 = vadd.f32 %v6431, %v6769
    %v6790 = vadd.f32 %v6433, %v6778
    %s6791 = scalar_lea.vmem %s17, 1
    %v6792 = vld [vmem:[%s6791] sm:$0x1]
    %v6794 = vlaneseq
    %v6795 = vshrl.u32 %v6794, 7
    %v6796 = vsub.s32 0, %v6795
    %v6797 = vrot.slane %v6792, %v6796
    %v6799 = vadd.f32 %v6789, %v6797
    %v6800 = vadd.f32 %v6790, %v6797
    %v6801 = vsel %vm225, %v6799, %v6800
    %v6802 = vld [vmem:[%s18] sm:$0x1]
    %v6803 = vld [vmem:[%s19] sm:$0x1]
    %v6804 = vsel %vm255, %v6801, 0.0
    %6805 = vadd.xlane.f32.xlu0 %v6804
    %v6806 = vpop.xlane.xlu0 %6805
    %v6807 = vmul.f32 %v6806, %v259
    %v6808 = vsub.f32 %v6801, %v6807
    %v6809 = vmul.f32 %v6808, %v6808
    %v6810 = vsel %vm255, %v6809, 0.0
    %6811 = vadd.xlane.f32.xlu0 %v6810
    %v6812 = vpop.xlane.xlu0 %6811
    %v6813 = vmul.f32 %v6812, %v259
    %v6814 = vadd.f32 %v6813, 1e-05
    %v6815 = vrsqrt.pop %v6814
    %v6816 = vmul.f32 %v6808, %v6815
    %v6818 = vlaneseq
    %v6819 = vshrl.u32 %v6818, 7
    %v6820 = vsub.s32 0, %v6819
    %v6821 = vrot.slane %v6802, %v6820
    %v6823 = vmul.f32 %v6816, %v6821
    %v6825 = vlaneseq
    %v6826 = vshrl.u32 %v6825, 7
    %v6827 = vsub.s32 0, %v6826
    %v6828 = vrot.slane %v6803, %v6827
    %v6830 = vadd.f32 %v6823, %v6828
    %v6831 = vld [vmem:[%s20] sm:$0xff]
    %v6832 = vld [vmem:[%s20 + $0x8] sm:$0xff]
    %v6833 = vld [vmem:[%s20 + $0x10] sm:$0xff]
    %v6834 = vld [vmem:[%s20 + $0x18] sm:$0xff]
    %v6836 = vsel %vm242, %v6830, 0
    %6838 = vmatprep.subr.mxu0 0.0
    %6839 = vmatpush1.msra.mxu0 %v6831
    %6840 = vmatprep.subr.mxu0 0.0
    %6841 = vmatpush1.msra.mxu0 %v6832
    %6842 = vmatprep.subr.mxu0 0.0
    %6843 = vmatpush1.msra.mxu0 %v6833
    %6844 = vmatprep.subr.mxu0 0.0
    %6845 = vmatpush1.msra.mxu0 %v6834
    %6846 = vmatprep.subr.mxu0 0.0
    %6847 = vmatpush1.msra.mxu0 0.0
    %6848 = vmatprep.subr.mxu0 0.0
    %6849 = vmatpush1.msra.mxu0 0.0
    %6850 = vmatprep.subr.mxu0 0.0
    %6851 = vmatpush1.msra.mxu0 0.0
    %6852 = vmatprep.subr.mxu0 0.0
    %6853 = vmatpush1.msra.mxu0 0.0
    %6854 = vmatprep.subr.mxu0 0.0
    %6855 = vmatpush1.msra.mxu0 0.0
    %6856 = vmatprep.subr.mxu0 0.0
    %6857 = vmatpush1.msra.mxu0 0.0
    %6858 = vmatprep.subr.mxu0 0.0
    %6859 = vmatpush1.msra.mxu0 0.0
    %6860 = vmatprep.subr.mxu0 0.0
    %6861 = vmatpush1.msra.mxu0 0.0
    %6862 = vmatprep.subr.mxu0 0.0
    %6863 = vmatpush1.msra.mxu0 0.0
    %6864 = vmatprep.subr.mxu0 0.0
    %6865 = vmatpush1.msra.mxu0 0.0
    %6866 = vmatprep.subr.mxu0 0.0
    %6867 = vmatpush1.msra.mxu0 0.0
    %6868 = vmatprep.subr.mxu0 0.0
    %6869 = vmatpush1.msra.mxu0 0.0
    %6870 = vmatprep.subr.mxu0 0.0
    %6871 = vmatpush1.msra.mxu0 0.0
    %6872 = vmatprep.subr.mxu0 0.0
    %6873 = vmatpush1.msra.mxu0 0.0
    %6874 = vmatprep.subr.mxu0 0.0
    %6875 = vmatpush1.msra.mxu0 0.0
    %6876 = vmatprep.subr.mxu0 0.0
    %6877 = vmatpush1.msra.mxu0 0.0
    %6878 = vmatprep.subr.mxu0 0.0
    %6879 = vmatpush1.msra.mxu0 0.0
    %6880 = vmatprep.subr.mxu0 0.0
    %6881 = vmatpush1.msra.mxu0 0.0
    %6882 = vmatprep.subr.mxu0 0.0
    %6883 = vmatpush1.msra.mxu0 0.0
    %6884 = vmatprep.subr.mxu0 0.0
    %6885 = vmatpush1.msra.mxu0 0.0
    %6886 = vmatprep.subr.mxu0 0.0
    %6887 = vmatpush1.msra.mxu0 0.0
    %6888 = vmatprep.subr.mxu0 0.0
    %6889 = vmatpush1.msra.mxu0 0.0
    %6890 = vmatprep.subr.mxu0 0.0
    %6891 = vmatpush1.msra.mxu0 0.0
    %6892 = vmatprep.subr.mxu0 0.0
    %6893 = vmatpush1.msra.mxu0 0.0
    %6894 = vmatprep.subr.mxu0 0.0
    %6895 = vmatpush1.msra.mxu0 0.0
    %6896 = vmatprep.subr.mxu0 0.0
    %6897 = vmatpush1.msra.mxu0 0.0
    %6898 = vmatprep.subr.mxu0 0.0
    %6899 = vmatpush1.msra.mxu0 0.0
    %6900 = vmatprep.subr.mxu0 0.0
    %6901 = vmatpush1.msra.mxu0 0.0
    %6902 = vmatprep.mubr.f32.mxu0 0.0
    %6903 = vmatmul.mubr.f32.gmra.mrb[0].mxu0 %v6836
    %v6904 = vpop.f32.mrb[0].mxu0
    %v6905 = vadd.f32 0.0, %v6904
    %v6906 = vpop.f32.mrb[0].mxu0
    %6907 = vdwg.mxu0
    %vm6908 = vcmask 123904
    %6909 = vst.msk [vmem:[#allocation2] sm:$0x3] %vm6908, %v6905
    // Predicated region
    $region86: #{vision_transformer_forward.1} parent=1 // pred_check
      _
    $region87: #{vision_transformer_forward.1} parent=1 // pred_check_branch
      %6911 = sbr.rel (0) target = $region89
    $region88: #{vision_transformer_forward.1} parent=1 // pred_region
      %s6913 = ssub.s32 32, 32
      %6914 = vsyncadd [#allocation3], %s6913
      %s6916 = sshll.u32 [#allocation2], 4
      %s6917 = int_to_ptr.vmem [resolvable:$true] %s6916
      %6919 = dma.vmem_to_hbm [thread:$0]  %s6917, 32, %s21, [#allocation3]
    $region89: #{vision_transformer_forward.1} parent=1 // pred_fallthru
      _
    // Predicated region
    $region90: #{vision_transformer_forward.1} parent=1 // pred_check
      _
    $region91: #{vision_transformer_forward.1} parent=1 // pred_check_branch
      %6921 = sbr.rel (0) target = $region93
    $region92: #{vision_transformer_forward.1} parent=1 // pred_region
      %6922 = dma.done [#allocation3], 32
    $region93: #{vision_transformer_forward.1} parent=1 // pred_fallthru
      _
    %6923 = vsyncpa [#allocation3], 1

</llo_original>
